<compile_context>
chip_gen: v5e
topology: v5e:2x2
jax: 0.10.0
libtpu: 0.0.40
codegen_flags: <defaults>
</compile_context>

<pallas_src>
import functools

import jax
import jax.numpy as jnp
from jax.experimental import pallas as pl
from jax.experimental.pallas import tpu as pltpu


def _rup(x, m):
    return ((int(x) + m - 1) // m) * m


def _pick_tile(total, prefs):
    for t in prefs:
        if t <= total and total % t == 0:
            return t
    return total


# ----------------------------------------------------------------------------
# Kernel 1: SplineConv message transform
#   msg[e, :] = sum_s basis[e, s] * (x_src[e, :] @ W[s])
# grid = (Cout tiles, E tiles); taps and Cin are reduced inside the kernel so
# the K2x feature blow-up never touches HBM.  W tile stays VMEM-resident
# across the inner (E) grid axis.
# ----------------------------------------------------------------------------
def _spline_msg_kernel(b_ref, x_ref, w_ref, o_ref, *, k2):
    o_ref[...] = jnp.zeros_like(o_ref)
    for s in range(k2):                       # static unroll: 25 (or 1) taps
        xs = (x_ref[...] * b_ref[:, s:s + 1]).astype(jnp.bfloat16)
        o_ref[...] += jnp.dot(xs, w_ref[s], preferred_element_type=jnp.float32)


def pallas_spline_message(basis, x_src, w_p, tn):
    """basis: (E, K2) f32; x_src: (E, Cin) f32; w_p: (K2, Cin_p, Cout_p) bf16."""
    E, k2 = basis.shape
    cin = x_src.shape[1]
    _, cin_p, cout_p = w_p.shape
    te = 256 if E >= 256 else _rup(max(E, 1), 8)
    ep = _rup(max(E, 1), te)
    tn = min(tn, cout_p)

    b_pad = jnp.zeros((ep, k2), jnp.float32).at[:E].set(basis)
    x_pad = jnp.zeros((ep, cin_p), jnp.float32).at[:E, :cin].set(x_src)

    out = pl.pallas_call(
        functools.partial(_spline_msg_kernel, k2=k2),
        out_shape=jax.ShapeDtypeStruct((ep, cout_p), jnp.float32),
        grid_spec=pltpu.PrefetchScalarGridSpec(
            num_scalar_prefetch=0,
            grid=(cout_p // tn, ep // te),     # E innermost -> W tile resident
            in_specs=[
                pl.BlockSpec((te, k2), lambda j, i: (i, 0)),
                pl.BlockSpec((te, cin_p), lambda j, i: (i, 0)),
                pl.BlockSpec((k2, cin_p, tn), lambda j, i: (0, 0, j)),
            ],
            out_specs=pl.BlockSpec((te, tn), lambda j, i: (i, j)),
        ),
        compiler_params=pltpu.CompilerParams(
            dimension_semantics=("parallel", "parallel")),
    )(b_pad, x_pad, w_p)
    return out[:E]                             # (E, Cout_p); padded cols are 0


# ----------------------------------------------------------------------------
# Kernel 2: SplineConv combine = mean-aggregated messages + root transform
#           (+ folded BN bias, + optional fused ELU)
#   y = agg * inv_deg + x @ root + bias ; optionally ELU
# ----------------------------------------------------------------------------
def _spline_combine_kernel(agg_ref, inv_ref, x_ref, r_ref, b_ref, o_ref,
                           *, apply_elu):
    y = agg_ref[...] * inv_ref[...]
    y += jnp.dot(x_ref[...].astype(jnp.bfloat16), r_ref[...],
                 preferred_element_type=jnp.float32)
    y += b_ref[...]
    if apply_elu:
        y = jnp.where(y > 0, y, jnp.expm1(y))
    o_ref[...] = y


def pallas_spline_combine(agg, inv_deg, x, root_p, bias_p, apply_elu):
    """agg: (N, Cout_p) f32; inv_deg: (N,) f32; x: (N, Cin) f32;
       root_p: (Cin_p, Cout_p) bf16; bias_p: (1, Cout_p) f32."""
    N, cout_p = agg.shape
    cin = x.shape[1]
    cin_p = root_p.shape[0]
    tr = 512 if N >= 512 else _rup(max(N, 1), 8)
    np_ = _rup(max(N, 1), tr)

    agg_pad = jnp.zeros((np_, cout_p), jnp.float32).at[:N].set(agg)
    inv_pad = jnp.zeros((np_, 1), jnp.float32).at[:N, 0].set(inv_deg)
    x_pad = jnp.zeros((np_, cin_p), jnp.float32).at[:N, :cin].set(x)

    out = pl.pallas_call(
        functools.partial(_spline_combine_kernel, apply_elu=apply_elu),
        out_shape=jax.ShapeDtypeStruct((np_, cout_p), jnp.float32),
        grid_spec=pltpu.PrefetchScalarGridSpec(
            num_scalar_prefetch=0,
            grid=(np_ // tr,),
            in_specs=[
                pl.BlockSpec((tr, cout_p), lambda i: (i, 0)),
                pl.BlockSpec((tr, 1), lambda i: (i, 0)),
                pl.BlockSpec((tr, cin_p), lambda i: (i, 0)),
                pl.BlockSpec((cin_p, cout_p), lambda i: (0, 0)),
                pl.BlockSpec((1, cout_p), lambda i: (0, 0)),
            ],
            out_specs=pl.BlockSpec((tr, cout_p), lambda i: (i, 0)),
        ),
        compiler_params=pltpu.CompilerParams(
            dimension_semantics=("parallel",)),
    )(agg_pad, inv_pad, x_pad, root_p, bias_p)
    return out[:N]


# ----------------------------------------------------------------------------
# Kernel 3: dense (fc) matmul with bias + optional fused ELU epilogue.
# M stays at the real batch (rounded to 8 sublanes), large K/N panels.
# ----------------------------------------------------------------------------
def _dense_kernel(a_ref, w_ref, b_ref, o_ref, acc_ref, *, apply_elu):
    k = pl.program_id(2)

    @pl.when(k == 0)
    def _():
        acc_ref[...] = jnp.zeros_like(acc_ref)

    acc_ref[...] += jnp.dot(a_ref[...].astype(jnp.bfloat16), w_ref[...],
                            preferred_element_type=jnp.float32)

    @pl.when(k == pl.num_programs(2) - 1)
    def _():
        y = acc_ref[...] + b_ref[...]
        if apply_elu:
            y = jnp.where(y > 0, y, jnp.expm1(y))
        o_ref[...] = y


def pallas_dense(a, w_p, bias_p, *, apply_elu=False):
    """a: (M, K) f32; w_p: (Kp, Np) bf16 pre-padded; bias_p: (1, Np) f32."""
    M, K = a.shape
    Kp, Np = w_p.shape
    tm = _rup(max(M, 1), 8)
    tn = _pick_tile(Np, (512, 256, 128))
    tk = _pick_tile(Kp, (2048, 1024, 512, 256, 128))
    a_pad = jnp.zeros((tm, Kp), jnp.float32).at[:M, :K].set(a)

    out = pl.pallas_call(
        functools.partial(_dense_kernel, apply_elu=apply_elu),
        out_shape=jax.ShapeDtypeStruct((tm, Np), jnp.float32),
        grid_spec=pltpu.PrefetchScalarGridSpec(
            num_scalar_prefetch=0,
            grid=(1, Np // tn, Kp // tk),
            in_specs=[
                pl.BlockSpec((tm, tk), lambda i, j, k: (i, k)),
                pl.BlockSpec((tk, tn), lambda i, j, k: (k, j)),
                pl.BlockSpec((1, tn), lambda i, j, k: (0, j)),
            ],
            out_specs=pl.BlockSpec((tm, tn), lambda i, j, k: (i, j)),
            scratch_shapes=[pltpu.VMEM((tm, tn), jnp.float32)],
        ),
        compiler_params=pltpu.CompilerParams(
            dimension_semantics=("parallel", "parallel", "arbitrary")),
    )(a_pad, w_p, bias_p)
    return out[:M]


# ----------------------------------------------------------------------------
# Kernel 4: residual add + ELU (row-tiled elementwise)
# ----------------------------------------------------------------------------
def _add_elu_kernel(a_ref, b_ref, o_ref):
    y = a_ref[...] + b_ref[...]
    o_ref[...] = jnp.where(y > 0, y, jnp.expm1(y))


def pallas_add_elu(a, b):
    M, C = a.shape
    cp = _rup(C, 128)
    tr = 512 if M >= 512 else _rup(max(M, 1), 8)
    mp = _rup(max(M, 1), tr)
    a_pad = jnp.zeros((mp, cp), jnp.float32).at[:M, :C].set(a)
    b_pad = jnp.zeros((mp, cp), jnp.float32).at[:M, :C].set(b)
    out = pl.pallas_call(
        _add_elu_kernel,
        out_shape=jax.ShapeDtypeStruct((mp, cp), jnp.float32),
        grid_spec=pltpu.PrefetchScalarGridSpec(
            num_scalar_prefetch=0,
            grid=(mp // tr,),
            in_specs=[pl.BlockSpec((tr, cp), lambda i: (i, 0)),
                      pl.BlockSpec((tr, cp), lambda i: (i, 0))],
            out_specs=pl.BlockSpec((tr, cp), lambda i: (i, 0)),
        ),
        compiler_params=pltpu.CompilerParams(dimension_semantics=("parallel",)),
    )(a_pad, b_pad)
    return out[:M, :C]


# ----------------------------------------------------------------------------
# Kernel 5: log_softmax over classes (tiny: batch x n_class)
# ----------------------------------------------------------------------------
def _log_softmax_kernel(x_ref, o_ref):
    x = x_ref[...]
    m = jnp.max(x, axis=-1, keepdims=True)
    s = x - m
    lse = jnp.log(jnp.sum(jnp.exp(s), axis=-1, keepdims=True))
    o_ref[...] = s - lse


def pallas_log_softmax(x):
    M, C = x.shape
    mp, cp = _rup(max(M, 1), 8), _rup(C, 128)
    x_pad = jnp.full((mp, cp), -1e30, jnp.float32).at[:M, :C].set(x)
    out = pl.pallas_call(
        _log_softmax_kernel,
        out_shape=jax.ShapeDtypeStruct((mp, cp), jnp.float32),
    )(x_pad)
    return out[:M, :C]


# ----------------------------------------------------------------------------
# SplineConv (degree-1 open B-splines, dim=2)
# ----------------------------------------------------------------------------
def spline_basis_dense(pseudo, K):
    """Dense (E, K*K) degree-1 open-spline basis over 2-D pseudo coords."""
    E = pseudo.shape[0]
    if K == 1:
        return jnp.ones((E, 1), jnp.float32)
    u = jnp.clip(pseudo, 0.0, 1.0) * (K - 1)
    lo = jnp.floor(u)
    frac = (u - lo).astype(jnp.float32)
    lo_i = jnp.clip(lo.astype(jnp.int32), 0, K - 1)
    hi_i = jnp.clip(lo_i + 1, 0, K - 1)
    B = jnp.zeros((E, K * K), jnp.float32)
    rows = jnp.arange(E)
    for b0 in (0, 1):
        for b1 in (0, 1):
            w0 = frac[:, 0] if b0 else (1.0 - frac[:, 0])
            w1 = frac[:, 1] if b1 else (1.0 - frac[:, 1])
            i0 = hi_i[:, 0] if b0 else lo_i[:, 0]
            i1 = hi_i[:, 1] if b1 else lo_i[:, 1]
            B = B.at[rows, i0 * K + i1].add(w0 * w1)
    return B


def spline_conv(x, edge_index, edge_attr, p, kernel_size, apply_elu):
    """out_i = mean_j sum_s B_s(e_ji) x_j W_s + x_i R + b  (aggr='mean'),
       with inference BatchNorm folded into W/R/b, optional fused ELU."""
    N = x.shape[0]
    cout = p["out_channels"]
    cout_p = p["bias"].shape[1]
    E = int(edge_index.shape[1])
    if E > 0:
        src, dst = edge_index[0], edge_index[1]
        basis = spline_basis_dense(edge_attr, kernel_size)            # (E, K2)
        msg = pallas_spline_message(basis, x[src], p["weight"], p["tn"])
        agg = jax.ops.segment_sum(msg, dst, num_segments=N)           # (N, Cout_p)
        deg = jax.ops.segment_sum(jnp.ones((E,), jnp.float32), dst, num_segments=N)
        inv_deg = 1.0 / jnp.maximum(deg, 1.0)
    else:
        agg = jnp.zeros((N, cout_p), jnp.float32)
        inv_deg = jnp.zeros((N,), jnp.float32)
    out = pallas_spline_combine(agg, inv_deg, x, p["root"], p["bias"], apply_elu)
    return out[:, :cout]


def residual_block(x, edge_index, edge_attr, p):
    h = spline_conv(x, edge_index, edge_attr, p["left_conv1"], 5, apply_elu=True)
    h = spline_conv(h, edge_index, edge_attr, p["left_conv2"], 5, apply_elu=False)
    s = spline_conv(x, edge_index, edge_attr, p["shortcut_conv"], 1, apply_elu=False)
    return pallas_add_elu(h, s)


# ----------------------------------------------------------------------------
# Graph glue: voxel_grid / max_pool / Cartesian / max_pool_x (eager JAX)
# ----------------------------------------------------------------------------
def cartesian_attr(pos, edge_index):
    """torch_geometric.transforms.Cartesian(cat=False, norm=True)."""
    if edge_index.shape[1] == 0:
        return jnp.zeros((0, 2), jnp.float32)
    row, col = edge_index[0], edge_index[1]
    cart = pos[row] - pos[col]
    m = jnp.maximum(jnp.max(jnp.abs(cart)), 1e-9)
    return cart / (2.0 * m) + 0.5


def voxel_grid(pos, batch, size):
    size = jnp.asarray(size, jnp.float32)
    start = jnp.min(pos, axis=0)
    end = jnp.max(pos, axis=0)
    num = jnp.floor((end - start) / size).astype(jnp.int32) + 1
    idx = jnp.clip(jnp.floor((pos - start) / size).astype(jnp.int32), 0, num - 1)
    local = idx[:, 0] * num[1] + idx[:, 1]
    cluster = batch.astype(jnp.int32) * (num[0] * num[1]) + local
    return cluster, local


def max_pool_graph(cluster, x, pos, batch, edge_index):
    """torch_geometric.nn.max_pool with transform=Cartesian(cat=False)."""
    uniq, inv = jnp.unique(cluster, return_inverse=True)
    n_new = int(uniq.shape[0])
    x_new = jax.ops.segment_max(x, inv, num_segments=n_new)
    cnt = jax.ops.segment_sum(jnp.ones((pos.shape[0],), jnp.float32), inv,
                              num_segments=n_new)
    pos_new = jax.ops.segment_sum(pos, inv, num_segments=n_new) / cnt[:, None]
    batch_new = jax.ops.segment_max(batch, inv, num_segments=n_new)
    src, dst = inv[edge_index[0]], inv[edge_index[1]]
    keep = src != dst
    src, dst = src[keep], dst[keep]
    key = src * n_new + dst
    key_u = jnp.unique(key)                              # coalesce duplicates
    ei_new = jnp.stack([key_u // n_new, key_u % n_new], axis=0).astype(jnp.int32)
    ea_new = cartesian_attr(pos_new, ei_new)
    return x_new, pos_new, batch_new.astype(jnp.int32), ei_new, ea_new


def max_pool_x_fixed(cluster_local, x, batch, size):
    # TODO(synk): torch_geometric's max_pool_x addresses clusters by raw voxel
    # id; here clusters are batch*size + in-graph voxel index, so slot ordering
    # feeding fc1 may differ from the PyTorch reference.
    batch_size = int(jnp.max(batch)) + 1
    cl = jnp.clip(cluster_local, 0, size - 1)
    idx = batch.astype(jnp.int32) * size + cl
    n_out = batch_size * size
    out = jax.ops.segment_max(x, idx, num_segments=n_out)
    cnt = jax.ops.segment_sum(jnp.ones((x.shape[0],), jnp.float32), idx,
                              num_segments=n_out)
    return jnp.where(cnt[:, None] > 0, out, 0.0)


# ----------------------------------------------------------------------------
# Full forward pass of Net_n_caltech101 (eval-mode semantics)
# ----------------------------------------------------------------------------
def forward(params, x, pos, batch, edge_index, edge_attr):
    x = spline_conv(x, edge_index, edge_attr, params["conv0"], 5, apply_elu=True)

    cluster, _ = voxel_grid(pos, batch, (4.0, 3.0))
    x, pos, batch, edge_index, edge_attr = max_pool_graph(
        cluster, x, pos, batch, edge_index)
    x = residual_block(x, edge_index, edge_attr, params["conv1"])

    cluster, _ = voxel_grid(pos, batch, (16.0, 12.0))
    x, pos, batch, edge_index, edge_attr = max_pool_graph(
        cluster, x, pos, batch, edge_index)
    x = residual_block(x, edge_index, edge_attr, params["conv2"])

    cluster, _ = voxel_grid(pos, batch, (30.0, 23.0))
    x, pos, batch, edge_index, edge_attr = max_pool_graph(
        cluster, x, pos, batch, edge_index)
    x = residual_block(x, edge_index, edge_attr, params["conv3"])

    _, local = voxel_grid(pos, batch, (60.0, 45.0))
    xp = max_pool_x_fixed(local, x, batch, 16)            # (B*16, 512)
    xf = xp.reshape(-1, 512 * 16)                         # (B, 8192)

    h = pallas_dense(xf, params["fc1"]["w"], params["fc1"]["b"], apply_elu=True)
    # BatchNorm1d(1024) is folded into fc2; Dropout() in eval mode is identity.
    logits = pallas_dense(h, params["fc2"]["w"], params["fc2"]["b"], apply_elu=False)
    return pallas_log_softmax(logits[:, :params["n_class"]])


# ----------------------------------------------------------------------------
# Parameter initialisation (raw, PyTorch-style) + one-shot kernel-ready prep
# ----------------------------------------------------------------------------
def init_params(key, n_class=101):
    keys = iter(jax.random.split(key, 256))

    def nrm(shape, scale):
        return jax.random.normal(next(keys), shape, jnp.float32) * scale

    def spline_p(cin, cout, K):
        K2 = K * K
        return dict(weight=nrm((K2, cin, cout), (1.0 / (K2 * cin)) ** 0.5),
                    root=nrm((cin, cout), (1.0 / cin) ** 0.5),
                    bias=nrm((cout,), 0.01))

    def bn_p(c):
        return dict(weight=1.0 + 0.1 * nrm((c,), 1.0),
                    bias=0.1 * nrm((c,), 1.0),
                    mean=0.05 * nrm((c,), 1.0),
                    var=1.0 + 0.1 * jnp.abs(nrm((c,), 1.0)))

    def res_p(cin, cout):
        return dict(left_conv1=spline_p(cin, cout, 5), left_bn1=bn_p(cout),
                    left_conv2=spline_p(cout, cout, 5), left_bn2=bn_p(cout),
                    shortcut_conv=spline_p(cin, cout, 1), shortcut_bn=bn_p(cout))

    return dict(
        conv0=spline_p(1, 64, 5), bn1=bn_p(64),
        conv1=res_p(64, 128), conv2=res_p(128, 256), conv3=res_p(256, 512),
        fc1=dict(w=nrm((512 * 16, 1024), (1.0 / (512 * 16)) ** 0.5),
                 b=nrm((1024,), 0.01)),
        bn=bn_p(1024),
        fc2=dict(w=nrm((1024, n_class), (1.0 / 1024) ** 0.5),
                 b=nrm((n_class,), 0.01)),
    )


def _bn_fold(bn, eps=1e-5):
    a = bn["weight"] / jnp.sqrt(bn["var"] + eps)
    c = bn["bias"] - a * bn["mean"]
    return a, c


def _prep_spline(conv, bn):
    """Fold inference BN into the conv, pad to MXU-friendly shapes, cast bf16."""
    a, c = _bn_fold(bn)
    W = conv["weight"] * a                     # (K2, Cin, Cout) * (Cout,)
    root = conv["root"] * a
    bias = a * conv["bias"] + c
    k2, cin, cout = conv["weight"].shape
    cin_p, cout_p = _rup(max(cin, 8), 8), _rup(cout, 128)
    w_p = jnp.zeros((k2, cin_p, cout_p), jnp.bfloat16).at[:, :cin, :cout].set(
        W.astype(jnp.bfloat16))
    root_p = jnp.zeros((cin_p, cout_p), jnp.bfloat16).at[:cin, :cout].set(
        root.astype(jnp.bfloat16))
    bias_p = jnp.zeros((1, cout_p), jnp.float32).at[0, :cout].set(bias)
    return dict(weight=w_p, root=root_p, bias=bias_p,
                out_channels=cout, tn=min(256, cout_p))


def _prep_fc(w, b):
    K, N = w.shape
    Kp, Np = _rup(K, 256), _rup(N, 128)
    w_p = jnp.zeros((Kp, Np), jnp.bfloat16).at[:K, :N].set(w.astype(jnp.bfloat16))
    b_p = jnp.zeros((1, Np), jnp.float32).at[0, :N].set(b.astype(jnp.float32))
    return dict(w=w_p, b=b_p)


def prepare_params(raw, n_class=101):
    def res(p):
        return dict(
            left_conv1=_prep_spline(p["left_conv1"], p["left_bn1"]),
            left_conv2=_prep_spline(p["left_conv2"], p["left_bn2"]),
            shortcut_conv=_prep_spline(p["shortcut_conv"], p["shortcut_bn"]))

    # Fold BatchNorm1d(1024) (applied after fc1+ELU) into fc2's weights.
    a, c = _bn_fold(raw["bn"])
    fc2_w = raw["fc2"]["w"] * a[:, None]
    fc2_b = raw["fc2"]["b"] + c @ raw["fc2"]["w"]
    return dict(
        conv0=_prep_spline(raw["conv0"], raw["bn1"]),
        conv1=res(raw["conv1"]), conv2=res(raw["conv2"]), conv3=res(raw["conv3"]),
        fc1=_prep_fc(raw["fc1"]["w"], raw["fc1"]["b"]),
        fc2=_prep_fc(fc2_w, fc2_b),
        n_class=n_class)


# ----------------------------------------------------------------------------
if __name__ == "__main__":
    key = jax.random.PRNGKey(0)
    k_pos, k_edge, k_par = jax.random.split(key, 3)

    B = 2                  # graphs in the batch
    n_per = 32             # nodes per graph
    N = B * n_per
    deg = 3                # out-edges per node

    pos = jax.random.uniform(k_pos, (N, 2), jnp.float32) * jnp.array(
        [240.0, 180.0], jnp.float32)                        # N-Caltech-like frame
    batch = jnp.repeat(jnp.arange(B, dtype=jnp.int32), n_per)
    x = jnp.ones((N, 1), jnp.float32)                        # event polarity feature

    src = jnp.repeat(jnp.arange(N, dtype=jnp.int32), deg)
    offs = jax.random.randint(k_edge, (N * deg,), 1, n_per, jnp.int32)
    dst = (src // n_per) * n_per + ((src % n_per) + offs) % n_per
    edge_index = jnp.stack([src, dst], axis=0).astype(jnp.int32)
    edge_attr = cartesian_attr(pos, edge_index)              # pseudo coords in [0,1]

    raw_params = init_params(k_par, n_class=101)
    params = prepare_params(raw_params, n_class=101)         # fold BN, pad, bf16

    out = forward(params, x, pos, batch, edge_index, edge_attr)
    out = jax.block_until_ready(out)
    assert out.shape == (B, 101)
    assert bool(jnp.all(jnp.isfinite(out)))
    print("KERNEL_OK")
</pallas_src>

<mosaic_0001>
module attributes {stable_mosaic.version = 11 : i64} {
  func.func @_spline_msg_kernel(%arg0: i32, %arg1: i32, %arg2: memref<192x25xf32, #tpu.memory_space<vmem>>, %arg3: memref<192x8xf32, #tpu.memory_space<vmem>>, %arg4: memref<25x8x128xbf16, #tpu.memory_space<vmem>>, %arg5: memref<192x128xf32, #tpu.memory_space<vmem>>) attributes {dimension_semantics = [#tpu.dimension_semantics<parallel>, #tpu.dimension_semantics<parallel>], iteration_bounds = array<i64: 1, 1>, scalar_prefetch = 0 : i64, scratch_operands = 0 : i64, tpu.core_type = #tpu.core_type<tc>, window_params = [{transform_indices = @transform_0, window_bounds = array<i64: 192, 25>}, {transform_indices = @transform_1, window_bounds = array<i64: 192, 8>}, {transform_indices = @transform_2, window_bounds = array<i64: 25, 8, 128>}, {transform_indices = @transform_3, window_bounds = array<i64: 192, 128>}]} {
    %cst = arith.constant 0.000000e+00 : f32
    %0 = vector.broadcast %cst : f32 to vector<192x128xf32>
    %c0 = arith.constant 0 : index
    %c0_0 = arith.constant 0 : index
    %1 = vector.load %arg5[%c0, %c0_0] : memref<192x128xf32, #tpu.memory_space<vmem>>, vector<192x128xf32>
    tpu.vector_store %arg5[%c0, %c0_0], %0 {strides = array<i32>} : memref<192x128xf32, #tpu.memory_space<vmem>>, vector<192x128xf32>,
    %c0_1 = arith.constant 0 : index
    %c0_2 = arith.constant 0 : index
    %2 = vector.load %arg3[%c0_1, %c0_2] : memref<192x8xf32, #tpu.memory_space<vmem>>, vector<192x8xf32>
    %c0_3 = arith.constant 0 : index
    %c0_4 = arith.constant 0 : index
    %3 = vector.load %arg2[%c0_3, %c0_4] : memref<192x25xf32, #tpu.memory_space<vmem>>, vector<192x1xf32>
    %4 = vector.broadcast %3 : vector<192x1xf32> to vector<192x8xf32>
    %5 = arith.mulf %2, %4 : vector<192x8xf32>
    %6 = arith.truncf %5 : vector<192x8xf32> to vector<192x8xbf16>
    %c0_5 = arith.constant 0 : index
    %c0_6 = arith.constant 0 : index
    %7 = vector.load %arg5[%c0_5, %c0_6] : memref<192x128xf32, #tpu.memory_space<vmem>>, vector<192x128xf32>
    %c0_7 = arith.constant 0 : index
    %c0_8 = arith.constant 0 : index
    %c0_9 = arith.constant 0 : index
    %8 = vector.load %arg4[%c0_7, %c0_8, %c0_9] : memref<25x8x128xbf16, #tpu.memory_space<vmem>>, vector<1x8x128xbf16>
    %9 = vector.shape_cast %8 : vector<1x8x128xbf16> to vector<8x128xbf16>
    %cst_10 = arith.constant dense<0.000000e+00> : vector<192x128xf32>
    %10 = tpu.matmul %6, %9, %cst_10 {dimension_numbers = #tpu.dot_dimension_numbers<[1], [0], [0], [1], [0, 0, 1, 1], [], []>} : vector<192x8xbf16>, vector<8x128xbf16>, vector<192x128xf32> -> vector<192x128xf32>
    %11 = arith.addf %7, %10 : vector<192x128xf32>
    %c0_11 = arith.constant 0 : index
    %c0_12 = arith.constant 0 : index
    %12 = vector.load %arg5[%c0_11, %c0_12] : memref<192x128xf32, #tpu.memory_space<vmem>>, vector<192x128xf32>
    tpu.vector_store %arg5[%c0_11, %c0_12], %11 {strides = array<i32>} : memref<192x128xf32, #tpu.memory_space<vmem>>, vector<192x128xf32>,
    %c0_13 = arith.constant 0 : index
    %c0_14 = arith.constant 0 : index
    %13 = vector.load %arg3[%c0_13, %c0_14] : memref<192x8xf32, #tpu.memory_space<vmem>>, vector<192x8xf32>
    %c0_15 = arith.constant 0 : index
    %c1 = arith.constant 1 : index
    %14 = vector.load %arg2[%c0_15, %c1] : memref<192x25xf32, #tpu.memory_space<vmem>>, vector<192x1xf32>
    %15 = vector.broadcast %14 : vector<192x1xf32> to vector<192x8xf32>
    %16 = arith.mulf %13, %15 : vector<192x8xf32>
    %17 = arith.truncf %16 : vector<192x8xf32> to vector<192x8xbf16>
    %c0_16 = arith.constant 0 : index
    %c0_17 = arith.constant 0 : index
    %18 = vector.load %arg5[%c0_16, %c0_17] : memref<192x128xf32, #tpu.memory_space<vmem>>, vector<192x128xf32>
    %c1_18 = arith.constant 1 : index
    %c0_19 = arith.constant 0 : index
    %c0_20 = arith.constant 0 : index
    %19 = vector.load %arg4[%c1_18, %c0_19, %c0_20] : memref<25x8x128xbf16, #tpu.memory_space<vmem>>, vector<1x8x128xbf16>
    %20 = vector.shape_cast %19 : vector<1x8x128xbf16> to vector<8x128xbf16>
    %cst_21 = arith.constant dense<0.000000e+00> : vector<192x128xf32>
    %21 = tpu.matmul %17, %20, %cst_21 {dimension_numbers = #tpu.dot_dimension_numbers<[1], [0], [0], [1], [0, 0, 1, 1], [], []>} : vector<192x8xbf16>, vector<8x128xbf16>, vector<192x128xf32> -> vector<192x128xf32>
    %22 = arith.addf %18, %21 : vector<192x128xf32>
    %c0_22 = arith.constant 0 : index
    %c0_23 = arith.constant 0 : index
    %23 = vector.load %arg5[%c0_22, %c0_23] : memref<192x128xf32, #tpu.memory_space<vmem>>, vector<192x128xf32>
    tpu.vector_store %arg5[%c0_22, %c0_23], %22 {strides = array<i32>} : memref<192x128xf32, #tpu.memory_space<vmem>>, vector<192x128xf32>,
    %c0_24 = arith.constant 0 : index
    %c0_25 = arith.constant 0 : index
    %24 = vector.load %arg3[%c0_24, %c0_25] : memref<192x8xf32, #tpu.memory_space<vmem>>, vector<192x8xf32>
    %c0_26 = arith.constant 0 : index
    %c2 = arith.constant 2 : index
    %25 = vector.load %arg2[%c0_26, %c2] : memref<192x25xf32, #tpu.memory_space<vmem>>, vector<192x1xf32>
    %26 = vector.broadcast %25 : vector<192x1xf32> to vector<192x8xf32>
    %27 = arith.mulf %24, %26 : vector<192x8xf32>
    %28 = arith.truncf %27 : vector<192x8xf32> to vector<192x8xbf16>
    %c0_27 = arith.constant 0 : index
    %c0_28 = arith.constant 0 : index
    %29 = vector.load %arg5[%c0_27, %c0_28] : memref<192x128xf32, #tpu.memory_space<vmem>>, vector<192x128xf32>
    %c2_29 = arith.constant 2 : index
    %c0_30 = arith.constant 0 : index
    %c0_31 = arith.constant 0 : index
    %30 = vector.load %arg4[%c2_29, %c0_30, %c0_31] : memref<25x8x128xbf16, #tpu.memory_space<vmem>>, vector<1x8x128xbf16>
    %31 = vector.shape_cast %30 : vector<1x8x128xbf16> to vector<8x128xbf16>
    %cst_32 = arith.constant dense<0.000000e+00> : vector<192x128xf32>
    %32 = tpu.matmul %28, %31, %cst_32 {dimension_numbers = #tpu.dot_dimension_numbers<[1], [0], [0], [1], [0, 0, 1, 1], [], []>} : vector<192x8xbf16>, vector<8x128xbf16>, vector<192x128xf32> -> vector<192x128xf32>
    %33 = arith.addf %29, %32 : vector<192x128xf32>
    %c0_33 = arith.constant 0 : index
    %c0_34 = arith.constant 0 : index
    %34 = vector.load %arg5[%c0_33, %c0_34] : memref<192x128xf32, #tpu.memory_space<vmem>>, vector<192x128xf32>
    tpu.vector_store %arg5[%c0_33, %c0_34], %33 {strides = array<i32>} : memref<192x128xf32, #tpu.memory_space<vmem>>, vector<192x128xf32>,
    %c0_35 = arith.constant 0 : index
    %c0_36 = arith.constant 0 : index
    %35 = vector.load %arg3[%c0_35, %c0_36] : memref<192x8xf32, #tpu.memory_space<vmem>>, vector<192x8xf32>
    %c0_37 = arith.constant 0 : index
    %c3 = arith.constant 3 : index
    %36 = vector.load %arg2[%c0_37, %c3] : memref<192x25xf32, #tpu.memory_space<vmem>>, vector<192x1xf32>
    %37 = vector.broadcast %36 : vector<192x1xf32> to vector<192x8xf32>
    %38 = arith.mulf %35, %37 : vector<192x8xf32>
    %39 = arith.truncf %38 : vector<192x8xf32> to vector<192x8xbf16>
    %c0_38 = arith.constant 0 : index
    %c0_39 = arith.constant 0 : index
    %40 = vector.load %arg5[%c0_38, %c0_39] : memref<192x128xf32, #tpu.memory_space<vmem>>, vector<192x128xf32>
    %c3_40 = arith.constant 3 : index
    %c0_41 = arith.constant 0 : index
    %c0_42 = arith.constant 0 : index
    %41 = vector.load %arg4[%c3_40, %c0_41, %c0_42] : memref<25x8x128xbf16, #tpu.memory_space<vmem>>, vector<1x8x128xbf16>
    %42 = vector.shape_cast %41 : vector<1x8x128xbf16> to vector<8x128xbf16>
    %cst_43 = arith.constant dense<0.000000e+00> : vector<192x128xf32>
    %43 = tpu.matmul %39, %42, %cst_43 {dimension_numbers = #tpu.dot_dimension_numbers<[1], [0], [0], [1], [0, 0, 1, 1], [], []>} : vector<192x8xbf16>, vector<8x128xbf16>, vector<192x128xf32> -> vector<192x128xf32>
    %44 = arith.addf %40, %43 : vector<192x128xf32>
    %c0_44 = arith.constant 0 : index
    %c0_45 = arith.constant 0 : index
    %45 = vector.load %arg5[%c0_44, %c0_45] : memref<192x128xf32, #tpu.memory_space<vmem>>, vector<192x128xf32>
    tpu.vector_store %arg5[%c0_44, %c0_45], %44 {strides = array<i32>} : memref<192x128xf32, #tpu.memory_space<vmem>>, vector<192x128xf32>,
    %c0_46 = arith.constant 0 : index
    %c0_47 = arith.constant 0 : index
    %46 = vector.load %arg3[%c0_46, %c0_47] : memref<192x8xf32, #tpu.memory_space<vmem>>, vector<192x8xf32>
    %c0_48 = arith.constant 0 : index
    %c4 = arith.constant 4 : index
    %47 = vector.load %arg2[%c0_48, %c4] : memref<192x25xf32, #tpu.memory_space<vmem>>, vector<192x1xf32>
    %48 = vector.broadcast %47 : vector<192x1xf32> to vector<192x8xf32>
    %49 = arith.mulf %46, %48 : vector<192x8xf32>
    %50 = arith.truncf %49 : vector<192x8xf32> to vector<192x8xbf16>
    %c0_49 = arith.constant 0 : index
    %c0_50 = arith.constant 0 : index
    %51 = vector.load %arg5[%c0_49, %c0_50] : memref<192x128xf32, #tpu.memory_space<vmem>>, vector<192x128xf32>
    %c4_51 = arith.constant 4 : index
    %c0_52 = arith.constant 0 : index
    %c0_53 = arith.constant 0 : index
    %52 = vector.load %arg4[%c4_51, %c0_52, %c0_53] : memref<25x8x128xbf16, #tpu.memory_space<vmem>>, vector<1x8x128xbf16>
    %53 = vector.shape_cast %52 : vector<1x8x128xbf16> to vector<8x128xbf16>
    %cst_54 = arith.constant dense<0.000000e+00> : vector<192x128xf32>
    %54 = tpu.matmul %50, %53, %cst_54 {dimension_numbers = #tpu.dot_dimension_numbers<[1], [0], [0], [1], [0, 0, 1, 1], [], []>} : vector<192x8xbf16>, vector<8x128xbf16>, vector<192x128xf32> -> vector<192x128xf32>
    %55 = arith.addf %51, %54 : vector<192x128xf32>
    %c0_55 = arith.constant 0 : index
    %c0_56 = arith.constant 0 : index
    %56 = vector.load %arg5[%c0_55, %c0_56] : memref<192x128xf32, #tpu.memory_space<vmem>>, vector<192x128xf32>
    tpu.vector_store %arg5[%c0_55, %c0_56], %55 {strides = array<i32>} : memref<192x128xf32, #tpu.memory_space<vmem>>, vector<192x128xf32>,
    %c0_57 = arith.constant 0 : index
    %c0_58 = arith.constant 0 : index
    %57 = vector.load %arg3[%c0_57, %c0_58] : memref<192x8xf32, #tpu.memory_space<vmem>>, vector<192x8xf32>
    %c0_59 = arith.constant 0 : index
    %c5 = arith.constant 5 : index
    %58 = vector.load %arg2[%c0_59, %c5] : memref<192x25xf32, #tpu.memory_space<vmem>>, vector<192x1xf32>
    %59 = vector.broadcast %58 : vector<192x1xf32> to vector<192x8xf32>
    %60 = arith.mulf %57, %59 : vector<192x8xf32>
    %61 = arith.truncf %60 : vector<192x8xf32> to vector<192x8xbf16>
    %c0_60 = arith.constant 0 : index
    %c0_61 = arith.constant 0 : index
    %62 = vector.load %arg5[%c0_60, %c0_61] : memref<192x128xf32, #tpu.memory_space<vmem>>, vector<192x128xf32>
    %c5_62 = arith.constant 5 : index
    %c0_63 = arith.constant 0 : index
    %c0_64 = arith.constant 0 : index
    %63 = vector.load %arg4[%c5_62, %c0_63, %c0_64] : memref<25x8x128xbf16, #tpu.memory_space<vmem>>, vector<1x8x128xbf16>
    %64 = vector.shape_cast %63 : vector<1x8x128xbf16> to vector<8x128xbf16>
    %cst_65 = arith.constant dense<0.000000e+00> : vector<192x128xf32>
    %65 = tpu.matmul %61, %64, %cst_65 {dimension_numbers = #tpu.dot_dimension_numbers<[1], [0], [0], [1], [0, 0, 1, 1], [], []>} : vector<192x8xbf16>, vector<8x128xbf16>, vector<192x128xf32> -> vector<192x128xf32>
    %66 = arith.addf %62, %65 : vector<192x128xf32>
    %c0_66 = arith.constant 0 : index
    %c0_67 = arith.constant 0 : index
    %67 = vector.load %arg5[%c0_66, %c0_67] : memref<192x128xf32, #tpu.memory_space<vmem>>, vector<192x128xf32>
    tpu.vector_store %arg5[%c0_66, %c0_67], %66 {strides = array<i32>} : memref<192x128xf32, #tpu.memory_space<vmem>>, vector<192x128xf32>,
    %c0_68 = arith.constant 0 : index
    %c0_69 = arith.constant 0 : index
    %68 = vector.load %arg3[%c0_68, %c0_69] : memref<192x8xf32, #tpu.memory_space<vmem>>, vector<192x8xf32>
    %c0_70 = arith.constant 0 : index
    %c6 = arith.constant 6 : index
    %69 = vector.load %arg2[%c0_70, %c6] : memref<192x25xf32, #tpu.memory_space<vmem>>, vector<192x1xf32>
    %70 = vector.broadcast %69 : vector<192x1xf32> to vector<192x8xf32>
    %71 = arith.mulf %68, %70 : vector<192x8xf32>
    %72 = arith.truncf %71 : vector<192x8xf32> to vector<192x8xbf16>
    %c0_71 = arith.constant 0 : index
    %c0_72 = arith.constant 0 : index
    %73 = vector.load %arg5[%c0_71, %c0_72] : memref<192x128xf32, #tpu.memory_space<vmem>>, vector<192x128xf32>
    %c6_73 = arith.constant 6 : index
    %c0_74 = arith.constant 0 : index
    %c0_75 = arith.constant 0 : index
    %74 = vector.load %arg4[%c6_73, %c0_74, %c0_75] : memref<25x8x128xbf16, #tpu.memory_space<vmem>>, vector<1x8x128xbf16>
    %75 = vector.shape_cast %74 : vector<1x8x128xbf16> to vector<8x128xbf16>
    %cst_76 = arith.constant dense<0.000000e+00> : vector<192x128xf32>
    %76 = tpu.matmul %72, %75, %cst_76 {dimension_numbers = #tpu.dot_dimension_numbers<[1], [0], [0], [1], [0, 0, 1, 1], [], []>} : vector<192x8xbf16>, vector<8x128xbf16>, vector<192x128xf32> -> vector<192x128xf32>
    %77 = arith.addf %73, %76 : vector<192x128xf32>
    %c0_77 = arith.constant 0 : index
    %c0_78 = arith.constant 0 : index
    %78 = vector.load %arg5[%c0_77, %c0_78] : memref<192x128xf32, #tpu.memory_space<vmem>>, vector<192x128xf32>
    tpu.vector_store %arg5[%c0_77, %c0_78], %77 {strides = array<i32>} : memref<192x128xf32, #tpu.memory_space<vmem>>, vector<192x128xf32>,
    %c0_79 = arith.constant 0 : index
    %c0_80 = arith.constant 0 : index
    %79 = vector.load %arg3[%c0_79, %c0_80] : memref<192x8xf32, #tpu.memory_space<vmem>>, vector<192x8xf32>
    %c0_81 = arith.constant 0 : index
    %c7 = arith.constant 7 : index
    %80 = vector.load %arg2[%c0_81, %c7] : memref<192x25xf32, #tpu.memory_space<vmem>>, vector<192x1xf32>
    %81 = vector.broadcast %80 : vector<192x1xf32> to vector<192x8xf32>
    %82 = arith.mulf %79, %81 : vector<192x8xf32>
    %83 = arith.truncf %82 : vector<192x8xf32> to vector<192x8xbf16>
    %c0_82 = arith.constant 0 : index
    %c0_83 = arith.constant 0 : index
    %84 = vector.load %arg5[%c0_82, %c0_83] : memref<192x128xf32, #tpu.memory_space<vmem>>, vector<192x128xf32>
    %c7_84 = arith.constant 7 : index
    %c0_85 = arith.constant 0 : index
    %c0_86 = arith.constant 0 : index
    %85 = vector.load %arg4[%c7_84, %c0_85, %c0_86] : memref<25x8x128xbf16, #tpu.memory_space<vmem>>, vector<1x8x128xbf16>
    %86 = vector.shape_cast %85 : vector<1x8x128xbf16> to vector<8x128xbf16>
    %cst_87 = arith.constant dense<0.000000e+00> : vector<192x128xf32>
    %87 = tpu.matmul %83, %86, %cst_87 {dimension_numbers = #tpu.dot_dimension_numbers<[1], [0], [0], [1], [0, 0, 1, 1], [], []>} : vector<192x8xbf16>, vector<8x128xbf16>, vector<192x128xf32> -> vector<192x128xf32>
    %88 = arith.addf %84, %87 : vector<192x128xf32>
    %c0_88 = arith.constant 0 : index
    %c0_89 = arith.constant 0 : index
    %89 = vector.load %arg5[%c0_88, %c0_89] : memref<192x128xf32, #tpu.memory_space<vmem>>, vector<192x128xf32>
    tpu.vector_store %arg5[%c0_88, %c0_89], %88 {strides = array<i32>} : memref<192x128xf32, #tpu.memory_space<vmem>>, vector<192x128xf32>,
    %c0_90 = arith.constant 0 : index
    %c0_91 = arith.constant 0 : index
    %90 = vector.load %arg3[%c0_90, %c0_91] : memref<192x8xf32, #tpu.memory_space<vmem>>, vector<192x8xf32>
    %c0_92 = arith.constant 0 : index
    %c8 = arith.constant 8 : index
    %91 = vector.load %arg2[%c0_92, %c8] : memref<192x25xf32, #tpu.memory_space<vmem>>, vector<192x1xf32>
    %92 = vector.broadcast %91 : vector<192x1xf32> to vector<192x8xf32>
    %93 = arith.mulf %90, %92 : vector<192x8xf32>
    %94 = arith.truncf %93 : vector<192x8xf32> to vector<192x8xbf16>
    %c0_93 = arith.constant 0 : index
    %c0_94 = arith.constant 0 : index
    %95 = vector.load %arg5[%c0_93, %c0_94] : memref<192x128xf32, #tpu.memory_space<vmem>>, vector<192x128xf32>
    %c8_95 = arith.constant 8 : index
    %c0_96 = arith.constant 0 : index
    %c0_97 = arith.constant 0 : index
    %96 = vector.load %arg4[%c8_95, %c0_96, %c0_97] : memref<25x8x128xbf16, #tpu.memory_space<vmem>>, vector<1x8x128xbf16>
    %97 = vector.shape_cast %96 : vector<1x8x128xbf16> to vector<8x128xbf16>
    %cst_98 = arith.constant dense<0.000000e+00> : vector<192x128xf32>
    %98 = tpu.matmul %94, %97, %cst_98 {dimension_numbers = #tpu.dot_dimension_numbers<[1], [0], [0], [1], [0, 0, 1, 1], [], []>} : vector<192x8xbf16>, vector<8x128xbf16>, vector<192x128xf32> -> vector<192x128xf32>
    %99 = arith.addf %95, %98 : vector<192x128xf32>
    %c0_99 = arith.constant 0 : index
    %c0_100 = arith.constant 0 : index
    %100 = vector.load %arg5[%c0_99, %c0_100] : memref<192x128xf32, #tpu.memory_space<vmem>>, vector<192x128xf32>
    tpu.vector_store %arg5[%c0_99, %c0_100], %99 {strides = array<i32>} : memref<192x128xf32, #tpu.memory_space<vmem>>, vector<192x128xf32>,
    %c0_101 = arith.constant 0 : index
    %c0_102 = arith.constant 0 : index
    %101 = vector.load %arg3[%c0_101, %c0_102] : memref<192x8xf32, #tpu.memory_space<vmem>>, vector<192x8xf32>
    %c0_103 = arith.constant 0 : index
    %c9 = arith.constant 9 : index
    %102 = vector.load %arg2[%c0_103, %c9] : memref<192x25xf32, #tpu.memory_space<vmem>>, vector<192x1xf32>
    %103 = vector.broadcast %102 : vector<192x1xf32> to vector<192x8xf32>
    %104 = arith.mulf %101, %103 : vector<192x8xf32>
    %105 = arith.truncf %104 : vector<192x8xf32> to vector<192x8xbf16>
    %c0_104 = arith.constant 0 : index
    %c0_105 = arith.constant 0 : index
    %106 = vector.load %arg5[%c0_104, %c0_105] : memref<192x128xf32, #tpu.memory_space<vmem>>, vector<192x128xf32>
    %c9_106 = arith.constant 9 : index
    %c0_107 = arith.constant 0 : index
    %c0_108 = arith.constant 0 : index
    %107 = vector.load %arg4[%c9_106, %c0_107, %c0_108] : memref<25x8x128xbf16, #tpu.memory_space<vmem>>, vector<1x8x128xbf16>
    %108 = vector.shape_cast %107 : vector<1x8x128xbf16> to vector<8x128xbf16>
    %cst_109 = arith.constant dense<0.000000e+00> : vector<192x128xf32>
    %109 = tpu.matmul %105, %108, %cst_109 {dimension_numbers = #tpu.dot_dimension_numbers<[1], [0], [0], [1], [0, 0, 1, 1], [], []>} : vector<192x8xbf16>, vector<8x128xbf16>, vector<192x128xf32> -> vector<192x128xf32>
    %110 = arith.addf %106, %109 : vector<192x128xf32>
    %c0_110 = arith.constant 0 : index
    %c0_111 = arith.constant 0 : index
    %111 = vector.load %arg5[%c0_110, %c0_111] : memref<192x128xf32, #tpu.memory_space<vmem>>, vector<192x128xf32>
    tpu.vector_store %arg5[%c0_110, %c0_111], %110 {strides = array<i32>} : memref<192x128xf32, #tpu.memory_space<vmem>>, vector<192x128xf32>,
    %c0_112 = arith.constant 0 : index
    %c0_113 = arith.constant 0 : index
    %112 = vector.load %arg3[%c0_112, %c0_113] : memref<192x8xf32, #tpu.memory_space<vmem>>, vector<192x8xf32>
    %c0_114 = arith.constant 0 : index
    %c10 = arith.constant 10 : index
    %113 = vector.load %arg2[%c0_114, %c10] : memref<192x25xf32, #tpu.memory_space<vmem>>, vector<192x1xf32>
    %114 = vector.broadcast %113 : vector<192x1xf32> to vector<192x8xf32>
    %115 = arith.mulf %112, %114 : vector<192x8xf32>
    %116 = arith.truncf %115 : vector<192x8xf32> to vector<192x8xbf16>
    %c0_115 = arith.constant 0 : index
    %c0_116 = arith.constant 0 : index
    %117 = vector.load %arg5[%c0_115, %c0_116] : memref<192x128xf32, #tpu.memory_space<vmem>>, vector<192x128xf32>
    %c10_117 = arith.constant 10 : index
    %c0_118 = arith.constant 0 : index
    %c0_119 = arith.constant 0 : index
    %118 = vector.load %arg4[%c10_117, %c0_118, %c0_119] : memref<25x8x128xbf16, #tpu.memory_space<vmem>>, vector<1x8x128xbf16>
    %119 = vector.shape_cast %118 : vector<1x8x128xbf16> to vector<8x128xbf16>
    %cst_120 = arith.constant dense<0.000000e+00> : vector<192x128xf32>
    %120 = tpu.matmul %116, %119, %cst_120 {dimension_numbers = #tpu.dot_dimension_numbers<[1], [0], [0], [1], [0, 0, 1, 1], [], []>} : vector<192x8xbf16>, vector<8x128xbf16>, vector<192x128xf32> -> vector<192x128xf32>
    %121 = arith.addf %117, %120 : vector<192x128xf32>
    %c0_121 = arith.constant 0 : index
    %c0_122 = arith.constant 0 : index
    %122 = vector.load %arg5[%c0_121, %c0_122] : memref<192x128xf32, #tpu.memory_space<vmem>>, vector<192x128xf32>
    tpu.vector_store %arg5[%c0_121, %c0_122], %121 {strides = array<i32>} : memref<192x128xf32, #tpu.memory_space<vmem>>, vector<192x128xf32>,
    %c0_123 = arith.constant 0 : index
    %c0_124 = arith.constant 0 : index
    %123 = vector.load %arg3[%c0_123, %c0_124] : memref<192x8xf32, #tpu.memory_space<vmem>>, vector<192x8xf32>
    %c0_125 = arith.constant 0 : index
    %c11 = arith.constant 11 : index
    %124 = vector.load %arg2[%c0_125, %c11] : memref<192x25xf32, #tpu.memory_space<vmem>>, vector<192x1xf32>
    %125 = vector.broadcast %124 : vector<192x1xf32> to vector<192x8xf32>
    %126 = arith.mulf %123, %125 : vector<192x8xf32>
    %127 = arith.truncf %126 : vector<192x8xf32> to vector<192x8xbf16>
    %c0_126 = arith.constant 0 : index
    %c0_127 = arith.constant 0 : index
    %128 = vector.load %arg5[%c0_126, %c0_127] : memref<192x128xf32, #tpu.memory_space<vmem>>, vector<192x128xf32>
    %c11_128 = arith.constant 11 : index
    %c0_129 = arith.constant 0 : index
    %c0_130 = arith.constant 0 : index
    %129 = vector.load %arg4[%c11_128, %c0_129, %c0_130] : memref<25x8x128xbf16, #tpu.memory_space<vmem>>, vector<1x8x128xbf16>
    %130 = vector.shape_cast %129 : vector<1x8x128xbf16> to vector<8x128xbf16>
    %cst_131 = arith.constant dense<0.000000e+00> : vector<192x128xf32>
    %131 = tpu.matmul %127, %130, %cst_131 {dimension_numbers = #tpu.dot_dimension_numbers<[1], [0], [0], [1], [0, 0, 1, 1], [], []>} : vector<192x8xbf16>, vector<8x128xbf16>, vector<192x128xf32> -> vector<192x128xf32>
    %132 = arith.addf %128, %131 : vector<192x128xf32>
    %c0_132 = arith.constant 0 : index
    %c0_133 = arith.constant 0 : index
    %133 = vector.load %arg5[%c0_132, %c0_133] : memref<192x128xf32, #tpu.memory_space<vmem>>, vector<192x128xf32>
    tpu.vector_store %arg5[%c0_132, %c0_133], %132 {strides = array<i32>} : memref<192x128xf32, #tpu.memory_space<vmem>>, vector<192x128xf32>,
    %c0_134 = arith.constant 0 : index
    %c0_135 = arith.constant 0 : index
    %134 = vector.load %arg3[%c0_134, %c0_135] : memref<192x8xf32, #tpu.memory_space<vmem>>, vector<192x8xf32>
    %c0_136 = arith.constant 0 : index
    %c12 = arith.constant 12 : index
    %135 = vector.load %arg2[%c0_136, %c12] : memref<192x25xf32, #tpu.memory_space<vmem>>, vector<192x1xf32>
    %136 = vector.broadcast %135 : vector<192x1xf32> to vector<192x8xf32>
    %137 = arith.mulf %134, %136 : vector<192x8xf32>
    %138 = arith.truncf %137 : vector<192x8xf32> to vector<192x8xbf16>
    %c0_137 = arith.constant 0 : index
    %c0_138 = arith.constant 0 : index
    %139 = vector.load %arg5[%c0_137, %c0_138] : memref<192x128xf32, #tpu.memory_space<vmem>>, vector<192x128xf32>
    %c12_139 = arith.constant 12 : index
    %c0_140 = arith.constant 0 : index
    %c0_141 = arith.constant 0 : index
    %140 = vector.load %arg4[%c12_139, %c0_140, %c0_141] : memref<25x8x128xbf16, #tpu.memory_space<vmem>>, vector<1x8x128xbf16>
    %141 = vector.shape_cast %140 : vector<1x8x128xbf16> to vector<8x128xbf16>
    %cst_142 = arith.constant dense<0.000000e+00> : vector<192x128xf32>
    %142 = tpu.matmul %138, %141, %cst_142 {dimension_numbers = #tpu.dot_dimension_numbers<[1], [0], [0], [1], [0, 0, 1, 1], [], []>} : vector<192x8xbf16>, vector<8x128xbf16>, vector<192x128xf32> -> vector<192x128xf32>
    %143 = arith.addf %139, %142 : vector<192x128xf32>
    %c0_143 = arith.constant 0 : index
    %c0_144 = arith.constant 0 : index
    %144 = vector.load %arg5[%c0_143, %c0_144] : memref<192x128xf32, #tpu.memory_space<vmem>>, vector<192x128xf32>
    tpu.vector_store %arg5[%c0_143, %c0_144], %143 {strides = array<i32>} : memref<192x128xf32, #tpu.memory_space<vmem>>, vector<192x128xf32>,
    %c0_145 = arith.constant 0 : index
    %c0_146 = arith.constant 0 : index
    %145 = vector.load %arg3[%c0_145, %c0_146] : memref<192x8xf32, #tpu.memory_space<vmem>>, vector<192x8xf32>
    %c0_147 = arith.constant 0 : index
    %c13 = arith.constant 13 : index
    %146 = vector.load %arg2[%c0_147, %c13] : memref<192x25xf32, #tpu.memory_space<vmem>>, vector<192x1xf32>
    %147 = vector.broadcast %146 : vector<192x1xf32> to vector<192x8xf32>
    %148 = arith.mulf %145, %147 : vector<192x8xf32>
    %149 = arith.truncf %148 : vector<192x8xf32> to vector<192x8xbf16>
    %c0_148 = arith.constant 0 : index
    %c0_149 = arith.constant 0 : index
    %150 = vector.load %arg5[%c0_148, %c0_149] : memref<192x128xf32, #tpu.memory_space<vmem>>, vector<192x128xf32>
    %c13_150 = arith.constant 13 : index
    %c0_151 = arith.constant 0 : index
    %c0_152 = arith.constant 0 : index
    %151 = vector.load %arg4[%c13_150, %c0_151, %c0_152] : memref<25x8x128xbf16, #tpu.memory_space<vmem>>, vector<1x8x128xbf16>
    %152 = vector.shape_cast %151 : vector<1x8x128xbf16> to vector<8x128xbf16>
    %cst_153 = arith.constant dense<0.000000e+00> : vector<192x128xf32>
    %153 = tpu.matmul %149, %152, %cst_153 {dimension_numbers = #tpu.dot_dimension_numbers<[1], [0], [0], [1], [0, 0, 1, 1], [], []>} : vector<192x8xbf16>, vector<8x128xbf16>, vector<192x128xf32> -> vector<192x128xf32>
    %154 = arith.addf %150, %153 : vector<192x128xf32>
    %c0_154 = arith.constant 0 : index
    %c0_155 = arith.constant 0 : index
    %155 = vector.load %arg5[%c0_154, %c0_155] : memref<192x128xf32, #tpu.memory_space<vmem>>, vector<192x128xf32>
    tpu.vector_store %arg5[%c0_154, %c0_155], %154 {strides = array<i32>} : memref<192x128xf32, #tpu.memory_space<vmem>>, vector<192x128xf32>,
    %c0_156 = arith.constant 0 : index
    %c0_157 = arith.constant 0 : index
    %156 = vector.load %arg3[%c0_156, %c0_157] : memref<192x8xf32, #tpu.memory_space<vmem>>, vector<192x8xf32>
    %c0_158 = arith.constant 0 : index
    %c14 = arith.constant 14 : index
    %157 = vector.load %arg2[%c0_158, %c14] : memref<192x25xf32, #tpu.memory_space<vmem>>, vector<192x1xf32>
    %158 = vector.broadcast %157 : vector<192x1xf32> to vector<192x8xf32>
    %159 = arith.mulf %156, %158 : vector<192x8xf32>
    %160 = arith.truncf %159 : vector<192x8xf32> to vector<192x8xbf16>
    %c0_159 = arith.constant 0 : index
    %c0_160 = arith.constant 0 : index
    %161 = vector.load %arg5[%c0_159, %c0_160] : memref<192x128xf32, #tpu.memory_space<vmem>>, vector<192x128xf32>
    %c14_161 = arith.constant 14 : index
    %c0_162 = arith.constant 0 : index
    %c0_163 = arith.constant 0 : index
    %162 = vector.load %arg4[%c14_161, %c0_162, %c0_163] : memref<25x8x128xbf16, #tpu.memory_space<vmem>>, vector<1x8x128xbf16>
    %163 = vector.shape_cast %162 : vector<1x8x128xbf16> to vector<8x128xbf16>
    %cst_164 = arith.constant dense<0.000000e+00> : vector<192x128xf32>
    %164 = tpu.matmul %160, %163, %cst_164 {dimension_numbers = #tpu.dot_dimension_numbers<[1], [0], [0], [1], [0, 0, 1, 1], [], []>} : vector<192x8xbf16>, vector<8x128xbf16>, vector<192x128xf32> -> vector<192x128xf32>
    %165 = arith.addf %161, %164 : vector<192x128xf32>
    %c0_165 = arith.constant 0 : index
    %c0_166 = arith.constant 0 : index
    %166 = vector.load %arg5[%c0_165, %c0_166] : memref<192x128xf32, #tpu.memory_space<vmem>>, vector<192x128xf32>
    tpu.vector_store %arg5[%c0_165, %c0_166], %165 {strides = array<i32>} : memref<192x128xf32, #tpu.memory_space<vmem>>, vector<192x128xf32>,
    %c0_167 = arith.constant 0 : index
    %c0_168 = arith.constant 0 : index
    %167 = vector.load %arg3[%c0_167, %c0_168] : memref<192x8xf32, #tpu.memory_space<vmem>>, vector<192x8xf32>
    %c0_169 = arith.constant 0 : index
    %c15 = arith.constant 15 : index
    %168 = vector.load %arg2[%c0_169, %c15] : memref<192x25xf32, #tpu.memory_space<vmem>>, vector<192x1xf32>
    %169 = vector.broadcast %168 : vector<192x1xf32> to vector<192x8xf32>
    %170 = arith.mulf %167, %169 : vector<192x8xf32>
    %171 = arith.truncf %170 : vector<192x8xf32> to vector<192x8xbf16>
    %c0_170 = arith.constant 0 : index
    %c0_171 = arith.constant 0 : index
    %172 = vector.load %arg5[%c0_170, %c0_171] : memref<192x128xf32, #tpu.memory_space<vmem>>, vector<192x128xf32>
    %c15_172 = arith.constant 15 : index
    %c0_173 = arith.constant 0 : index
    %c0_174 = arith.constant 0 : index
    %173 = vector.load %arg4[%c15_172, %c0_173, %c0_174] : memref<25x8x128xbf16, #tpu.memory_space<vmem>>, vector<1x8x128xbf16>
    %174 = vector.shape_cast %173 : vector<1x8x128xbf16> to vector<8x128xbf16>
    %cst_175 = arith.constant dense<0.000000e+00> : vector<192x128xf32>
    %175 = tpu.matmul %171, %174, %cst_175 {dimension_numbers = #tpu.dot_dimension_numbers<[1], [0], [0], [1], [0, 0, 1, 1], [], []>} : vector<192x8xbf16>, vector<8x128xbf16>, vector<192x128xf32> -> vector<192x128xf32>
    %176 = arith.addf %172, %175 : vector<192x128xf32>
    %c0_176 = arith.constant 0 : index
    %c0_177 = arith.constant 0 : index
    %177 = vector.load %arg5[%c0_176, %c0_177] : memref<192x128xf32, #tpu.memory_space<vmem>>, vector<192x128xf32>
    tpu.vector_store %arg5[%c0_176, %c0_177], %176 {strides = array<i32>} : memref<192x128xf32, #tpu.memory_space<vmem>>, vector<192x128xf32>,
    %c0_178 = arith.constant 0 : index
    %c0_179 = arith.constant 0 : index
    %178 = vector.load %arg3[%c0_178, %c0_179] : memref<192x8xf32, #tpu.memory_space<vmem>>, vector<192x8xf32>
    %c0_180 = arith.constant 0 : index
    %c16 = arith.constant 16 : index
    %179 = vector.load %arg2[%c0_180, %c16] : memref<192x25xf32, #tpu.memory_space<vmem>>, vector<192x1xf32>
    %180 = vector.broadcast %179 : vector<192x1xf32> to vector<192x8xf32>
    %181 = arith.mulf %178, %180 : vector<192x8xf32>
    %182 = arith.truncf %181 : vector<192x8xf32> to vector<192x8xbf16>
    %c0_181 = arith.constant 0 : index
    %c0_182 = arith.constant 0 : index
    %183 = vector.load %arg5[%c0_181, %c0_182] : memref<192x128xf32, #tpu.memory_space<vmem>>, vector<192x128xf32>
    %c16_183 = arith.constant 16 : index
    %c0_184 = arith.constant 0 : index
    %c0_185 = arith.constant 0 : index
    %184 = vector.load %arg4[%c16_183, %c0_184, %c0_185] : memref<25x8x128xbf16, #tpu.memory_space<vmem>>, vector<1x8x128xbf16>
    %185 = vector.shape_cast %184 : vector<1x8x128xbf16> to vector<8x128xbf16>
    %cst_186 = arith.constant dense<0.000000e+00> : vector<192x128xf32>
    %186 = tpu.matmul %182, %185, %cst_186 {dimension_numbers = #tpu.dot_dimension_numbers<[1], [0], [0], [1], [0, 0, 1, 1], [], []>} : vector<192x8xbf16>, vector<8x128xbf16>, vector<192x128xf32> -> vector<192x128xf32>
    %187 = arith.addf %183, %186 : vector<192x128xf32>
    %c0_187 = arith.constant 0 : index
    %c0_188 = arith.constant 0 : index
    %188 = vector.load %arg5[%c0_187, %c0_188] : memref<192x128xf32, #tpu.memory_space<vmem>>, vector<192x128xf32>
    tpu.vector_store %arg5[%c0_187, %c0_188], %187 {strides = array<i32>} : memref<192x128xf32, #tpu.memory_space<vmem>>, vector<192x128xf32>,
    %c0_189 = arith.constant 0 : index
    %c0_190 = arith.constant 0 : index
    %189 = vector.load %arg3[%c0_189, %c0_190] : memref<192x8xf32, #tpu.memory_space<vmem>>, vector<192x8xf32>
    %c0_191 = arith.constant 0 : index
    %c17 = arith.constant 17 : index
    %190 = vector.load %arg2[%c0_191, %c17] : memref<192x25xf32, #tpu.memory_space<vmem>>, vector<192x1xf32>
    %191 = vector.broadcast %190 : vector<192x1xf32> to vector<192x8xf32>
    %192 = arith.mulf %189, %191 : vector<192x8xf32>
    %193 = arith.truncf %192 : vector<192x8xf32> to vector<192x8xbf16>
    %c0_192 = arith.constant 0 : index
    %c0_193 = arith.constant 0 : index
    %194 = vector.load %arg5[%c0_192, %c0_193] : memref<192x128xf32, #tpu.memory_space<vmem>>, vector<192x128xf32>
    %c17_194 = arith.constant 17 : index
    %c0_195 = arith.constant 0 : index
    %c0_196 = arith.constant 0 : index
    %195 = vector.load %arg4[%c17_194, %c0_195, %c0_196] : memref<25x8x128xbf16, #tpu.memory_space<vmem>>, vector<1x8x128xbf16>
    %196 = vector.shape_cast %195 : vector<1x8x128xbf16> to vector<8x128xbf16>
    %cst_197 = arith.constant dense<0.000000e+00> : vector<192x128xf32>
    %197 = tpu.matmul %193, %196, %cst_197 {dimension_numbers = #tpu.dot_dimension_numbers<[1], [0], [0], [1], [0, 0, 1, 1], [], []>} : vector<192x8xbf16>, vector<8x128xbf16>, vector<192x128xf32> -> vector<192x128xf32>
    %198 = arith.addf %194, %197 : vector<192x128xf32>
    %c0_198 = arith.constant 0 : index
    %c0_199 = arith.constant 0 : index
    %199 = vector.load %arg5[%c0_198, %c0_199] : memref<192x128xf32, #tpu.memory_space<vmem>>, vector<192x128xf32>
    tpu.vector_store %arg5[%c0_198, %c0_199], %198 {strides = array<i32>} : memref<192x128xf32, #tpu.memory_space<vmem>>, vector<192x128xf32>,
    %c0_200 = arith.constant 0 : index
    %c0_201 = arith.constant 0 : index
    %200 = vector.load %arg3[%c0_200, %c0_201] : memref<192x8xf32, #tpu.memory_space<vmem>>, vector<192x8xf32>
    %c0_202 = arith.constant 0 : index
    %c18 = arith.constant 18 : index
    %201 = vector.load %arg2[%c0_202, %c18] : memref<192x25xf32, #tpu.memory_space<vmem>>, vector<192x1xf32>
    %202 = vector.broadcast %201 : vector<192x1xf32> to vector<192x8xf32>
    %203 = arith.mulf %200, %202 : vector<192x8xf32>
    %204 = arith.truncf %203 : vector<192x8xf32> to vector<192x8xbf16>
    %c0_203 = arith.constant 0 : index
    %c0_204 = arith.constant 0 : index
    %205 = vector.load %arg5[%c0_203, %c0_204] : memref<192x128xf32, #tpu.memory_space<vmem>>, vector<192x128xf32>
    %c18_205 = arith.constant 18 : index
    %c0_206 = arith.constant 0 : index
    %c0_207 = arith.constant 0 : index
    %206 = vector.load %arg4[%c18_205, %c0_206, %c0_207] : memref<25x8x128xbf16, #tpu.memory_space<vmem>>, vector<1x8x128xbf16>
    %207 = vector.shape_cast %206 : vector<1x8x128xbf16> to vector<8x128xbf16>
    %cst_208 = arith.constant dense<0.000000e+00> : vector<192x128xf32>
    %208 = tpu.matmul %204, %207, %cst_208 {dimension_numbers = #tpu.dot_dimension_numbers<[1], [0], [0], [1], [0, 0, 1, 1], [], []>} : vector<192x8xbf16>, vector<8x128xbf16>, vector<192x128xf32> -> vector<192x128xf32>
    %209 = arith.addf %205, %208 : vector<192x128xf32>
    %c0_209 = arith.constant 0 : index
    %c0_210 = arith.constant 0 : index
    %210 = vector.load %arg5[%c0_209, %c0_210] : memref<192x128xf32, #tpu.memory_space<vmem>>, vector<192x128xf32>
    tpu.vector_store %arg5[%c0_209, %c0_210], %209 {strides = array<i32>} : memref<192x128xf32, #tpu.memory_space<vmem>>, vector<192x128xf32>,
    %c0_211 = arith.constant 0 : index
    %c0_212 = arith.constant 0 : index
    %211 = vector.load %arg3[%c0_211, %c0_212] : memref<192x8xf32, #tpu.memory_space<vmem>>, vector<192x8xf32>
    %c0_213 = arith.constant 0 : index
    %c19 = arith.constant 19 : index
    %212 = vector.load %arg2[%c0_213, %c19] : memref<192x25xf32, #tpu.memory_space<vmem>>, vector<192x1xf32>
    %213 = vector.broadcast %212 : vector<192x1xf32> to vector<192x8xf32>
    %214 = arith.mulf %211, %213 : vector<192x8xf32>
    %215 = arith.truncf %214 : vector<192x8xf32> to vector<192x8xbf16>
    %c0_214 = arith.constant 0 : index
    %c0_215 = arith.constant 0 : index
    %216 = vector.load %arg5[%c0_214, %c0_215] : memref<192x128xf32, #tpu.memory_space<vmem>>, vector<192x128xf32>
    %c19_216 = arith.constant 19 : index
    %c0_217 = arith.constant 0 : index
    %c0_218 = arith.constant 0 : index
    %217 = vector.load %arg4[%c19_216, %c0_217, %c0_218] : memref<25x8x128xbf16, #tpu.memory_space<vmem>>, vector<1x8x128xbf16>
    %218 = vector.shape_cast %217 : vector<1x8x128xbf16> to vector<8x128xbf16>
    %cst_219 = arith.constant dense<0.000000e+00> : vector<192x128xf32>
    %219 = tpu.matmul %215, %218, %cst_219 {dimension_numbers = #tpu.dot_dimension_numbers<[1], [0], [0], [1], [0, 0, 1, 1], [], []>} : vector<192x8xbf16>, vector<8x128xbf16>, vector<192x128xf32> -> vector<192x128xf32>
    %220 = arith.addf %216, %219 : vector<192x128xf32>
    %c0_220 = arith.constant 0 : index
    %c0_221 = arith.constant 0 : index
    %221 = vector.load %arg5[%c0_220, %c0_221] : memref<192x128xf32, #tpu.memory_space<vmem>>, vector<192x128xf32>
    tpu.vector_store %arg5[%c0_220, %c0_221], %220 {strides = array<i32>} : memref<192x128xf32, #tpu.memory_space<vmem>>, vector<192x128xf32>,
    %c0_222 = arith.constant 0 : index
    %c0_223 = arith.constant 0 : index
    %222 = vector.load %arg3[%c0_222, %c0_223] : memref<192x8xf32, #tpu.memory_space<vmem>>, vector<192x8xf32>
    %c0_224 = arith.constant 0 : index
    %c20 = arith.constant 20 : index
    %223 = vector.load %arg2[%c0_224, %c20] : memref<192x25xf32, #tpu.memory_space<vmem>>, vector<192x1xf32>
    %224 = vector.broadcast %223 : vector<192x1xf32> to vector<192x8xf32>
    %225 = arith.mulf %222, %224 : vector<192x8xf32>
    %226 = arith.truncf %225 : vector<192x8xf32> to vector<192x8xbf16>
    %c0_225 = arith.constant 0 : index
    %c0_226 = arith.constant 0 : index
    %227 = vector.load %arg5[%c0_225, %c0_226] : memref<192x128xf32, #tpu.memory_space<vmem>>, vector<192x128xf32>
    %c20_227 = arith.constant 20 : index
    %c0_228 = arith.constant 0 : index
    %c0_229 = arith.constant 0 : index
    %228 = vector.load %arg4[%c20_227, %c0_228, %c0_229] : memref<25x8x128xbf16, #tpu.memory_space<vmem>>, vector<1x8x128xbf16>
    %229 = vector.shape_cast %228 : vector<1x8x128xbf16> to vector<8x128xbf16>
    %cst_230 = arith.constant dense<0.000000e+00> : vector<192x128xf32>
    %230 = tpu.matmul %226, %229, %cst_230 {dimension_numbers = #tpu.dot_dimension_numbers<[1], [0], [0], [1], [0, 0, 1, 1], [], []>} : vector<192x8xbf16>, vector<8x128xbf16>, vector<192x128xf32> -> vector<192x128xf32>
    %231 = arith.addf %227, %230 : vector<192x128xf32>
    %c0_231 = arith.constant 0 : index
    %c0_232 = arith.constant 0 : index
    %232 = vector.load %arg5[%c0_231, %c0_232] : memref<192x128xf32, #tpu.memory_space<vmem>>, vector<192x128xf32>
    tpu.vector_store %arg5[%c0_231, %c0_232], %231 {strides = array<i32>} : memref<192x128xf32, #tpu.memory_space<vmem>>, vector<192x128xf32>,
    %c0_233 = arith.constant 0 : index
    %c0_234 = arith.constant 0 : index
    %233 = vector.load %arg3[%c0_233, %c0_234] : memref<192x8xf32, #tpu.memory_space<vmem>>, vector<192x8xf32>
    %c0_235 = arith.constant 0 : index
    %c21 = arith.constant 21 : index
    %234 = vector.load %arg2[%c0_235, %c21] : memref<192x25xf32, #tpu.memory_space<vmem>>, vector<192x1xf32>
    %235 = vector.broadcast %234 : vector<192x1xf32> to vector<192x8xf32>
    %236 = arith.mulf %233, %235 : vector<192x8xf32>
    %237 = arith.truncf %236 : vector<192x8xf32> to vector<192x8xbf16>
    %c0_236 = arith.constant 0 : index
    %c0_237 = arith.constant 0 : index
    %238 = vector.load %arg5[%c0_236, %c0_237] : memref<192x128xf32, #tpu.memory_space<vmem>>, vector<192x128xf32>
    %c21_238 = arith.constant 21 : index
    %c0_239 = arith.constant 0 : index
    %c0_240 = arith.constant 0 : index
    %239 = vector.load %arg4[%c21_238, %c0_239, %c0_240] : memref<25x8x128xbf16, #tpu.memory_space<vmem>>, vector<1x8x128xbf16>
    %240 = vector.shape_cast %239 : vector<1x8x128xbf16> to vector<8x128xbf16>
    %cst_241 = arith.constant dense<0.000000e+00> : vector<192x128xf32>
    %241 = tpu.matmul %237, %240, %cst_241 {dimension_numbers = #tpu.dot_dimension_numbers<[1], [0], [0], [1], [0, 0, 1, 1], [], []>} : vector<192x8xbf16>, vector<8x128xbf16>, vector<192x128xf32> -> vector<192x128xf32>
    %242 = arith.addf %238, %241 : vector<192x128xf32>
    %c0_242 = arith.constant 0 : index
    %c0_243 = arith.constant 0 : index
    %243 = vector.load %arg5[%c0_242, %c0_243] : memref<192x128xf32, #tpu.memory_space<vmem>>, vector<192x128xf32>
    tpu.vector_store %arg5[%c0_242, %c0_243], %242 {strides = array<i32>} : memref<192x128xf32, #tpu.memory_space<vmem>>, vector<192x128xf32>,
    %c0_244 = arith.constant 0 : index
    %c0_245 = arith.constant 0 : index
    %244 = vector.load %arg3[%c0_244, %c0_245] : memref<192x8xf32, #tpu.memory_space<vmem>>, vector<192x8xf32>
    %c0_246 = arith.constant 0 : index
    %c22 = arith.constant 22 : index
    %245 = vector.load %arg2[%c0_246, %c22] : memref<192x25xf32, #tpu.memory_space<vmem>>, vector<192x1xf32>
    %246 = vector.broadcast %245 : vector<192x1xf32> to vector<192x8xf32>
    %247 = arith.mulf %244, %246 : vector<192x8xf32>
    %248 = arith.truncf %247 : vector<192x8xf32> to vector<192x8xbf16>
    %c0_247 = arith.constant 0 : index
    %c0_248 = arith.constant 0 : index
    %249 = vector.load %arg5[%c0_247, %c0_248] : memref<192x128xf32, #tpu.memory_space<vmem>>, vector<192x128xf32>
    %c22_249 = arith.constant 22 : index
    %c0_250 = arith.constant 0 : index
    %c0_251 = arith.constant 0 : index
    %250 = vector.load %arg4[%c22_249, %c0_250, %c0_251] : memref<25x8x128xbf16, #tpu.memory_space<vmem>>, vector<1x8x128xbf16>
    %251 = vector.shape_cast %250 : vector<1x8x128xbf16> to vector<8x128xbf16>
    %cst_252 = arith.constant dense<0.000000e+00> : vector<192x128xf32>
    %252 = tpu.matmul %248, %251, %cst_252 {dimension_numbers = #tpu.dot_dimension_numbers<[1], [0], [0], [1], [0, 0, 1, 1], [], []>} : vector<192x8xbf16>, vector<8x128xbf16>, vector<192x128xf32> -> vector<192x128xf32>
    %253 = arith.addf %249, %252 : vector<192x128xf32>
    %c0_253 = arith.constant 0 : index
    %c0_254 = arith.constant 0 : index
    %254 = vector.load %arg5[%c0_253, %c0_254] : memref<192x128xf32, #tpu.memory_space<vmem>>, vector<192x128xf32>
    tpu.vector_store %arg5[%c0_253, %c0_254], %253 {strides = array<i32>} : memref<192x128xf32, #tpu.memory_space<vmem>>, vector<192x128xf32>,
    %c0_255 = arith.constant 0 : index
    %c0_256 = arith.constant 0 : index
    %255 = vector.load %arg3[%c0_255, %c0_256] : memref<192x8xf32, #tpu.memory_space<vmem>>, vector<192x8xf32>
    %c0_257 = arith.constant 0 : index
    %c23 = arith.constant 23 : index
    %256 = vector.load %arg2[%c0_257, %c23] : memref<192x25xf32, #tpu.memory_space<vmem>>, vector<192x1xf32>
    %257 = vector.broadcast %256 : vector<192x1xf32> to vector<192x8xf32>
    %258 = arith.mulf %255, %257 : vector<192x8xf32>
    %259 = arith.truncf %258 : vector<192x8xf32> to vector<192x8xbf16>
    %c0_258 = arith.constant 0 : index
    %c0_259 = arith.constant 0 : index
    %260 = vector.load %arg5[%c0_258, %c0_259] : memref<192x128xf32, #tpu.memory_space<vmem>>, vector<192x128xf32>
    %c23_260 = arith.constant 23 : index
    %c0_261 = arith.constant 0 : index
    %c0_262 = arith.constant 0 : index
    %261 = vector.load %arg4[%c23_260, %c0_261, %c0_262] : memref<25x8x128xbf16, #tpu.memory_space<vmem>>, vector<1x8x128xbf16>
    %262 = vector.shape_cast %261 : vector<1x8x128xbf16> to vector<8x128xbf16>
    %cst_263 = arith.constant dense<0.000000e+00> : vector<192x128xf32>
    %263 = tpu.matmul %259, %262, %cst_263 {dimension_numbers = #tpu.dot_dimension_numbers<[1], [0], [0], [1], [0, 0, 1, 1], [], []>} : vector<192x8xbf16>, vector<8x128xbf16>, vector<192x128xf32> -> vector<192x128xf32>
    %264 = arith.addf %260, %263 : vector<192x128xf32>
    %c0_264 = arith.constant 0 : index
    %c0_265 = arith.constant 0 : index
    %265 = vector.load %arg5[%c0_264, %c0_265] : memref<192x128xf32, #tpu.memory_space<vmem>>, vector<192x128xf32>
    tpu.vector_store %arg5[%c0_264, %c0_265], %264 {strides = array<i32>} : memref<192x128xf32, #tpu.memory_space<vmem>>, vector<192x128xf32>,
    %c0_266 = arith.constant 0 : index
    %c0_267 = arith.constant 0 : index
    %266 = vector.load %arg3[%c0_266, %c0_267] : memref<192x8xf32, #tpu.memory_space<vmem>>, vector<192x8xf32>
    %c0_268 = arith.constant 0 : index
    %c24 = arith.constant 24 : index
    %267 = vector.load %arg2[%c0_268, %c24] : memref<192x25xf32, #tpu.memory_space<vmem>>, vector<192x1xf32>
    %268 = vector.broadcast %267 : vector<192x1xf32> to vector<192x8xf32>
    %269 = arith.mulf %266, %268 : vector<192x8xf32>
    %270 = arith.truncf %269 : vector<192x8xf32> to vector<192x8xbf16>
    %c0_269 = arith.constant 0 : index
    %c0_270 = arith.constant 0 : index
    %271 = vector.load %arg5[%c0_269, %c0_270] : memref<192x128xf32, #tpu.memory_space<vmem>>, vector<192x128xf32>
    %c24_271 = arith.constant 24 : index
    %c0_272 = arith.constant 0 : index
    %c0_273 = arith.constant 0 : index
    %272 = vector.load %arg4[%c24_271, %c0_272, %c0_273] : memref<25x8x128xbf16, #tpu.memory_space<vmem>>, vector<1x8x128xbf16>
    %273 = vector.shape_cast %272 : vector<1x8x128xbf16> to vector<8x128xbf16>
    %cst_274 = arith.constant dense<0.000000e+00> : vector<192x128xf32>
    %274 = tpu.matmul %270, %273, %cst_274 {dimension_numbers = #tpu.dot_dimension_numbers<[1], [0], [0], [1], [0, 0, 1, 1], [], []>} : vector<192x8xbf16>, vector<8x128xbf16>, vector<192x128xf32> -> vector<192x128xf32>
    %275 = arith.addf %271, %274 : vector<192x128xf32>
    %c0_275 = arith.constant 0 : index
    %c0_276 = arith.constant 0 : index
    %276 = vector.load %arg5[%c0_275, %c0_276] : memref<192x128xf32, #tpu.memory_space<vmem>>, vector<192x128xf32>
    tpu.vector_store %arg5[%c0_275, %c0_276], %275 {strides = array<i32>} : memref<192x128xf32, #tpu.memory_space<vmem>>, vector<192x128xf32>,
    return
  }
  func.func @transform_0(%arg0: i32, %arg1: i32) -> (i32, i32) {
    %c0_i32 = arith.constant 0 : i32
    %c0_i32_0 = arith.constant 0 : i32
    return %arg1, %c0_i32 : i32, i32
  }
  func.func @transform_1(%arg0: i32, %arg1: i32) -> (i32, i32) {
    %c0_i32 = arith.constant 0 : i32
    %c0_i32_0 = arith.constant 0 : i32
    return %arg1, %c0_i32 : i32, i32
  }
  func.func @transform_2(%arg0: i32, %arg1: i32) -> (i32, i32, i32) {
    %c0_i32 = arith.constant 0 : i32
    %c0_i32_0 = arith.constant 0 : i32
    %c0_i32_1 = arith.constant 0 : i32
    return %c0_i32, %c0_i32_0, %arg0 : i32, i32, i32
  }
  func.func @transform_3(%arg0: i32, %arg1: i32) -> (i32, i32) {
    %c0_i32 = arith.constant 0 : i32
    return %arg1, %arg0 : i32, i32
  }
}

</mosaic_0001>

<llo_original>
// kernel: tpu_custom_call.1
$region0: #{tpu_custom_call.1}
  #allocation0 [shape = 'u32[]', space=smem, size = 0x4, offset = 0x4, fixed_abs, tag = 'smem constant byte address 0x4 - core index']
  #allocation1 [shape = 'u32[72,128]{1,0:T(1,128)}', space=vmem, size = 0x9000, scoped, tag = 'internal scratch']
  %s0 = inlined_call_operand.vmem [shape: f32[192,25], index: 0, kind: input, shape index: {}]
  %s1 = inlined_call_operand.vmem [shape: f32[192,8], index: 1, kind: input, shape index: {}]
  %s2 = inlined_call_operand.vmem [shape: bf16[25,8,128], index: 2, kind: input, shape index: {}]
  %s3 = inlined_call_operand.hbm [shape: f32[192,128], index: 3, kind: output, shape index: {}]
  %s4 = sld [smem:[#allocation0]]
  $region22: #{tpu_custom_call.1} parent=0
    _
  %s6 = ssub.s32 1, %s4
  %s7 = scalar_select 0, %s6, %s4
  $region1: #{tpu_custom_call.1} parent=0
    #allocation2 [shape = 'u8[98304]{0}', space=vmem, size = 0x18000, scoped, tag = 'output window, operand 0, single buffered']
    #allocation3 [shape = 's32[1]{0}', space=sflag, size = 0x4, scoped, tag = 'scoped memory for tpu_custom_call.1']
    %8 = vsyncpa [#allocation3], 0
    // Predicated region
    $region2: #{tpu_custom_call.1} parent=1 // pred_check
      _
    $region3: #{tpu_custom_call.1} parent=1 // pred_check_branch
      %10 = sbr.rel (0) target = $region5
    $region4: #{tpu_custom_call.1} parent=1 // pred_region
      _
    $region5: #{tpu_custom_call.1} parent=1 // pred_fallthru
      _
    // Predicated region
    $region6: #{tpu_custom_call.1} parent=1 // pred_check
      _
    $region7: #{tpu_custom_call.1} parent=1 // pred_check_branch
      %12 = sbr.rel (0) target = $region9
    $region8: #{tpu_custom_call.1} parent=1 // pred_region
      _
    $region9: #{tpu_custom_call.1} parent=1 // pred_fallthru
      _
    // Predicated region
    $region10: #{tpu_custom_call.1} parent=1 // pred_check
      _
    $region11: #{tpu_custom_call.1} parent=1 // pred_check_branch
      %14 = sbr.rel (0) target = $region13
    $region12: #{tpu_custom_call.1} parent=1 // pred_region
      _
    $region13: #{tpu_custom_call.1} parent=1 // pred_fallthru
      _
    %16 = vst [vmem:[#allocation2] sm:$0xff] 0.0
    %17 = vst [vmem:[#allocation2 + $0x8] sm:$0xff] 0.0
    %18 = vst [vmem:[#allocation2 + $0x10] sm:$0xff] 0.0
    %19 = vst [vmem:[#allocation2 + $0x18] sm:$0xff] 0.0
    %20 = vst [vmem:[#allocation2 + $0x20] sm:$0xff] 0.0
    %21 = vst [vmem:[#allocation2 + $0x28] sm:$0xff] 0.0
    %22 = vst [vmem:[#allocation2 + $0x30] sm:$0xff] 0.0
    %23 = vst [vmem:[#allocation2 + $0x38] sm:$0xff] 0.0
    %24 = vst [vmem:[#allocation2 + $0x40] sm:$0xff] 0.0
    %25 = vst [vmem:[#allocation2 + $0x48] sm:$0xff] 0.0
    %26 = vst [vmem:[#allocation2 + $0x50] sm:$0xff] 0.0
    %27 = vst [vmem:[#allocation2 + $0x58] sm:$0xff] 0.0
    %28 = vst [vmem:[#allocation2 + $0x60] sm:$0xff] 0.0
    %29 = vst [vmem:[#allocation2 + $0x68] sm:$0xff] 0.0
    %30 = vst [vmem:[#allocation2 + $0x70] sm:$0xff] 0.0
    %31 = vst [vmem:[#allocation2 + $0x78] sm:$0xff] 0.0
    %32 = vst [vmem:[#allocation2 + $0x80] sm:$0xff] 0.0
    %33 = vst [vmem:[#allocation2 + $0x88] sm:$0xff] 0.0
    %34 = vst [vmem:[#allocation2 + $0x90] sm:$0xff] 0.0
    %35 = vst [vmem:[#allocation2 + $0x98] sm:$0xff] 0.0
    %36 = vst [vmem:[#allocation2 + $0xa0] sm:$0xff] 0.0
    %37 = vst [vmem:[#allocation2 + $0xa8] sm:$0xff] 0.0
    %38 = vst [vmem:[#allocation2 + $0xb0] sm:$0xff] 0.0
    %39 = vst [vmem:[#allocation2 + $0xb8] sm:$0xff] 0.0
    %v40 = vld [vmem:[%s1] sm:$0xff]
    %v41 = vld [vmem:[%s1 + $0x8] sm:$0xff]
    %v42 = vld [vmem:[%s1 + $0x10] sm:$0xff]
    %v43 = vld [vmem:[%s1 + $0x18] sm:$0xff]
    %v44 = vld [vmem:[%s1 + $0x20] sm:$0xff]
    %v45 = vld [vmem:[%s1 + $0x28] sm:$0xff]
    %v46 = vld [vmem:[%s1 + $0x30] sm:$0xff]
    %v47 = vld [vmem:[%s1 + $0x38] sm:$0xff]
    %v48 = vld [vmem:[%s1 + $0x40] sm:$0xff]
    %v49 = vld [vmem:[%s1 + $0x48] sm:$0xff]
    %v50 = vld [vmem:[%s1 + $0x50] sm:$0xff]
    %v51 = vld [vmem:[%s1 + $0x58] sm:$0xff]
    %v52 = vld [vmem:[%s1 + $0x60] sm:$0xff]
    %v53 = vld [vmem:[%s1 + $0x68] sm:$0xff]
    %v54 = vld [vmem:[%s1 + $0x70] sm:$0xff]
    %v55 = vld [vmem:[%s1 + $0x78] sm:$0xff]
    %v56 = vld [vmem:[%s1 + $0x80] sm:$0xff]
    %v57 = vld [vmem:[%s1 + $0x88] sm:$0xff]
    %v58 = vld [vmem:[%s1 + $0x90] sm:$0xff]
    %v59 = vld [vmem:[%s1 + $0x98] sm:$0xff]
    %v60 = vld [vmem:[%s1 + $0xa0] sm:$0xff]
    %v61 = vld [vmem:[%s1 + $0xa8] sm:$0xff]
    %v62 = vld [vmem:[%s1 + $0xb0] sm:$0xff]
    %v63 = vld [vmem:[%s1 + $0xb8] sm:$0xff]
    %v64 = vld [vmem:[%s0] sm:$0xff]
    %v65 = vld [vmem:[%s0 + $0x8] sm:$0xff]
    %v66 = vld [vmem:[%s0 + $0x10] sm:$0xff]
    %v67 = vld [vmem:[%s0 + $0x18] sm:$0xff]
    %v68 = vld [vmem:[%s0 + $0x20] sm:$0xff]
    %v69 = vld [vmem:[%s0 + $0x28] sm:$0xff]
    %v70 = vld [vmem:[%s0 + $0x30] sm:$0xff]
    %v71 = vld [vmem:[%s0 + $0x38] sm:$0xff]
    %v72 = vld [vmem:[%s0 + $0x40] sm:$0xff]
    %v73 = vld [vmem:[%s0 + $0x48] sm:$0xff]
    %v74 = vld [vmem:[%s0 + $0x50] sm:$0xff]
    %v75 = vld [vmem:[%s0 + $0x58] sm:$0xff]
    %v76 = vld [vmem:[%s0 + $0x60] sm:$0xff]
    %v77 = vld [vmem:[%s0 + $0x68] sm:$0xff]
    %v78 = vld [vmem:[%s0 + $0x70] sm:$0xff]
    %v79 = vld [vmem:[%s0 + $0x78] sm:$0xff]
    %v80 = vld [vmem:[%s0 + $0x80] sm:$0xff]
    %v81 = vld [vmem:[%s0 + $0x88] sm:$0xff]
    %v82 = vld [vmem:[%s0 + $0x90] sm:$0xff]
    %v83 = vld [vmem:[%s0 + $0x98] sm:$0xff]
    %v84 = vld [vmem:[%s0 + $0xa0] sm:$0xff]
    %v85 = vld [vmem:[%s0 + $0xa8] sm:$0xff]
    %v86 = vld [vmem:[%s0 + $0xb0] sm:$0xff]
    %v87 = vld [vmem:[%s0 + $0xb8] sm:$0xff]
    %89 = vset.pattern.permute.xlu0 0
    %90 = vperm.xlu0 %89, %v64
    %v91 = vpop.permute.xlu0 %90
    %94 = vset.pattern.permute.xlu0 0
    %95 = vperm.xlu0 %94, %v65
    %v96 = vpop.permute.xlu0 %95
    %99 = vset.pattern.permute.xlu0 0
    %100 = vperm.xlu0 %99, %v66
    %v101 = vpop.permute.xlu0 %100
    %104 = vset.pattern.permute.xlu0 0
    %105 = vperm.xlu0 %104, %v67
    %v106 = vpop.permute.xlu0 %105
    %109 = vset.pattern.permute.xlu0 0
    %110 = vperm.xlu0 %109, %v68
    %v111 = vpop.permute.xlu0 %110
    %114 = vset.pattern.permute.xlu0 0
    %115 = vperm.xlu0 %114, %v69
    %v116 = vpop.permute.xlu0 %115
    %119 = vset.pattern.permute.xlu0 0
    %120 = vperm.xlu0 %119, %v70
    %v121 = vpop.permute.xlu0 %120
    %124 = vset.pattern.permute.xlu0 0
    %125 = vperm.xlu0 %124, %v71
    %v126 = vpop.permute.xlu0 %125
    %129 = vset.pattern.permute.xlu0 0
    %130 = vperm.xlu0 %129, %v72
    %v131 = vpop.permute.xlu0 %130
    %134 = vset.pattern.permute.xlu0 0
    %135 = vperm.xlu0 %134, %v73
    %v136 = vpop.permute.xlu0 %135
    %139 = vset.pattern.permute.xlu0 0
    %140 = vperm.xlu0 %139, %v74
    %v141 = vpop.permute.xlu0 %140
    %144 = vset.pattern.permute.xlu0 0
    %145 = vperm.xlu0 %144, %v75
    %v146 = vpop.permute.xlu0 %145
    %149 = vset.pattern.permute.xlu0 0
    %150 = vperm.xlu0 %149, %v76
    %v151 = vpop.permute.xlu0 %150
    %154 = vset.pattern.permute.xlu0 0
    %155 = vperm.xlu0 %154, %v77
    %v156 = vpop.permute.xlu0 %155
    %159 = vset.pattern.permute.xlu0 0
    %160 = vperm.xlu0 %159, %v78
    %v161 = vpop.permute.xlu0 %160
    %164 = vset.pattern.permute.xlu0 0
    %165 = vperm.xlu0 %164, %v79
    %v166 = vpop.permute.xlu0 %165
    %169 = vset.pattern.permute.xlu0 0
    %170 = vperm.xlu0 %169, %v80
    %v171 = vpop.permute.xlu0 %170
    %174 = vset.pattern.permute.xlu0 0
    %175 = vperm.xlu0 %174, %v81
    %v176 = vpop.permute.xlu0 %175
    %179 = vset.pattern.permute.xlu0 0
    %180 = vperm.xlu0 %179, %v82
    %v181 = vpop.permute.xlu0 %180
    %184 = vset.pattern.permute.xlu0 0
    %185 = vperm.xlu0 %184, %v83
    %v186 = vpop.permute.xlu0 %185
    %189 = vset.pattern.permute.xlu0 0
    %190 = vperm.xlu0 %189, %v84
    %v191 = vpop.permute.xlu0 %190
    %194 = vset.pattern.permute.xlu0 0
    %195 = vperm.xlu0 %194, %v85
    %v196 = vpop.permute.xlu0 %195
    %199 = vset.pattern.permute.xlu0 0
    %200 = vperm.xlu0 %199, %v86
    %v201 = vpop.permute.xlu0 %200
    %204 = vset.pattern.permute.xlu0 0
    %205 = vperm.xlu0 %204, %v87
    %v206 = vpop.permute.xlu0 %205
    %v208 = vmul.f32 %v40, %v91
    %v209 = vmul.f32 %v41, %v96
    %v210 = vmul.f32 %v42, %v101
    %v211 = vmul.f32 %v43, %v106
    %v212 = vmul.f32 %v44, %v111
    %v213 = vmul.f32 %v45, %v116
    %v214 = vmul.f32 %v46, %v121
    %v215 = vmul.f32 %v47, %v126
    %v216 = vmul.f32 %v48, %v131
    %v217 = vmul.f32 %v49, %v136
    %v218 = vmul.f32 %v50, %v141
    %v219 = vmul.f32 %v51, %v146
    %v220 = vmul.f32 %v52, %v151
    %v221 = vmul.f32 %v53, %v156
    %v222 = vmul.f32 %v54, %v161
    %v223 = vmul.f32 %v55, %v166
    %v224 = vmul.f32 %v56, %v171
    %v225 = vmul.f32 %v57, %v176
    %v226 = vmul.f32 %v58, %v181
    %v227 = vmul.f32 %v59, %v186
    %v228 = vmul.f32 %v60, %v191
    %v229 = vmul.f32 %v61, %v196
    %v230 = vmul.f32 %v62, %v201
    %v231 = vmul.f32 %v63, %v206
    %v232 = vpack.c.bf16 %v209, %v208
    %v233 = vpack.c.bf16 %v211, %v210
    %v234 = vpack.c.bf16 %v213, %v212
    %v235 = vpack.c.bf16 %v215, %v214
    %v236 = vpack.c.bf16 %v217, %v216
    %v237 = vpack.c.bf16 %v219, %v218
    %v238 = vpack.c.bf16 %v221, %v220
    %v239 = vpack.c.bf16 %v223, %v222
    %v240 = vpack.c.bf16 %v225, %v224
    %v241 = vpack.c.bf16 %v227, %v226
    %v242 = vpack.c.bf16 %v229, %v228
    %v243 = vpack.c.bf16 %v231, %v230
    %v244 = vld [vmem:[#allocation2] sm:$0xff]
    %v245 = vld [vmem:[#allocation2 + $0x8] sm:$0xff]
    %v246 = vld [vmem:[#allocation2 + $0x10] sm:$0xff]
    %v247 = vld [vmem:[#allocation2 + $0x18] sm:$0xff]
    %v248 = vld [vmem:[#allocation2 + $0x20] sm:$0xff]
    %v249 = vld [vmem:[#allocation2 + $0x28] sm:$0xff]
    %v250 = vld [vmem:[#allocation2 + $0x30] sm:$0xff]
    %v251 = vld [vmem:[#allocation2 + $0x38] sm:$0xff]
    %v252 = vld [vmem:[#allocation2 + $0x40] sm:$0xff]
    %v253 = vld [vmem:[#allocation2 + $0x48] sm:$0xff]
    %v254 = vld [vmem:[#allocation2 + $0x50] sm:$0xff]
    %v255 = vld [vmem:[#allocation2 + $0x58] sm:$0xff]
    %v256 = vld [vmem:[#allocation2 + $0x60] sm:$0xff]
    %v257 = vld [vmem:[#allocation2 + $0x68] sm:$0xff]
    %v258 = vld [vmem:[#allocation2 + $0x70] sm:$0xff]
    %v259 = vld [vmem:[#allocation2 + $0x78] sm:$0xff]
    %v260 = vld [vmem:[#allocation2 + $0x80] sm:$0xff]
    %v261 = vld [vmem:[#allocation2 + $0x88] sm:$0xff]
    %v262 = vld [vmem:[#allocation2 + $0x90] sm:$0xff]
    %v263 = vld [vmem:[#allocation2 + $0x98] sm:$0xff]
    %v264 = vld [vmem:[#allocation2 + $0xa0] sm:$0xff]
    %v265 = vld [vmem:[#allocation2 + $0xa8] sm:$0xff]
    %v266 = vld [vmem:[#allocation2 + $0xb0] sm:$0xff]
    %v267 = vld [vmem:[#allocation2 + $0xb8] sm:$0xff]
    %v268 = vld [vmem:[%s2] sm:$0xf]
    %vm269 = vcmask 64512
    %v271 = vsel %vm269, %v232, 0
    %v274 = vsel %vm269, %v233, 0
    %v277 = vsel %vm269, %v234, 0
    %v280 = vsel %vm269, %v235, 0
    %v283 = vsel %vm269, %v236, 0
    %v286 = vsel %vm269, %v237, 0
    %v289 = vsel %vm269, %v238, 0
    %v292 = vsel %vm269, %v239, 0
    %v295 = vsel %vm269, %v240, 0
    %v298 = vsel %vm269, %v241, 0
    %v301 = vsel %vm269, %v242, 0
    %v304 = vsel %vm269, %v243, 0
    %vm306 = vcmask 1043456
    %v308 = vsel %vm306, %v268, 0
    %310 = vmatpush.bf16.msra.mxu0 0
    %311 = vmatpush.bf16.msra.mxu0 0
    %312 = vmatpush.bf16.msra.mxu0 0
    %313 = vmatpush.bf16.msra.mxu0 0
    %314 = vmatpush.bf16.msra.mxu0 0
    %315 = vmatpush.bf16.msra.mxu0 0
    %316 = vmatpush.bf16.msra.mxu0 0
    %317 = vmatpush.bf16.msra.mxu0 %v308
    %318 = vmatmul.bf16.gmra.mxu0 %v271
    %v319 = vpop.f32.mrf.mxu0
    %v320 = vadd.f32 0.0, %v319
    %v321 = vpop.f32.mrf.mxu0
    %v322 = vadd.f32 0.0, %v321
    %323 = vmatmul.bf16.gmra.mxu0 %v274
    %v324 = vpop.f32.mrf.mxu0
    %v325 = vadd.f32 0.0, %v324
    %v326 = vpop.f32.mrf.mxu0
    %v327 = vadd.f32 0.0, %v326
    %328 = vmatmul.bf16.gmra.mxu0 %v277
    %v329 = vpop.f32.mrf.mxu0
    %v330 = vadd.f32 0.0, %v329
    %v331 = vpop.f32.mrf.mxu0
    %v332 = vadd.f32 0.0, %v331
    %333 = vmatmul.bf16.gmra.mxu0 %v280
    %v334 = vpop.f32.mrf.mxu0
    %v335 = vadd.f32 0.0, %v334
    %v336 = vpop.f32.mrf.mxu0
    %v337 = vadd.f32 0.0, %v336
    %338 = vmatmul.bf16.gmra.mxu0 %v283
    %v339 = vpop.f32.mrf.mxu0
    %v340 = vadd.f32 0.0, %v339
    %v341 = vpop.f32.mrf.mxu0
    %v342 = vadd.f32 0.0, %v341
    %343 = vmatmul.bf16.gmra.mxu0 %v286
    %v344 = vpop.f32.mrf.mxu0
    %v345 = vadd.f32 0.0, %v344
    %v346 = vpop.f32.mrf.mxu0
    %v347 = vadd.f32 0.0, %v346
    %348 = vmatmul.bf16.gmra.mxu0 %v289
    %v349 = vpop.f32.mrf.mxu0
    %v350 = vadd.f32 0.0, %v349
    %v351 = vpop.f32.mrf.mxu0
    %v352 = vadd.f32 0.0, %v351
    %353 = vmatmul.bf16.gmra.mxu0 %v292
    %v354 = vpop.f32.mrf.mxu0
    %v355 = vadd.f32 0.0, %v354
    %v356 = vpop.f32.mrf.mxu0
    %v357 = vadd.f32 0.0, %v356
    %358 = vmatmul.bf16.gmra.mxu0 %v295
    %v359 = vpop.f32.mrf.mxu0
    %v360 = vadd.f32 0.0, %v359
    %v361 = vpop.f32.mrf.mxu0
    %v362 = vadd.f32 0.0, %v361
    %363 = vmatmul.bf16.gmra.mxu0 %v298
    %v364 = vpop.f32.mrf.mxu0
    %v365 = vadd.f32 0.0, %v364
    %v366 = vpop.f32.mrf.mxu0
    %v367 = vadd.f32 0.0, %v366
    %368 = vmatmul.bf16.gmra.mxu0 %v301
    %v369 = vpop.f32.mrf.mxu0
    %v370 = vadd.f32 0.0, %v369
    %v371 = vpop.f32.mrf.mxu0
    %v372 = vadd.f32 0.0, %v371
    %373 = vmatmul.bf16.gmra.mxu0 %v304
    %v374 = vpop.f32.mrf.mxu0
    %v375 = vadd.f32 0.0, %v374
    %v376 = vpop.f32.mrf.mxu0
    %v377 = vadd.f32 0.0, %v376
    %378 = vdwg.mxu0
    %v379 = vadd.f32 %v244, %v320
    %v380 = vadd.f32 %v245, %v322
    %v381 = vadd.f32 %v246, %v325
    %v382 = vadd.f32 %v247, %v327
    %v383 = vadd.f32 %v248, %v330
    %v384 = vadd.f32 %v249, %v332
    %v385 = vadd.f32 %v250, %v335
    %v386 = vadd.f32 %v251, %v337
    %v387 = vadd.f32 %v252, %v340
    %v388 = vadd.f32 %v253, %v342
    %v389 = vadd.f32 %v254, %v345
    %v390 = vadd.f32 %v255, %v347
    %v391 = vadd.f32 %v256, %v350
    %v392 = vadd.f32 %v257, %v352
    %v393 = vadd.f32 %v258, %v355
    %v394 = vadd.f32 %v259, %v357
    %v395 = vadd.f32 %v260, %v360
    %v396 = vadd.f32 %v261, %v362
    %v397 = vadd.f32 %v262, %v365
    %v398 = vadd.f32 %v263, %v367
    %v399 = vadd.f32 %v264, %v370
    %v400 = vadd.f32 %v265, %v372
    %v401 = vadd.f32 %v266, %v375
    %v402 = vadd.f32 %v267, %v377
    %403 = vst [vmem:[#allocation2] sm:$0xff] %v379
    %404 = vst [vmem:[#allocation2 + $0x8] sm:$0xff] %v380
    %405 = vst [vmem:[#allocation2 + $0x10] sm:$0xff] %v381
    %406 = vst [vmem:[#allocation2 + $0x18] sm:$0xff] %v382
    %407 = vst [vmem:[#allocation2 + $0x20] sm:$0xff] %v383
    %408 = vst [vmem:[#allocation2 + $0x28] sm:$0xff] %v384
    %409 = vst [vmem:[#allocation2 + $0x30] sm:$0xff] %v385
    %410 = vst [vmem:[#allocation2 + $0x38] sm:$0xff] %v386
    %411 = vst [vmem:[#allocation2 + $0x40] sm:$0xff] %v387
    %412 = vst [vmem:[#allocation2 + $0x48] sm:$0xff] %v388
    %413 = vst [vmem:[#allocation2 + $0x50] sm:$0xff] %v389
    %414 = vst [vmem:[#allocation2 + $0x58] sm:$0xff] %v390
    %415 = vst [vmem:[#allocation2 + $0x60] sm:$0xff] %v391
    %416 = vst [vmem:[#allocation2 + $0x68] sm:$0xff] %v392
    %417 = vst [vmem:[#allocation2 + $0x70] sm:$0xff] %v393
    %418 = vst [vmem:[#allocation2 + $0x78] sm:$0xff] %v394
    %419 = vst [vmem:[#allocation2 + $0x80] sm:$0xff] %v395
    %420 = vst [vmem:[#allocation2 + $0x88] sm:$0xff] %v396
    %421 = vst [vmem:[#allocation2 + $0x90] sm:$0xff] %v397
    %422 = vst [vmem:[#allocation2 + $0x98] sm:$0xff] %v398
    %423 = vst [vmem:[#allocation2 + $0xa0] sm:$0xff] %v399
    %424 = vst [vmem:[#allocation2 + $0xa8] sm:$0xff] %v400
    %425 = vst [vmem:[#allocation2 + $0xb0] sm:$0xff] %v401
    %426 = vst [vmem:[#allocation2 + $0xb8] sm:$0xff] %v402
    %v427 = vld [vmem:[%s1] sm:$0xff]
    %v428 = vld [vmem:[%s1 + $0x8] sm:$0xff]
    %v429 = vld [vmem:[%s1 + $0x10] sm:$0xff]
    %v430 = vld [vmem:[%s1 + $0x18] sm:$0xff]
    %v431 = vld [vmem:[%s1 + $0x20] sm:$0xff]
    %v432 = vld [vmem:[%s1 + $0x28] sm:$0xff]
    %v433 = vld [vmem:[%s1 + $0x30] sm:$0xff]
    %v434 = vld [vmem:[%s1 + $0x38] sm:$0xff]
    %v435 = vld [vmem:[%s1 + $0x40] sm:$0xff]
    %v436 = vld [vmem:[%s1 + $0x48] sm:$0xff]
    %v437 = vld [vmem:[%s1 + $0x50] sm:$0xff]
    %v438 = vld [vmem:[%s1 + $0x58] sm:$0xff]
    %v439 = vld [vmem:[%s1 + $0x60] sm:$0xff]
    %v440 = vld [vmem:[%s1 + $0x68] sm:$0xff]
    %v441 = vld [vmem:[%s1 + $0x70] sm:$0xff]
    %v442 = vld [vmem:[%s1 + $0x78] sm:$0xff]
    %v443 = vld [vmem:[%s1 + $0x80] sm:$0xff]
    %v444 = vld [vmem:[%s1 + $0x88] sm:$0xff]
    %v445 = vld [vmem:[%s1 + $0x90] sm:$0xff]
    %v446 = vld [vmem:[%s1 + $0x98] sm:$0xff]
    %v447 = vld [vmem:[%s1 + $0xa0] sm:$0xff]
    %v448 = vld [vmem:[%s1 + $0xa8] sm:$0xff]
    %v449 = vld [vmem:[%s1 + $0xb0] sm:$0xff]
    %v450 = vld [vmem:[%s1 + $0xb8] sm:$0xff]
    %v451 = vld [vmem:[%s0] sm:$0xff]
    %v452 = vld [vmem:[%s0 + $0x8] sm:$0xff]
    %v453 = vld [vmem:[%s0 + $0x10] sm:$0xff]
    %v454 = vld [vmem:[%s0 + $0x18] sm:$0xff]
    %v455 = vld [vmem:[%s0 + $0x20] sm:$0xff]
    %v456 = vld [vmem:[%s0 + $0x28] sm:$0xff]
    %v457 = vld [vmem:[%s0 + $0x30] sm:$0xff]
    %v458 = vld [vmem:[%s0 + $0x38] sm:$0xff]
    %v459 = vld [vmem:[%s0 + $0x40] sm:$0xff]
    %v460 = vld [vmem:[%s0 + $0x48] sm:$0xff]
    %v461 = vld [vmem:[%s0 + $0x50] sm:$0xff]
    %v462 = vld [vmem:[%s0 + $0x58] sm:$0xff]
    %v463 = vld [vmem:[%s0 + $0x60] sm:$0xff]
    %v464 = vld [vmem:[%s0 + $0x68] sm:$0xff]
    %v465 = vld [vmem:[%s0 + $0x70] sm:$0xff]
    %v466 = vld [vmem:[%s0 + $0x78] sm:$0xff]
    %v467 = vld [vmem:[%s0 + $0x80] sm:$0xff]
    %v468 = vld [vmem:[%s0 + $0x88] sm:$0xff]
    %v469 = vld [vmem:[%s0 + $0x90] sm:$0xff]
    %v470 = vld [vmem:[%s0 + $0x98] sm:$0xff]
    %v471 = vld [vmem:[%s0 + $0xa0] sm:$0xff]
    %v472 = vld [vmem:[%s0 + $0xa8] sm:$0xff]
    %v473 = vld [vmem:[%s0 + $0xb0] sm:$0xff]
    %v474 = vld [vmem:[%s0 + $0xb8] sm:$0xff]
    %476 = vset.pattern.permute.xlu0 1
    %477 = vperm.xlu0 %476, %v451
    %v478 = vpop.permute.xlu0 %477
    %481 = vset.pattern.permute.xlu0 1
    %482 = vperm.xlu0 %481, %v452
    %v483 = vpop.permute.xlu0 %482
    %486 = vset.pattern.permute.xlu0 1
    %487 = vperm.xlu0 %486, %v453
    %v488 = vpop.permute.xlu0 %487
    %491 = vset.pattern.permute.xlu0 1
    %492 = vperm.xlu0 %491, %v454
    %v493 = vpop.permute.xlu0 %492
    %496 = vset.pattern.permute.xlu0 1
    %497 = vperm.xlu0 %496, %v455
    %v498 = vpop.permute.xlu0 %497
    %501 = vset.pattern.permute.xlu0 1
    %502 = vperm.xlu0 %501, %v456
    %v503 = vpop.permute.xlu0 %502
    %506 = vset.pattern.permute.xlu0 1
    %507 = vperm.xlu0 %506, %v457
    %v508 = vpop.permute.xlu0 %507
    %511 = vset.pattern.permute.xlu0 1
    %512 = vperm.xlu0 %511, %v458
    %v513 = vpop.permute.xlu0 %512
    %516 = vset.pattern.permute.xlu0 1
    %517 = vperm.xlu0 %516, %v459
    %v518 = vpop.permute.xlu0 %517
    %521 = vset.pattern.permute.xlu0 1
    %522 = vperm.xlu0 %521, %v460
    %v523 = vpop.permute.xlu0 %522
    %526 = vset.pattern.permute.xlu0 1
    %527 = vperm.xlu0 %526, %v461
    %v528 = vpop.permute.xlu0 %527
    %531 = vset.pattern.permute.xlu0 1
    %532 = vperm.xlu0 %531, %v462
    %v533 = vpop.permute.xlu0 %532
    %536 = vset.pattern.permute.xlu0 1
    %537 = vperm.xlu0 %536, %v463
    %v538 = vpop.permute.xlu0 %537
    %541 = vset.pattern.permute.xlu0 1
    %542 = vperm.xlu0 %541, %v464
    %v543 = vpop.permute.xlu0 %542
    %546 = vset.pattern.permute.xlu0 1
    %547 = vperm.xlu0 %546, %v465
    %v548 = vpop.permute.xlu0 %547
    %551 = vset.pattern.permute.xlu0 1
    %552 = vperm.xlu0 %551, %v466
    %v553 = vpop.permute.xlu0 %552
    %556 = vset.pattern.permute.xlu0 1
    %557 = vperm.xlu0 %556, %v467
    %v558 = vpop.permute.xlu0 %557
    %561 = vset.pattern.permute.xlu0 1
    %562 = vperm.xlu0 %561, %v468
    %v563 = vpop.permute.xlu0 %562
    %566 = vset.pattern.permute.xlu0 1
    %567 = vperm.xlu0 %566, %v469
    %v568 = vpop.permute.xlu0 %567
    %571 = vset.pattern.permute.xlu0 1
    %572 = vperm.xlu0 %571, %v470
    %v573 = vpop.permute.xlu0 %572
    %576 = vset.pattern.permute.xlu0 1
    %577 = vperm.xlu0 %576, %v471
    %v578 = vpop.permute.xlu0 %577
    %581 = vset.pattern.permute.xlu0 1
    %582 = vperm.xlu0 %581, %v472
    %v583 = vpop.permute.xlu0 %582
    %586 = vset.pattern.permute.xlu0 1
    %587 = vperm.xlu0 %586, %v473
    %v588 = vpop.permute.xlu0 %587
    %591 = vset.pattern.permute.xlu0 1
    %592 = vperm.xlu0 %591, %v474
    %v593 = vpop.permute.xlu0 %592
    %v595 = vmul.f32 %v427, %v478
    %v596 = vmul.f32 %v428, %v483
    %v597 = vmul.f32 %v429, %v488
    %v598 = vmul.f32 %v430, %v493
    %v599 = vmul.f32 %v431, %v498
    %v600 = vmul.f32 %v432, %v503
    %v601 = vmul.f32 %v433, %v508
    %v602 = vmul.f32 %v434, %v513
    %v603 = vmul.f32 %v435, %v518
    %v604 = vmul.f32 %v436, %v523
    %v605 = vmul.f32 %v437, %v528
    %v606 = vmul.f32 %v438, %v533
    %v607 = vmul.f32 %v439, %v538
    %v608 = vmul.f32 %v440, %v543
    %v609 = vmul.f32 %v441, %v548
    %v610 = vmul.f32 %v442, %v553
    %v611 = vmul.f32 %v443, %v558
    %v612 = vmul.f32 %v444, %v563
    %v613 = vmul.f32 %v445, %v568
    %v614 = vmul.f32 %v446, %v573
    %v615 = vmul.f32 %v447, %v578
    %v616 = vmul.f32 %v448, %v583
    %v617 = vmul.f32 %v449, %v588
    %v618 = vmul.f32 %v450, %v593
    %v619 = vpack.c.bf16 %v596, %v595
    %v620 = vpack.c.bf16 %v598, %v597
    %v621 = vpack.c.bf16 %v600, %v599
    %v622 = vpack.c.bf16 %v602, %v601
    %v623 = vpack.c.bf16 %v604, %v603
    %v624 = vpack.c.bf16 %v606, %v605
    %v625 = vpack.c.bf16 %v608, %v607
    %v626 = vpack.c.bf16 %v610, %v609
    %v627 = vpack.c.bf16 %v612, %v611
    %v628 = vpack.c.bf16 %v614, %v613
    %v629 = vpack.c.bf16 %v616, %v615
    %v630 = vpack.c.bf16 %v618, %v617
    %v631 = vld [vmem:[#allocation2] sm:$0xff]
    %v632 = vld [vmem:[#allocation2 + $0x8] sm:$0xff]
    %v633 = vld [vmem:[#allocation2 + $0x10] sm:$0xff]
    %v634 = vld [vmem:[#allocation2 + $0x18] sm:$0xff]
    %v635 = vld [vmem:[#allocation2 + $0x20] sm:$0xff]
    %v636 = vld [vmem:[#allocation2 + $0x28] sm:$0xff]
    %v637 = vld [vmem:[#allocation2 + $0x30] sm:$0xff]
    %v638 = vld [vmem:[#allocation2 + $0x38] sm:$0xff]
    %v639 = vld [vmem:[#allocation2 + $0x40] sm:$0xff]
    %v640 = vld [vmem:[#allocation2 + $0x48] sm:$0xff]
    %v641 = vld [vmem:[#allocation2 + $0x50] sm:$0xff]
    %v642 = vld [vmem:[#allocation2 + $0x58] sm:$0xff]
    %v643 = vld [vmem:[#allocation2 + $0x60] sm:$0xff]
    %v644 = vld [vmem:[#allocation2 + $0x68] sm:$0xff]
    %v645 = vld [vmem:[#allocation2 + $0x70] sm:$0xff]
    %v646 = vld [vmem:[#allocation2 + $0x78] sm:$0xff]
    %v647 = vld [vmem:[#allocation2 + $0x80] sm:$0xff]
    %v648 = vld [vmem:[#allocation2 + $0x88] sm:$0xff]
    %v649 = vld [vmem:[#allocation2 + $0x90] sm:$0xff]
    %v650 = vld [vmem:[#allocation2 + $0x98] sm:$0xff]
    %v651 = vld [vmem:[#allocation2 + $0xa0] sm:$0xff]
    %v652 = vld [vmem:[#allocation2 + $0xa8] sm:$0xff]
    %v653 = vld [vmem:[#allocation2 + $0xb0] sm:$0xff]
    %v654 = vld [vmem:[#allocation2 + $0xb8] sm:$0xff]
    %s655 = scalar_lea.vmem %s2, 4
    %v656 = vld [vmem:[%s655] sm:$0xf]
    %v658 = vsel %vm269, %v619, 0
    %v661 = vsel %vm269, %v620, 0
    %v664 = vsel %vm269, %v621, 0
    %v667 = vsel %vm269, %v622, 0
    %v670 = vsel %vm269, %v623, 0
    %v673 = vsel %vm269, %v624, 0
    %v676 = vsel %vm269, %v625, 0
    %v679 = vsel %vm269, %v626, 0
    %v682 = vsel %vm269, %v627, 0
    %v685 = vsel %vm269, %v628, 0
    %v688 = vsel %vm269, %v629, 0
    %v691 = vsel %vm269, %v630, 0
    %v694 = vsel %vm306, %v656, 0
    %696 = vmatpush.bf16.msra.mxu0 0
    %697 = vmatpush.bf16.msra.mxu0 0
    %698 = vmatpush.bf16.msra.mxu0 0
    %699 = vmatpush.bf16.msra.mxu0 0
    %700 = vmatpush.bf16.msra.mxu0 0
    %701 = vmatpush.bf16.msra.mxu0 0
    %702 = vmatpush.bf16.msra.mxu0 0
    %703 = vmatpush.bf16.msra.mxu0 %v694
    %704 = vmatmul.bf16.gmra.mxu0 %v658
    %v705 = vpop.f32.mrf.mxu0
    %v706 = vadd.f32 0.0, %v705
    %v707 = vpop.f32.mrf.mxu0
    %v708 = vadd.f32 0.0, %v707
    %709 = vmatmul.bf16.gmra.mxu0 %v661
    %v710 = vpop.f32.mrf.mxu0
    %v711 = vadd.f32 0.0, %v710
    %v712 = vpop.f32.mrf.mxu0
    %v713 = vadd.f32 0.0, %v712
    %714 = vmatmul.bf16.gmra.mxu0 %v664
    %v715 = vpop.f32.mrf.mxu0
    %v716 = vadd.f32 0.0, %v715
    %v717 = vpop.f32.mrf.mxu0
    %v718 = vadd.f32 0.0, %v717
    %719 = vmatmul.bf16.gmra.mxu0 %v667
    %v720 = vpop.f32.mrf.mxu0
    %v721 = vadd.f32 0.0, %v720
    %v722 = vpop.f32.mrf.mxu0
    %v723 = vadd.f32 0.0, %v722
    %724 = vmatmul.bf16.gmra.mxu0 %v670
    %v725 = vpop.f32.mrf.mxu0
    %v726 = vadd.f32 0.0, %v725
    %v727 = vpop.f32.mrf.mxu0
    %v728 = vadd.f32 0.0, %v727
    %729 = vmatmul.bf16.gmra.mxu0 %v673
    %v730 = vpop.f32.mrf.mxu0
    %v731 = vadd.f32 0.0, %v730
    %v732 = vpop.f32.mrf.mxu0
    %v733 = vadd.f32 0.0, %v732
    %734 = vmatmul.bf16.gmra.mxu0 %v676
    %v735 = vpop.f32.mrf.mxu0
    %v736 = vadd.f32 0.0, %v735
    %v737 = vpop.f32.mrf.mxu0
    %v738 = vadd.f32 0.0, %v737
    %739 = vmatmul.bf16.gmra.mxu0 %v679
    %v740 = vpop.f32.mrf.mxu0
    %v741 = vadd.f32 0.0, %v740
    %v742 = vpop.f32.mrf.mxu0
    %v743 = vadd.f32 0.0, %v742
    %744 = vmatmul.bf16.gmra.mxu0 %v682
    %v745 = vpop.f32.mrf.mxu0
    %v746 = vadd.f32 0.0, %v745
    %v747 = vpop.f32.mrf.mxu0
    %v748 = vadd.f32 0.0, %v747
    %749 = vmatmul.bf16.gmra.mxu0 %v685
    %v750 = vpop.f32.mrf.mxu0
    %v751 = vadd.f32 0.0, %v750
    %v752 = vpop.f32.mrf.mxu0
    %v753 = vadd.f32 0.0, %v752
    %754 = vmatmul.bf16.gmra.mxu0 %v688
    %v755 = vpop.f32.mrf.mxu0
    %v756 = vadd.f32 0.0, %v755
    %v757 = vpop.f32.mrf.mxu0
    %v758 = vadd.f32 0.0, %v757
    %759 = vmatmul.bf16.gmra.mxu0 %v691
    %v760 = vpop.f32.mrf.mxu0
    %v761 = vadd.f32 0.0, %v760
    %v762 = vpop.f32.mrf.mxu0
    %v763 = vadd.f32 0.0, %v762
    %764 = vdwg.mxu0
    %v765 = vadd.f32 %v631, %v706
    %v766 = vadd.f32 %v632, %v708
    %v767 = vadd.f32 %v633, %v711
    %v768 = vadd.f32 %v634, %v713
    %v769 = vadd.f32 %v635, %v716
    %v770 = vadd.f32 %v636, %v718
    %v771 = vadd.f32 %v637, %v721
    %v772 = vadd.f32 %v638, %v723
    %v773 = vadd.f32 %v639, %v726
    %v774 = vadd.f32 %v640, %v728
    %v775 = vadd.f32 %v641, %v731
    %v776 = vadd.f32 %v642, %v733
    %v777 = vadd.f32 %v643, %v736
    %v778 = vadd.f32 %v644, %v738
    %v779 = vadd.f32 %v645, %v741
    %v780 = vadd.f32 %v646, %v743
    %v781 = vadd.f32 %v647, %v746
    %v782 = vadd.f32 %v648, %v748
    %v783 = vadd.f32 %v649, %v751
    %v784 = vadd.f32 %v650, %v753
    %v785 = vadd.f32 %v651, %v756
    %v786 = vadd.f32 %v652, %v758
    %v787 = vadd.f32 %v653, %v761
    %v788 = vadd.f32 %v654, %v763
    %789 = vst [vmem:[#allocation2] sm:$0xff] %v765
    %790 = vst [vmem:[#allocation2 + $0x8] sm:$0xff] %v766
    %791 = vst [vmem:[#allocation2 + $0x10] sm:$0xff] %v767
    %792 = vst [vmem:[#allocation2 + $0x18] sm:$0xff] %v768
    %793 = vst [vmem:[#allocation2 + $0x20] sm:$0xff] %v769
    %794 = vst [vmem:[#allocation2 + $0x28] sm:$0xff] %v770
    %795 = vst [vmem:[#allocation2 + $0x30] sm:$0xff] %v771
    %796 = vst [vmem:[#allocation2 + $0x38] sm:$0xff] %v772
    %797 = vst [vmem:[#allocation2 + $0x40] sm:$0xff] %v773
    %798 = vst [vmem:[#allocation2 + $0x48] sm:$0xff] %v774
    %799 = vst [vmem:[#allocation2 + $0x50] sm:$0xff] %v775
    %800 = vst [vmem:[#allocation2 + $0x58] sm:$0xff] %v776
    %801 = vst [vmem:[#allocation2 + $0x60] sm:$0xff] %v777
    %802 = vst [vmem:[#allocation2 + $0x68] sm:$0xff] %v778
    %803 = vst [vmem:[#allocation2 + $0x70] sm:$0xff] %v779
    %804 = vst [vmem:[#allocation2 + $0x78] sm:$0xff] %v780
    %805 = vst [vmem:[#allocation2 + $0x80] sm:$0xff] %v781
    %806 = vst [vmem:[#allocation2 + $0x88] sm:$0xff] %v782
    %807 = vst [vmem:[#allocation2 + $0x90] sm:$0xff] %v783
    %808 = vst [vmem:[#allocation2 + $0x98] sm:$0xff] %v784
    %809 = vst [vmem:[#allocation2 + $0xa0] sm:$0xff] %v785
    %810 = vst [vmem:[#allocation2 + $0xa8] sm:$0xff] %v786
    %811 = vst [vmem:[#allocation2 + $0xb0] sm:$0xff] %v787
    %812 = vst [vmem:[#allocation2 + $0xb8] sm:$0xff] %v788
    %v813 = vld [vmem:[%s1] sm:$0xff]
    %v814 = vld [vmem:[%s1 + $0x8] sm:$0xff]
    %v815 = vld [vmem:[%s1 + $0x10] sm:$0xff]
    %v816 = vld [vmem:[%s1 + $0x18] sm:$0xff]
    %v817 = vld [vmem:[%s1 + $0x20] sm:$0xff]
    %v818 = vld [vmem:[%s1 + $0x28] sm:$0xff]
    %v819 = vld [vmem:[%s1 + $0x30] sm:$0xff]
    %v820 = vld [vmem:[%s1 + $0x38] sm:$0xff]
    %v821 = vld [vmem:[%s1 + $0x40] sm:$0xff]
    %v822 = vld [vmem:[%s1 + $0x48] sm:$0xff]
    %v823 = vld [vmem:[%s1 + $0x50] sm:$0xff]
    %v824 = vld [vmem:[%s1 + $0x58] sm:$0xff]
    %v825 = vld [vmem:[%s1 + $0x60] sm:$0xff]
    %v826 = vld [vmem:[%s1 + $0x68] sm:$0xff]
    %v827 = vld [vmem:[%s1 + $0x70] sm:$0xff]
    %v828 = vld [vmem:[%s1 + $0x78] sm:$0xff]
    %v829 = vld [vmem:[%s1 + $0x80] sm:$0xff]
    %v830 = vld [vmem:[%s1 + $0x88] sm:$0xff]
    %v831 = vld [vmem:[%s1 + $0x90] sm:$0xff]
    %v832 = vld [vmem:[%s1 + $0x98] sm:$0xff]
    %v833 = vld [vmem:[%s1 + $0xa0] sm:$0xff]
    %v834 = vld [vmem:[%s1 + $0xa8] sm:$0xff]
    %v835 = vld [vmem:[%s1 + $0xb0] sm:$0xff]
    %v836 = vld [vmem:[%s1 + $0xb8] sm:$0xff]
    %v837 = vld [vmem:[%s0] sm:$0xff]
    %v838 = vld [vmem:[%s0 + $0x8] sm:$0xff]
    %v839 = vld [vmem:[%s0 + $0x10] sm:$0xff]
    %v840 = vld [vmem:[%s0 + $0x18] sm:$0xff]
    %v841 = vld [vmem:[%s0 + $0x20] sm:$0xff]
    %v842 = vld [vmem:[%s0 + $0x28] sm:$0xff]
    %v843 = vld [vmem:[%s0 + $0x30] sm:$0xff]
    %v844 = vld [vmem:[%s0 + $0x38] sm:$0xff]
    %v845 = vld [vmem:[%s0 + $0x40] sm:$0xff]
    %v846 = vld [vmem:[%s0 + $0x48] sm:$0xff]
    %v847 = vld [vmem:[%s0 + $0x50] sm:$0xff]
    %v848 = vld [vmem:[%s0 + $0x58] sm:$0xff]
    %v849 = vld [vmem:[%s0 + $0x60] sm:$0xff]
    %v850 = vld [vmem:[%s0 + $0x68] sm:$0xff]
    %v851 = vld [vmem:[%s0 + $0x70] sm:$0xff]
    %v852 = vld [vmem:[%s0 + $0x78] sm:$0xff]
    %v853 = vld [vmem:[%s0 + $0x80] sm:$0xff]
    %v854 = vld [vmem:[%s0 + $0x88] sm:$0xff]
    %v855 = vld [vmem:[%s0 + $0x90] sm:$0xff]
    %v856 = vld [vmem:[%s0 + $0x98] sm:$0xff]
    %v857 = vld [vmem:[%s0 + $0xa0] sm:$0xff]
    %v858 = vld [vmem:[%s0 + $0xa8] sm:$0xff]
    %v859 = vld [vmem:[%s0 + $0xb0] sm:$0xff]
    %v860 = vld [vmem:[%s0 + $0xb8] sm:$0xff]
    %862 = vset.pattern.permute.xlu0 2
    %863 = vperm.xlu0 %862, %v837
    %v864 = vpop.permute.xlu0 %863
    %867 = vset.pattern.permute.xlu0 2
    %868 = vperm.xlu0 %867, %v838
    %v869 = vpop.permute.xlu0 %868
    %872 = vset.pattern.permute.xlu0 2
    %873 = vperm.xlu0 %872, %v839
    %v874 = vpop.permute.xlu0 %873
    %877 = vset.pattern.permute.xlu0 2
    %878 = vperm.xlu0 %877, %v840
    %v879 = vpop.permute.xlu0 %878
    %882 = vset.pattern.permute.xlu0 2
    %883 = vperm.xlu0 %882, %v841
    %v884 = vpop.permute.xlu0 %883
    %887 = vset.pattern.permute.xlu0 2
    %888 = vperm.xlu0 %887, %v842
    %v889 = vpop.permute.xlu0 %888
    %892 = vset.pattern.permute.xlu0 2
    %893 = vperm.xlu0 %892, %v843
    %v894 = vpop.permute.xlu0 %893
    %897 = vset.pattern.permute.xlu0 2
    %898 = vperm.xlu0 %897, %v844
    %v899 = vpop.permute.xlu0 %898
    %902 = vset.pattern.permute.xlu0 2
    %903 = vperm.xlu0 %902, %v845
    %v904 = vpop.permute.xlu0 %903
    %907 = vset.pattern.permute.xlu0 2
    %908 = vperm.xlu0 %907, %v846
    %v909 = vpop.permute.xlu0 %908
    %912 = vset.pattern.permute.xlu0 2
    %913 = vperm.xlu0 %912, %v847
    %v914 = vpop.permute.xlu0 %913
    %917 = vset.pattern.permute.xlu0 2
    %918 = vperm.xlu0 %917, %v848
    %v919 = vpop.permute.xlu0 %918
    %922 = vset.pattern.permute.xlu0 2
    %923 = vperm.xlu0 %922, %v849
    %v924 = vpop.permute.xlu0 %923
    %927 = vset.pattern.permute.xlu0 2
    %928 = vperm.xlu0 %927, %v850
    %v929 = vpop.permute.xlu0 %928
    %932 = vset.pattern.permute.xlu0 2
    %933 = vperm.xlu0 %932, %v851
    %v934 = vpop.permute.xlu0 %933
    %937 = vset.pattern.permute.xlu0 2
    %938 = vperm.xlu0 %937, %v852
    %v939 = vpop.permute.xlu0 %938
    %942 = vset.pattern.permute.xlu0 2
    %943 = vperm.xlu0 %942, %v853
    %v944 = vpop.permute.xlu0 %943
    %947 = vset.pattern.permute.xlu0 2
    %948 = vperm.xlu0 %947, %v854
    %v949 = vpop.permute.xlu0 %948
    %952 = vset.pattern.permute.xlu0 2
    %953 = vperm.xlu0 %952, %v855
    %v954 = vpop.permute.xlu0 %953
    %957 = vset.pattern.permute.xlu0 2
    %958 = vperm.xlu0 %957, %v856
    %v959 = vpop.permute.xlu0 %958
    %962 = vset.pattern.permute.xlu0 2
    %963 = vperm.xlu0 %962, %v857
    %v964 = vpop.permute.xlu0 %963
    %967 = vset.pattern.permute.xlu0 2
    %968 = vperm.xlu0 %967, %v858
    %v969 = vpop.permute.xlu0 %968
    %972 = vset.pattern.permute.xlu0 2
    %973 = vperm.xlu0 %972, %v859
    %v974 = vpop.permute.xlu0 %973
    %977 = vset.pattern.permute.xlu0 2
    %978 = vperm.xlu0 %977, %v860
    %v979 = vpop.permute.xlu0 %978
    %v981 = vmul.f32 %v813, %v864
    %v982 = vmul.f32 %v814, %v869
    %v983 = vmul.f32 %v815, %v874
    %v984 = vmul.f32 %v816, %v879
    %v985 = vmul.f32 %v817, %v884
    %v986 = vmul.f32 %v818, %v889
    %v987 = vmul.f32 %v819, %v894
    %v988 = vmul.f32 %v820, %v899
    %v989 = vmul.f32 %v821, %v904
    %v990 = vmul.f32 %v822, %v909
    %v991 = vmul.f32 %v823, %v914
    %v992 = vmul.f32 %v824, %v919
    %v993 = vmul.f32 %v825, %v924
    %v994 = vmul.f32 %v826, %v929
    %v995 = vmul.f32 %v827, %v934
    %v996 = vmul.f32 %v828, %v939
    %v997 = vmul.f32 %v829, %v944
    %v998 = vmul.f32 %v830, %v949
    %v999 = vmul.f32 %v831, %v954
    %v1000 = vmul.f32 %v832, %v959
    %v1001 = vmul.f32 %v833, %v964
    %v1002 = vmul.f32 %v834, %v969
    %v1003 = vmul.f32 %v835, %v974
    %v1004 = vmul.f32 %v836, %v979
    %v1005 = vpack.c.bf16 %v982, %v981
    %v1006 = vpack.c.bf16 %v984, %v983
    %v1007 = vpack.c.bf16 %v986, %v985
    %v1008 = vpack.c.bf16 %v988, %v987
    %v1009 = vpack.c.bf16 %v990, %v989
    %v1010 = vpack.c.bf16 %v992, %v991
    %v1011 = vpack.c.bf16 %v994, %v993
    %v1012 = vpack.c.bf16 %v996, %v995
    %v1013 = vpack.c.bf16 %v998, %v997
    %v1014 = vpack.c.bf16 %v1000, %v999
    %v1015 = vpack.c.bf16 %v1002, %v1001
    %v1016 = vpack.c.bf16 %v1004, %v1003
    %v1017 = vld [vmem:[#allocation2] sm:$0xff]
    %v1018 = vld [vmem:[#allocation2 + $0x8] sm:$0xff]
    %v1019 = vld [vmem:[#allocation2 + $0x10] sm:$0xff]
    %v1020 = vld [vmem:[#allocation2 + $0x18] sm:$0xff]
    %v1021 = vld [vmem:[#allocation2 + $0x20] sm:$0xff]
    %v1022 = vld [vmem:[#allocation2 + $0x28] sm:$0xff]
    %v1023 = vld [vmem:[#allocation2 + $0x30] sm:$0xff]
    %v1024 = vld [vmem:[#allocation2 + $0x38] sm:$0xff]
    %v1025 = vld [vmem:[#allocation2 + $0x40] sm:$0xff]
    %v1026 = vld [vmem:[#allocation2 + $0x48] sm:$0xff]
    %v1027 = vld [vmem:[#allocation2 + $0x50] sm:$0xff]
    %v1028 = vld [vmem:[#allocation2 + $0x58] sm:$0xff]
    %v1029 = vld [vmem:[#allocation2 + $0x60] sm:$0xff]
    %v1030 = vld [vmem:[#allocation2 + $0x68] sm:$0xff]
    %v1031 = vld [vmem:[#allocation2 + $0x70] sm:$0xff]
    %v1032 = vld [vmem:[#allocation2 + $0x78] sm:$0xff]
    %v1033 = vld [vmem:[#allocation2 + $0x80] sm:$0xff]
    %v1034 = vld [vmem:[#allocation2 + $0x88] sm:$0xff]
    %v1035 = vld [vmem:[#allocation2 + $0x90] sm:$0xff]
    %v1036 = vld [vmem:[#allocation2 + $0x98] sm:$0xff]
    %v1037 = vld [vmem:[#allocation2 + $0xa0] sm:$0xff]
    %v1038 = vld [vmem:[#allocation2 + $0xa8] sm:$0xff]
    %v1039 = vld [vmem:[#allocation2 + $0xb0] sm:$0xff]
    %v1040 = vld [vmem:[#allocation2 + $0xb8] sm:$0xff]
    %s1041 = scalar_lea.vmem %s2, 8
    %v1042 = vld [vmem:[%s1041] sm:$0xf]
    %v1044 = vsel %vm269, %v1005, 0
    %v1047 = vsel %vm269, %v1006, 0
    %v1050 = vsel %vm269, %v1007, 0
    %v1053 = vsel %vm269, %v1008, 0
    %v1056 = vsel %vm269, %v1009, 0
    %v1059 = vsel %vm269, %v1010, 0
    %v1062 = vsel %vm269, %v1011, 0
    %v1065 = vsel %vm269, %v1012, 0
    %v1068 = vsel %vm269, %v1013, 0
    %v1071 = vsel %vm269, %v1014, 0
    %v1074 = vsel %vm269, %v1015, 0
    %v1077 = vsel %vm269, %v1016, 0
    %v1080 = vsel %vm306, %v1042, 0
    %1082 = vmatpush.bf16.msra.mxu0 0
    %1083 = vmatpush.bf16.msra.mxu0 0
    %1084 = vmatpush.bf16.msra.mxu0 0
    %1085 = vmatpush.bf16.msra.mxu0 0
    %1086 = vmatpush.bf16.msra.mxu0 0
    %1087 = vmatpush.bf16.msra.mxu0 0
    %1088 = vmatpush.bf16.msra.mxu0 0
    %1089 = vmatpush.bf16.msra.mxu0 %v1080
    %1090 = vmatmul.bf16.gmra.mxu0 %v1044
    %v1091 = vpop.f32.mrf.mxu0
    %v1092 = vadd.f32 0.0, %v1091
    %v1093 = vpop.f32.mrf.mxu0
    %v1094 = vadd.f32 0.0, %v1093
    %1095 = vmatmul.bf16.gmra.mxu0 %v1047
    %v1096 = vpop.f32.mrf.mxu0
    %v1097 = vadd.f32 0.0, %v1096
    %v1098 = vpop.f32.mrf.mxu0
    %v1099 = vadd.f32 0.0, %v1098
    %1100 = vmatmul.bf16.gmra.mxu0 %v1050
    %v1101 = vpop.f32.mrf.mxu0
    %v1102 = vadd.f32 0.0, %v1101
    %v1103 = vpop.f32.mrf.mxu0
    %v1104 = vadd.f32 0.0, %v1103
    %1105 = vmatmul.bf16.gmra.mxu0 %v1053
    %v1106 = vpop.f32.mrf.mxu0
    %v1107 = vadd.f32 0.0, %v1106
    %v1108 = vpop.f32.mrf.mxu0
    %v1109 = vadd.f32 0.0, %v1108
    %1110 = vmatmul.bf16.gmra.mxu0 %v1056
    %v1111 = vpop.f32.mrf.mxu0
    %v1112 = vadd.f32 0.0, %v1111
    %v1113 = vpop.f32.mrf.mxu0
    %v1114 = vadd.f32 0.0, %v1113
    %1115 = vmatmul.bf16.gmra.mxu0 %v1059
    %v1116 = vpop.f32.mrf.mxu0
    %v1117 = vadd.f32 0.0, %v1116
    %v1118 = vpop.f32.mrf.mxu0
    %v1119 = vadd.f32 0.0, %v1118
    %1120 = vmatmul.bf16.gmra.mxu0 %v1062
    %v1121 = vpop.f32.mrf.mxu0
    %v1122 = vadd.f32 0.0, %v1121
    %v1123 = vpop.f32.mrf.mxu0
    %v1124 = vadd.f32 0.0, %v1123
    %1125 = vmatmul.bf16.gmra.mxu0 %v1065
    %v1126 = vpop.f32.mrf.mxu0
    %v1127 = vadd.f32 0.0, %v1126
    %v1128 = vpop.f32.mrf.mxu0
    %v1129 = vadd.f32 0.0, %v1128
    %1130 = vmatmul.bf16.gmra.mxu0 %v1068
    %v1131 = vpop.f32.mrf.mxu0
    %v1132 = vadd.f32 0.0, %v1131
    %v1133 = vpop.f32.mrf.mxu0
    %v1134 = vadd.f32 0.0, %v1133
    %1135 = vmatmul.bf16.gmra.mxu0 %v1071
    %v1136 = vpop.f32.mrf.mxu0
    %v1137 = vadd.f32 0.0, %v1136
    %v1138 = vpop.f32.mrf.mxu0
    %v1139 = vadd.f32 0.0, %v1138
    %1140 = vmatmul.bf16.gmra.mxu0 %v1074
    %v1141 = vpop.f32.mrf.mxu0
    %v1142 = vadd.f32 0.0, %v1141
    %v1143 = vpop.f32.mrf.mxu0
    %v1144 = vadd.f32 0.0, %v1143
    %1145 = vmatmul.bf16.gmra.mxu0 %v1077
    %v1146 = vpop.f32.mrf.mxu0
    %v1147 = vadd.f32 0.0, %v1146
    %v1148 = vpop.f32.mrf.mxu0
    %v1149 = vadd.f32 0.0, %v1148
    %1150 = vdwg.mxu0
    %v1151 = vadd.f32 %v1017, %v1092
    %v1152 = vadd.f32 %v1018, %v1094
    %v1153 = vadd.f32 %v1019, %v1097
    %v1154 = vadd.f32 %v1020, %v1099
    %v1155 = vadd.f32 %v1021, %v1102
    %v1156 = vadd.f32 %v1022, %v1104
    %v1157 = vadd.f32 %v1023, %v1107
    %v1158 = vadd.f32 %v1024, %v1109
    %v1159 = vadd.f32 %v1025, %v1112
    %v1160 = vadd.f32 %v1026, %v1114
    %v1161 = vadd.f32 %v1027, %v1117
    %v1162 = vadd.f32 %v1028, %v1119
    %v1163 = vadd.f32 %v1029, %v1122
    %v1164 = vadd.f32 %v1030, %v1124
    %v1165 = vadd.f32 %v1031, %v1127
    %v1166 = vadd.f32 %v1032, %v1129
    %v1167 = vadd.f32 %v1033, %v1132
    %v1168 = vadd.f32 %v1034, %v1134
    %v1169 = vadd.f32 %v1035, %v1137
    %v1170 = vadd.f32 %v1036, %v1139
    %v1171 = vadd.f32 %v1037, %v1142
    %v1172 = vadd.f32 %v1038, %v1144
    %v1173 = vadd.f32 %v1039, %v1147
    %v1174 = vadd.f32 %v1040, %v1149
    %1175 = vst [vmem:[#allocation2] sm:$0xff] %v1151
    %1176 = vst [vmem:[#allocation2 + $0x8] sm:$0xff] %v1152
    %1177 = vst [vmem:[#allocation2 + $0x10] sm:$0xff] %v1153
    %1178 = vst [vmem:[#allocation2 + $0x18] sm:$0xff] %v1154
    %1179 = vst [vmem:[#allocation2 + $0x20] sm:$0xff] %v1155
    %1180 = vst [vmem:[#allocation2 + $0x28] sm:$0xff] %v1156
    %1181 = vst [vmem:[#allocation2 + $0x30] sm:$0xff] %v1157
    %1182 = vst [vmem:[#allocation2 + $0x38] sm:$0xff] %v1158
    %1183 = vst [vmem:[#allocation2 + $0x40] sm:$0xff] %v1159
    %1184 = vst [vmem:[#allocation2 + $0x48] sm:$0xff] %v1160
    %1185 = vst [vmem:[#allocation2 + $0x50] sm:$0xff] %v1161
    %1186 = vst [vmem:[#allocation2 + $0x58] sm:$0xff] %v1162
    %1187 = vst [vmem:[#allocation2 + $0x60] sm:$0xff] %v1163
    %1188 = vst [vmem:[#allocation2 + $0x68] sm:$0xff] %v1164
    %1189 = vst [vmem:[#allocation2 + $0x70] sm:$0xff] %v1165
    %1190 = vst [vmem:[#allocation2 + $0x78] sm:$0xff] %v1166
    %1191 = vst [vmem:[#allocation2 + $0x80] sm:$0xff] %v1167
    %1192 = vst [vmem:[#allocation2 + $0x88] sm:$0xff] %v1168
    %1193 = vst [vmem:[#allocation2 + $0x90] sm:$0xff] %v1169
    %1194 = vst [vmem:[#allocation2 + $0x98] sm:$0xff] %v1170
    %1195 = vst [vmem:[#allocation2 + $0xa0] sm:$0xff] %v1171
    %1196 = vst [vmem:[#allocation2 + $0xa8] sm:$0xff] %v1172
    %1197 = vst [vmem:[#allocation2 + $0xb0] sm:$0xff] %v1173
    %1198 = vst [vmem:[#allocation2 + $0xb8] sm:$0xff] %v1174
    %v1199 = vld [vmem:[%s1] sm:$0xff]
    %v1200 = vld [vmem:[%s1 + $0x8] sm:$0xff]
    %v1201 = vld [vmem:[%s1 + $0x10] sm:$0xff]
    %v1202 = vld [vmem:[%s1 + $0x18] sm:$0xff]
    %v1203 = vld [vmem:[%s1 + $0x20] sm:$0xff]
    %v1204 = vld [vmem:[%s1 + $0x28] sm:$0xff]
    %v1205 = vld [vmem:[%s1 + $0x30] sm:$0xff]
    %v1206 = vld [vmem:[%s1 + $0x38] sm:$0xff]
    %v1207 = vld [vmem:[%s1 + $0x40] sm:$0xff]
    %v1208 = vld [vmem:[%s1 + $0x48] sm:$0xff]
    %v1209 = vld [vmem:[%s1 + $0x50] sm:$0xff]
    %v1210 = vld [vmem:[%s1 + $0x58] sm:$0xff]
    %v1211 = vld [vmem:[%s1 + $0x60] sm:$0xff]
    %v1212 = vld [vmem:[%s1 + $0x68] sm:$0xff]
    %v1213 = vld [vmem:[%s1 + $0x70] sm:$0xff]
    %v1214 = vld [vmem:[%s1 + $0x78] sm:$0xff]
    %v1215 = vld [vmem:[%s1 + $0x80] sm:$0xff]
    %v1216 = vld [vmem:[%s1 + $0x88] sm:$0xff]
    %v1217 = vld [vmem:[%s1 + $0x90] sm:$0xff]
    %v1218 = vld [vmem:[%s1 + $0x98] sm:$0xff]
    %v1219 = vld [vmem:[%s1 + $0xa0] sm:$0xff]
    %v1220 = vld [vmem:[%s1 + $0xa8] sm:$0xff]
    %v1221 = vld [vmem:[%s1 + $0xb0] sm:$0xff]
    %v1222 = vld [vmem:[%s1 + $0xb8] sm:$0xff]
    %v1223 = vld [vmem:[%s0] sm:$0xff]
    %v1224 = vld [vmem:[%s0 + $0x8] sm:$0xff]
    %v1225 = vld [vmem:[%s0 + $0x10] sm:$0xff]
    %v1226 = vld [vmem:[%s0 + $0x18] sm:$0xff]
    %v1227 = vld [vmem:[%s0 + $0x20] sm:$0xff]
    %v1228 = vld [vmem:[%s0 + $0x28] sm:$0xff]
    %v1229 = vld [vmem:[%s0 + $0x30] sm:$0xff]
    %v1230 = vld [vmem:[%s0 + $0x38] sm:$0xff]
    %v1231 = vld [vmem:[%s0 + $0x40] sm:$0xff]
    %v1232 = vld [vmem:[%s0 + $0x48] sm:$0xff]
    %v1233 = vld [vmem:[%s0 + $0x50] sm:$0xff]
    %v1234 = vld [vmem:[%s0 + $0x58] sm:$0xff]
    %v1235 = vld [vmem:[%s0 + $0x60] sm:$0xff]
    %v1236 = vld [vmem:[%s0 + $0x68] sm:$0xff]
    %v1237 = vld [vmem:[%s0 + $0x70] sm:$0xff]
    %v1238 = vld [vmem:[%s0 + $0x78] sm:$0xff]
    %v1239 = vld [vmem:[%s0 + $0x80] sm:$0xff]
    %v1240 = vld [vmem:[%s0 + $0x88] sm:$0xff]
    %v1241 = vld [vmem:[%s0 + $0x90] sm:$0xff]
    %v1242 = vld [vmem:[%s0 + $0x98] sm:$0xff]
    %v1243 = vld [vmem:[%s0 + $0xa0] sm:$0xff]
    %v1244 = vld [vmem:[%s0 + $0xa8] sm:$0xff]
    %v1245 = vld [vmem:[%s0 + $0xb0] sm:$0xff]
    %v1246 = vld [vmem:[%s0 + $0xb8] sm:$0xff]
    %1248 = vset.pattern.permute.xlu0 3
    %1249 = vperm.xlu0 %1248, %v1223
    %v1250 = vpop.permute.xlu0 %1249
    %1253 = vset.pattern.permute.xlu0 3
    %1254 = vperm.xlu0 %1253, %v1224
    %v1255 = vpop.permute.xlu0 %1254
    %1258 = vset.pattern.permute.xlu0 3
    %1259 = vperm.xlu0 %1258, %v1225
    %v1260 = vpop.permute.xlu0 %1259
    %1263 = vset.pattern.permute.xlu0 3
    %1264 = vperm.xlu0 %1263, %v1226
    %v1265 = vpop.permute.xlu0 %1264
    %1268 = vset.pattern.permute.xlu0 3
    %1269 = vperm.xlu0 %1268, %v1227
    %v1270 = vpop.permute.xlu0 %1269
    %1273 = vset.pattern.permute.xlu0 3
    %1274 = vperm.xlu0 %1273, %v1228
    %v1275 = vpop.permute.xlu0 %1274
    %1278 = vset.pattern.permute.xlu0 3
    %1279 = vperm.xlu0 %1278, %v1229
    %v1280 = vpop.permute.xlu0 %1279
    %1283 = vset.pattern.permute.xlu0 3
    %1284 = vperm.xlu0 %1283, %v1230
    %v1285 = vpop.permute.xlu0 %1284
    %1288 = vset.pattern.permute.xlu0 3
    %1289 = vperm.xlu0 %1288, %v1231
    %v1290 = vpop.permute.xlu0 %1289
    %1293 = vset.pattern.permute.xlu0 3
    %1294 = vperm.xlu0 %1293, %v1232
    %v1295 = vpop.permute.xlu0 %1294
    %1298 = vset.pattern.permute.xlu0 3
    %1299 = vperm.xlu0 %1298, %v1233
    %v1300 = vpop.permute.xlu0 %1299
    %1303 = vset.pattern.permute.xlu0 3
    %1304 = vperm.xlu0 %1303, %v1234
    %v1305 = vpop.permute.xlu0 %1304
    %1308 = vset.pattern.permute.xlu0 3
    %1309 = vperm.xlu0 %1308, %v1235
    %v1310 = vpop.permute.xlu0 %1309
    %1313 = vset.pattern.permute.xlu0 3
    %1314 = vperm.xlu0 %1313, %v1236
    %v1315 = vpop.permute.xlu0 %1314
    %1318 = vset.pattern.permute.xlu0 3
    %1319 = vperm.xlu0 %1318, %v1237
    %v1320 = vpop.permute.xlu0 %1319
    %1323 = vset.pattern.permute.xlu0 3
    %1324 = vperm.xlu0 %1323, %v1238
    %v1325 = vpop.permute.xlu0 %1324
    %1328 = vset.pattern.permute.xlu0 3
    %1329 = vperm.xlu0 %1328, %v1239
    %v1330 = vpop.permute.xlu0 %1329
    %1333 = vset.pattern.permute.xlu0 3
    %1334 = vperm.xlu0 %1333, %v1240
    %v1335 = vpop.permute.xlu0 %1334
    %1338 = vset.pattern.permute.xlu0 3
    %1339 = vperm.xlu0 %1338, %v1241
    %v1340 = vpop.permute.xlu0 %1339
    %1343 = vset.pattern.permute.xlu0 3
    %1344 = vperm.xlu0 %1343, %v1242
    %v1345 = vpop.permute.xlu0 %1344
    %1348 = vset.pattern.permute.xlu0 3
    %1349 = vperm.xlu0 %1348, %v1243
    %v1350 = vpop.permute.xlu0 %1349
    %1353 = vset.pattern.permute.xlu0 3
    %1354 = vperm.xlu0 %1353, %v1244
    %v1355 = vpop.permute.xlu0 %1354
    %1358 = vset.pattern.permute.xlu0 3
    %1359 = vperm.xlu0 %1358, %v1245
    %v1360 = vpop.permute.xlu0 %1359
    %1363 = vset.pattern.permute.xlu0 3
    %1364 = vperm.xlu0 %1363, %v1246
    %v1365 = vpop.permute.xlu0 %1364
    %v1367 = vmul.f32 %v1199, %v1250
    %v1368 = vmul.f32 %v1200, %v1255
    %v1369 = vmul.f32 %v1201, %v1260
    %v1370 = vmul.f32 %v1202, %v1265
    %v1371 = vmul.f32 %v1203, %v1270
    %v1372 = vmul.f32 %v1204, %v1275
    %v1373 = vmul.f32 %v1205, %v1280
    %v1374 = vmul.f32 %v1206, %v1285
    %v1375 = vmul.f32 %v1207, %v1290
    %v1376 = vmul.f32 %v1208, %v1295
    %v1377 = vmul.f32 %v1209, %v1300
    %v1378 = vmul.f32 %v1210, %v1305
    %v1379 = vmul.f32 %v1211, %v1310
    %v1380 = vmul.f32 %v1212, %v1315
    %v1381 = vmul.f32 %v1213, %v1320
    %v1382 = vmul.f32 %v1214, %v1325
    %v1383 = vmul.f32 %v1215, %v1330
    %v1384 = vmul.f32 %v1216, %v1335
    %v1385 = vmul.f32 %v1217, %v1340
    %v1386 = vmul.f32 %v1218, %v1345
    %v1387 = vmul.f32 %v1219, %v1350
    %v1388 = vmul.f32 %v1220, %v1355
    %v1389 = vmul.f32 %v1221, %v1360
    %v1390 = vmul.f32 %v1222, %v1365
    %v1391 = vpack.c.bf16 %v1368, %v1367
    %v1392 = vpack.c.bf16 %v1370, %v1369
    %v1393 = vpack.c.bf16 %v1372, %v1371
    %v1394 = vpack.c.bf16 %v1374, %v1373
    %v1395 = vpack.c.bf16 %v1376, %v1375
    %v1396 = vpack.c.bf16 %v1378, %v1377
    %v1397 = vpack.c.bf16 %v1380, %v1379
    %v1398 = vpack.c.bf16 %v1382, %v1381
    %v1399 = vpack.c.bf16 %v1384, %v1383
    %v1400 = vpack.c.bf16 %v1386, %v1385
    %v1401 = vpack.c.bf16 %v1388, %v1387
    %v1402 = vpack.c.bf16 %v1390, %v1389
    %v1403 = vld [vmem:[#allocation2] sm:$0xff]
    %v1404 = vld [vmem:[#allocation2 + $0x8] sm:$0xff]
    %v1405 = vld [vmem:[#allocation2 + $0x10] sm:$0xff]
    %v1406 = vld [vmem:[#allocation2 + $0x18] sm:$0xff]
    %v1407 = vld [vmem:[#allocation2 + $0x20] sm:$0xff]
    %v1408 = vld [vmem:[#allocation2 + $0x28] sm:$0xff]
    %v1409 = vld [vmem:[#allocation2 + $0x30] sm:$0xff]
    %v1410 = vld [vmem:[#allocation2 + $0x38] sm:$0xff]
    %v1411 = vld [vmem:[#allocation2 + $0x40] sm:$0xff]
    %v1412 = vld [vmem:[#allocation2 + $0x48] sm:$0xff]
    %v1413 = vld [vmem:[#allocation2 + $0x50] sm:$0xff]
    %v1414 = vld [vmem:[#allocation2 + $0x58] sm:$0xff]
    %v1415 = vld [vmem:[#allocation2 + $0x60] sm:$0xff]
    %v1416 = vld [vmem:[#allocation2 + $0x68] sm:$0xff]
    %v1417 = vld [vmem:[#allocation2 + $0x70] sm:$0xff]
    %v1418 = vld [vmem:[#allocation2 + $0x78] sm:$0xff]
    %v1419 = vld [vmem:[#allocation2 + $0x80] sm:$0xff]
    %v1420 = vld [vmem:[#allocation2 + $0x88] sm:$0xff]
    %v1421 = vld [vmem:[#allocation2 + $0x90] sm:$0xff]
    %v1422 = vld [vmem:[#allocation2 + $0x98] sm:$0xff]
    %v1423 = vld [vmem:[#allocation2 + $0xa0] sm:$0xff]
    %v1424 = vld [vmem:[#allocation2 + $0xa8] sm:$0xff]
    %v1425 = vld [vmem:[#allocation2 + $0xb0] sm:$0xff]
    %v1426 = vld [vmem:[#allocation2 + $0xb8] sm:$0xff]
    %s1427 = scalar_lea.vmem %s2, 12
    %v1428 = vld [vmem:[%s1427] sm:$0xf]
    %v1430 = vsel %vm269, %v1391, 0
    %v1433 = vsel %vm269, %v1392, 0
    %v1436 = vsel %vm269, %v1393, 0
    %v1439 = vsel %vm269, %v1394, 0
    %v1442 = vsel %vm269, %v1395, 0
    %v1445 = vsel %vm269, %v1396, 0
    %v1448 = vsel %vm269, %v1397, 0
    %v1451 = vsel %vm269, %v1398, 0
    %v1454 = vsel %vm269, %v1399, 0
    %v1457 = vsel %vm269, %v1400, 0
    %v1460 = vsel %vm269, %v1401, 0
    %v1463 = vsel %vm269, %v1402, 0
    %v1466 = vsel %vm306, %v1428, 0
    %1468 = vmatpush.bf16.msra.mxu0 0
    %1469 = vmatpush.bf16.msra.mxu0 0
    %1470 = vmatpush.bf16.msra.mxu0 0
    %1471 = vmatpush.bf16.msra.mxu0 0
    %1472 = vmatpush.bf16.msra.mxu0 0
    %1473 = vmatpush.bf16.msra.mxu0 0
    %1474 = vmatpush.bf16.msra.mxu0 0
    %1475 = vmatpush.bf16.msra.mxu0 %v1466
    %1476 = vmatmul.bf16.gmra.mxu0 %v1430
    %v1477 = vpop.f32.mrf.mxu0
    %v1478 = vadd.f32 0.0, %v1477
    %v1479 = vpop.f32.mrf.mxu0
    %v1480 = vadd.f32 0.0, %v1479
    %1481 = vmatmul.bf16.gmra.mxu0 %v1433
    %v1482 = vpop.f32.mrf.mxu0
    %v1483 = vadd.f32 0.0, %v1482
    %v1484 = vpop.f32.mrf.mxu0
    %v1485 = vadd.f32 0.0, %v1484
    %1486 = vmatmul.bf16.gmra.mxu0 %v1436
    %v1487 = vpop.f32.mrf.mxu0
    %v1488 = vadd.f32 0.0, %v1487
    %v1489 = vpop.f32.mrf.mxu0
    %v1490 = vadd.f32 0.0, %v1489
    %1491 = vmatmul.bf16.gmra.mxu0 %v1439
    %v1492 = vpop.f32.mrf.mxu0
    %v1493 = vadd.f32 0.0, %v1492
    %v1494 = vpop.f32.mrf.mxu0
    %v1495 = vadd.f32 0.0, %v1494
    %1496 = vmatmul.bf16.gmra.mxu0 %v1442
    %v1497 = vpop.f32.mrf.mxu0
    %v1498 = vadd.f32 0.0, %v1497
    %v1499 = vpop.f32.mrf.mxu0
    %v1500 = vadd.f32 0.0, %v1499
    %1501 = vmatmul.bf16.gmra.mxu0 %v1445
    %v1502 = vpop.f32.mrf.mxu0
    %v1503 = vadd.f32 0.0, %v1502
    %v1504 = vpop.f32.mrf.mxu0
    %v1505 = vadd.f32 0.0, %v1504
    %1506 = vmatmul.bf16.gmra.mxu0 %v1448
    %v1507 = vpop.f32.mrf.mxu0
    %v1508 = vadd.f32 0.0, %v1507
    %v1509 = vpop.f32.mrf.mxu0
    %v1510 = vadd.f32 0.0, %v1509
    %1511 = vmatmul.bf16.gmra.mxu0 %v1451
    %v1512 = vpop.f32.mrf.mxu0
    %v1513 = vadd.f32 0.0, %v1512
    %v1514 = vpop.f32.mrf.mxu0
    %v1515 = vadd.f32 0.0, %v1514
    %1516 = vmatmul.bf16.gmra.mxu0 %v1454
    %v1517 = vpop.f32.mrf.mxu0
    %v1518 = vadd.f32 0.0, %v1517
    %v1519 = vpop.f32.mrf.mxu0
    %v1520 = vadd.f32 0.0, %v1519
    %1521 = vmatmul.bf16.gmra.mxu0 %v1457
    %v1522 = vpop.f32.mrf.mxu0
    %v1523 = vadd.f32 0.0, %v1522
    %v1524 = vpop.f32.mrf.mxu0
    %v1525 = vadd.f32 0.0, %v1524
    %1526 = vmatmul.bf16.gmra.mxu0 %v1460
    %v1527 = vpop.f32.mrf.mxu0
    %v1528 = vadd.f32 0.0, %v1527
    %v1529 = vpop.f32.mrf.mxu0
    %v1530 = vadd.f32 0.0, %v1529
    %1531 = vmatmul.bf16.gmra.mxu0 %v1463
    %v1532 = vpop.f32.mrf.mxu0
    %v1533 = vadd.f32 0.0, %v1532
    %v1534 = vpop.f32.mrf.mxu0
    %v1535 = vadd.f32 0.0, %v1534
    %1536 = vdwg.mxu0
    %v1537 = vadd.f32 %v1403, %v1478
    %v1538 = vadd.f32 %v1404, %v1480
    %v1539 = vadd.f32 %v1405, %v1483
    %v1540 = vadd.f32 %v1406, %v1485
    %v1541 = vadd.f32 %v1407, %v1488
    %v1542 = vadd.f32 %v1408, %v1490
    %v1543 = vadd.f32 %v1409, %v1493
    %v1544 = vadd.f32 %v1410, %v1495
    %v1545 = vadd.f32 %v1411, %v1498
    %v1546 = vadd.f32 %v1412, %v1500
    %v1547 = vadd.f32 %v1413, %v1503
    %v1548 = vadd.f32 %v1414, %v1505
    %v1549 = vadd.f32 %v1415, %v1508
    %v1550 = vadd.f32 %v1416, %v1510
    %v1551 = vadd.f32 %v1417, %v1513
    %v1552 = vadd.f32 %v1418, %v1515
    %v1553 = vadd.f32 %v1419, %v1518
    %v1554 = vadd.f32 %v1420, %v1520
    %v1555 = vadd.f32 %v1421, %v1523
    %v1556 = vadd.f32 %v1422, %v1525
    %v1557 = vadd.f32 %v1423, %v1528
    %v1558 = vadd.f32 %v1424, %v1530
    %v1559 = vadd.f32 %v1425, %v1533
    %v1560 = vadd.f32 %v1426, %v1535
    %1561 = vst [vmem:[#allocation2] sm:$0xff] %v1537
    %1562 = vst [vmem:[#allocation2 + $0x8] sm:$0xff] %v1538
    %1563 = vst [vmem:[#allocation2 + $0x10] sm:$0xff] %v1539
    %1564 = vst [vmem:[#allocation2 + $0x18] sm:$0xff] %v1540
    %1565 = vst [vmem:[#allocation2 + $0x20] sm:$0xff] %v1541
    %1566 = vst [vmem:[#allocation2 + $0x28] sm:$0xff] %v1542
    %1567 = vst [vmem:[#allocation2 + $0x30] sm:$0xff] %v1543
    %1568 = vst [vmem:[#allocation2 + $0x38] sm:$0xff] %v1544
    %1569 = vst [vmem:[#allocation2 + $0x40] sm:$0xff] %v1545
    %1570 = vst [vmem:[#allocation2 + $0x48] sm:$0xff] %v1546
    %1571 = vst [vmem:[#allocation2 + $0x50] sm:$0xff] %v1547
    %1572 = vst [vmem:[#allocation2 + $0x58] sm:$0xff] %v1548
    %1573 = vst [vmem:[#allocation2 + $0x60] sm:$0xff] %v1549
    %1574 = vst [vmem:[#allocation2 + $0x68] sm:$0xff] %v1550
    %1575 = vst [vmem:[#allocation2 + $0x70] sm:$0xff] %v1551
    %1576 = vst [vmem:[#allocation2 + $0x78] sm:$0xff] %v1552
    %1577 = vst [vmem:[#allocation2 + $0x80] sm:$0xff] %v1553
    %1578 = vst [vmem:[#allocation2 + $0x88] sm:$0xff] %v1554
    %1579 = vst [vmem:[#allocation2 + $0x90] sm:$0xff] %v1555
    %1580 = vst [vmem:[#allocation2 + $0x98] sm:$0xff] %v1556
    %1581 = vst [vmem:[#allocation2 + $0xa0] sm:$0xff] %v1557
    %1582 = vst [vmem:[#allocation2 + $0xa8] sm:$0xff] %v1558
    %1583 = vst [vmem:[#allocation2 + $0xb0] sm:$0xff] %v1559
    %1584 = vst [vmem:[#allocation2 + $0xb8] sm:$0xff] %v1560
    %v1585 = vld [vmem:[%s1] sm:$0xff]
    %v1586 = vld [vmem:[%s1 + $0x8] sm:$0xff]
    %v1587 = vld [vmem:[%s1 + $0x10] sm:$0xff]
    %v1588 = vld [vmem:[%s1 + $0x18] sm:$0xff]
    %v1589 = vld [vmem:[%s1 + $0x20] sm:$0xff]
    %v1590 = vld [vmem:[%s1 + $0x28] sm:$0xff]
    %v1591 = vld [vmem:[%s1 + $0x30] sm:$0xff]
    %v1592 = vld [vmem:[%s1 + $0x38] sm:$0xff]
    %v1593 = vld [vmem:[%s1 + $0x40] sm:$0xff]
    %v1594 = vld [vmem:[%s1 + $0x48] sm:$0xff]
    %v1595 = vld [vmem:[%s1 + $0x50] sm:$0xff]
    %v1596 = vld [vmem:[%s1 + $0x58] sm:$0xff]
    %v1597 = vld [vmem:[%s1 + $0x60] sm:$0xff]
    %v1598 = vld [vmem:[%s1 + $0x68] sm:$0xff]
    %v1599 = vld [vmem:[%s1 + $0x70] sm:$0xff]
    %v1600 = vld [vmem:[%s1 + $0x78] sm:$0xff]
    %v1601 = vld [vmem:[%s1 + $0x80] sm:$0xff]
    %v1602 = vld [vmem:[%s1 + $0x88] sm:$0xff]
    %v1603 = vld [vmem:[%s1 + $0x90] sm:$0xff]
    %v1604 = vld [vmem:[%s1 + $0x98] sm:$0xff]
    %v1605 = vld [vmem:[%s1 + $0xa0] sm:$0xff]
    %v1606 = vld [vmem:[%s1 + $0xa8] sm:$0xff]
    %v1607 = vld [vmem:[%s1 + $0xb0] sm:$0xff]
    %v1608 = vld [vmem:[%s1 + $0xb8] sm:$0xff]
    %v1609 = vld [vmem:[%s0] sm:$0xff]
    %v1610 = vld [vmem:[%s0 + $0x8] sm:$0xff]
    %v1611 = vld [vmem:[%s0 + $0x10] sm:$0xff]
    %v1612 = vld [vmem:[%s0 + $0x18] sm:$0xff]
    %v1613 = vld [vmem:[%s0 + $0x20] sm:$0xff]
    %v1614 = vld [vmem:[%s0 + $0x28] sm:$0xff]
    %v1615 = vld [vmem:[%s0 + $0x30] sm:$0xff]
    %v1616 = vld [vmem:[%s0 + $0x38] sm:$0xff]
    %v1617 = vld [vmem:[%s0 + $0x40] sm:$0xff]
    %v1618 = vld [vmem:[%s0 + $0x48] sm:$0xff]
    %v1619 = vld [vmem:[%s0 + $0x50] sm:$0xff]
    %v1620 = vld [vmem:[%s0 + $0x58] sm:$0xff]
    %v1621 = vld [vmem:[%s0 + $0x60] sm:$0xff]
    %v1622 = vld [vmem:[%s0 + $0x68] sm:$0xff]
    %v1623 = vld [vmem:[%s0 + $0x70] sm:$0xff]
    %v1624 = vld [vmem:[%s0 + $0x78] sm:$0xff]
    %v1625 = vld [vmem:[%s0 + $0x80] sm:$0xff]
    %v1626 = vld [vmem:[%s0 + $0x88] sm:$0xff]
    %v1627 = vld [vmem:[%s0 + $0x90] sm:$0xff]
    %v1628 = vld [vmem:[%s0 + $0x98] sm:$0xff]
    %v1629 = vld [vmem:[%s0 + $0xa0] sm:$0xff]
    %v1630 = vld [vmem:[%s0 + $0xa8] sm:$0xff]
    %v1631 = vld [vmem:[%s0 + $0xb0] sm:$0xff]
    %v1632 = vld [vmem:[%s0 + $0xb8] sm:$0xff]
    %1634 = vset.pattern.permute.xlu0 4
    %1635 = vperm.xlu0 %1634, %v1609
    %v1636 = vpop.permute.xlu0 %1635
    %1639 = vset.pattern.permute.xlu0 4
    %1640 = vperm.xlu0 %1639, %v1610
    %v1641 = vpop.permute.xlu0 %1640
    %1644 = vset.pattern.permute.xlu0 4
    %1645 = vperm.xlu0 %1644, %v1611
    %v1646 = vpop.permute.xlu0 %1645
    %1649 = vset.pattern.permute.xlu0 4
    %1650 = vperm.xlu0 %1649, %v1612
    %v1651 = vpop.permute.xlu0 %1650
    %1654 = vset.pattern.permute.xlu0 4
    %1655 = vperm.xlu0 %1654, %v1613
    %v1656 = vpop.permute.xlu0 %1655
    %1659 = vset.pattern.permute.xlu0 4
    %1660 = vperm.xlu0 %1659, %v1614
    %v1661 = vpop.permute.xlu0 %1660
    %1664 = vset.pattern.permute.xlu0 4
    %1665 = vperm.xlu0 %1664, %v1615
    %v1666 = vpop.permute.xlu0 %1665
    %1669 = vset.pattern.permute.xlu0 4
    %1670 = vperm.xlu0 %1669, %v1616
    %v1671 = vpop.permute.xlu0 %1670
    %1674 = vset.pattern.permute.xlu0 4
    %1675 = vperm.xlu0 %1674, %v1617
    %v1676 = vpop.permute.xlu0 %1675
    %1679 = vset.pattern.permute.xlu0 4
    %1680 = vperm.xlu0 %1679, %v1618
    %v1681 = vpop.permute.xlu0 %1680
    %1684 = vset.pattern.permute.xlu0 4
    %1685 = vperm.xlu0 %1684, %v1619
    %v1686 = vpop.permute.xlu0 %1685
    %1689 = vset.pattern.permute.xlu0 4
    %1690 = vperm.xlu0 %1689, %v1620
    %v1691 = vpop.permute.xlu0 %1690
    %1694 = vset.pattern.permute.xlu0 4
    %1695 = vperm.xlu0 %1694, %v1621
    %v1696 = vpop.permute.xlu0 %1695
    %1699 = vset.pattern.permute.xlu0 4
    %1700 = vperm.xlu0 %1699, %v1622
    %v1701 = vpop.permute.xlu0 %1700
    %1704 = vset.pattern.permute.xlu0 4
    %1705 = vperm.xlu0 %1704, %v1623
    %v1706 = vpop.permute.xlu0 %1705
    %1709 = vset.pattern.permute.xlu0 4
    %1710 = vperm.xlu0 %1709, %v1624
    %v1711 = vpop.permute.xlu0 %1710
    %1714 = vset.pattern.permute.xlu0 4
    %1715 = vperm.xlu0 %1714, %v1625
    %v1716 = vpop.permute.xlu0 %1715
    %1719 = vset.pattern.permute.xlu0 4
    %1720 = vperm.xlu0 %1719, %v1626
    %v1721 = vpop.permute.xlu0 %1720
    %1724 = vset.pattern.permute.xlu0 4
    %1725 = vperm.xlu0 %1724, %v1627
    %v1726 = vpop.permute.xlu0 %1725
    %1729 = vset.pattern.permute.xlu0 4
    %1730 = vperm.xlu0 %1729, %v1628
    %v1731 = vpop.permute.xlu0 %1730
    %1734 = vset.pattern.permute.xlu0 4
    %1735 = vperm.xlu0 %1734, %v1629
    %v1736 = vpop.permute.xlu0 %1735
    %1739 = vset.pattern.permute.xlu0 4
    %1740 = vperm.xlu0 %1739, %v1630
    %v1741 = vpop.permute.xlu0 %1740
    %1744 = vset.pattern.permute.xlu0 4
    %1745 = vperm.xlu0 %1744, %v1631
    %v1746 = vpop.permute.xlu0 %1745
    %1749 = vset.pattern.permute.xlu0 4
    %1750 = vperm.xlu0 %1749, %v1632
    %v1751 = vpop.permute.xlu0 %1750
    %v1753 = vmul.f32 %v1585, %v1636
    %v1754 = vmul.f32 %v1586, %v1641
    %v1755 = vmul.f32 %v1587, %v1646
    %v1756 = vmul.f32 %v1588, %v1651
    %v1757 = vmul.f32 %v1589, %v1656
    %v1758 = vmul.f32 %v1590, %v1661
    %v1759 = vmul.f32 %v1591, %v1666
    %v1760 = vmul.f32 %v1592, %v1671
    %v1761 = vmul.f32 %v1593, %v1676
    %v1762 = vmul.f32 %v1594, %v1681
    %v1763 = vmul.f32 %v1595, %v1686
    %v1764 = vmul.f32 %v1596, %v1691
    %v1765 = vmul.f32 %v1597, %v1696
    %v1766 = vmul.f32 %v1598, %v1701
    %v1767 = vmul.f32 %v1599, %v1706
    %v1768 = vmul.f32 %v1600, %v1711
    %v1769 = vmul.f32 %v1601, %v1716
    %v1770 = vmul.f32 %v1602, %v1721
    %v1771 = vmul.f32 %v1603, %v1726
    %v1772 = vmul.f32 %v1604, %v1731
    %v1773 = vmul.f32 %v1605, %v1736
    %v1774 = vmul.f32 %v1606, %v1741
    %v1775 = vmul.f32 %v1607, %v1746
    %v1776 = vmul.f32 %v1608, %v1751
    %v1777 = vpack.c.bf16 %v1754, %v1753
    %v1778 = vpack.c.bf16 %v1756, %v1755
    %v1779 = vpack.c.bf16 %v1758, %v1757
    %v1780 = vpack.c.bf16 %v1760, %v1759
    %v1781 = vpack.c.bf16 %v1762, %v1761
    %v1782 = vpack.c.bf16 %v1764, %v1763
    %v1783 = vpack.c.bf16 %v1766, %v1765
    %v1784 = vpack.c.bf16 %v1768, %v1767
    %v1785 = vpack.c.bf16 %v1770, %v1769
    %v1786 = vpack.c.bf16 %v1772, %v1771
    %v1787 = vpack.c.bf16 %v1774, %v1773
    %v1788 = vpack.c.bf16 %v1776, %v1775
    %v1789 = vld [vmem:[#allocation2] sm:$0xff]
    %v1790 = vld [vmem:[#allocation2 + $0x8] sm:$0xff]
    %v1791 = vld [vmem:[#allocation2 + $0x10] sm:$0xff]
    %v1792 = vld [vmem:[#allocation2 + $0x18] sm:$0xff]
    %v1793 = vld [vmem:[#allocation2 + $0x20] sm:$0xff]
    %v1794 = vld [vmem:[#allocation2 + $0x28] sm:$0xff]
    %v1795 = vld [vmem:[#allocation2 + $0x30] sm:$0xff]
    %v1796 = vld [vmem:[#allocation2 + $0x38] sm:$0xff]
    %v1797 = vld [vmem:[#allocation2 + $0x40] sm:$0xff]
    %v1798 = vld [vmem:[#allocation2 + $0x48] sm:$0xff]
    %v1799 = vld [vmem:[#allocation2 + $0x50] sm:$0xff]
    %v1800 = vld [vmem:[#allocation2 + $0x58] sm:$0xff]
    %v1801 = vld [vmem:[#allocation2 + $0x60] sm:$0xff]
    %v1802 = vld [vmem:[#allocation2 + $0x68] sm:$0xff]
    %v1803 = vld [vmem:[#allocation2 + $0x70] sm:$0xff]
    %v1804 = vld [vmem:[#allocation2 + $0x78] sm:$0xff]
    %v1805 = vld [vmem:[#allocation2 + $0x80] sm:$0xff]
    %v1806 = vld [vmem:[#allocation2 + $0x88] sm:$0xff]
    %v1807 = vld [vmem:[#allocation2 + $0x90] sm:$0xff]
    %v1808 = vld [vmem:[#allocation2 + $0x98] sm:$0xff]
    %v1809 = vld [vmem:[#allocation2 + $0xa0] sm:$0xff]
    %v1810 = vld [vmem:[#allocation2 + $0xa8] sm:$0xff]
    %v1811 = vld [vmem:[#allocation2 + $0xb0] sm:$0xff]
    %v1812 = vld [vmem:[#allocation2 + $0xb8] sm:$0xff]
    %s1813 = scalar_lea.vmem %s2, 16
    %v1814 = vld [vmem:[%s1813] sm:$0xf]
    %v1816 = vsel %vm269, %v1777, 0
    %v1819 = vsel %vm269, %v1778, 0
    %v1822 = vsel %vm269, %v1779, 0
    %v1825 = vsel %vm269, %v1780, 0
    %v1828 = vsel %vm269, %v1781, 0
    %v1831 = vsel %vm269, %v1782, 0
    %v1834 = vsel %vm269, %v1783, 0
    %v1837 = vsel %vm269, %v1784, 0
    %v1840 = vsel %vm269, %v1785, 0
    %v1843 = vsel %vm269, %v1786, 0
    %v1846 = vsel %vm269, %v1787, 0
    %v1849 = vsel %vm269, %v1788, 0
    %v1852 = vsel %vm306, %v1814, 0
    %1854 = vmatpush.bf16.msra.mxu0 0
    %1855 = vmatpush.bf16.msra.mxu0 0
    %1856 = vmatpush.bf16.msra.mxu0 0
    %1857 = vmatpush.bf16.msra.mxu0 0
    %1858 = vmatpush.bf16.msra.mxu0 0
    %1859 = vmatpush.bf16.msra.mxu0 0
    %1860 = vmatpush.bf16.msra.mxu0 0
    %1861 = vmatpush.bf16.msra.mxu0 %v1852
    %1862 = vmatmul.bf16.gmra.mxu0 %v1816
    %v1863 = vpop.f32.mrf.mxu0
    %v1864 = vadd.f32 0.0, %v1863
    %v1865 = vpop.f32.mrf.mxu0
    %v1866 = vadd.f32 0.0, %v1865
    %1867 = vmatmul.bf16.gmra.mxu0 %v1819
    %v1868 = vpop.f32.mrf.mxu0
    %v1869 = vadd.f32 0.0, %v1868
    %v1870 = vpop.f32.mrf.mxu0
    %v1871 = vadd.f32 0.0, %v1870
    %1872 = vmatmul.bf16.gmra.mxu0 %v1822
    %v1873 = vpop.f32.mrf.mxu0
    %v1874 = vadd.f32 0.0, %v1873
    %v1875 = vpop.f32.mrf.mxu0
    %v1876 = vadd.f32 0.0, %v1875
    %1877 = vmatmul.bf16.gmra.mxu0 %v1825
    %v1878 = vpop.f32.mrf.mxu0
    %v1879 = vadd.f32 0.0, %v1878
    %v1880 = vpop.f32.mrf.mxu0
    %v1881 = vadd.f32 0.0, %v1880
    %1882 = vmatmul.bf16.gmra.mxu0 %v1828
    %v1883 = vpop.f32.mrf.mxu0
    %v1884 = vadd.f32 0.0, %v1883
    %v1885 = vpop.f32.mrf.mxu0
    %v1886 = vadd.f32 0.0, %v1885
    %1887 = vmatmul.bf16.gmra.mxu0 %v1831
    %v1888 = vpop.f32.mrf.mxu0
    %v1889 = vadd.f32 0.0, %v1888
    %v1890 = vpop.f32.mrf.mxu0
    %v1891 = vadd.f32 0.0, %v1890
    %1892 = vmatmul.bf16.gmra.mxu0 %v1834
    %v1893 = vpop.f32.mrf.mxu0
    %v1894 = vadd.f32 0.0, %v1893
    %v1895 = vpop.f32.mrf.mxu0
    %v1896 = vadd.f32 0.0, %v1895
    %1897 = vmatmul.bf16.gmra.mxu0 %v1837
    %v1898 = vpop.f32.mrf.mxu0
    %v1899 = vadd.f32 0.0, %v1898
    %v1900 = vpop.f32.mrf.mxu0
    %v1901 = vadd.f32 0.0, %v1900
    %1902 = vmatmul.bf16.gmra.mxu0 %v1840
    %v1903 = vpop.f32.mrf.mxu0
    %v1904 = vadd.f32 0.0, %v1903
    %v1905 = vpop.f32.mrf.mxu0
    %v1906 = vadd.f32 0.0, %v1905
    %1907 = vmatmul.bf16.gmra.mxu0 %v1843
    %v1908 = vpop.f32.mrf.mxu0
    %v1909 = vadd.f32 0.0, %v1908
    %v1910 = vpop.f32.mrf.mxu0
    %v1911 = vadd.f32 0.0, %v1910
    %1912 = vmatmul.bf16.gmra.mxu0 %v1846
    %v1913 = vpop.f32.mrf.mxu0
    %v1914 = vadd.f32 0.0, %v1913
    %v1915 = vpop.f32.mrf.mxu0
    %v1916 = vadd.f32 0.0, %v1915
    %1917 = vmatmul.bf16.gmra.mxu0 %v1849
    %v1918 = vpop.f32.mrf.mxu0
    %v1919 = vadd.f32 0.0, %v1918
    %v1920 = vpop.f32.mrf.mxu0
    %v1921 = vadd.f32 0.0, %v1920
    %1922 = vdwg.mxu0
    %v1923 = vadd.f32 %v1789, %v1864
    %v1924 = vadd.f32 %v1790, %v1866
    %v1925 = vadd.f32 %v1791, %v1869
    %v1926 = vadd.f32 %v1792, %v1871
    %v1927 = vadd.f32 %v1793, %v1874
    %v1928 = vadd.f32 %v1794, %v1876
    %v1929 = vadd.f32 %v1795, %v1879
    %v1930 = vadd.f32 %v1796, %v1881
    %v1931 = vadd.f32 %v1797, %v1884
    %v1932 = vadd.f32 %v1798, %v1886
    %v1933 = vadd.f32 %v1799, %v1889
    %v1934 = vadd.f32 %v1800, %v1891
    %v1935 = vadd.f32 %v1801, %v1894
    %v1936 = vadd.f32 %v1802, %v1896
    %v1937 = vadd.f32 %v1803, %v1899
    %v1938 = vadd.f32 %v1804, %v1901
    %v1939 = vadd.f32 %v1805, %v1904
    %v1940 = vadd.f32 %v1806, %v1906
    %v1941 = vadd.f32 %v1807, %v1909
    %v1942 = vadd.f32 %v1808, %v1911
    %v1943 = vadd.f32 %v1809, %v1914
    %v1944 = vadd.f32 %v1810, %v1916
    %v1945 = vadd.f32 %v1811, %v1919
    %v1946 = vadd.f32 %v1812, %v1921
    %1947 = vst [vmem:[#allocation2] sm:$0xff] %v1923
    %1948 = vst [vmem:[#allocation2 + $0x8] sm:$0xff] %v1924
    %1949 = vst [vmem:[#allocation2 + $0x10] sm:$0xff] %v1925
    %1950 = vst [vmem:[#allocation2 + $0x18] sm:$0xff] %v1926
    %1951 = vst [vmem:[#allocation2 + $0x20] sm:$0xff] %v1927
    %1952 = vst [vmem:[#allocation2 + $0x28] sm:$0xff] %v1928
    %1953 = vst [vmem:[#allocation2 + $0x30] sm:$0xff] %v1929
    %1954 = vst [vmem:[#allocation2 + $0x38] sm:$0xff] %v1930
    %1955 = vst [vmem:[#allocation2 + $0x40] sm:$0xff] %v1931
    %1956 = vst [vmem:[#allocation2 + $0x48] sm:$0xff] %v1932
    %1957 = vst [vmem:[#allocation2 + $0x50] sm:$0xff] %v1933
    %1958 = vst [vmem:[#allocation2 + $0x58] sm:$0xff] %v1934
    %1959 = vst [vmem:[#allocation2 + $0x60] sm:$0xff] %v1935
    %1960 = vst [vmem:[#allocation2 + $0x68] sm:$0xff] %v1936
    %1961 = vst [vmem:[#allocation2 + $0x70] sm:$0xff] %v1937
    %1962 = vst [vmem:[#allocation2 + $0x78] sm:$0xff] %v1938
    %1963 = vst [vmem:[#allocation2 + $0x80] sm:$0xff] %v1939
    %1964 = vst [vmem:[#allocation2 + $0x88] sm:$0xff] %v1940
    %1965 = vst [vmem:[#allocation2 + $0x90] sm:$0xff] %v1941
    %1966 = vst [vmem:[#allocation2 + $0x98] sm:$0xff] %v1942
    %1967 = vst [vmem:[#allocation2 + $0xa0] sm:$0xff] %v1943
    %1968 = vst [vmem:[#allocation2 + $0xa8] sm:$0xff] %v1944
    %1969 = vst [vmem:[#allocation2 + $0xb0] sm:$0xff] %v1945
    %1970 = vst [vmem:[#allocation2 + $0xb8] sm:$0xff] %v1946
    %v1971 = vld [vmem:[%s1] sm:$0xff]
    %v1972 = vld [vmem:[%s1 + $0x8] sm:$0xff]
    %v1973 = vld [vmem:[%s1 + $0x10] sm:$0xff]
    %v1974 = vld [vmem:[%s1 + $0x18] sm:$0xff]
    %v1975 = vld [vmem:[%s1 + $0x20] sm:$0xff]
    %v1976 = vld [vmem:[%s1 + $0x28] sm:$0xff]
    %v1977 = vld [vmem:[%s1 + $0x30] sm:$0xff]
    %v1978 = vld [vmem:[%s1 + $0x38] sm:$0xff]
    %v1979 = vld [vmem:[%s1 + $0x40] sm:$0xff]
    %v1980 = vld [vmem:[%s1 + $0x48] sm:$0xff]
    %v1981 = vld [vmem:[%s1 + $0x50] sm:$0xff]
    %v1982 = vld [vmem:[%s1 + $0x58] sm:$0xff]
    %v1983 = vld [vmem:[%s1 + $0x60] sm:$0xff]
    %v1984 = vld [vmem:[%s1 + $0x68] sm:$0xff]
    %v1985 = vld [vmem:[%s1 + $0x70] sm:$0xff]
    %v1986 = vld [vmem:[%s1 + $0x78] sm:$0xff]
    %v1987 = vld [vmem:[%s1 + $0x80] sm:$0xff]
    %v1988 = vld [vmem:[%s1 + $0x88] sm:$0xff]
    %v1989 = vld [vmem:[%s1 + $0x90] sm:$0xff]
    %v1990 = vld [vmem:[%s1 + $0x98] sm:$0xff]
    %v1991 = vld [vmem:[%s1 + $0xa0] sm:$0xff]
    %v1992 = vld [vmem:[%s1 + $0xa8] sm:$0xff]
    %v1993 = vld [vmem:[%s1 + $0xb0] sm:$0xff]
    %v1994 = vld [vmem:[%s1 + $0xb8] sm:$0xff]
    %v1995 = vld [vmem:[%s0] sm:$0xff]
    %v1996 = vld [vmem:[%s0 + $0x8] sm:$0xff]
    %v1997 = vld [vmem:[%s0 + $0x10] sm:$0xff]
    %v1998 = vld [vmem:[%s0 + $0x18] sm:$0xff]
    %v1999 = vld [vmem:[%s0 + $0x20] sm:$0xff]
    %v2000 = vld [vmem:[%s0 + $0x28] sm:$0xff]
    %v2001 = vld [vmem:[%s0 + $0x30] sm:$0xff]
    %v2002 = vld [vmem:[%s0 + $0x38] sm:$0xff]
    %v2003 = vld [vmem:[%s0 + $0x40] sm:$0xff]
    %v2004 = vld [vmem:[%s0 + $0x48] sm:$0xff]
    %v2005 = vld [vmem:[%s0 + $0x50] sm:$0xff]
    %v2006 = vld [vmem:[%s0 + $0x58] sm:$0xff]
    %v2007 = vld [vmem:[%s0 + $0x60] sm:$0xff]
    %v2008 = vld [vmem:[%s0 + $0x68] sm:$0xff]
    %v2009 = vld [vmem:[%s0 + $0x70] sm:$0xff]
    %v2010 = vld [vmem:[%s0 + $0x78] sm:$0xff]
    %v2011 = vld [vmem:[%s0 + $0x80] sm:$0xff]
    %v2012 = vld [vmem:[%s0 + $0x88] sm:$0xff]
    %v2013 = vld [vmem:[%s0 + $0x90] sm:$0xff]
    %v2014 = vld [vmem:[%s0 + $0x98] sm:$0xff]
    %v2015 = vld [vmem:[%s0 + $0xa0] sm:$0xff]
    %v2016 = vld [vmem:[%s0 + $0xa8] sm:$0xff]
    %v2017 = vld [vmem:[%s0 + $0xb0] sm:$0xff]
    %v2018 = vld [vmem:[%s0 + $0xb8] sm:$0xff]
    %2020 = vset.pattern.permute.xlu0 5
    %2021 = vperm.xlu0 %2020, %v1995
    %v2022 = vpop.permute.xlu0 %2021
    %2025 = vset.pattern.permute.xlu0 5
    %2026 = vperm.xlu0 %2025, %v1996
    %v2027 = vpop.permute.xlu0 %2026
    %2030 = vset.pattern.permute.xlu0 5
    %2031 = vperm.xlu0 %2030, %v1997
    %v2032 = vpop.permute.xlu0 %2031
    %2035 = vset.pattern.permute.xlu0 5
    %2036 = vperm.xlu0 %2035, %v1998
    %v2037 = vpop.permute.xlu0 %2036
    %2040 = vset.pattern.permute.xlu0 5
    %2041 = vperm.xlu0 %2040, %v1999
    %v2042 = vpop.permute.xlu0 %2041
    %2045 = vset.pattern.permute.xlu0 5
    %2046 = vperm.xlu0 %2045, %v2000
    %v2047 = vpop.permute.xlu0 %2046
    %2050 = vset.pattern.permute.xlu0 5
    %2051 = vperm.xlu0 %2050, %v2001
    %v2052 = vpop.permute.xlu0 %2051
    %2055 = vset.pattern.permute.xlu0 5
    %2056 = vperm.xlu0 %2055, %v2002
    %v2057 = vpop.permute.xlu0 %2056
    %2060 = vset.pattern.permute.xlu0 5
    %2061 = vperm.xlu0 %2060, %v2003
    %v2062 = vpop.permute.xlu0 %2061
    %2065 = vset.pattern.permute.xlu0 5
    %2066 = vperm.xlu0 %2065, %v2004
    %v2067 = vpop.permute.xlu0 %2066
    %2070 = vset.pattern.permute.xlu0 5
    %2071 = vperm.xlu0 %2070, %v2005
    %v2072 = vpop.permute.xlu0 %2071
    %2075 = vset.pattern.permute.xlu0 5
    %2076 = vperm.xlu0 %2075, %v2006
    %v2077 = vpop.permute.xlu0 %2076
    %2080 = vset.pattern.permute.xlu0 5
    %2081 = vperm.xlu0 %2080, %v2007
    %v2082 = vpop.permute.xlu0 %2081
    %2085 = vset.pattern.permute.xlu0 5
    %2086 = vperm.xlu0 %2085, %v2008
    %v2087 = vpop.permute.xlu0 %2086
    %2090 = vset.pattern.permute.xlu0 5
    %2091 = vperm.xlu0 %2090, %v2009
    %v2092 = vpop.permute.xlu0 %2091
    %2095 = vset.pattern.permute.xlu0 5
    %2096 = vperm.xlu0 %2095, %v2010
    %v2097 = vpop.permute.xlu0 %2096
    %2100 = vset.pattern.permute.xlu0 5
    %2101 = vperm.xlu0 %2100, %v2011
    %v2102 = vpop.permute.xlu0 %2101
    %2105 = vset.pattern.permute.xlu0 5
    %2106 = vperm.xlu0 %2105, %v2012
    %v2107 = vpop.permute.xlu0 %2106
    %2110 = vset.pattern.permute.xlu0 5
    %2111 = vperm.xlu0 %2110, %v2013
    %v2112 = vpop.permute.xlu0 %2111
    %2115 = vset.pattern.permute.xlu0 5
    %2116 = vperm.xlu0 %2115, %v2014
    %v2117 = vpop.permute.xlu0 %2116
    %2120 = vset.pattern.permute.xlu0 5
    %2121 = vperm.xlu0 %2120, %v2015
    %v2122 = vpop.permute.xlu0 %2121
    %2125 = vset.pattern.permute.xlu0 5
    %2126 = vperm.xlu0 %2125, %v2016
    %v2127 = vpop.permute.xlu0 %2126
    %2130 = vset.pattern.permute.xlu0 5
    %2131 = vperm.xlu0 %2130, %v2017
    %v2132 = vpop.permute.xlu0 %2131
    %2135 = vset.pattern.permute.xlu0 5
    %2136 = vperm.xlu0 %2135, %v2018
    %v2137 = vpop.permute.xlu0 %2136
    %v2139 = vmul.f32 %v1971, %v2022
    %v2140 = vmul.f32 %v1972, %v2027
    %v2141 = vmul.f32 %v1973, %v2032
    %v2142 = vmul.f32 %v1974, %v2037
    %v2143 = vmul.f32 %v1975, %v2042
    %v2144 = vmul.f32 %v1976, %v2047
    %v2145 = vmul.f32 %v1977, %v2052
    %v2146 = vmul.f32 %v1978, %v2057
    %v2147 = vmul.f32 %v1979, %v2062
    %v2148 = vmul.f32 %v1980, %v2067
    %v2149 = vmul.f32 %v1981, %v2072
    %v2150 = vmul.f32 %v1982, %v2077
    %v2151 = vmul.f32 %v1983, %v2082
    %v2152 = vmul.f32 %v1984, %v2087
    %v2153 = vmul.f32 %v1985, %v2092
    %v2154 = vmul.f32 %v1986, %v2097
    %v2155 = vmul.f32 %v1987, %v2102
    %v2156 = vmul.f32 %v1988, %v2107
    %v2157 = vmul.f32 %v1989, %v2112
    %v2158 = vmul.f32 %v1990, %v2117
    %v2159 = vmul.f32 %v1991, %v2122
    %v2160 = vmul.f32 %v1992, %v2127
    %v2161 = vmul.f32 %v1993, %v2132
    %v2162 = vmul.f32 %v1994, %v2137
    %v2163 = vpack.c.bf16 %v2140, %v2139
    %v2164 = vpack.c.bf16 %v2142, %v2141
    %v2165 = vpack.c.bf16 %v2144, %v2143
    %v2166 = vpack.c.bf16 %v2146, %v2145
    %v2167 = vpack.c.bf16 %v2148, %v2147
    %v2168 = vpack.c.bf16 %v2150, %v2149
    %v2169 = vpack.c.bf16 %v2152, %v2151
    %v2170 = vpack.c.bf16 %v2154, %v2153
    %v2171 = vpack.c.bf16 %v2156, %v2155
    %v2172 = vpack.c.bf16 %v2158, %v2157
    %v2173 = vpack.c.bf16 %v2160, %v2159
    %v2174 = vpack.c.bf16 %v2162, %v2161
    %v2175 = vld [vmem:[#allocation2] sm:$0xff]
    %v2176 = vld [vmem:[#allocation2 + $0x8] sm:$0xff]
    %v2177 = vld [vmem:[#allocation2 + $0x10] sm:$0xff]
    %v2178 = vld [vmem:[#allocation2 + $0x18] sm:$0xff]
    %v2179 = vld [vmem:[#allocation2 + $0x20] sm:$0xff]
    %v2180 = vld [vmem:[#allocation2 + $0x28] sm:$0xff]
    %v2181 = vld [vmem:[#allocation2 + $0x30] sm:$0xff]
    %v2182 = vld [vmem:[#allocation2 + $0x38] sm:$0xff]
    %v2183 = vld [vmem:[#allocation2 + $0x40] sm:$0xff]
    %v2184 = vld [vmem:[#allocation2 + $0x48] sm:$0xff]
    %v2185 = vld [vmem:[#allocation2 + $0x50] sm:$0xff]
    %v2186 = vld [vmem:[#allocation2 + $0x58] sm:$0xff]
    %v2187 = vld [vmem:[#allocation2 + $0x60] sm:$0xff]
    %v2188 = vld [vmem:[#allocation2 + $0x68] sm:$0xff]
    %v2189 = vld [vmem:[#allocation2 + $0x70] sm:$0xff]
    %v2190 = vld [vmem:[#allocation2 + $0x78] sm:$0xff]
    %v2191 = vld [vmem:[#allocation2 + $0x80] sm:$0xff]
    %v2192 = vld [vmem:[#allocation2 + $0x88] sm:$0xff]
    %v2193 = vld [vmem:[#allocation2 + $0x90] sm:$0xff]
    %v2194 = vld [vmem:[#allocation2 + $0x98] sm:$0xff]
    %v2195 = vld [vmem:[#allocation2 + $0xa0] sm:$0xff]
    %v2196 = vld [vmem:[#allocation2 + $0xa8] sm:$0xff]
    %v2197 = vld [vmem:[#allocation2 + $0xb0] sm:$0xff]
    %v2198 = vld [vmem:[#allocation2 + $0xb8] sm:$0xff]
    %s2199 = scalar_lea.vmem %s2, 20
    %v2200 = vld [vmem:[%s2199] sm:$0xf]
    %v2202 = vsel %vm269, %v2163, 0
    %v2205 = vsel %vm269, %v2164, 0
    %v2208 = vsel %vm269, %v2165, 0
    %v2211 = vsel %vm269, %v2166, 0
    %v2214 = vsel %vm269, %v2167, 0
    %v2217 = vsel %vm269, %v2168, 0
    %v2220 = vsel %vm269, %v2169, 0
    %v2223 = vsel %vm269, %v2170, 0
    %v2226 = vsel %vm269, %v2171, 0
    %v2229 = vsel %vm269, %v2172, 0
    %v2232 = vsel %vm269, %v2173, 0
    %v2235 = vsel %vm269, %v2174, 0
    %v2238 = vsel %vm306, %v2200, 0
    %2240 = vmatpush.bf16.msra.mxu0 0
    %2241 = vmatpush.bf16.msra.mxu0 0
    %2242 = vmatpush.bf16.msra.mxu0 0
    %2243 = vmatpush.bf16.msra.mxu0 0
    %2244 = vmatpush.bf16.msra.mxu0 0
    %2245 = vmatpush.bf16.msra.mxu0 0
    %2246 = vmatpush.bf16.msra.mxu0 0
    %2247 = vmatpush.bf16.msra.mxu0 %v2238
    %2248 = vmatmul.bf16.gmra.mxu0 %v2202
    %v2249 = vpop.f32.mrf.mxu0
    %v2250 = vadd.f32 0.0, %v2249
    %v2251 = vpop.f32.mrf.mxu0
    %v2252 = vadd.f32 0.0, %v2251
    %2253 = vmatmul.bf16.gmra.mxu0 %v2205
    %v2254 = vpop.f32.mrf.mxu0
    %v2255 = vadd.f32 0.0, %v2254
    %v2256 = vpop.f32.mrf.mxu0
    %v2257 = vadd.f32 0.0, %v2256
    %2258 = vmatmul.bf16.gmra.mxu0 %v2208
    %v2259 = vpop.f32.mrf.mxu0
    %v2260 = vadd.f32 0.0, %v2259
    %v2261 = vpop.f32.mrf.mxu0
    %v2262 = vadd.f32 0.0, %v2261
    %2263 = vmatmul.bf16.gmra.mxu0 %v2211
    %v2264 = vpop.f32.mrf.mxu0
    %v2265 = vadd.f32 0.0, %v2264
    %v2266 = vpop.f32.mrf.mxu0
    %v2267 = vadd.f32 0.0, %v2266
    %2268 = vmatmul.bf16.gmra.mxu0 %v2214
    %v2269 = vpop.f32.mrf.mxu0
    %v2270 = vadd.f32 0.0, %v2269
    %v2271 = vpop.f32.mrf.mxu0
    %v2272 = vadd.f32 0.0, %v2271
    %2273 = vmatmul.bf16.gmra.mxu0 %v2217
    %v2274 = vpop.f32.mrf.mxu0
    %v2275 = vadd.f32 0.0, %v2274
    %v2276 = vpop.f32.mrf.mxu0
    %v2277 = vadd.f32 0.0, %v2276
    %2278 = vmatmul.bf16.gmra.mxu0 %v2220
    %v2279 = vpop.f32.mrf.mxu0
    %v2280 = vadd.f32 0.0, %v2279
    %v2281 = vpop.f32.mrf.mxu0
    %v2282 = vadd.f32 0.0, %v2281
    %2283 = vmatmul.bf16.gmra.mxu0 %v2223
    %v2284 = vpop.f32.mrf.mxu0
    %v2285 = vadd.f32 0.0, %v2284
    %v2286 = vpop.f32.mrf.mxu0
    %v2287 = vadd.f32 0.0, %v2286
    %2288 = vmatmul.bf16.gmra.mxu0 %v2226
    %v2289 = vpop.f32.mrf.mxu0
    %v2290 = vadd.f32 0.0, %v2289
    %v2291 = vpop.f32.mrf.mxu0
    %v2292 = vadd.f32 0.0, %v2291
    %2293 = vmatmul.bf16.gmra.mxu0 %v2229
    %v2294 = vpop.f32.mrf.mxu0
    %v2295 = vadd.f32 0.0, %v2294
    %v2296 = vpop.f32.mrf.mxu0
    %v2297 = vadd.f32 0.0, %v2296
    %2298 = vmatmul.bf16.gmra.mxu0 %v2232
    %v2299 = vpop.f32.mrf.mxu0
    %v2300 = vadd.f32 0.0, %v2299
    %v2301 = vpop.f32.mrf.mxu0
    %v2302 = vadd.f32 0.0, %v2301
    %2303 = vmatmul.bf16.gmra.mxu0 %v2235
    %v2304 = vpop.f32.mrf.mxu0
    %v2305 = vadd.f32 0.0, %v2304
    %v2306 = vpop.f32.mrf.mxu0
    %v2307 = vadd.f32 0.0, %v2306
    %2308 = vdwg.mxu0
    %v2309 = vadd.f32 %v2175, %v2250
    %v2310 = vadd.f32 %v2176, %v2252
    %v2311 = vadd.f32 %v2177, %v2255
    %v2312 = vadd.f32 %v2178, %v2257
    %v2313 = vadd.f32 %v2179, %v2260
    %v2314 = vadd.f32 %v2180, %v2262
    %v2315 = vadd.f32 %v2181, %v2265
    %v2316 = vadd.f32 %v2182, %v2267
    %v2317 = vadd.f32 %v2183, %v2270
    %v2318 = vadd.f32 %v2184, %v2272
    %v2319 = vadd.f32 %v2185, %v2275
    %v2320 = vadd.f32 %v2186, %v2277
    %v2321 = vadd.f32 %v2187, %v2280
    %v2322 = vadd.f32 %v2188, %v2282
    %v2323 = vadd.f32 %v2189, %v2285
    %v2324 = vadd.f32 %v2190, %v2287
    %v2325 = vadd.f32 %v2191, %v2290
    %v2326 = vadd.f32 %v2192, %v2292
    %v2327 = vadd.f32 %v2193, %v2295
    %v2328 = vadd.f32 %v2194, %v2297
    %v2329 = vadd.f32 %v2195, %v2300
    %v2330 = vadd.f32 %v2196, %v2302
    %v2331 = vadd.f32 %v2197, %v2305
    %v2332 = vadd.f32 %v2198, %v2307
    %2333 = vst [vmem:[#allocation2] sm:$0xff] %v2309
    %2334 = vst [vmem:[#allocation2 + $0x8] sm:$0xff] %v2310
    %2335 = vst [vmem:[#allocation2 + $0x10] sm:$0xff] %v2311
    %2336 = vst [vmem:[#allocation2 + $0x18] sm:$0xff] %v2312
    %2337 = vst [vmem:[#allocation2 + $0x20] sm:$0xff] %v2313
    %2338 = vst [vmem:[#allocation2 + $0x28] sm:$0xff] %v2314
    %2339 = vst [vmem:[#allocation2 + $0x30] sm:$0xff] %v2315
    %2340 = vst [vmem:[#allocation2 + $0x38] sm:$0xff] %v2316
    %2341 = vst [vmem:[#allocation2 + $0x40] sm:$0xff] %v2317
    %2342 = vst [vmem:[#allocation2 + $0x48] sm:$0xff] %v2318
    %2343 = vst [vmem:[#allocation2 + $0x50] sm:$0xff] %v2319
    %2344 = vst [vmem:[#allocation2 + $0x58] sm:$0xff] %v2320
    %2345 = vst [vmem:[#allocation2 + $0x60] sm:$0xff] %v2321
    %2346 = vst [vmem:[#allocation2 + $0x68] sm:$0xff] %v2322
    %2347 = vst [vmem:[#allocation2 + $0x70] sm:$0xff] %v2323
    %2348 = vst [vmem:[#allocation2 + $0x78] sm:$0xff] %v2324
    %2349 = vst [vmem:[#allocation2 + $0x80] sm:$0xff] %v2325
    %2350 = vst [vmem:[#allocation2 + $0x88] sm:$0xff] %v2326
    %2351 = vst [vmem:[#allocation2 + $0x90] sm:$0xff] %v2327
    %2352 = vst [vmem:[#allocation2 + $0x98] sm:$0xff] %v2328
    %2353 = vst [vmem:[#allocation2 + $0xa0] sm:$0xff] %v2329
    %2354 = vst [vmem:[#allocation2 + $0xa8] sm:$0xff] %v2330
    %2355 = vst [vmem:[#allocation2 + $0xb0] sm:$0xff] %v2331
    %2356 = vst [vmem:[#allocation2 + $0xb8] sm:$0xff] %v2332
    %v2357 = vld [vmem:[%s1] sm:$0xff]
    %v2358 = vld [vmem:[%s1 + $0x8] sm:$0xff]
    %v2359 = vld [vmem:[%s1 + $0x10] sm:$0xff]
    %v2360 = vld [vmem:[%s1 + $0x18] sm:$0xff]
    %v2361 = vld [vmem:[%s1 + $0x20] sm:$0xff]
    %v2362 = vld [vmem:[%s1 + $0x28] sm:$0xff]
    %v2363 = vld [vmem:[%s1 + $0x30] sm:$0xff]
    %v2364 = vld [vmem:[%s1 + $0x38] sm:$0xff]
    %v2365 = vld [vmem:[%s1 + $0x40] sm:$0xff]
    %v2366 = vld [vmem:[%s1 + $0x48] sm:$0xff]
    %v2367 = vld [vmem:[%s1 + $0x50] sm:$0xff]
    %v2368 = vld [vmem:[%s1 + $0x58] sm:$0xff]
    %v2369 = vld [vmem:[%s1 + $0x60] sm:$0xff]
    %v2370 = vld [vmem:[%s1 + $0x68] sm:$0xff]
    %v2371 = vld [vmem:[%s1 + $0x70] sm:$0xff]
    %v2372 = vld [vmem:[%s1 + $0x78] sm:$0xff]
    %v2373 = vld [vmem:[%s1 + $0x80] sm:$0xff]
    %v2374 = vld [vmem:[%s1 + $0x88] sm:$0xff]
    %v2375 = vld [vmem:[%s1 + $0x90] sm:$0xff]
    %v2376 = vld [vmem:[%s1 + $0x98] sm:$0xff]
    %v2377 = vld [vmem:[%s1 + $0xa0] sm:$0xff]
    %v2378 = vld [vmem:[%s1 + $0xa8] sm:$0xff]
    %v2379 = vld [vmem:[%s1 + $0xb0] sm:$0xff]
    %v2380 = vld [vmem:[%s1 + $0xb8] sm:$0xff]
    %v2381 = vld [vmem:[%s0] sm:$0xff]
    %v2382 = vld [vmem:[%s0 + $0x8] sm:$0xff]
    %v2383 = vld [vmem:[%s0 + $0x10] sm:$0xff]
    %v2384 = vld [vmem:[%s0 + $0x18] sm:$0xff]
    %v2385 = vld [vmem:[%s0 + $0x20] sm:$0xff]
    %v2386 = vld [vmem:[%s0 + $0x28] sm:$0xff]
    %v2387 = vld [vmem:[%s0 + $0x30] sm:$0xff]
    %v2388 = vld [vmem:[%s0 + $0x38] sm:$0xff]
    %v2389 = vld [vmem:[%s0 + $0x40] sm:$0xff]
    %v2390 = vld [vmem:[%s0 + $0x48] sm:$0xff]
    %v2391 = vld [vmem:[%s0 + $0x50] sm:$0xff]
    %v2392 = vld [vmem:[%s0 + $0x58] sm:$0xff]
    %v2393 = vld [vmem:[%s0 + $0x60] sm:$0xff]
    %v2394 = vld [vmem:[%s0 + $0x68] sm:$0xff]
    %v2395 = vld [vmem:[%s0 + $0x70] sm:$0xff]
    %v2396 = vld [vmem:[%s0 + $0x78] sm:$0xff]
    %v2397 = vld [vmem:[%s0 + $0x80] sm:$0xff]
    %v2398 = vld [vmem:[%s0 + $0x88] sm:$0xff]
    %v2399 = vld [vmem:[%s0 + $0x90] sm:$0xff]
    %v2400 = vld [vmem:[%s0 + $0x98] sm:$0xff]
    %v2401 = vld [vmem:[%s0 + $0xa0] sm:$0xff]
    %v2402 = vld [vmem:[%s0 + $0xa8] sm:$0xff]
    %v2403 = vld [vmem:[%s0 + $0xb0] sm:$0xff]
    %v2404 = vld [vmem:[%s0 + $0xb8] sm:$0xff]
    %2406 = vset.pattern.permute.xlu0 6
    %2407 = vperm.xlu0 %2406, %v2381
    %v2408 = vpop.permute.xlu0 %2407
    %2411 = vset.pattern.permute.xlu0 6
    %2412 = vperm.xlu0 %2411, %v2382
    %v2413 = vpop.permute.xlu0 %2412
    %2416 = vset.pattern.permute.xlu0 6
    %2417 = vperm.xlu0 %2416, %v2383
    %v2418 = vpop.permute.xlu0 %2417
    %2421 = vset.pattern.permute.xlu0 6
    %2422 = vperm.xlu0 %2421, %v2384
    %v2423 = vpop.permute.xlu0 %2422
    %2426 = vset.pattern.permute.xlu0 6
    %2427 = vperm.xlu0 %2426, %v2385
    %v2428 = vpop.permute.xlu0 %2427
    %2431 = vset.pattern.permute.xlu0 6
    %2432 = vperm.xlu0 %2431, %v2386
    %v2433 = vpop.permute.xlu0 %2432
    %2436 = vset.pattern.permute.xlu0 6
    %2437 = vperm.xlu0 %2436, %v2387
    %v2438 = vpop.permute.xlu0 %2437
    %2441 = vset.pattern.permute.xlu0 6
    %2442 = vperm.xlu0 %2441, %v2388
    %v2443 = vpop.permute.xlu0 %2442
    %2446 = vset.pattern.permute.xlu0 6
    %2447 = vperm.xlu0 %2446, %v2389
    %v2448 = vpop.permute.xlu0 %2447
    %2451 = vset.pattern.permute.xlu0 6
    %2452 = vperm.xlu0 %2451, %v2390
    %v2453 = vpop.permute.xlu0 %2452
    %2456 = vset.pattern.permute.xlu0 6
    %2457 = vperm.xlu0 %2456, %v2391
    %v2458 = vpop.permute.xlu0 %2457
    %2461 = vset.pattern.permute.xlu0 6
    %2462 = vperm.xlu0 %2461, %v2392
    %v2463 = vpop.permute.xlu0 %2462
    %2466 = vset.pattern.permute.xlu0 6
    %2467 = vperm.xlu0 %2466, %v2393
    %v2468 = vpop.permute.xlu0 %2467
    %2471 = vset.pattern.permute.xlu0 6
    %2472 = vperm.xlu0 %2471, %v2394
    %v2473 = vpop.permute.xlu0 %2472
    %2476 = vset.pattern.permute.xlu0 6
    %2477 = vperm.xlu0 %2476, %v2395
    %v2478 = vpop.permute.xlu0 %2477
    %2481 = vset.pattern.permute.xlu0 6
    %2482 = vperm.xlu0 %2481, %v2396
    %v2483 = vpop.permute.xlu0 %2482
    %2486 = vset.pattern.permute.xlu0 6
    %2487 = vperm.xlu0 %2486, %v2397
    %v2488 = vpop.permute.xlu0 %2487
    %2491 = vset.pattern.permute.xlu0 6
    %2492 = vperm.xlu0 %2491, %v2398
    %v2493 = vpop.permute.xlu0 %2492
    %2496 = vset.pattern.permute.xlu0 6
    %2497 = vperm.xlu0 %2496, %v2399
    %v2498 = vpop.permute.xlu0 %2497
    %2501 = vset.pattern.permute.xlu0 6
    %2502 = vperm.xlu0 %2501, %v2400
    %v2503 = vpop.permute.xlu0 %2502
    %2506 = vset.pattern.permute.xlu0 6
    %2507 = vperm.xlu0 %2506, %v2401
    %v2508 = vpop.permute.xlu0 %2507
    %2511 = vset.pattern.permute.xlu0 6
    %2512 = vperm.xlu0 %2511, %v2402
    %v2513 = vpop.permute.xlu0 %2512
    %2516 = vset.pattern.permute.xlu0 6
    %2517 = vperm.xlu0 %2516, %v2403
    %v2518 = vpop.permute.xlu0 %2517
    %2521 = vset.pattern.permute.xlu0 6
    %2522 = vperm.xlu0 %2521, %v2404
    %v2523 = vpop.permute.xlu0 %2522
    %v2525 = vmul.f32 %v2357, %v2408
    %v2526 = vmul.f32 %v2358, %v2413
    %v2527 = vmul.f32 %v2359, %v2418
    %v2528 = vmul.f32 %v2360, %v2423
    %v2529 = vmul.f32 %v2361, %v2428
    %v2530 = vmul.f32 %v2362, %v2433
    %v2531 = vmul.f32 %v2363, %v2438
    %v2532 = vmul.f32 %v2364, %v2443
    %v2533 = vmul.f32 %v2365, %v2448
    %v2534 = vmul.f32 %v2366, %v2453
    %v2535 = vmul.f32 %v2367, %v2458
    %v2536 = vmul.f32 %v2368, %v2463
    %v2537 = vmul.f32 %v2369, %v2468
    %v2538 = vmul.f32 %v2370, %v2473
    %v2539 = vmul.f32 %v2371, %v2478
    %v2540 = vmul.f32 %v2372, %v2483
    %v2541 = vmul.f32 %v2373, %v2488
    %v2542 = vmul.f32 %v2374, %v2493
    %v2543 = vmul.f32 %v2375, %v2498
    %v2544 = vmul.f32 %v2376, %v2503
    %v2545 = vmul.f32 %v2377, %v2508
    %v2546 = vmul.f32 %v2378, %v2513
    %v2547 = vmul.f32 %v2379, %v2518
    %v2548 = vmul.f32 %v2380, %v2523
    %v2549 = vpack.c.bf16 %v2526, %v2525
    %v2550 = vpack.c.bf16 %v2528, %v2527
    %v2551 = vpack.c.bf16 %v2530, %v2529
    %v2552 = vpack.c.bf16 %v2532, %v2531
    %v2553 = vpack.c.bf16 %v2534, %v2533
    %v2554 = vpack.c.bf16 %v2536, %v2535
    %v2555 = vpack.c.bf16 %v2538, %v2537
    %v2556 = vpack.c.bf16 %v2540, %v2539
    %v2557 = vpack.c.bf16 %v2542, %v2541
    %v2558 = vpack.c.bf16 %v2544, %v2543
    %v2559 = vpack.c.bf16 %v2546, %v2545
    %v2560 = vpack.c.bf16 %v2548, %v2547
    %v2561 = vld [vmem:[#allocation2] sm:$0xff]
    %v2562 = vld [vmem:[#allocation2 + $0x8] sm:$0xff]
    %v2563 = vld [vmem:[#allocation2 + $0x10] sm:$0xff]
    %v2564 = vld [vmem:[#allocation2 + $0x18] sm:$0xff]
    %v2565 = vld [vmem:[#allocation2 + $0x20] sm:$0xff]
    %v2566 = vld [vmem:[#allocation2 + $0x28] sm:$0xff]
    %v2567 = vld [vmem:[#allocation2 + $0x30] sm:$0xff]
    %v2568 = vld [vmem:[#allocation2 + $0x38] sm:$0xff]
    %v2569 = vld [vmem:[#allocation2 + $0x40] sm:$0xff]
    %v2570 = vld [vmem:[#allocation2 + $0x48] sm:$0xff]
    %v2571 = vld [vmem:[#allocation2 + $0x50] sm:$0xff]
    %v2572 = vld [vmem:[#allocation2 + $0x58] sm:$0xff]
    %v2573 = vld [vmem:[#allocation2 + $0x60] sm:$0xff]
    %v2574 = vld [vmem:[#allocation2 + $0x68] sm:$0xff]
    %v2575 = vld [vmem:[#allocation2 + $0x70] sm:$0xff]
    %v2576 = vld [vmem:[#allocation2 + $0x78] sm:$0xff]
    %v2577 = vld [vmem:[#allocation2 + $0x80] sm:$0xff]
    %v2578 = vld [vmem:[#allocation2 + $0x88] sm:$0xff]
    %v2579 = vld [vmem:[#allocation2 + $0x90] sm:$0xff]
    %v2580 = vld [vmem:[#allocation2 + $0x98] sm:$0xff]
    %v2581 = vld [vmem:[#allocation2 + $0xa0] sm:$0xff]
    %v2582 = vld [vmem:[#allocation2 + $0xa8] sm:$0xff]
    %v2583 = vld [vmem:[#allocation2 + $0xb0] sm:$0xff]
    %v2584 = vld [vmem:[#allocation2 + $0xb8] sm:$0xff]
    %s2585 = scalar_lea.vmem %s2, 24
    %v2586 = vld [vmem:[%s2585] sm:$0xf]
    %v2588 = vsel %vm269, %v2549, 0
    %v2591 = vsel %vm269, %v2550, 0
    %v2594 = vsel %vm269, %v2551, 0
    %v2597 = vsel %vm269, %v2552, 0
    %v2600 = vsel %vm269, %v2553, 0
    %v2603 = vsel %vm269, %v2554, 0
    %v2606 = vsel %vm269, %v2555, 0
    %v2609 = vsel %vm269, %v2556, 0
    %v2612 = vsel %vm269, %v2557, 0
    %v2615 = vsel %vm269, %v2558, 0
    %v2618 = vsel %vm269, %v2559, 0
    %v2621 = vsel %vm269, %v2560, 0
    %v2624 = vsel %vm306, %v2586, 0
    %2626 = vmatpush.bf16.msra.mxu0 0
    %2627 = vmatpush.bf16.msra.mxu0 0
    %2628 = vmatpush.bf16.msra.mxu0 0
    %2629 = vmatpush.bf16.msra.mxu0 0
    %2630 = vmatpush.bf16.msra.mxu0 0
    %2631 = vmatpush.bf16.msra.mxu0 0
    %2632 = vmatpush.bf16.msra.mxu0 0
    %2633 = vmatpush.bf16.msra.mxu0 %v2624
    %2634 = vmatmul.bf16.gmra.mxu0 %v2588
    %v2635 = vpop.f32.mrf.mxu0
    %v2636 = vadd.f32 0.0, %v2635
    %v2637 = vpop.f32.mrf.mxu0
    %v2638 = vadd.f32 0.0, %v2637
    %2639 = vmatmul.bf16.gmra.mxu0 %v2591
    %v2640 = vpop.f32.mrf.mxu0
    %v2641 = vadd.f32 0.0, %v2640
    %v2642 = vpop.f32.mrf.mxu0
    %v2643 = vadd.f32 0.0, %v2642
    %2644 = vmatmul.bf16.gmra.mxu0 %v2594
    %v2645 = vpop.f32.mrf.mxu0
    %v2646 = vadd.f32 0.0, %v2645
    %v2647 = vpop.f32.mrf.mxu0
    %v2648 = vadd.f32 0.0, %v2647
    %2649 = vmatmul.bf16.gmra.mxu0 %v2597
    %v2650 = vpop.f32.mrf.mxu0
    %v2651 = vadd.f32 0.0, %v2650
    %v2652 = vpop.f32.mrf.mxu0
    %v2653 = vadd.f32 0.0, %v2652
    %2654 = vmatmul.bf16.gmra.mxu0 %v2600
    %v2655 = vpop.f32.mrf.mxu0
    %v2656 = vadd.f32 0.0, %v2655
    %v2657 = vpop.f32.mrf.mxu0
    %v2658 = vadd.f32 0.0, %v2657
    %2659 = vmatmul.bf16.gmra.mxu0 %v2603
    %v2660 = vpop.f32.mrf.mxu0
    %v2661 = vadd.f32 0.0, %v2660
    %v2662 = vpop.f32.mrf.mxu0
    %v2663 = vadd.f32 0.0, %v2662
    %2664 = vmatmul.bf16.gmra.mxu0 %v2606
    %v2665 = vpop.f32.mrf.mxu0
    %v2666 = vadd.f32 0.0, %v2665
    %v2667 = vpop.f32.mrf.mxu0
    %v2668 = vadd.f32 0.0, %v2667
    %2669 = vmatmul.bf16.gmra.mxu0 %v2609
    %v2670 = vpop.f32.mrf.mxu0
    %v2671 = vadd.f32 0.0, %v2670
    %v2672 = vpop.f32.mrf.mxu0
    %v2673 = vadd.f32 0.0, %v2672
    %2674 = vmatmul.bf16.gmra.mxu0 %v2612
    %v2675 = vpop.f32.mrf.mxu0
    %v2676 = vadd.f32 0.0, %v2675
    %v2677 = vpop.f32.mrf.mxu0
    %v2678 = vadd.f32 0.0, %v2677
    %2679 = vmatmul.bf16.gmra.mxu0 %v2615
    %v2680 = vpop.f32.mrf.mxu0
    %v2681 = vadd.f32 0.0, %v2680
    %v2682 = vpop.f32.mrf.mxu0
    %v2683 = vadd.f32 0.0, %v2682
    %2684 = vmatmul.bf16.gmra.mxu0 %v2618
    %v2685 = vpop.f32.mrf.mxu0
    %v2686 = vadd.f32 0.0, %v2685
    %v2687 = vpop.f32.mrf.mxu0
    %v2688 = vadd.f32 0.0, %v2687
    %2689 = vmatmul.bf16.gmra.mxu0 %v2621
    %v2690 = vpop.f32.mrf.mxu0
    %v2691 = vadd.f32 0.0, %v2690
    %v2692 = vpop.f32.mrf.mxu0
    %v2693 = vadd.f32 0.0, %v2692
    %2694 = vdwg.mxu0
    %v2695 = vadd.f32 %v2561, %v2636
    %v2696 = vadd.f32 %v2562, %v2638
    %v2697 = vadd.f32 %v2563, %v2641
    %v2698 = vadd.f32 %v2564, %v2643
    %v2699 = vadd.f32 %v2565, %v2646
    %v2700 = vadd.f32 %v2566, %v2648
    %v2701 = vadd.f32 %v2567, %v2651
    %v2702 = vadd.f32 %v2568, %v2653
    %v2703 = vadd.f32 %v2569, %v2656
    %v2704 = vadd.f32 %v2570, %v2658
    %v2705 = vadd.f32 %v2571, %v2661
    %v2706 = vadd.f32 %v2572, %v2663
    %v2707 = vadd.f32 %v2573, %v2666
    %v2708 = vadd.f32 %v2574, %v2668
    %v2709 = vadd.f32 %v2575, %v2671
    %v2710 = vadd.f32 %v2576, %v2673
    %v2711 = vadd.f32 %v2577, %v2676
    %v2712 = vadd.f32 %v2578, %v2678
    %v2713 = vadd.f32 %v2579, %v2681
    %v2714 = vadd.f32 %v2580, %v2683
    %v2715 = vadd.f32 %v2581, %v2686
    %v2716 = vadd.f32 %v2582, %v2688
    %v2717 = vadd.f32 %v2583, %v2691
    %v2718 = vadd.f32 %v2584, %v2693
    %2719 = vst [vmem:[#allocation2] sm:$0xff] %v2695
    %2720 = vst [vmem:[#allocation2 + $0x8] sm:$0xff] %v2696
    %2721 = vst [vmem:[#allocation2 + $0x10] sm:$0xff] %v2697
    %2722 = vst [vmem:[#allocation2 + $0x18] sm:$0xff] %v2698
    %2723 = vst [vmem:[#allocation2 + $0x20] sm:$0xff] %v2699
    %2724 = vst [vmem:[#allocation2 + $0x28] sm:$0xff] %v2700
    %2725 = vst [vmem:[#allocation2 + $0x30] sm:$0xff] %v2701
    %2726 = vst [vmem:[#allocation2 + $0x38] sm:$0xff] %v2702
    %2727 = vst [vmem:[#allocation2 + $0x40] sm:$0xff] %v2703
    %2728 = vst [vmem:[#allocation2 + $0x48] sm:$0xff] %v2704
    %2729 = vst [vmem:[#allocation2 + $0x50] sm:$0xff] %v2705
    %2730 = vst [vmem:[#allocation2 + $0x58] sm:$0xff] %v2706
    %2731 = vst [vmem:[#allocation2 + $0x60] sm:$0xff] %v2707
    %2732 = vst [vmem:[#allocation2 + $0x68] sm:$0xff] %v2708
    %2733 = vst [vmem:[#allocation2 + $0x70] sm:$0xff] %v2709
    %2734 = vst [vmem:[#allocation2 + $0x78] sm:$0xff] %v2710
    %2735 = vst [vmem:[#allocation2 + $0x80] sm:$0xff] %v2711
    %2736 = vst [vmem:[#allocation2 + $0x88] sm:$0xff] %v2712
    %2737 = vst [vmem:[#allocation2 + $0x90] sm:$0xff] %v2713
    %2738 = vst [vmem:[#allocation2 + $0x98] sm:$0xff] %v2714
    %2739 = vst [vmem:[#allocation2 + $0xa0] sm:$0xff] %v2715
    %2740 = vst [vmem:[#allocation2 + $0xa8] sm:$0xff] %v2716
    %2741 = vst [vmem:[#allocation2 + $0xb0] sm:$0xff] %v2717
    %2742 = vst [vmem:[#allocation2 + $0xb8] sm:$0xff] %v2718
    %v2743 = vld [vmem:[%s1] sm:$0xff]
    %v2744 = vld [vmem:[%s1 + $0x8] sm:$0xff]
    %v2745 = vld [vmem:[%s1 + $0x10] sm:$0xff]
    %v2746 = vld [vmem:[%s1 + $0x18] sm:$0xff]
    %v2747 = vld [vmem:[%s1 + $0x20] sm:$0xff]
    %v2748 = vld [vmem:[%s1 + $0x28] sm:$0xff]
    %v2749 = vld [vmem:[%s1 + $0x30] sm:$0xff]
    %v2750 = vld [vmem:[%s1 + $0x38] sm:$0xff]
    %v2751 = vld [vmem:[%s1 + $0x40] sm:$0xff]
    %v2752 = vld [vmem:[%s1 + $0x48] sm:$0xff]
    %v2753 = vld [vmem:[%s1 + $0x50] sm:$0xff]
    %v2754 = vld [vmem:[%s1 + $0x58] sm:$0xff]
    %v2755 = vld [vmem:[%s1 + $0x60] sm:$0xff]
    %v2756 = vld [vmem:[%s1 + $0x68] sm:$0xff]
    %v2757 = vld [vmem:[%s1 + $0x70] sm:$0xff]
    %v2758 = vld [vmem:[%s1 + $0x78] sm:$0xff]
    %v2759 = vld [vmem:[%s1 + $0x80] sm:$0xff]
    %v2760 = vld [vmem:[%s1 + $0x88] sm:$0xff]
    %v2761 = vld [vmem:[%s1 + $0x90] sm:$0xff]
    %v2762 = vld [vmem:[%s1 + $0x98] sm:$0xff]
    %v2763 = vld [vmem:[%s1 + $0xa0] sm:$0xff]
    %v2764 = vld [vmem:[%s1 + $0xa8] sm:$0xff]
    %v2765 = vld [vmem:[%s1 + $0xb0] sm:$0xff]
    %v2766 = vld [vmem:[%s1 + $0xb8] sm:$0xff]
    %v2767 = vld [vmem:[%s0] sm:$0xff]
    %v2768 = vld [vmem:[%s0 + $0x8] sm:$0xff]
    %v2769 = vld [vmem:[%s0 + $0x10] sm:$0xff]
    %v2770 = vld [vmem:[%s0 + $0x18] sm:$0xff]
    %v2771 = vld [vmem:[%s0 + $0x20] sm:$0xff]
    %v2772 = vld [vmem:[%s0 + $0x28] sm:$0xff]
    %v2773 = vld [vmem:[%s0 + $0x30] sm:$0xff]
    %v2774 = vld [vmem:[%s0 + $0x38] sm:$0xff]
    %v2775 = vld [vmem:[%s0 + $0x40] sm:$0xff]
    %v2776 = vld [vmem:[%s0 + $0x48] sm:$0xff]
    %v2777 = vld [vmem:[%s0 + $0x50] sm:$0xff]
    %v2778 = vld [vmem:[%s0 + $0x58] sm:$0xff]
    %v2779 = vld [vmem:[%s0 + $0x60] sm:$0xff]
    %v2780 = vld [vmem:[%s0 + $0x68] sm:$0xff]
    %v2781 = vld [vmem:[%s0 + $0x70] sm:$0xff]
    %v2782 = vld [vmem:[%s0 + $0x78] sm:$0xff]
    %v2783 = vld [vmem:[%s0 + $0x80] sm:$0xff]
    %v2784 = vld [vmem:[%s0 + $0x88] sm:$0xff]
    %v2785 = vld [vmem:[%s0 + $0x90] sm:$0xff]
    %v2786 = vld [vmem:[%s0 + $0x98] sm:$0xff]
    %v2787 = vld [vmem:[%s0 + $0xa0] sm:$0xff]
    %v2788 = vld [vmem:[%s0 + $0xa8] sm:$0xff]
    %v2789 = vld [vmem:[%s0 + $0xb0] sm:$0xff]
    %v2790 = vld [vmem:[%s0 + $0xb8] sm:$0xff]
    %2792 = vset.pattern.permute.xlu0 7
    %2793 = vperm.xlu0 %2792, %v2767
    %v2794 = vpop.permute.xlu0 %2793
    %2797 = vset.pattern.permute.xlu0 7
    %2798 = vperm.xlu0 %2797, %v2768
    %v2799 = vpop.permute.xlu0 %2798
    %2802 = vset.pattern.permute.xlu0 7
    %2803 = vperm.xlu0 %2802, %v2769
    %v2804 = vpop.permute.xlu0 %2803
    %2807 = vset.pattern.permute.xlu0 7
    %2808 = vperm.xlu0 %2807, %v2770
    %v2809 = vpop.permute.xlu0 %2808
    %2812 = vset.pattern.permute.xlu0 7
    %2813 = vperm.xlu0 %2812, %v2771
    %v2814 = vpop.permute.xlu0 %2813
    %2817 = vset.pattern.permute.xlu0 7
    %2818 = vperm.xlu0 %2817, %v2772
    %v2819 = vpop.permute.xlu0 %2818
    %2822 = vset.pattern.permute.xlu0 7
    %2823 = vperm.xlu0 %2822, %v2773
    %v2824 = vpop.permute.xlu0 %2823
    %2827 = vset.pattern.permute.xlu0 7
    %2828 = vperm.xlu0 %2827, %v2774
    %v2829 = vpop.permute.xlu0 %2828
    %2832 = vset.pattern.permute.xlu0 7
    %2833 = vperm.xlu0 %2832, %v2775
    %v2834 = vpop.permute.xlu0 %2833
    %2837 = vset.pattern.permute.xlu0 7
    %2838 = vperm.xlu0 %2837, %v2776
    %v2839 = vpop.permute.xlu0 %2838
    %2842 = vset.pattern.permute.xlu0 7
    %2843 = vperm.xlu0 %2842, %v2777
    %v2844 = vpop.permute.xlu0 %2843
    %2847 = vset.pattern.permute.xlu0 7
    %2848 = vperm.xlu0 %2847, %v2778
    %v2849 = vpop.permute.xlu0 %2848
    %2852 = vset.pattern.permute.xlu0 7
    %2853 = vperm.xlu0 %2852, %v2779
    %v2854 = vpop.permute.xlu0 %2853
    %2857 = vset.pattern.permute.xlu0 7
    %2858 = vperm.xlu0 %2857, %v2780
    %v2859 = vpop.permute.xlu0 %2858
    %2862 = vset.pattern.permute.xlu0 7
    %2863 = vperm.xlu0 %2862, %v2781
    %v2864 = vpop.permute.xlu0 %2863
    %2867 = vset.pattern.permute.xlu0 7
    %2868 = vperm.xlu0 %2867, %v2782
    %v2869 = vpop.permute.xlu0 %2868
    %2872 = vset.pattern.permute.xlu0 7
    %2873 = vperm.xlu0 %2872, %v2783
    %v2874 = vpop.permute.xlu0 %2873
    %2877 = vset.pattern.permute.xlu0 7
    %2878 = vperm.xlu0 %2877, %v2784
    %v2879 = vpop.permute.xlu0 %2878
    %2882 = vset.pattern.permute.xlu0 7
    %2883 = vperm.xlu0 %2882, %v2785
    %v2884 = vpop.permute.xlu0 %2883
    %2887 = vset.pattern.permute.xlu0 7
    %2888 = vperm.xlu0 %2887, %v2786
    %v2889 = vpop.permute.xlu0 %2888
    %2892 = vset.pattern.permute.xlu0 7
    %2893 = vperm.xlu0 %2892, %v2787
    %v2894 = vpop.permute.xlu0 %2893
    %2897 = vset.pattern.permute.xlu0 7
    %2898 = vperm.xlu0 %2897, %v2788
    %v2899 = vpop.permute.xlu0 %2898
    %2902 = vset.pattern.permute.xlu0 7
    %2903 = vperm.xlu0 %2902, %v2789
    %v2904 = vpop.permute.xlu0 %2903
    %2907 = vset.pattern.permute.xlu0 7
    %2908 = vperm.xlu0 %2907, %v2790
    %v2909 = vpop.permute.xlu0 %2908
    %v2911 = vmul.f32 %v2743, %v2794
    %v2912 = vmul.f32 %v2744, %v2799
    %v2913 = vmul.f32 %v2745, %v2804
    %v2914 = vmul.f32 %v2746, %v2809
    %v2915 = vmul.f32 %v2747, %v2814
    %v2916 = vmul.f32 %v2748, %v2819
    %v2917 = vmul.f32 %v2749, %v2824
    %v2918 = vmul.f32 %v2750, %v2829
    %v2919 = vmul.f32 %v2751, %v2834
    %v2920 = vmul.f32 %v2752, %v2839
    %v2921 = vmul.f32 %v2753, %v2844
    %v2922 = vmul.f32 %v2754, %v2849
    %v2923 = vmul.f32 %v2755, %v2854
    %v2924 = vmul.f32 %v2756, %v2859
    %v2925 = vmul.f32 %v2757, %v2864
    %v2926 = vmul.f32 %v2758, %v2869
    %v2927 = vmul.f32 %v2759, %v2874
    %v2928 = vmul.f32 %v2760, %v2879
    %v2929 = vmul.f32 %v2761, %v2884
    %v2930 = vmul.f32 %v2762, %v2889
    %v2931 = vmul.f32 %v2763, %v2894
    %v2932 = vmul.f32 %v2764, %v2899
    %v2933 = vmul.f32 %v2765, %v2904
    %v2934 = vmul.f32 %v2766, %v2909
    %v2935 = vpack.c.bf16 %v2912, %v2911
    %v2936 = vpack.c.bf16 %v2914, %v2913
    %v2937 = vpack.c.bf16 %v2916, %v2915
    %v2938 = vpack.c.bf16 %v2918, %v2917
    %v2939 = vpack.c.bf16 %v2920, %v2919
    %v2940 = vpack.c.bf16 %v2922, %v2921
    %v2941 = vpack.c.bf16 %v2924, %v2923
    %v2942 = vpack.c.bf16 %v2926, %v2925
    %v2943 = vpack.c.bf16 %v2928, %v2927
    %v2944 = vpack.c.bf16 %v2930, %v2929
    %v2945 = vpack.c.bf16 %v2932, %v2931
    %v2946 = vpack.c.bf16 %v2934, %v2933
    %v2947 = vld [vmem:[#allocation2] sm:$0xff]
    %v2948 = vld [vmem:[#allocation2 + $0x8] sm:$0xff]
    %v2949 = vld [vmem:[#allocation2 + $0x10] sm:$0xff]
    %v2950 = vld [vmem:[#allocation2 + $0x18] sm:$0xff]
    %v2951 = vld [vmem:[#allocation2 + $0x20] sm:$0xff]
    %v2952 = vld [vmem:[#allocation2 + $0x28] sm:$0xff]
    %v2953 = vld [vmem:[#allocation2 + $0x30] sm:$0xff]
    %v2954 = vld [vmem:[#allocation2 + $0x38] sm:$0xff]
    %v2955 = vld [vmem:[#allocation2 + $0x40] sm:$0xff]
    %v2956 = vld [vmem:[#allocation2 + $0x48] sm:$0xff]
    %v2957 = vld [vmem:[#allocation2 + $0x50] sm:$0xff]
    %v2958 = vld [vmem:[#allocation2 + $0x58] sm:$0xff]
    %v2959 = vld [vmem:[#allocation2 + $0x60] sm:$0xff]
    %v2960 = vld [vmem:[#allocation2 + $0x68] sm:$0xff]
    %v2961 = vld [vmem:[#allocation2 + $0x70] sm:$0xff]
    %v2962 = vld [vmem:[#allocation2 + $0x78] sm:$0xff]
    %v2963 = vld [vmem:[#allocation2 + $0x80] sm:$0xff]
    %v2964 = vld [vmem:[#allocation2 + $0x88] sm:$0xff]
    %v2965 = vld [vmem:[#allocation2 + $0x90] sm:$0xff]
    %v2966 = vld [vmem:[#allocation2 + $0x98] sm:$0xff]
    %v2967 = vld [vmem:[#allocation2 + $0xa0] sm:$0xff]
    %v2968 = vld [vmem:[#allocation2 + $0xa8] sm:$0xff]
    %v2969 = vld [vmem:[#allocation2 + $0xb0] sm:$0xff]
    %v2970 = vld [vmem:[#allocation2 + $0xb8] sm:$0xff]
    %s2971 = scalar_lea.vmem %s2, 28
    %v2972 = vld [vmem:[%s2971] sm:$0xf]
    %v2974 = vsel %vm269, %v2935, 0
    %v2977 = vsel %vm269, %v2936, 0
    %v2980 = vsel %vm269, %v2937, 0
    %v2983 = vsel %vm269, %v2938, 0
    %v2986 = vsel %vm269, %v2939, 0
    %v2989 = vsel %vm269, %v2940, 0
    %v2992 = vsel %vm269, %v2941, 0
    %v2995 = vsel %vm269, %v2942, 0
    %v2998 = vsel %vm269, %v2943, 0
    %v3001 = vsel %vm269, %v2944, 0
    %v3004 = vsel %vm269, %v2945, 0
    %v3007 = vsel %vm269, %v2946, 0
    %v3010 = vsel %vm306, %v2972, 0
    %3012 = vmatpush.bf16.msra.mxu0 0
    %3013 = vmatpush.bf16.msra.mxu0 0
    %3014 = vmatpush.bf16.msra.mxu0 0
    %3015 = vmatpush.bf16.msra.mxu0 0
    %3016 = vmatpush.bf16.msra.mxu0 0
    %3017 = vmatpush.bf16.msra.mxu0 0
    %3018 = vmatpush.bf16.msra.mxu0 0
    %3019 = vmatpush.bf16.msra.mxu0 %v3010
    %3020 = vmatmul.bf16.gmra.mxu0 %v2974
    %v3021 = vpop.f32.mrf.mxu0
    %v3022 = vadd.f32 0.0, %v3021
    %v3023 = vpop.f32.mrf.mxu0
    %v3024 = vadd.f32 0.0, %v3023
    %3025 = vmatmul.bf16.gmra.mxu0 %v2977
    %v3026 = vpop.f32.mrf.mxu0
    %v3027 = vadd.f32 0.0, %v3026
    %v3028 = vpop.f32.mrf.mxu0
    %v3029 = vadd.f32 0.0, %v3028
    %3030 = vmatmul.bf16.gmra.mxu0 %v2980
    %v3031 = vpop.f32.mrf.mxu0
    %v3032 = vadd.f32 0.0, %v3031
    %v3033 = vpop.f32.mrf.mxu0
    %v3034 = vadd.f32 0.0, %v3033
    %3035 = vmatmul.bf16.gmra.mxu0 %v2983
    %v3036 = vpop.f32.mrf.mxu0
    %v3037 = vadd.f32 0.0, %v3036
    %v3038 = vpop.f32.mrf.mxu0
    %v3039 = vadd.f32 0.0, %v3038
    %3040 = vmatmul.bf16.gmra.mxu0 %v2986
    %v3041 = vpop.f32.mrf.mxu0
    %v3042 = vadd.f32 0.0, %v3041
    %v3043 = vpop.f32.mrf.mxu0
    %v3044 = vadd.f32 0.0, %v3043
    %3045 = vmatmul.bf16.gmra.mxu0 %v2989
    %v3046 = vpop.f32.mrf.mxu0
    %v3047 = vadd.f32 0.0, %v3046
    %v3048 = vpop.f32.mrf.mxu0
    %v3049 = vadd.f32 0.0, %v3048
    %3050 = vmatmul.bf16.gmra.mxu0 %v2992
    %v3051 = vpop.f32.mrf.mxu0
    %v3052 = vadd.f32 0.0, %v3051
    %v3053 = vpop.f32.mrf.mxu0
    %v3054 = vadd.f32 0.0, %v3053
    %3055 = vmatmul.bf16.gmra.mxu0 %v2995
    %v3056 = vpop.f32.mrf.mxu0
    %v3057 = vadd.f32 0.0, %v3056
    %v3058 = vpop.f32.mrf.mxu0
    %v3059 = vadd.f32 0.0, %v3058
    %3060 = vmatmul.bf16.gmra.mxu0 %v2998
    %v3061 = vpop.f32.mrf.mxu0
    %v3062 = vadd.f32 0.0, %v3061
    %v3063 = vpop.f32.mrf.mxu0
    %v3064 = vadd.f32 0.0, %v3063
    %3065 = vmatmul.bf16.gmra.mxu0 %v3001
    %v3066 = vpop.f32.mrf.mxu0
    %v3067 = vadd.f32 0.0, %v3066
    %v3068 = vpop.f32.mrf.mxu0
    %v3069 = vadd.f32 0.0, %v3068
    %3070 = vmatmul.bf16.gmra.mxu0 %v3004
    %v3071 = vpop.f32.mrf.mxu0
    %v3072 = vadd.f32 0.0, %v3071
    %v3073 = vpop.f32.mrf.mxu0
    %v3074 = vadd.f32 0.0, %v3073
    %3075 = vmatmul.bf16.gmra.mxu0 %v3007
    %v3076 = vpop.f32.mrf.mxu0
    %v3077 = vadd.f32 0.0, %v3076
    %v3078 = vpop.f32.mrf.mxu0
    %v3079 = vadd.f32 0.0, %v3078
    %3080 = vdwg.mxu0
    %v3081 = vadd.f32 %v2947, %v3022
    %v3082 = vadd.f32 %v2948, %v3024
    %v3083 = vadd.f32 %v2949, %v3027
    %v3084 = vadd.f32 %v2950, %v3029
    %v3085 = vadd.f32 %v2951, %v3032
    %v3086 = vadd.f32 %v2952, %v3034
    %v3087 = vadd.f32 %v2953, %v3037
    %v3088 = vadd.f32 %v2954, %v3039
    %v3089 = vadd.f32 %v2955, %v3042
    %v3090 = vadd.f32 %v2956, %v3044
    %v3091 = vadd.f32 %v2957, %v3047
    %v3092 = vadd.f32 %v2958, %v3049
    %v3093 = vadd.f32 %v2959, %v3052
    %v3094 = vadd.f32 %v2960, %v3054
    %v3095 = vadd.f32 %v2961, %v3057
    %v3096 = vadd.f32 %v2962, %v3059
    %v3097 = vadd.f32 %v2963, %v3062
    %v3098 = vadd.f32 %v2964, %v3064
    %v3099 = vadd.f32 %v2965, %v3067
    %v3100 = vadd.f32 %v2966, %v3069
    %v3101 = vadd.f32 %v2967, %v3072
    %v3102 = vadd.f32 %v2968, %v3074
    %v3103 = vadd.f32 %v2969, %v3077
    %v3104 = vadd.f32 %v2970, %v3079
    %3105 = vst [vmem:[#allocation2] sm:$0xff] %v3081
    %3106 = vst [vmem:[#allocation2 + $0x8] sm:$0xff] %v3082
    %3107 = vst [vmem:[#allocation2 + $0x10] sm:$0xff] %v3083
    %3108 = vst [vmem:[#allocation2 + $0x18] sm:$0xff] %v3084
    %3109 = vst [vmem:[#allocation2 + $0x20] sm:$0xff] %v3085
    %3110 = vst [vmem:[#allocation2 + $0x28] sm:$0xff] %v3086
    %3111 = vst [vmem:[#allocation2 + $0x30] sm:$0xff] %v3087
    %3112 = vst [vmem:[#allocation2 + $0x38] sm:$0xff] %v3088
    %3113 = vst [vmem:[#allocation2 + $0x40] sm:$0xff] %v3089
    %3114 = vst [vmem:[#allocation2 + $0x48] sm:$0xff] %v3090
    %3115 = vst [vmem:[#allocation2 + $0x50] sm:$0xff] %v3091
    %3116 = vst [vmem:[#allocation2 + $0x58] sm:$0xff] %v3092
    %3117 = vst [vmem:[#allocation2 + $0x60] sm:$0xff] %v3093
    %3118 = vst [vmem:[#allocation2 + $0x68] sm:$0xff] %v3094
    %3119 = vst [vmem:[#allocation2 + $0x70] sm:$0xff] %v3095
    %3120 = vst [vmem:[#allocation2 + $0x78] sm:$0xff] %v3096
    %3121 = vst [vmem:[#allocation2 + $0x80] sm:$0xff] %v3097
    %3122 = vst [vmem:[#allocation2 + $0x88] sm:$0xff] %v3098
    %3123 = vst [vmem:[#allocation2 + $0x90] sm:$0xff] %v3099
    %3124 = vst [vmem:[#allocation2 + $0x98] sm:$0xff] %v3100
    %3125 = vst [vmem:[#allocation2 + $0xa0] sm:$0xff] %v3101
    %3126 = vst [vmem:[#allocation2 + $0xa8] sm:$0xff] %v3102
    %3127 = vst [vmem:[#allocation2 + $0xb0] sm:$0xff] %v3103
    %3128 = vst [vmem:[#allocation2 + $0xb8] sm:$0xff] %v3104
    %v3129 = vld [vmem:[%s1] sm:$0xff]
    %v3130 = vld [vmem:[%s1 + $0x8] sm:$0xff]
    %v3131 = vld [vmem:[%s1 + $0x10] sm:$0xff]
    %v3132 = vld [vmem:[%s1 + $0x18] sm:$0xff]
    %v3133 = vld [vmem:[%s1 + $0x20] sm:$0xff]
    %v3134 = vld [vmem:[%s1 + $0x28] sm:$0xff]
    %v3135 = vld [vmem:[%s1 + $0x30] sm:$0xff]
    %v3136 = vld [vmem:[%s1 + $0x38] sm:$0xff]
    %v3137 = vld [vmem:[%s1 + $0x40] sm:$0xff]
    %v3138 = vld [vmem:[%s1 + $0x48] sm:$0xff]
    %v3139 = vld [vmem:[%s1 + $0x50] sm:$0xff]
    %v3140 = vld [vmem:[%s1 + $0x58] sm:$0xff]
    %v3141 = vld [vmem:[%s1 + $0x60] sm:$0xff]
    %v3142 = vld [vmem:[%s1 + $0x68] sm:$0xff]
    %v3143 = vld [vmem:[%s1 + $0x70] sm:$0xff]
    %v3144 = vld [vmem:[%s1 + $0x78] sm:$0xff]
    %v3145 = vld [vmem:[%s1 + $0x80] sm:$0xff]
    %v3146 = vld [vmem:[%s1 + $0x88] sm:$0xff]
    %v3147 = vld [vmem:[%s1 + $0x90] sm:$0xff]
    %v3148 = vld [vmem:[%s1 + $0x98] sm:$0xff]
    %v3149 = vld [vmem:[%s1 + $0xa0] sm:$0xff]
    %v3150 = vld [vmem:[%s1 + $0xa8] sm:$0xff]
    %v3151 = vld [vmem:[%s1 + $0xb0] sm:$0xff]
    %v3152 = vld [vmem:[%s1 + $0xb8] sm:$0xff]
    %v3153 = vld [vmem:[%s0] sm:$0xff]
    %v3154 = vld [vmem:[%s0 + $0x8] sm:$0xff]
    %v3155 = vld [vmem:[%s0 + $0x10] sm:$0xff]
    %v3156 = vld [vmem:[%s0 + $0x18] sm:$0xff]
    %v3157 = vld [vmem:[%s0 + $0x20] sm:$0xff]
    %v3158 = vld [vmem:[%s0 + $0x28] sm:$0xff]
    %v3159 = vld [vmem:[%s0 + $0x30] sm:$0xff]
    %v3160 = vld [vmem:[%s0 + $0x38] sm:$0xff]
    %v3161 = vld [vmem:[%s0 + $0x40] sm:$0xff]
    %v3162 = vld [vmem:[%s0 + $0x48] sm:$0xff]
    %v3163 = vld [vmem:[%s0 + $0x50] sm:$0xff]
    %v3164 = vld [vmem:[%s0 + $0x58] sm:$0xff]
    %v3165 = vld [vmem:[%s0 + $0x60] sm:$0xff]
    %v3166 = vld [vmem:[%s0 + $0x68] sm:$0xff]
    %v3167 = vld [vmem:[%s0 + $0x70] sm:$0xff]
    %v3168 = vld [vmem:[%s0 + $0x78] sm:$0xff]
    %v3169 = vld [vmem:[%s0 + $0x80] sm:$0xff]
    %v3170 = vld [vmem:[%s0 + $0x88] sm:$0xff]
    %v3171 = vld [vmem:[%s0 + $0x90] sm:$0xff]
    %v3172 = vld [vmem:[%s0 + $0x98] sm:$0xff]
    %v3173 = vld [vmem:[%s0 + $0xa0] sm:$0xff]
    %v3174 = vld [vmem:[%s0 + $0xa8] sm:$0xff]
    %v3175 = vld [vmem:[%s0 + $0xb0] sm:$0xff]
    %v3176 = vld [vmem:[%s0 + $0xb8] sm:$0xff]
    %3178 = vset.pattern.permute.xlu0 8
    %3179 = vperm.xlu0 %3178, %v3153
    %v3180 = vpop.permute.xlu0 %3179
    %3183 = vset.pattern.permute.xlu0 8
    %3184 = vperm.xlu0 %3183, %v3154
    %v3185 = vpop.permute.xlu0 %3184
    %3188 = vset.pattern.permute.xlu0 8
    %3189 = vperm.xlu0 %3188, %v3155
    %v3190 = vpop.permute.xlu0 %3189
    %3193 = vset.pattern.permute.xlu0 8
    %3194 = vperm.xlu0 %3193, %v3156
    %v3195 = vpop.permute.xlu0 %3194
    %3198 = vset.pattern.permute.xlu0 8
    %3199 = vperm.xlu0 %3198, %v3157
    %v3200 = vpop.permute.xlu0 %3199
    %3203 = vset.pattern.permute.xlu0 8
    %3204 = vperm.xlu0 %3203, %v3158
    %v3205 = vpop.permute.xlu0 %3204
    %3208 = vset.pattern.permute.xlu0 8
    %3209 = vperm.xlu0 %3208, %v3159
    %v3210 = vpop.permute.xlu0 %3209
    %3213 = vset.pattern.permute.xlu0 8
    %3214 = vperm.xlu0 %3213, %v3160
    %v3215 = vpop.permute.xlu0 %3214
    %3218 = vset.pattern.permute.xlu0 8
    %3219 = vperm.xlu0 %3218, %v3161
    %v3220 = vpop.permute.xlu0 %3219
    %3223 = vset.pattern.permute.xlu0 8
    %3224 = vperm.xlu0 %3223, %v3162
    %v3225 = vpop.permute.xlu0 %3224
    %3228 = vset.pattern.permute.xlu0 8
    %3229 = vperm.xlu0 %3228, %v3163
    %v3230 = vpop.permute.xlu0 %3229
    %3233 = vset.pattern.permute.xlu0 8
    %3234 = vperm.xlu0 %3233, %v3164
    %v3235 = vpop.permute.xlu0 %3234
    %3238 = vset.pattern.permute.xlu0 8
    %3239 = vperm.xlu0 %3238, %v3165
    %v3240 = vpop.permute.xlu0 %3239
    %3243 = vset.pattern.permute.xlu0 8
    %3244 = vperm.xlu0 %3243, %v3166
    %v3245 = vpop.permute.xlu0 %3244
    %3248 = vset.pattern.permute.xlu0 8
    %3249 = vperm.xlu0 %3248, %v3167
    %v3250 = vpop.permute.xlu0 %3249
    %3253 = vset.pattern.permute.xlu0 8
    %3254 = vperm.xlu0 %3253, %v3168
    %v3255 = vpop.permute.xlu0 %3254
    %3258 = vset.pattern.permute.xlu0 8
    %3259 = vperm.xlu0 %3258, %v3169
    %v3260 = vpop.permute.xlu0 %3259
    %3263 = vset.pattern.permute.xlu0 8
    %3264 = vperm.xlu0 %3263, %v3170
    %v3265 = vpop.permute.xlu0 %3264
    %3268 = vset.pattern.permute.xlu0 8
    %3269 = vperm.xlu0 %3268, %v3171
    %v3270 = vpop.permute.xlu0 %3269
    %3273 = vset.pattern.permute.xlu0 8
    %3274 = vperm.xlu0 %3273, %v3172
    %v3275 = vpop.permute.xlu0 %3274
    %3278 = vset.pattern.permute.xlu0 8
    %3279 = vperm.xlu0 %3278, %v3173
    %v3280 = vpop.permute.xlu0 %3279
    %3283 = vset.pattern.permute.xlu0 8
    %3284 = vperm.xlu0 %3283, %v3174
    %v3285 = vpop.permute.xlu0 %3284
    %3288 = vset.pattern.permute.xlu0 8
    %3289 = vperm.xlu0 %3288, %v3175
    %v3290 = vpop.permute.xlu0 %3289
    %3293 = vset.pattern.permute.xlu0 8
    %3294 = vperm.xlu0 %3293, %v3176
    %v3295 = vpop.permute.xlu0 %3294
    %v3297 = vmul.f32 %v3129, %v3180
    %v3298 = vmul.f32 %v3130, %v3185
    %v3299 = vmul.f32 %v3131, %v3190
    %v3300 = vmul.f32 %v3132, %v3195
    %v3301 = vmul.f32 %v3133, %v3200
    %v3302 = vmul.f32 %v3134, %v3205
    %v3303 = vmul.f32 %v3135, %v3210
    %v3304 = vmul.f32 %v3136, %v3215
    %v3305 = vmul.f32 %v3137, %v3220
    %v3306 = vmul.f32 %v3138, %v3225
    %v3307 = vmul.f32 %v3139, %v3230
    %v3308 = vmul.f32 %v3140, %v3235
    %v3309 = vmul.f32 %v3141, %v3240
    %v3310 = vmul.f32 %v3142, %v3245
    %v3311 = vmul.f32 %v3143, %v3250
    %v3312 = vmul.f32 %v3144, %v3255
    %v3313 = vmul.f32 %v3145, %v3260
    %v3314 = vmul.f32 %v3146, %v3265
    %v3315 = vmul.f32 %v3147, %v3270
    %v3316 = vmul.f32 %v3148, %v3275
    %v3317 = vmul.f32 %v3149, %v3280
    %v3318 = vmul.f32 %v3150, %v3285
    %v3319 = vmul.f32 %v3151, %v3290
    %v3320 = vmul.f32 %v3152, %v3295
    %v3321 = vpack.c.bf16 %v3298, %v3297
    %v3322 = vpack.c.bf16 %v3300, %v3299
    %v3323 = vpack.c.bf16 %v3302, %v3301
    %v3324 = vpack.c.bf16 %v3304, %v3303
    %v3325 = vpack.c.bf16 %v3306, %v3305
    %v3326 = vpack.c.bf16 %v3308, %v3307
    %v3327 = vpack.c.bf16 %v3310, %v3309
    %v3328 = vpack.c.bf16 %v3312, %v3311
    %v3329 = vpack.c.bf16 %v3314, %v3313
    %v3330 = vpack.c.bf16 %v3316, %v3315
    %v3331 = vpack.c.bf16 %v3318, %v3317
    %v3332 = vpack.c.bf16 %v3320, %v3319
    %v3333 = vld [vmem:[#allocation2] sm:$0xff]
    %v3334 = vld [vmem:[#allocation2 + $0x8] sm:$0xff]
    %v3335 = vld [vmem:[#allocation2 + $0x10] sm:$0xff]
    %v3336 = vld [vmem:[#allocation2 + $0x18] sm:$0xff]
    %v3337 = vld [vmem:[#allocation2 + $0x20] sm:$0xff]
    %v3338 = vld [vmem:[#allocation2 + $0x28] sm:$0xff]
    %v3339 = vld [vmem:[#allocation2 + $0x30] sm:$0xff]
    %v3340 = vld [vmem:[#allocation2 + $0x38] sm:$0xff]
    %v3341 = vld [vmem:[#allocation2 + $0x40] sm:$0xff]
    %v3342 = vld [vmem:[#allocation2 + $0x48] sm:$0xff]
    %v3343 = vld [vmem:[#allocation2 + $0x50] sm:$0xff]
    %v3344 = vld [vmem:[#allocation2 + $0x58] sm:$0xff]
    %v3345 = vld [vmem:[#allocation2 + $0x60] sm:$0xff]
    %v3346 = vld [vmem:[#allocation2 + $0x68] sm:$0xff]
    %v3347 = vld [vmem:[#allocation2 + $0x70] sm:$0xff]
    %v3348 = vld [vmem:[#allocation2 + $0x78] sm:$0xff]
    %v3349 = vld [vmem:[#allocation2 + $0x80] sm:$0xff]
    %v3350 = vld [vmem:[#allocation2 + $0x88] sm:$0xff]
    %v3351 = vld [vmem:[#allocation2 + $0x90] sm:$0xff]
    %v3352 = vld [vmem:[#allocation2 + $0x98] sm:$0xff]
    %v3353 = vld [vmem:[#allocation2 + $0xa0] sm:$0xff]
    %v3354 = vld [vmem:[#allocation2 + $0xa8] sm:$0xff]
    %v3355 = vld [vmem:[#allocation2 + $0xb0] sm:$0xff]
    %v3356 = vld [vmem:[#allocation2 + $0xb8] sm:$0xff]
    %s3357 = scalar_lea.vmem %s2, 32
    %v3358 = vld [vmem:[%s3357] sm:$0xf]
    %v3360 = vsel %vm269, %v3321, 0
    %v3363 = vsel %vm269, %v3322, 0
    %v3366 = vsel %vm269, %v3323, 0
    %v3369 = vsel %vm269, %v3324, 0
    %v3372 = vsel %vm269, %v3325, 0
    %v3375 = vsel %vm269, %v3326, 0
    %v3378 = vsel %vm269, %v3327, 0
    %v3381 = vsel %vm269, %v3328, 0
    %v3384 = vsel %vm269, %v3329, 0
    %v3387 = vsel %vm269, %v3330, 0
    %v3390 = vsel %vm269, %v3331, 0
    %v3393 = vsel %vm269, %v3332, 0
    %v3396 = vsel %vm306, %v3358, 0
    %3398 = vmatpush.bf16.msra.mxu0 0
    %3399 = vmatpush.bf16.msra.mxu0 0
    %3400 = vmatpush.bf16.msra.mxu0 0
    %3401 = vmatpush.bf16.msra.mxu0 0
    %3402 = vmatpush.bf16.msra.mxu0 0
    %3403 = vmatpush.bf16.msra.mxu0 0
    %3404 = vmatpush.bf16.msra.mxu0 0
    %3405 = vmatpush.bf16.msra.mxu0 %v3396
    %3406 = vmatmul.bf16.gmra.mxu0 %v3360
    %v3407 = vpop.f32.mrf.mxu0
    %v3408 = vadd.f32 0.0, %v3407
    %v3409 = vpop.f32.mrf.mxu0
    %v3410 = vadd.f32 0.0, %v3409
    %3411 = vmatmul.bf16.gmra.mxu0 %v3363
    %v3412 = vpop.f32.mrf.mxu0
    %v3413 = vadd.f32 0.0, %v3412
    %v3414 = vpop.f32.mrf.mxu0
    %v3415 = vadd.f32 0.0, %v3414
    %3416 = vmatmul.bf16.gmra.mxu0 %v3366
    %v3417 = vpop.f32.mrf.mxu0
    %v3418 = vadd.f32 0.0, %v3417
    %v3419 = vpop.f32.mrf.mxu0
    %v3420 = vadd.f32 0.0, %v3419
    %3421 = vmatmul.bf16.gmra.mxu0 %v3369
    %v3422 = vpop.f32.mrf.mxu0
    %v3423 = vadd.f32 0.0, %v3422
    %v3424 = vpop.f32.mrf.mxu0
    %v3425 = vadd.f32 0.0, %v3424
    %3426 = vmatmul.bf16.gmra.mxu0 %v3372
    %v3427 = vpop.f32.mrf.mxu0
    %v3428 = vadd.f32 0.0, %v3427
    %v3429 = vpop.f32.mrf.mxu0
    %v3430 = vadd.f32 0.0, %v3429
    %3431 = vmatmul.bf16.gmra.mxu0 %v3375
    %v3432 = vpop.f32.mrf.mxu0
    %v3433 = vadd.f32 0.0, %v3432
    %v3434 = vpop.f32.mrf.mxu0
    %v3435 = vadd.f32 0.0, %v3434
    %3436 = vmatmul.bf16.gmra.mxu0 %v3378
    %v3437 = vpop.f32.mrf.mxu0
    %v3438 = vadd.f32 0.0, %v3437
    %v3439 = vpop.f32.mrf.mxu0
    %v3440 = vadd.f32 0.0, %v3439
    %3441 = vmatmul.bf16.gmra.mxu0 %v3381
    %v3442 = vpop.f32.mrf.mxu0
    %v3443 = vadd.f32 0.0, %v3442
    %v3444 = vpop.f32.mrf.mxu0
    %v3445 = vadd.f32 0.0, %v3444
    %3446 = vmatmul.bf16.gmra.mxu0 %v3384
    %v3447 = vpop.f32.mrf.mxu0
    %v3448 = vadd.f32 0.0, %v3447
    %v3449 = vpop.f32.mrf.mxu0
    %v3450 = vadd.f32 0.0, %v3449
    %3451 = vmatmul.bf16.gmra.mxu0 %v3387
    %v3452 = vpop.f32.mrf.mxu0
    %v3453 = vadd.f32 0.0, %v3452
    %v3454 = vpop.f32.mrf.mxu0
    %v3455 = vadd.f32 0.0, %v3454
    %3456 = vmatmul.bf16.gmra.mxu0 %v3390
    %v3457 = vpop.f32.mrf.mxu0
    %v3458 = vadd.f32 0.0, %v3457
    %v3459 = vpop.f32.mrf.mxu0
    %v3460 = vadd.f32 0.0, %v3459
    %3461 = vmatmul.bf16.gmra.mxu0 %v3393
    %v3462 = vpop.f32.mrf.mxu0
    %v3463 = vadd.f32 0.0, %v3462
    %v3464 = vpop.f32.mrf.mxu0
    %v3465 = vadd.f32 0.0, %v3464
    %3466 = vdwg.mxu0
    %v3467 = vadd.f32 %v3333, %v3408
    %v3468 = vadd.f32 %v3334, %v3410
    %v3469 = vadd.f32 %v3335, %v3413
    %v3470 = vadd.f32 %v3336, %v3415
    %v3471 = vadd.f32 %v3337, %v3418
    %v3472 = vadd.f32 %v3338, %v3420
    %v3473 = vadd.f32 %v3339, %v3423
    %v3474 = vadd.f32 %v3340, %v3425
    %v3475 = vadd.f32 %v3341, %v3428
    %v3476 = vadd.f32 %v3342, %v3430
    %v3477 = vadd.f32 %v3343, %v3433
    %v3478 = vadd.f32 %v3344, %v3435
    %v3479 = vadd.f32 %v3345, %v3438
    %v3480 = vadd.f32 %v3346, %v3440
    %v3481 = vadd.f32 %v3347, %v3443
    %v3482 = vadd.f32 %v3348, %v3445
    %v3483 = vadd.f32 %v3349, %v3448
    %v3484 = vadd.f32 %v3350, %v3450
    %v3485 = vadd.f32 %v3351, %v3453
    %v3486 = vadd.f32 %v3352, %v3455
    %v3487 = vadd.f32 %v3353, %v3458
    %v3488 = vadd.f32 %v3354, %v3460
    %v3489 = vadd.f32 %v3355, %v3463
    %v3490 = vadd.f32 %v3356, %v3465
    %3491 = vst [vmem:[#allocation2] sm:$0xff] %v3467
    %3492 = vst [vmem:[#allocation2 + $0x8] sm:$0xff] %v3468
    %3493 = vst [vmem:[#allocation2 + $0x10] sm:$0xff] %v3469
    %3494 = vst [vmem:[#allocation2 + $0x18] sm:$0xff] %v3470
    %3495 = vst [vmem:[#allocation2 + $0x20] sm:$0xff] %v3471
    %3496 = vst [vmem:[#allocation2 + $0x28] sm:$0xff] %v3472
    %3497 = vst [vmem:[#allocation2 + $0x30] sm:$0xff] %v3473
    %3498 = vst [vmem:[#allocation2 + $0x38] sm:$0xff] %v3474
    %3499 = vst [vmem:[#allocation2 + $0x40] sm:$0xff] %v3475
    %3500 = vst [vmem:[#allocation2 + $0x48] sm:$0xff] %v3476
    %3501 = vst [vmem:[#allocation2 + $0x50] sm:$0xff] %v3477
    %3502 = vst [vmem:[#allocation2 + $0x58] sm:$0xff] %v3478
    %3503 = vst [vmem:[#allocation2 + $0x60] sm:$0xff] %v3479
    %3504 = vst [vmem:[#allocation2 + $0x68] sm:$0xff] %v3480
    %3505 = vst [vmem:[#allocation2 + $0x70] sm:$0xff] %v3481
    %3506 = vst [vmem:[#allocation2 + $0x78] sm:$0xff] %v3482
    %3507 = vst [vmem:[#allocation2 + $0x80] sm:$0xff] %v3483
    %3508 = vst [vmem:[#allocation2 + $0x88] sm:$0xff] %v3484
    %3509 = vst [vmem:[#allocation2 + $0x90] sm:$0xff] %v3485
    %3510 = vst [vmem:[#allocation2 + $0x98] sm:$0xff] %v3486
    %3511 = vst [vmem:[#allocation2 + $0xa0] sm:$0xff] %v3487
    %3512 = vst [vmem:[#allocation2 + $0xa8] sm:$0xff] %v3488
    %3513 = vst [vmem:[#allocation2 + $0xb0] sm:$0xff] %v3489
    %3514 = vst [vmem:[#allocation2 + $0xb8] sm:$0xff] %v3490
    %v3515 = vld [vmem:[%s1] sm:$0xff]
    %v3516 = vld [vmem:[%s1 + $0x8] sm:$0xff]
    %v3517 = vld [vmem:[%s1 + $0x10] sm:$0xff]
    %v3518 = vld [vmem:[%s1 + $0x18] sm:$0xff]
    %v3519 = vld [vmem:[%s1 + $0x20] sm:$0xff]
    %v3520 = vld [vmem:[%s1 + $0x28] sm:$0xff]
    %v3521 = vld [vmem:[%s1 + $0x30] sm:$0xff]
    %v3522 = vld [vmem:[%s1 + $0x38] sm:$0xff]
    %v3523 = vld [vmem:[%s1 + $0x40] sm:$0xff]
    %v3524 = vld [vmem:[%s1 + $0x48] sm:$0xff]
    %v3525 = vld [vmem:[%s1 + $0x50] sm:$0xff]
    %v3526 = vld [vmem:[%s1 + $0x58] sm:$0xff]
    %v3527 = vld [vmem:[%s1 + $0x60] sm:$0xff]
    %v3528 = vld [vmem:[%s1 + $0x68] sm:$0xff]
    %v3529 = vld [vmem:[%s1 + $0x70] sm:$0xff]
    %v3530 = vld [vmem:[%s1 + $0x78] sm:$0xff]
    %v3531 = vld [vmem:[%s1 + $0x80] sm:$0xff]
    %v3532 = vld [vmem:[%s1 + $0x88] sm:$0xff]
    %v3533 = vld [vmem:[%s1 + $0x90] sm:$0xff]
    %v3534 = vld [vmem:[%s1 + $0x98] sm:$0xff]
    %v3535 = vld [vmem:[%s1 + $0xa0] sm:$0xff]
    %v3536 = vld [vmem:[%s1 + $0xa8] sm:$0xff]
    %v3537 = vld [vmem:[%s1 + $0xb0] sm:$0xff]
    %v3538 = vld [vmem:[%s1 + $0xb8] sm:$0xff]
    %v3539 = vld [vmem:[%s0] sm:$0xff]
    %v3540 = vld [vmem:[%s0 + $0x8] sm:$0xff]
    %v3541 = vld [vmem:[%s0 + $0x10] sm:$0xff]
    %v3542 = vld [vmem:[%s0 + $0x18] sm:$0xff]
    %v3543 = vld [vmem:[%s0 + $0x20] sm:$0xff]
    %v3544 = vld [vmem:[%s0 + $0x28] sm:$0xff]
    %v3545 = vld [vmem:[%s0 + $0x30] sm:$0xff]
    %v3546 = vld [vmem:[%s0 + $0x38] sm:$0xff]
    %v3547 = vld [vmem:[%s0 + $0x40] sm:$0xff]
    %v3548 = vld [vmem:[%s0 + $0x48] sm:$0xff]
    %v3549 = vld [vmem:[%s0 + $0x50] sm:$0xff]
    %v3550 = vld [vmem:[%s0 + $0x58] sm:$0xff]
    %v3551 = vld [vmem:[%s0 + $0x60] sm:$0xff]
    %v3552 = vld [vmem:[%s0 + $0x68] sm:$0xff]
    %v3553 = vld [vmem:[%s0 + $0x70] sm:$0xff]
    %v3554 = vld [vmem:[%s0 + $0x78] sm:$0xff]
    %v3555 = vld [vmem:[%s0 + $0x80] sm:$0xff]
    %v3556 = vld [vmem:[%s0 + $0x88] sm:$0xff]
    %v3557 = vld [vmem:[%s0 + $0x90] sm:$0xff]
    %v3558 = vld [vmem:[%s0 + $0x98] sm:$0xff]
    %v3559 = vld [vmem:[%s0 + $0xa0] sm:$0xff]
    %v3560 = vld [vmem:[%s0 + $0xa8] sm:$0xff]
    %v3561 = vld [vmem:[%s0 + $0xb0] sm:$0xff]
    %v3562 = vld [vmem:[%s0 + $0xb8] sm:$0xff]
    %3564 = vset.pattern.permute.xlu0 9
    %3565 = vperm.xlu0 %3564, %v3539
    %v3566 = vpop.permute.xlu0 %3565
    %3569 = vset.pattern.permute.xlu0 9
    %3570 = vperm.xlu0 %3569, %v3540
    %v3571 = vpop.permute.xlu0 %3570
    %3574 = vset.pattern.permute.xlu0 9
    %3575 = vperm.xlu0 %3574, %v3541
    %v3576 = vpop.permute.xlu0 %3575
    %3579 = vset.pattern.permute.xlu0 9
    %3580 = vperm.xlu0 %3579, %v3542
    %v3581 = vpop.permute.xlu0 %3580
    %3584 = vset.pattern.permute.xlu0 9
    %3585 = vperm.xlu0 %3584, %v3543
    %v3586 = vpop.permute.xlu0 %3585
    %3589 = vset.pattern.permute.xlu0 9
    %3590 = vperm.xlu0 %3589, %v3544
    %v3591 = vpop.permute.xlu0 %3590
    %3594 = vset.pattern.permute.xlu0 9
    %3595 = vperm.xlu0 %3594, %v3545
    %v3596 = vpop.permute.xlu0 %3595
    %3599 = vset.pattern.permute.xlu0 9
    %3600 = vperm.xlu0 %3599, %v3546
    %v3601 = vpop.permute.xlu0 %3600
    %3604 = vset.pattern.permute.xlu0 9
    %3605 = vperm.xlu0 %3604, %v3547
    %v3606 = vpop.permute.xlu0 %3605
    %3609 = vset.pattern.permute.xlu0 9
    %3610 = vperm.xlu0 %3609, %v3548
    %v3611 = vpop.permute.xlu0 %3610
    %3614 = vset.pattern.permute.xlu0 9
    %3615 = vperm.xlu0 %3614, %v3549
    %v3616 = vpop.permute.xlu0 %3615
    %3619 = vset.pattern.permute.xlu0 9
    %3620 = vperm.xlu0 %3619, %v3550
    %v3621 = vpop.permute.xlu0 %3620
    %3624 = vset.pattern.permute.xlu0 9
    %3625 = vperm.xlu0 %3624, %v3551
    %v3626 = vpop.permute.xlu0 %3625
    %3629 = vset.pattern.permute.xlu0 9
    %3630 = vperm.xlu0 %3629, %v3552
    %v3631 = vpop.permute.xlu0 %3630
    %3634 = vset.pattern.permute.xlu0 9
    %3635 = vperm.xlu0 %3634, %v3553
    %v3636 = vpop.permute.xlu0 %3635
    %3639 = vset.pattern.permute.xlu0 9
    %3640 = vperm.xlu0 %3639, %v3554
    %v3641 = vpop.permute.xlu0 %3640
    %3644 = vset.pattern.permute.xlu0 9
    %3645 = vperm.xlu0 %3644, %v3555
    %v3646 = vpop.permute.xlu0 %3645
    %3649 = vset.pattern.permute.xlu0 9
    %3650 = vperm.xlu0 %3649, %v3556
    %v3651 = vpop.permute.xlu0 %3650
    %3654 = vset.pattern.permute.xlu0 9
    %3655 = vperm.xlu0 %3654, %v3557
    %v3656 = vpop.permute.xlu0 %3655
    %3659 = vset.pattern.permute.xlu0 9
    %3660 = vperm.xlu0 %3659, %v3558
    %v3661 = vpop.permute.xlu0 %3660
    %3664 = vset.pattern.permute.xlu0 9
    %3665 = vperm.xlu0 %3664, %v3559
    %v3666 = vpop.permute.xlu0 %3665
    %3669 = vset.pattern.permute.xlu0 9
    %3670 = vperm.xlu0 %3669, %v3560
    %v3671 = vpop.permute.xlu0 %3670
    %3674 = vset.pattern.permute.xlu0 9
    %3675 = vperm.xlu0 %3674, %v3561
    %v3676 = vpop.permute.xlu0 %3675
    %3679 = vset.pattern.permute.xlu0 9
    %3680 = vperm.xlu0 %3679, %v3562
    %v3681 = vpop.permute.xlu0 %3680
    %v3683 = vmul.f32 %v3515, %v3566
    %v3684 = vmul.f32 %v3516, %v3571
    %v3685 = vmul.f32 %v3517, %v3576
    %v3686 = vmul.f32 %v3518, %v3581
    %v3687 = vmul.f32 %v3519, %v3586
    %v3688 = vmul.f32 %v3520, %v3591
    %v3689 = vmul.f32 %v3521, %v3596
    %v3690 = vmul.f32 %v3522, %v3601
    %v3691 = vmul.f32 %v3523, %v3606
    %v3692 = vmul.f32 %v3524, %v3611
    %v3693 = vmul.f32 %v3525, %v3616
    %v3694 = vmul.f32 %v3526, %v3621
    %v3695 = vmul.f32 %v3527, %v3626
    %v3696 = vmul.f32 %v3528, %v3631
    %v3697 = vmul.f32 %v3529, %v3636
    %v3698 = vmul.f32 %v3530, %v3641
    %v3699 = vmul.f32 %v3531, %v3646
    %v3700 = vmul.f32 %v3532, %v3651
    %v3701 = vmul.f32 %v3533, %v3656
    %v3702 = vmul.f32 %v3534, %v3661
    %v3703 = vmul.f32 %v3535, %v3666
    %v3704 = vmul.f32 %v3536, %v3671
    %v3705 = vmul.f32 %v3537, %v3676
    %v3706 = vmul.f32 %v3538, %v3681
    %v3707 = vpack.c.bf16 %v3684, %v3683
    %v3708 = vpack.c.bf16 %v3686, %v3685
    %v3709 = vpack.c.bf16 %v3688, %v3687
    %v3710 = vpack.c.bf16 %v3690, %v3689
    %v3711 = vpack.c.bf16 %v3692, %v3691
    %v3712 = vpack.c.bf16 %v3694, %v3693
    %v3713 = vpack.c.bf16 %v3696, %v3695
    %v3714 = vpack.c.bf16 %v3698, %v3697
    %v3715 = vpack.c.bf16 %v3700, %v3699
    %v3716 = vpack.c.bf16 %v3702, %v3701
    %v3717 = vpack.c.bf16 %v3704, %v3703
    %v3718 = vpack.c.bf16 %v3706, %v3705
    %v3719 = vld [vmem:[#allocation2] sm:$0xff]
    %v3720 = vld [vmem:[#allocation2 + $0x8] sm:$0xff]
    %v3721 = vld [vmem:[#allocation2 + $0x10] sm:$0xff]
    %v3722 = vld [vmem:[#allocation2 + $0x18] sm:$0xff]
    %v3723 = vld [vmem:[#allocation2 + $0x20] sm:$0xff]
    %v3724 = vld [vmem:[#allocation2 + $0x28] sm:$0xff]
    %v3725 = vld [vmem:[#allocation2 + $0x30] sm:$0xff]
    %v3726 = vld [vmem:[#allocation2 + $0x38] sm:$0xff]
    %v3727 = vld [vmem:[#allocation2 + $0x40] sm:$0xff]
    %v3728 = vld [vmem:[#allocation2 + $0x48] sm:$0xff]
    %v3729 = vld [vmem:[#allocation2 + $0x50] sm:$0xff]
    %v3730 = vld [vmem:[#allocation2 + $0x58] sm:$0xff]
    %v3731 = vld [vmem:[#allocation2 + $0x60] sm:$0xff]
    %v3732 = vld [vmem:[#allocation2 + $0x68] sm:$0xff]
    %v3733 = vld [vmem:[#allocation2 + $0x70] sm:$0xff]
    %v3734 = vld [vmem:[#allocation2 + $0x78] sm:$0xff]
    %v3735 = vld [vmem:[#allocation2 + $0x80] sm:$0xff]
    %v3736 = vld [vmem:[#allocation2 + $0x88] sm:$0xff]
    %v3737 = vld [vmem:[#allocation2 + $0x90] sm:$0xff]
    %v3738 = vld [vmem:[#allocation2 + $0x98] sm:$0xff]
    %v3739 = vld [vmem:[#allocation2 + $0xa0] sm:$0xff]
    %v3740 = vld [vmem:[#allocation2 + $0xa8] sm:$0xff]
    %v3741 = vld [vmem:[#allocation2 + $0xb0] sm:$0xff]
    %v3742 = vld [vmem:[#allocation2 + $0xb8] sm:$0xff]
    %s3743 = scalar_lea.vmem %s2, 36
    %v3744 = vld [vmem:[%s3743] sm:$0xf]
    %v3746 = vsel %vm269, %v3707, 0
    %v3749 = vsel %vm269, %v3708, 0
    %v3752 = vsel %vm269, %v3709, 0
    %v3755 = vsel %vm269, %v3710, 0
    %v3758 = vsel %vm269, %v3711, 0
    %v3761 = vsel %vm269, %v3712, 0
    %v3764 = vsel %vm269, %v3713, 0
    %v3767 = vsel %vm269, %v3714, 0
    %v3770 = vsel %vm269, %v3715, 0
    %v3773 = vsel %vm269, %v3716, 0
    %v3776 = vsel %vm269, %v3717, 0
    %v3779 = vsel %vm269, %v3718, 0
    %v3782 = vsel %vm306, %v3744, 0
    %3784 = vmatpush.bf16.msra.mxu0 0
    %3785 = vmatpush.bf16.msra.mxu0 0
    %3786 = vmatpush.bf16.msra.mxu0 0
    %3787 = vmatpush.bf16.msra.mxu0 0
    %3788 = vmatpush.bf16.msra.mxu0 0
    %3789 = vmatpush.bf16.msra.mxu0 0
    %3790 = vmatpush.bf16.msra.mxu0 0
    %3791 = vmatpush.bf16.msra.mxu0 %v3782
    %3792 = vmatmul.bf16.gmra.mxu0 %v3746
    %v3793 = vpop.f32.mrf.mxu0
    %v3794 = vadd.f32 0.0, %v3793
    %v3795 = vpop.f32.mrf.mxu0
    %v3796 = vadd.f32 0.0, %v3795
    %3797 = vmatmul.bf16.gmra.mxu0 %v3749
    %v3798 = vpop.f32.mrf.mxu0
    %v3799 = vadd.f32 0.0, %v3798
    %v3800 = vpop.f32.mrf.mxu0
    %v3801 = vadd.f32 0.0, %v3800
    %3802 = vmatmul.bf16.gmra.mxu0 %v3752
    %v3803 = vpop.f32.mrf.mxu0
    %v3804 = vadd.f32 0.0, %v3803
    %v3805 = vpop.f32.mrf.mxu0
    %v3806 = vadd.f32 0.0, %v3805
    %3807 = vmatmul.bf16.gmra.mxu0 %v3755
    %v3808 = vpop.f32.mrf.mxu0
    %v3809 = vadd.f32 0.0, %v3808
    %v3810 = vpop.f32.mrf.mxu0
    %v3811 = vadd.f32 0.0, %v3810
    %3812 = vmatmul.bf16.gmra.mxu0 %v3758
    %v3813 = vpop.f32.mrf.mxu0
    %v3814 = vadd.f32 0.0, %v3813
    %v3815 = vpop.f32.mrf.mxu0
    %v3816 = vadd.f32 0.0, %v3815
    %3817 = vmatmul.bf16.gmra.mxu0 %v3761
    %v3818 = vpop.f32.mrf.mxu0
    %v3819 = vadd.f32 0.0, %v3818
    %v3820 = vpop.f32.mrf.mxu0
    %v3821 = vadd.f32 0.0, %v3820
    %3822 = vmatmul.bf16.gmra.mxu0 %v3764
    %v3823 = vpop.f32.mrf.mxu0
    %v3824 = vadd.f32 0.0, %v3823
    %v3825 = vpop.f32.mrf.mxu0
    %v3826 = vadd.f32 0.0, %v3825
    %3827 = vmatmul.bf16.gmra.mxu0 %v3767
    %v3828 = vpop.f32.mrf.mxu0
    %v3829 = vadd.f32 0.0, %v3828
    %v3830 = vpop.f32.mrf.mxu0
    %v3831 = vadd.f32 0.0, %v3830
    %3832 = vmatmul.bf16.gmra.mxu0 %v3770
    %v3833 = vpop.f32.mrf.mxu0
    %v3834 = vadd.f32 0.0, %v3833
    %v3835 = vpop.f32.mrf.mxu0
    %v3836 = vadd.f32 0.0, %v3835
    %3837 = vmatmul.bf16.gmra.mxu0 %v3773
    %v3838 = vpop.f32.mrf.mxu0
    %v3839 = vadd.f32 0.0, %v3838
    %v3840 = vpop.f32.mrf.mxu0
    %v3841 = vadd.f32 0.0, %v3840
    %3842 = vmatmul.bf16.gmra.mxu0 %v3776
    %v3843 = vpop.f32.mrf.mxu0
    %v3844 = vadd.f32 0.0, %v3843
    %v3845 = vpop.f32.mrf.mxu0
    %v3846 = vadd.f32 0.0, %v3845
    %3847 = vmatmul.bf16.gmra.mxu0 %v3779
    %v3848 = vpop.f32.mrf.mxu0
    %v3849 = vadd.f32 0.0, %v3848
    %v3850 = vpop.f32.mrf.mxu0
    %v3851 = vadd.f32 0.0, %v3850
    %3852 = vdwg.mxu0
    %v3853 = vadd.f32 %v3719, %v3794
    %v3854 = vadd.f32 %v3720, %v3796
    %v3855 = vadd.f32 %v3721, %v3799
    %v3856 = vadd.f32 %v3722, %v3801
    %v3857 = vadd.f32 %v3723, %v3804
    %v3858 = vadd.f32 %v3724, %v3806
    %v3859 = vadd.f32 %v3725, %v3809
    %v3860 = vadd.f32 %v3726, %v3811
    %v3861 = vadd.f32 %v3727, %v3814
    %v3862 = vadd.f32 %v3728, %v3816
    %v3863 = vadd.f32 %v3729, %v3819
    %v3864 = vadd.f32 %v3730, %v3821
    %v3865 = vadd.f32 %v3731, %v3824
    %v3866 = vadd.f32 %v3732, %v3826
    %v3867 = vadd.f32 %v3733, %v3829
    %v3868 = vadd.f32 %v3734, %v3831
    %v3869 = vadd.f32 %v3735, %v3834
    %v3870 = vadd.f32 %v3736, %v3836
    %v3871 = vadd.f32 %v3737, %v3839
    %v3872 = vadd.f32 %v3738, %v3841
    %v3873 = vadd.f32 %v3739, %v3844
    %v3874 = vadd.f32 %v3740, %v3846
    %v3875 = vadd.f32 %v3741, %v3849
    %v3876 = vadd.f32 %v3742, %v3851
    %3877 = vst [vmem:[#allocation2] sm:$0xff] %v3853
    %3878 = vst [vmem:[#allocation2 + $0x8] sm:$0xff] %v3854
    %3879 = vst [vmem:[#allocation2 + $0x10] sm:$0xff] %v3855
    %3880 = vst [vmem:[#allocation2 + $0x18] sm:$0xff] %v3856
    %3881 = vst [vmem:[#allocation2 + $0x20] sm:$0xff] %v3857
    %3882 = vst [vmem:[#allocation2 + $0x28] sm:$0xff] %v3858
    %3883 = vst [vmem:[#allocation2 + $0x30] sm:$0xff] %v3859
    %3884 = vst [vmem:[#allocation2 + $0x38] sm:$0xff] %v3860
    %3885 = vst [vmem:[#allocation2 + $0x40] sm:$0xff] %v3861
    %3886 = vst [vmem:[#allocation2 + $0x48] sm:$0xff] %v3862
    %3887 = vst [vmem:[#allocation2 + $0x50] sm:$0xff] %v3863
    %3888 = vst [vmem:[#allocation2 + $0x58] sm:$0xff] %v3864
    %3889 = vst [vmem:[#allocation2 + $0x60] sm:$0xff] %v3865
    %3890 = vst [vmem:[#allocation2 + $0x68] sm:$0xff] %v3866
    %3891 = vst [vmem:[#allocation2 + $0x70] sm:$0xff] %v3867
    %3892 = vst [vmem:[#allocation2 + $0x78] sm:$0xff] %v3868
    %3893 = vst [vmem:[#allocation2 + $0x80] sm:$0xff] %v3869
    %3894 = vst [vmem:[#allocation2 + $0x88] sm:$0xff] %v3870
    %3895 = vst [vmem:[#allocation2 + $0x90] sm:$0xff] %v3871
    %3896 = vst [vmem:[#allocation2 + $0x98] sm:$0xff] %v3872
    %3897 = vst [vmem:[#allocation2 + $0xa0] sm:$0xff] %v3873
    %3898 = vst [vmem:[#allocation2 + $0xa8] sm:$0xff] %v3874
    %3899 = vst [vmem:[#allocation2 + $0xb0] sm:$0xff] %v3875
    %3900 = vst [vmem:[#allocation2 + $0xb8] sm:$0xff] %v3876
    %v3901 = vld [vmem:[%s1] sm:$0xff]
    %v3902 = vld [vmem:[%s1 + $0x8] sm:$0xff]
    %v3903 = vld [vmem:[%s1 + $0x10] sm:$0xff]
    %v3904 = vld [vmem:[%s1 + $0x18] sm:$0xff]
    %v3905 = vld [vmem:[%s1 + $0x20] sm:$0xff]
    %v3906 = vld [vmem:[%s1 + $0x28] sm:$0xff]
    %v3907 = vld [vmem:[%s1 + $0x30] sm:$0xff]
    %v3908 = vld [vmem:[%s1 + $0x38] sm:$0xff]
    %v3909 = vld [vmem:[%s1 + $0x40] sm:$0xff]
    %v3910 = vld [vmem:[%s1 + $0x48] sm:$0xff]
    %v3911 = vld [vmem:[%s1 + $0x50] sm:$0xff]
    %v3912 = vld [vmem:[%s1 + $0x58] sm:$0xff]
    %v3913 = vld [vmem:[%s1 + $0x60] sm:$0xff]
    %v3914 = vld [vmem:[%s1 + $0x68] sm:$0xff]
    %v3915 = vld [vmem:[%s1 + $0x70] sm:$0xff]
    %v3916 = vld [vmem:[%s1 + $0x78] sm:$0xff]
    %v3917 = vld [vmem:[%s1 + $0x80] sm:$0xff]
    %v3918 = vld [vmem:[%s1 + $0x88] sm:$0xff]
    %v3919 = vld [vmem:[%s1 + $0x90] sm:$0xff]
    %v3920 = vld [vmem:[%s1 + $0x98] sm:$0xff]
    %v3921 = vld [vmem:[%s1 + $0xa0] sm:$0xff]
    %v3922 = vld [vmem:[%s1 + $0xa8] sm:$0xff]
    %v3923 = vld [vmem:[%s1 + $0xb0] sm:$0xff]
    %v3924 = vld [vmem:[%s1 + $0xb8] sm:$0xff]
    %v3925 = vld [vmem:[%s0] sm:$0xff]
    %v3926 = vld [vmem:[%s0 + $0x8] sm:$0xff]
    %v3927 = vld [vmem:[%s0 + $0x10] sm:$0xff]
    %v3928 = vld [vmem:[%s0 + $0x18] sm:$0xff]
    %v3929 = vld [vmem:[%s0 + $0x20] sm:$0xff]
    %v3930 = vld [vmem:[%s0 + $0x28] sm:$0xff]
    %v3931 = vld [vmem:[%s0 + $0x30] sm:$0xff]
    %v3932 = vld [vmem:[%s0 + $0x38] sm:$0xff]
    %v3933 = vld [vmem:[%s0 + $0x40] sm:$0xff]
    %v3934 = vld [vmem:[%s0 + $0x48] sm:$0xff]
    %v3935 = vld [vmem:[%s0 + $0x50] sm:$0xff]
    %v3936 = vld [vmem:[%s0 + $0x58] sm:$0xff]
    %v3937 = vld [vmem:[%s0 + $0x60] sm:$0xff]
    %v3938 = vld [vmem:[%s0 + $0x68] sm:$0xff]
    %v3939 = vld [vmem:[%s0 + $0x70] sm:$0xff]
    %v3940 = vld [vmem:[%s0 + $0x78] sm:$0xff]
    %v3941 = vld [vmem:[%s0 + $0x80] sm:$0xff]
    %v3942 = vld [vmem:[%s0 + $0x88] sm:$0xff]
    %v3943 = vld [vmem:[%s0 + $0x90] sm:$0xff]
    %v3944 = vld [vmem:[%s0 + $0x98] sm:$0xff]
    %v3945 = vld [vmem:[%s0 + $0xa0] sm:$0xff]
    %v3946 = vld [vmem:[%s0 + $0xa8] sm:$0xff]
    %v3947 = vld [vmem:[%s0 + $0xb0] sm:$0xff]
    %v3948 = vld [vmem:[%s0 + $0xb8] sm:$0xff]
    %3950 = vset.pattern.permute.xlu0 10
    %3951 = vperm.xlu0 %3950, %v3925
    %v3952 = vpop.permute.xlu0 %3951
    %3955 = vset.pattern.permute.xlu0 10
    %3956 = vperm.xlu0 %3955, %v3926
    %v3957 = vpop.permute.xlu0 %3956
    %3960 = vset.pattern.permute.xlu0 10
    %3961 = vperm.xlu0 %3960, %v3927
    %v3962 = vpop.permute.xlu0 %3961
    %3965 = vset.pattern.permute.xlu0 10
    %3966 = vperm.xlu0 %3965, %v3928
    %v3967 = vpop.permute.xlu0 %3966
    %3970 = vset.pattern.permute.xlu0 10
    %3971 = vperm.xlu0 %3970, %v3929
    %v3972 = vpop.permute.xlu0 %3971
    %3975 = vset.pattern.permute.xlu0 10
    %3976 = vperm.xlu0 %3975, %v3930
    %v3977 = vpop.permute.xlu0 %3976
    %3980 = vset.pattern.permute.xlu0 10
    %3981 = vperm.xlu0 %3980, %v3931
    %v3982 = vpop.permute.xlu0 %3981
    %3985 = vset.pattern.permute.xlu0 10
    %3986 = vperm.xlu0 %3985, %v3932
    %v3987 = vpop.permute.xlu0 %3986
    %3990 = vset.pattern.permute.xlu0 10
    %3991 = vperm.xlu0 %3990, %v3933
    %v3992 = vpop.permute.xlu0 %3991
    %3995 = vset.pattern.permute.xlu0 10
    %3996 = vperm.xlu0 %3995, %v3934
    %v3997 = vpop.permute.xlu0 %3996
    %4000 = vset.pattern.permute.xlu0 10
    %4001 = vperm.xlu0 %4000, %v3935
    %v4002 = vpop.permute.xlu0 %4001
    %4005 = vset.pattern.permute.xlu0 10
    %4006 = vperm.xlu0 %4005, %v3936
    %v4007 = vpop.permute.xlu0 %4006
    %4010 = vset.pattern.permute.xlu0 10
    %4011 = vperm.xlu0 %4010, %v3937
    %v4012 = vpop.permute.xlu0 %4011
    %4015 = vset.pattern.permute.xlu0 10
    %4016 = vperm.xlu0 %4015, %v3938
    %v4017 = vpop.permute.xlu0 %4016
    %4020 = vset.pattern.permute.xlu0 10
    %4021 = vperm.xlu0 %4020, %v3939
    %v4022 = vpop.permute.xlu0 %4021
    %4025 = vset.pattern.permute.xlu0 10
    %4026 = vperm.xlu0 %4025, %v3940
    %v4027 = vpop.permute.xlu0 %4026
    %4030 = vset.pattern.permute.xlu0 10
    %4031 = vperm.xlu0 %4030, %v3941
    %v4032 = vpop.permute.xlu0 %4031
    %4035 = vset.pattern.permute.xlu0 10
    %4036 = vperm.xlu0 %4035, %v3942
    %v4037 = vpop.permute.xlu0 %4036
    %4040 = vset.pattern.permute.xlu0 10
    %4041 = vperm.xlu0 %4040, %v3943
    %v4042 = vpop.permute.xlu0 %4041
    %4045 = vset.pattern.permute.xlu0 10
    %4046 = vperm.xlu0 %4045, %v3944
    %v4047 = vpop.permute.xlu0 %4046
    %4050 = vset.pattern.permute.xlu0 10
    %4051 = vperm.xlu0 %4050, %v3945
    %v4052 = vpop.permute.xlu0 %4051
    %4055 = vset.pattern.permute.xlu0 10
    %4056 = vperm.xlu0 %4055, %v3946
    %v4057 = vpop.permute.xlu0 %4056
    %4060 = vset.pattern.permute.xlu0 10
    %4061 = vperm.xlu0 %4060, %v3947
    %v4062 = vpop.permute.xlu0 %4061
    %4065 = vset.pattern.permute.xlu0 10
    %4066 = vperm.xlu0 %4065, %v3948
    %v4067 = vpop.permute.xlu0 %4066
    %v4069 = vmul.f32 %v3901, %v3952
    %v4070 = vmul.f32 %v3902, %v3957
    %v4071 = vmul.f32 %v3903, %v3962
    %v4072 = vmul.f32 %v3904, %v3967
    %v4073 = vmul.f32 %v3905, %v3972
    %v4074 = vmul.f32 %v3906, %v3977
    %v4075 = vmul.f32 %v3907, %v3982
    %v4076 = vmul.f32 %v3908, %v3987
    %v4077 = vmul.f32 %v3909, %v3992
    %v4078 = vmul.f32 %v3910, %v3997
    %v4079 = vmul.f32 %v3911, %v4002
    %v4080 = vmul.f32 %v3912, %v4007
    %v4081 = vmul.f32 %v3913, %v4012
    %v4082 = vmul.f32 %v3914, %v4017
    %v4083 = vmul.f32 %v3915, %v4022
    %v4084 = vmul.f32 %v3916, %v4027
    %v4085 = vmul.f32 %v3917, %v4032
    %v4086 = vmul.f32 %v3918, %v4037
    %v4087 = vmul.f32 %v3919, %v4042
    %v4088 = vmul.f32 %v3920, %v4047
    %v4089 = vmul.f32 %v3921, %v4052
    %v4090 = vmul.f32 %v3922, %v4057
    %v4091 = vmul.f32 %v3923, %v4062
    %v4092 = vmul.f32 %v3924, %v4067
    %v4093 = vpack.c.bf16 %v4070, %v4069
    %v4094 = vpack.c.bf16 %v4072, %v4071
    %v4095 = vpack.c.bf16 %v4074, %v4073
    %v4096 = vpack.c.bf16 %v4076, %v4075
    %v4097 = vpack.c.bf16 %v4078, %v4077
    %v4098 = vpack.c.bf16 %v4080, %v4079
    %v4099 = vpack.c.bf16 %v4082, %v4081
    %v4100 = vpack.c.bf16 %v4084, %v4083
    %v4101 = vpack.c.bf16 %v4086, %v4085
    %v4102 = vpack.c.bf16 %v4088, %v4087
    %v4103 = vpack.c.bf16 %v4090, %v4089
    %v4104 = vpack.c.bf16 %v4092, %v4091
    %v4105 = vld [vmem:[#allocation2] sm:$0xff]
    %v4106 = vld [vmem:[#allocation2 + $0x8] sm:$0xff]
    %v4107 = vld [vmem:[#allocation2 + $0x10] sm:$0xff]
    %v4108 = vld [vmem:[#allocation2 + $0x18] sm:$0xff]
    %v4109 = vld [vmem:[#allocation2 + $0x20] sm:$0xff]
    %v4110 = vld [vmem:[#allocation2 + $0x28] sm:$0xff]
    %v4111 = vld [vmem:[#allocation2 + $0x30] sm:$0xff]
    %v4112 = vld [vmem:[#allocation2 + $0x38] sm:$0xff]
    %v4113 = vld [vmem:[#allocation2 + $0x40] sm:$0xff]
    %v4114 = vld [vmem:[#allocation2 + $0x48] sm:$0xff]
    %v4115 = vld [vmem:[#allocation2 + $0x50] sm:$0xff]
    %v4116 = vld [vmem:[#allocation2 + $0x58] sm:$0xff]
    %v4117 = vld [vmem:[#allocation2 + $0x60] sm:$0xff]
    %v4118 = vld [vmem:[#allocation2 + $0x68] sm:$0xff]
    %v4119 = vld [vmem:[#allocation2 + $0x70] sm:$0xff]
    %v4120 = vld [vmem:[#allocation2 + $0x78] sm:$0xff]
    %v4121 = vld [vmem:[#allocation2 + $0x80] sm:$0xff]
    %v4122 = vld [vmem:[#allocation2 + $0x88] sm:$0xff]
    %v4123 = vld [vmem:[#allocation2 + $0x90] sm:$0xff]
    %v4124 = vld [vmem:[#allocation2 + $0x98] sm:$0xff]
    %v4125 = vld [vmem:[#allocation2 + $0xa0] sm:$0xff]
    %v4126 = vld [vmem:[#allocation2 + $0xa8] sm:$0xff]
    %v4127 = vld [vmem:[#allocation2 + $0xb0] sm:$0xff]
    %v4128 = vld [vmem:[#allocation2 + $0xb8] sm:$0xff]
    %s4129 = scalar_lea.vmem %s2, 40
    %v4130 = vld [vmem:[%s4129] sm:$0xf]
    %v4132 = vsel %vm269, %v4093, 0
    %v4135 = vsel %vm269, %v4094, 0
    %v4138 = vsel %vm269, %v4095, 0
    %v4141 = vsel %vm269, %v4096, 0
    %v4144 = vsel %vm269, %v4097, 0
    %v4147 = vsel %vm269, %v4098, 0
    %v4150 = vsel %vm269, %v4099, 0
    %v4153 = vsel %vm269, %v4100, 0
    %v4156 = vsel %vm269, %v4101, 0
    %v4159 = vsel %vm269, %v4102, 0
    %v4162 = vsel %vm269, %v4103, 0
    %v4165 = vsel %vm269, %v4104, 0
    %v4168 = vsel %vm306, %v4130, 0
    %4170 = vmatpush.bf16.msra.mxu0 0
    %4171 = vmatpush.bf16.msra.mxu0 0
    %4172 = vmatpush.bf16.msra.mxu0 0
    %4173 = vmatpush.bf16.msra.mxu0 0
    %4174 = vmatpush.bf16.msra.mxu0 0
    %4175 = vmatpush.bf16.msra.mxu0 0
    %4176 = vmatpush.bf16.msra.mxu0 0
    %4177 = vmatpush.bf16.msra.mxu0 %v4168
    %4178 = vmatmul.bf16.gmra.mxu0 %v4132
    %v4179 = vpop.f32.mrf.mxu0
    %v4180 = vadd.f32 0.0, %v4179
    %v4181 = vpop.f32.mrf.mxu0
    %v4182 = vadd.f32 0.0, %v4181
    %4183 = vmatmul.bf16.gmra.mxu0 %v4135
    %v4184 = vpop.f32.mrf.mxu0
    %v4185 = vadd.f32 0.0, %v4184
    %v4186 = vpop.f32.mrf.mxu0
    %v4187 = vadd.f32 0.0, %v4186
    %4188 = vmatmul.bf16.gmra.mxu0 %v4138
    %v4189 = vpop.f32.mrf.mxu0
    %v4190 = vadd.f32 0.0, %v4189
    %v4191 = vpop.f32.mrf.mxu0
    %v4192 = vadd.f32 0.0, %v4191
    %4193 = vmatmul.bf16.gmra.mxu0 %v4141
    %v4194 = vpop.f32.mrf.mxu0
    %v4195 = vadd.f32 0.0, %v4194
    %v4196 = vpop.f32.mrf.mxu0
    %v4197 = vadd.f32 0.0, %v4196
    %4198 = vmatmul.bf16.gmra.mxu0 %v4144
    %v4199 = vpop.f32.mrf.mxu0
    %v4200 = vadd.f32 0.0, %v4199
    %v4201 = vpop.f32.mrf.mxu0
    %v4202 = vadd.f32 0.0, %v4201
    %4203 = vmatmul.bf16.gmra.mxu0 %v4147
    %v4204 = vpop.f32.mrf.mxu0
    %v4205 = vadd.f32 0.0, %v4204
    %v4206 = vpop.f32.mrf.mxu0
    %v4207 = vadd.f32 0.0, %v4206
    %4208 = vmatmul.bf16.gmra.mxu0 %v4150
    %v4209 = vpop.f32.mrf.mxu0
    %v4210 = vadd.f32 0.0, %v4209
    %v4211 = vpop.f32.mrf.mxu0
    %v4212 = vadd.f32 0.0, %v4211
    %4213 = vmatmul.bf16.gmra.mxu0 %v4153
    %v4214 = vpop.f32.mrf.mxu0
    %v4215 = vadd.f32 0.0, %v4214
    %v4216 = vpop.f32.mrf.mxu0
    %v4217 = vadd.f32 0.0, %v4216
    %4218 = vmatmul.bf16.gmra.mxu0 %v4156
    %v4219 = vpop.f32.mrf.mxu0
    %v4220 = vadd.f32 0.0, %v4219
    %v4221 = vpop.f32.mrf.mxu0
    %v4222 = vadd.f32 0.0, %v4221
    %4223 = vmatmul.bf16.gmra.mxu0 %v4159
    %v4224 = vpop.f32.mrf.mxu0
    %v4225 = vadd.f32 0.0, %v4224
    %v4226 = vpop.f32.mrf.mxu0
    %v4227 = vadd.f32 0.0, %v4226
    %4228 = vmatmul.bf16.gmra.mxu0 %v4162
    %v4229 = vpop.f32.mrf.mxu0
    %v4230 = vadd.f32 0.0, %v4229
    %v4231 = vpop.f32.mrf.mxu0
    %v4232 = vadd.f32 0.0, %v4231
    %4233 = vmatmul.bf16.gmra.mxu0 %v4165
    %v4234 = vpop.f32.mrf.mxu0
    %v4235 = vadd.f32 0.0, %v4234
    %v4236 = vpop.f32.mrf.mxu0
    %v4237 = vadd.f32 0.0, %v4236
    %4238 = vdwg.mxu0
    %v4239 = vadd.f32 %v4105, %v4180
    %v4240 = vadd.f32 %v4106, %v4182
    %v4241 = vadd.f32 %v4107, %v4185
    %v4242 = vadd.f32 %v4108, %v4187
    %v4243 = vadd.f32 %v4109, %v4190
    %v4244 = vadd.f32 %v4110, %v4192
    %v4245 = vadd.f32 %v4111, %v4195
    %v4246 = vadd.f32 %v4112, %v4197
    %v4247 = vadd.f32 %v4113, %v4200
    %v4248 = vadd.f32 %v4114, %v4202
    %v4249 = vadd.f32 %v4115, %v4205
    %v4250 = vadd.f32 %v4116, %v4207
    %v4251 = vadd.f32 %v4117, %v4210
    %v4252 = vadd.f32 %v4118, %v4212
    %v4253 = vadd.f32 %v4119, %v4215
    %v4254 = vadd.f32 %v4120, %v4217
    %v4255 = vadd.f32 %v4121, %v4220
    %v4256 = vadd.f32 %v4122, %v4222
    %v4257 = vadd.f32 %v4123, %v4225
    %v4258 = vadd.f32 %v4124, %v4227
    %v4259 = vadd.f32 %v4125, %v4230
    %v4260 = vadd.f32 %v4126, %v4232
    %v4261 = vadd.f32 %v4127, %v4235
    %v4262 = vadd.f32 %v4128, %v4237
    %4263 = vst [vmem:[#allocation2] sm:$0xff] %v4239
    %4264 = vst [vmem:[#allocation2 + $0x8] sm:$0xff] %v4240
    %4265 = vst [vmem:[#allocation2 + $0x10] sm:$0xff] %v4241
    %4266 = vst [vmem:[#allocation2 + $0x18] sm:$0xff] %v4242
    %4267 = vst [vmem:[#allocation2 + $0x20] sm:$0xff] %v4243
    %4268 = vst [vmem:[#allocation2 + $0x28] sm:$0xff] %v4244
    %4269 = vst [vmem:[#allocation2 + $0x30] sm:$0xff] %v4245
    %4270 = vst [vmem:[#allocation2 + $0x38] sm:$0xff] %v4246
    %4271 = vst [vmem:[#allocation2 + $0x40] sm:$0xff] %v4247
    %4272 = vst [vmem:[#allocation2 + $0x48] sm:$0xff] %v4248
    %4273 = vst [vmem:[#allocation2 + $0x50] sm:$0xff] %v4249
    %4274 = vst [vmem:[#allocation2 + $0x58] sm:$0xff] %v4250
    %4275 = vst [vmem:[#allocation2 + $0x60] sm:$0xff] %v4251
    %4276 = vst [vmem:[#allocation2 + $0x68] sm:$0xff] %v4252
    %4277 = vst [vmem:[#allocation2 + $0x70] sm:$0xff] %v4253
    %4278 = vst [vmem:[#allocation2 + $0x78] sm:$0xff] %v4254
    %4279 = vst [vmem:[#allocation2 + $0x80] sm:$0xff] %v4255
    %4280 = vst [vmem:[#allocation2 + $0x88] sm:$0xff] %v4256
    %4281 = vst [vmem:[#allocation2 + $0x90] sm:$0xff] %v4257
    %4282 = vst [vmem:[#allocation2 + $0x98] sm:$0xff] %v4258
    %4283 = vst [vmem:[#allocation2 + $0xa0] sm:$0xff] %v4259
    %4284 = vst [vmem:[#allocation2 + $0xa8] sm:$0xff] %v4260
    %4285 = vst [vmem:[#allocation2 + $0xb0] sm:$0xff] %v4261
    %4286 = vst [vmem:[#allocation2 + $0xb8] sm:$0xff] %v4262
    %v4287 = vld [vmem:[%s1] sm:$0xff]
    %v4288 = vld [vmem:[%s1 + $0x8] sm:$0xff]
    %v4289 = vld [vmem:[%s1 + $0x10] sm:$0xff]
    %v4290 = vld [vmem:[%s1 + $0x18] sm:$0xff]
    %v4291 = vld [vmem:[%s1 + $0x20] sm:$0xff]
    %v4292 = vld [vmem:[%s1 + $0x28] sm:$0xff]
    %v4293 = vld [vmem:[%s1 + $0x30] sm:$0xff]
    %v4294 = vld [vmem:[%s1 + $0x38] sm:$0xff]
    %v4295 = vld [vmem:[%s1 + $0x40] sm:$0xff]
    %v4296 = vld [vmem:[%s1 + $0x48] sm:$0xff]
    %v4297 = vld [vmem:[%s1 + $0x50] sm:$0xff]
    %v4298 = vld [vmem:[%s1 + $0x58] sm:$0xff]
    %v4299 = vld [vmem:[%s1 + $0x60] sm:$0xff]
    %v4300 = vld [vmem:[%s1 + $0x68] sm:$0xff]
    %v4301 = vld [vmem:[%s1 + $0x70] sm:$0xff]
    %v4302 = vld [vmem:[%s1 + $0x78] sm:$0xff]
    %v4303 = vld [vmem:[%s1 + $0x80] sm:$0xff]
    %v4304 = vld [vmem:[%s1 + $0x88] sm:$0xff]
    %v4305 = vld [vmem:[%s1 + $0x90] sm:$0xff]
    %v4306 = vld [vmem:[%s1 + $0x98] sm:$0xff]
    %v4307 = vld [vmem:[%s1 + $0xa0] sm:$0xff]
    %v4308 = vld [vmem:[%s1 + $0xa8] sm:$0xff]
    %v4309 = vld [vmem:[%s1 + $0xb0] sm:$0xff]
    %v4310 = vld [vmem:[%s1 + $0xb8] sm:$0xff]
    %v4311 = vld [vmem:[%s0] sm:$0xff]
    %v4312 = vld [vmem:[%s0 + $0x8] sm:$0xff]
    %v4313 = vld [vmem:[%s0 + $0x10] sm:$0xff]
    %v4314 = vld [vmem:[%s0 + $0x18] sm:$0xff]
    %v4315 = vld [vmem:[%s0 + $0x20] sm:$0xff]
    %v4316 = vld [vmem:[%s0 + $0x28] sm:$0xff]
    %v4317 = vld [vmem:[%s0 + $0x30] sm:$0xff]
    %v4318 = vld [vmem:[%s0 + $0x38] sm:$0xff]
    %v4319 = vld [vmem:[%s0 + $0x40] sm:$0xff]
    %v4320 = vld [vmem:[%s0 + $0x48] sm:$0xff]
    %v4321 = vld [vmem:[%s0 + $0x50] sm:$0xff]
    %v4322 = vld [vmem:[%s0 + $0x58] sm:$0xff]
    %v4323 = vld [vmem:[%s0 + $0x60] sm:$0xff]
    %v4324 = vld [vmem:[%s0 + $0x68] sm:$0xff]
    %v4325 = vld [vmem:[%s0 + $0x70] sm:$0xff]
    %v4326 = vld [vmem:[%s0 + $0x78] sm:$0xff]
    %v4327 = vld [vmem:[%s0 + $0x80] sm:$0xff]
    %v4328 = vld [vmem:[%s0 + $0x88] sm:$0xff]
    %v4329 = vld [vmem:[%s0 + $0x90] sm:$0xff]
    %v4330 = vld [vmem:[%s0 + $0x98] sm:$0xff]
    %v4331 = vld [vmem:[%s0 + $0xa0] sm:$0xff]
    %v4332 = vld [vmem:[%s0 + $0xa8] sm:$0xff]
    %v4333 = vld [vmem:[%s0 + $0xb0] sm:$0xff]
    %v4334 = vld [vmem:[%s0 + $0xb8] sm:$0xff]
    %4336 = vset.pattern.permute.xlu0 11
    %4337 = vperm.xlu0 %4336, %v4311
    %v4338 = vpop.permute.xlu0 %4337
    %4341 = vset.pattern.permute.xlu0 11
    %4342 = vperm.xlu0 %4341, %v4312
    %v4343 = vpop.permute.xlu0 %4342
    %4346 = vset.pattern.permute.xlu0 11
    %4347 = vperm.xlu0 %4346, %v4313
    %v4348 = vpop.permute.xlu0 %4347
    %4351 = vset.pattern.permute.xlu0 11
    %4352 = vperm.xlu0 %4351, %v4314
    %v4353 = vpop.permute.xlu0 %4352
    %4356 = vset.pattern.permute.xlu0 11
    %4357 = vperm.xlu0 %4356, %v4315
    %v4358 = vpop.permute.xlu0 %4357
    %4361 = vset.pattern.permute.xlu0 11
    %4362 = vperm.xlu0 %4361, %v4316
    %v4363 = vpop.permute.xlu0 %4362
    %4366 = vset.pattern.permute.xlu0 11
    %4367 = vperm.xlu0 %4366, %v4317
    %v4368 = vpop.permute.xlu0 %4367
    %4371 = vset.pattern.permute.xlu0 11
    %4372 = vperm.xlu0 %4371, %v4318
    %v4373 = vpop.permute.xlu0 %4372
    %4376 = vset.pattern.permute.xlu0 11
    %4377 = vperm.xlu0 %4376, %v4319
    %v4378 = vpop.permute.xlu0 %4377
    %4381 = vset.pattern.permute.xlu0 11
    %4382 = vperm.xlu0 %4381, %v4320
    %v4383 = vpop.permute.xlu0 %4382
    %4386 = vset.pattern.permute.xlu0 11
    %4387 = vperm.xlu0 %4386, %v4321
    %v4388 = vpop.permute.xlu0 %4387
    %4391 = vset.pattern.permute.xlu0 11
    %4392 = vperm.xlu0 %4391, %v4322
    %v4393 = vpop.permute.xlu0 %4392
    %4396 = vset.pattern.permute.xlu0 11
    %4397 = vperm.xlu0 %4396, %v4323
    %v4398 = vpop.permute.xlu0 %4397
    %4401 = vset.pattern.permute.xlu0 11
    %4402 = vperm.xlu0 %4401, %v4324
    %v4403 = vpop.permute.xlu0 %4402
    %4406 = vset.pattern.permute.xlu0 11
    %4407 = vperm.xlu0 %4406, %v4325
    %v4408 = vpop.permute.xlu0 %4407
    %4411 = vset.pattern.permute.xlu0 11
    %4412 = vperm.xlu0 %4411, %v4326
    %v4413 = vpop.permute.xlu0 %4412
    %4416 = vset.pattern.permute.xlu0 11
    %4417 = vperm.xlu0 %4416, %v4327
    %v4418 = vpop.permute.xlu0 %4417
    %4421 = vset.pattern.permute.xlu0 11
    %4422 = vperm.xlu0 %4421, %v4328
    %v4423 = vpop.permute.xlu0 %4422
    %4426 = vset.pattern.permute.xlu0 11
    %4427 = vperm.xlu0 %4426, %v4329
    %v4428 = vpop.permute.xlu0 %4427
    %4431 = vset.pattern.permute.xlu0 11
    %4432 = vperm.xlu0 %4431, %v4330
    %v4433 = vpop.permute.xlu0 %4432
    %4436 = vset.pattern.permute.xlu0 11
    %4437 = vperm.xlu0 %4436, %v4331
    %v4438 = vpop.permute.xlu0 %4437
    %4441 = vset.pattern.permute.xlu0 11
    %4442 = vperm.xlu0 %4441, %v4332
    %v4443 = vpop.permute.xlu0 %4442
    %4446 = vset.pattern.permute.xlu0 11
    %4447 = vperm.xlu0 %4446, %v4333
    %v4448 = vpop.permute.xlu0 %4447
    %4451 = vset.pattern.permute.xlu0 11
    %4452 = vperm.xlu0 %4451, %v4334
    %v4453 = vpop.permute.xlu0 %4452
    %v4455 = vmul.f32 %v4287, %v4338
    %v4456 = vmul.f32 %v4288, %v4343
    %v4457 = vmul.f32 %v4289, %v4348
    %v4458 = vmul.f32 %v4290, %v4353
    %v4459 = vmul.f32 %v4291, %v4358
    %v4460 = vmul.f32 %v4292, %v4363
    %v4461 = vmul.f32 %v4293, %v4368
    %v4462 = vmul.f32 %v4294, %v4373
    %v4463 = vmul.f32 %v4295, %v4378
    %v4464 = vmul.f32 %v4296, %v4383
    %v4465 = vmul.f32 %v4297, %v4388
    %v4466 = vmul.f32 %v4298, %v4393
    %v4467 = vmul.f32 %v4299, %v4398
    %v4468 = vmul.f32 %v4300, %v4403
    %v4469 = vmul.f32 %v4301, %v4408
    %v4470 = vmul.f32 %v4302, %v4413
    %v4471 = vmul.f32 %v4303, %v4418
    %v4472 = vmul.f32 %v4304, %v4423
    %v4473 = vmul.f32 %v4305, %v4428
    %v4474 = vmul.f32 %v4306, %v4433
    %v4475 = vmul.f32 %v4307, %v4438
    %v4476 = vmul.f32 %v4308, %v4443
    %v4477 = vmul.f32 %v4309, %v4448
    %v4478 = vmul.f32 %v4310, %v4453
    %v4479 = vpack.c.bf16 %v4456, %v4455
    %v4480 = vpack.c.bf16 %v4458, %v4457
    %v4481 = vpack.c.bf16 %v4460, %v4459
    %v4482 = vpack.c.bf16 %v4462, %v4461
    %v4483 = vpack.c.bf16 %v4464, %v4463
    %v4484 = vpack.c.bf16 %v4466, %v4465
    %v4485 = vpack.c.bf16 %v4468, %v4467
    %v4486 = vpack.c.bf16 %v4470, %v4469
    %v4487 = vpack.c.bf16 %v4472, %v4471
    %v4488 = vpack.c.bf16 %v4474, %v4473
    %v4489 = vpack.c.bf16 %v4476, %v4475
    %v4490 = vpack.c.bf16 %v4478, %v4477
    %v4491 = vld [vmem:[#allocation2] sm:$0xff]
    %v4492 = vld [vmem:[#allocation2 + $0x8] sm:$0xff]
    %v4493 = vld [vmem:[#allocation2 + $0x10] sm:$0xff]
    %v4494 = vld [vmem:[#allocation2 + $0x18] sm:$0xff]
    %v4495 = vld [vmem:[#allocation2 + $0x20] sm:$0xff]
    %v4496 = vld [vmem:[#allocation2 + $0x28] sm:$0xff]
    %v4497 = vld [vmem:[#allocation2 + $0x30] sm:$0xff]
    %v4498 = vld [vmem:[#allocation2 + $0x38] sm:$0xff]
    %v4499 = vld [vmem:[#allocation2 + $0x40] sm:$0xff]
    %v4500 = vld [vmem:[#allocation2 + $0x48] sm:$0xff]
    %v4501 = vld [vmem:[#allocation2 + $0x50] sm:$0xff]
    %v4502 = vld [vmem:[#allocation2 + $0x58] sm:$0xff]
    %v4503 = vld [vmem:[#allocation2 + $0x60] sm:$0xff]
    %v4504 = vld [vmem:[#allocation2 + $0x68] sm:$0xff]
    %v4505 = vld [vmem:[#allocation2 + $0x70] sm:$0xff]
    %v4506 = vld [vmem:[#allocation2 + $0x78] sm:$0xff]
    %v4507 = vld [vmem:[#allocation2 + $0x80] sm:$0xff]
    %v4508 = vld [vmem:[#allocation2 + $0x88] sm:$0xff]
    %v4509 = vld [vmem:[#allocation2 + $0x90] sm:$0xff]
    %v4510 = vld [vmem:[#allocation2 + $0x98] sm:$0xff]
    %v4511 = vld [vmem:[#allocation2 + $0xa0] sm:$0xff]
    %v4512 = vld [vmem:[#allocation2 + $0xa8] sm:$0xff]
    %v4513 = vld [vmem:[#allocation2 + $0xb0] sm:$0xff]
    %v4514 = vld [vmem:[#allocation2 + $0xb8] sm:$0xff]
    %s4515 = scalar_lea.vmem %s2, 44
    %v4516 = vld [vmem:[%s4515] sm:$0xf]
    %v4518 = vsel %vm269, %v4479, 0
    %v4521 = vsel %vm269, %v4480, 0
    %v4524 = vsel %vm269, %v4481, 0
    %v4527 = vsel %vm269, %v4482, 0
    %v4530 = vsel %vm269, %v4483, 0
    %v4533 = vsel %vm269, %v4484, 0
    %v4536 = vsel %vm269, %v4485, 0
    %v4539 = vsel %vm269, %v4486, 0
    %v4542 = vsel %vm269, %v4487, 0
    %v4545 = vsel %vm269, %v4488, 0
    %v4548 = vsel %vm269, %v4489, 0
    %v4551 = vsel %vm269, %v4490, 0
    %v4554 = vsel %vm306, %v4516, 0
    %4556 = vmatpush.bf16.msra.mxu0 0
    %4557 = vmatpush.bf16.msra.mxu0 0
    %4558 = vmatpush.bf16.msra.mxu0 0
    %4559 = vmatpush.bf16.msra.mxu0 0
    %4560 = vmatpush.bf16.msra.mxu0 0
    %4561 = vmatpush.bf16.msra.mxu0 0
    %4562 = vmatpush.bf16.msra.mxu0 0
    %4563 = vmatpush.bf16.msra.mxu0 %v4554
    %4564 = vmatmul.bf16.gmra.mxu0 %v4518
    %v4565 = vpop.f32.mrf.mxu0
    %v4566 = vadd.f32 0.0, %v4565
    %v4567 = vpop.f32.mrf.mxu0
    %v4568 = vadd.f32 0.0, %v4567
    %4569 = vmatmul.bf16.gmra.mxu0 %v4521
    %v4570 = vpop.f32.mrf.mxu0
    %v4571 = vadd.f32 0.0, %v4570
    %v4572 = vpop.f32.mrf.mxu0
    %v4573 = vadd.f32 0.0, %v4572
    %4574 = vmatmul.bf16.gmra.mxu0 %v4524
    %v4575 = vpop.f32.mrf.mxu0
    %v4576 = vadd.f32 0.0, %v4575
    %v4577 = vpop.f32.mrf.mxu0
    %v4578 = vadd.f32 0.0, %v4577
    %4579 = vmatmul.bf16.gmra.mxu0 %v4527
    %v4580 = vpop.f32.mrf.mxu0
    %v4581 = vadd.f32 0.0, %v4580
    %v4582 = vpop.f32.mrf.mxu0
    %v4583 = vadd.f32 0.0, %v4582
    %4584 = vmatmul.bf16.gmra.mxu0 %v4530
    %v4585 = vpop.f32.mrf.mxu0
    %v4586 = vadd.f32 0.0, %v4585
    %v4587 = vpop.f32.mrf.mxu0
    %v4588 = vadd.f32 0.0, %v4587
    %4589 = vmatmul.bf16.gmra.mxu0 %v4533
    %v4590 = vpop.f32.mrf.mxu0
    %v4591 = vadd.f32 0.0, %v4590
    %v4592 = vpop.f32.mrf.mxu0
    %v4593 = vadd.f32 0.0, %v4592
    %4594 = vmatmul.bf16.gmra.mxu0 %v4536
    %v4595 = vpop.f32.mrf.mxu0
    %v4596 = vadd.f32 0.0, %v4595
    %v4597 = vpop.f32.mrf.mxu0
    %v4598 = vadd.f32 0.0, %v4597
    %4599 = vmatmul.bf16.gmra.mxu0 %v4539
    %v4600 = vpop.f32.mrf.mxu0
    %v4601 = vadd.f32 0.0, %v4600
    %v4602 = vpop.f32.mrf.mxu0
    %v4603 = vadd.f32 0.0, %v4602
    %4604 = vmatmul.bf16.gmra.mxu0 %v4542
    %v4605 = vpop.f32.mrf.mxu0
    %v4606 = vadd.f32 0.0, %v4605
    %v4607 = vpop.f32.mrf.mxu0
    %v4608 = vadd.f32 0.0, %v4607
    %4609 = vmatmul.bf16.gmra.mxu0 %v4545
    %v4610 = vpop.f32.mrf.mxu0
    %v4611 = vadd.f32 0.0, %v4610
    %v4612 = vpop.f32.mrf.mxu0
    %v4613 = vadd.f32 0.0, %v4612
    %4614 = vmatmul.bf16.gmra.mxu0 %v4548
    %v4615 = vpop.f32.mrf.mxu0
    %v4616 = vadd.f32 0.0, %v4615
    %v4617 = vpop.f32.mrf.mxu0
    %v4618 = vadd.f32 0.0, %v4617
    %4619 = vmatmul.bf16.gmra.mxu0 %v4551
    %v4620 = vpop.f32.mrf.mxu0
    %v4621 = vadd.f32 0.0, %v4620
    %v4622 = vpop.f32.mrf.mxu0
    %v4623 = vadd.f32 0.0, %v4622
    %4624 = vdwg.mxu0
    %v4625 = vadd.f32 %v4491, %v4566
    %v4626 = vadd.f32 %v4492, %v4568
    %v4627 = vadd.f32 %v4493, %v4571
    %v4628 = vadd.f32 %v4494, %v4573
    %v4629 = vadd.f32 %v4495, %v4576
    %v4630 = vadd.f32 %v4496, %v4578
    %v4631 = vadd.f32 %v4497, %v4581
    %v4632 = vadd.f32 %v4498, %v4583
    %v4633 = vadd.f32 %v4499, %v4586
    %v4634 = vadd.f32 %v4500, %v4588
    %v4635 = vadd.f32 %v4501, %v4591
    %v4636 = vadd.f32 %v4502, %v4593
    %v4637 = vadd.f32 %v4503, %v4596
    %v4638 = vadd.f32 %v4504, %v4598
    %v4639 = vadd.f32 %v4505, %v4601
    %v4640 = vadd.f32 %v4506, %v4603
    %v4641 = vadd.f32 %v4507, %v4606
    %v4642 = vadd.f32 %v4508, %v4608
    %v4643 = vadd.f32 %v4509, %v4611
    %v4644 = vadd.f32 %v4510, %v4613
    %v4645 = vadd.f32 %v4511, %v4616
    %v4646 = vadd.f32 %v4512, %v4618
    %v4647 = vadd.f32 %v4513, %v4621
    %v4648 = vadd.f32 %v4514, %v4623
    %4649 = vst [vmem:[#allocation2] sm:$0xff] %v4625
    %4650 = vst [vmem:[#allocation2 + $0x8] sm:$0xff] %v4626
    %4651 = vst [vmem:[#allocation2 + $0x10] sm:$0xff] %v4627
    %4652 = vst [vmem:[#allocation2 + $0x18] sm:$0xff] %v4628
    %4653 = vst [vmem:[#allocation2 + $0x20] sm:$0xff] %v4629
    %4654 = vst [vmem:[#allocation2 + $0x28] sm:$0xff] %v4630
    %4655 = vst [vmem:[#allocation2 + $0x30] sm:$0xff] %v4631
    %4656 = vst [vmem:[#allocation2 + $0x38] sm:$0xff] %v4632
    %4657 = vst [vmem:[#allocation2 + $0x40] sm:$0xff] %v4633
    %4658 = vst [vmem:[#allocation2 + $0x48] sm:$0xff] %v4634
    %4659 = vst [vmem:[#allocation2 + $0x50] sm:$0xff] %v4635
    %4660 = vst [vmem:[#allocation2 + $0x58] sm:$0xff] %v4636
    %4661 = vst [vmem:[#allocation2 + $0x60] sm:$0xff] %v4637
    %4662 = vst [vmem:[#allocation2 + $0x68] sm:$0xff] %v4638
    %4663 = vst [vmem:[#allocation2 + $0x70] sm:$0xff] %v4639
    %4664 = vst [vmem:[#allocation2 + $0x78] sm:$0xff] %v4640
    %4665 = vst [vmem:[#allocation2 + $0x80] sm:$0xff] %v4641
    %4666 = vst [vmem:[#allocation2 + $0x88] sm:$0xff] %v4642
    %4667 = vst [vmem:[#allocation2 + $0x90] sm:$0xff] %v4643
    %4668 = vst [vmem:[#allocation2 + $0x98] sm:$0xff] %v4644
    %4669 = vst [vmem:[#allocation2 + $0xa0] sm:$0xff] %v4645
    %4670 = vst [vmem:[#allocation2 + $0xa8] sm:$0xff] %v4646
    %4671 = vst [vmem:[#allocation2 + $0xb0] sm:$0xff] %v4647
    %4672 = vst [vmem:[#allocation2 + $0xb8] sm:$0xff] %v4648
    %v4673 = vld [vmem:[%s1] sm:$0xff]
    %v4674 = vld [vmem:[%s1 + $0x8] sm:$0xff]
    %v4675 = vld [vmem:[%s1 + $0x10] sm:$0xff]
    %v4676 = vld [vmem:[%s1 + $0x18] sm:$0xff]
    %v4677 = vld [vmem:[%s1 + $0x20] sm:$0xff]
    %v4678 = vld [vmem:[%s1 + $0x28] sm:$0xff]
    %v4679 = vld [vmem:[%s1 + $0x30] sm:$0xff]
    %v4680 = vld [vmem:[%s1 + $0x38] sm:$0xff]
    %v4681 = vld [vmem:[%s1 + $0x40] sm:$0xff]
    %v4682 = vld [vmem:[%s1 + $0x48] sm:$0xff]
    %v4683 = vld [vmem:[%s1 + $0x50] sm:$0xff]
    %v4684 = vld [vmem:[%s1 + $0x58] sm:$0xff]
    %v4685 = vld [vmem:[%s1 + $0x60] sm:$0xff]
    %v4686 = vld [vmem:[%s1 + $0x68] sm:$0xff]
    %v4687 = vld [vmem:[%s1 + $0x70] sm:$0xff]
    %v4688 = vld [vmem:[%s1 + $0x78] sm:$0xff]
    %v4689 = vld [vmem:[%s1 + $0x80] sm:$0xff]
    %v4690 = vld [vmem:[%s1 + $0x88] sm:$0xff]
    %v4691 = vld [vmem:[%s1 + $0x90] sm:$0xff]
    %v4692 = vld [vmem:[%s1 + $0x98] sm:$0xff]
    %v4693 = vld [vmem:[%s1 + $0xa0] sm:$0xff]
    %v4694 = vld [vmem:[%s1 + $0xa8] sm:$0xff]
    %v4695 = vld [vmem:[%s1 + $0xb0] sm:$0xff]
    %v4696 = vld [vmem:[%s1 + $0xb8] sm:$0xff]
    %v4697 = vld [vmem:[%s0] sm:$0xff]
    %v4698 = vld [vmem:[%s0 + $0x8] sm:$0xff]
    %v4699 = vld [vmem:[%s0 + $0x10] sm:$0xff]
    %v4700 = vld [vmem:[%s0 + $0x18] sm:$0xff]
    %v4701 = vld [vmem:[%s0 + $0x20] sm:$0xff]
    %v4702 = vld [vmem:[%s0 + $0x28] sm:$0xff]
    %v4703 = vld [vmem:[%s0 + $0x30] sm:$0xff]
    %v4704 = vld [vmem:[%s0 + $0x38] sm:$0xff]
    %v4705 = vld [vmem:[%s0 + $0x40] sm:$0xff]
    %v4706 = vld [vmem:[%s0 + $0x48] sm:$0xff]
    %v4707 = vld [vmem:[%s0 + $0x50] sm:$0xff]
    %v4708 = vld [vmem:[%s0 + $0x58] sm:$0xff]
    %v4709 = vld [vmem:[%s0 + $0x60] sm:$0xff]
    %v4710 = vld [vmem:[%s0 + $0x68] sm:$0xff]
    %v4711 = vld [vmem:[%s0 + $0x70] sm:$0xff]
    %v4712 = vld [vmem:[%s0 + $0x78] sm:$0xff]
    %v4713 = vld [vmem:[%s0 + $0x80] sm:$0xff]
    %v4714 = vld [vmem:[%s0 + $0x88] sm:$0xff]
    %v4715 = vld [vmem:[%s0 + $0x90] sm:$0xff]
    %v4716 = vld [vmem:[%s0 + $0x98] sm:$0xff]
    %v4717 = vld [vmem:[%s0 + $0xa0] sm:$0xff]
    %v4718 = vld [vmem:[%s0 + $0xa8] sm:$0xff]
    %v4719 = vld [vmem:[%s0 + $0xb0] sm:$0xff]
    %v4720 = vld [vmem:[%s0 + $0xb8] sm:$0xff]
    %4722 = vset.pattern.permute.xlu0 12
    %4723 = vperm.xlu0 %4722, %v4697
    %v4724 = vpop.permute.xlu0 %4723
    %4727 = vset.pattern.permute.xlu0 12
    %4728 = vperm.xlu0 %4727, %v4698
    %v4729 = vpop.permute.xlu0 %4728
    %4732 = vset.pattern.permute.xlu0 12
    %4733 = vperm.xlu0 %4732, %v4699
    %v4734 = vpop.permute.xlu0 %4733
    %4737 = vset.pattern.permute.xlu0 12
    %4738 = vperm.xlu0 %4737, %v4700
    %v4739 = vpop.permute.xlu0 %4738
    %4742 = vset.pattern.permute.xlu0 12
    %4743 = vperm.xlu0 %4742, %v4701
    %v4744 = vpop.permute.xlu0 %4743
    %4747 = vset.pattern.permute.xlu0 12
    %4748 = vperm.xlu0 %4747, %v4702
    %v4749 = vpop.permute.xlu0 %4748
    %4752 = vset.pattern.permute.xlu0 12
    %4753 = vperm.xlu0 %4752, %v4703
    %v4754 = vpop.permute.xlu0 %4753
    %4757 = vset.pattern.permute.xlu0 12
    %4758 = vperm.xlu0 %4757, %v4704
    %v4759 = vpop.permute.xlu0 %4758
    %4762 = vset.pattern.permute.xlu0 12
    %4763 = vperm.xlu0 %4762, %v4705
    %v4764 = vpop.permute.xlu0 %4763
    %4767 = vset.pattern.permute.xlu0 12
    %4768 = vperm.xlu0 %4767, %v4706
    %v4769 = vpop.permute.xlu0 %4768
    %4772 = vset.pattern.permute.xlu0 12
    %4773 = vperm.xlu0 %4772, %v4707
    %v4774 = vpop.permute.xlu0 %4773
    %4777 = vset.pattern.permute.xlu0 12
    %4778 = vperm.xlu0 %4777, %v4708
    %v4779 = vpop.permute.xlu0 %4778
    %4782 = vset.pattern.permute.xlu0 12
    %4783 = vperm.xlu0 %4782, %v4709
    %v4784 = vpop.permute.xlu0 %4783
    %4787 = vset.pattern.permute.xlu0 12
    %4788 = vperm.xlu0 %4787, %v4710
    %v4789 = vpop.permute.xlu0 %4788
    %4792 = vset.pattern.permute.xlu0 12
    %4793 = vperm.xlu0 %4792, %v4711
    %v4794 = vpop.permute.xlu0 %4793
    %4797 = vset.pattern.permute.xlu0 12
    %4798 = vperm.xlu0 %4797, %v4712
    %v4799 = vpop.permute.xlu0 %4798
    %4802 = vset.pattern.permute.xlu0 12
    %4803 = vperm.xlu0 %4802, %v4713
    %v4804 = vpop.permute.xlu0 %4803
    %4807 = vset.pattern.permute.xlu0 12
    %4808 = vperm.xlu0 %4807, %v4714
    %v4809 = vpop.permute.xlu0 %4808
    %4812 = vset.pattern.permute.xlu0 12
    %4813 = vperm.xlu0 %4812, %v4715
    %v4814 = vpop.permute.xlu0 %4813
    %4817 = vset.pattern.permute.xlu0 12
    %4818 = vperm.xlu0 %4817, %v4716
    %v4819 = vpop.permute.xlu0 %4818
    %4822 = vset.pattern.permute.xlu0 12
    %4823 = vperm.xlu0 %4822, %v4717
    %v4824 = vpop.permute.xlu0 %4823
    %4827 = vset.pattern.permute.xlu0 12
    %4828 = vperm.xlu0 %4827, %v4718
    %v4829 = vpop.permute.xlu0 %4828
    %4832 = vset.pattern.permute.xlu0 12
    %4833 = vperm.xlu0 %4832, %v4719
    %v4834 = vpop.permute.xlu0 %4833
    %4837 = vset.pattern.permute.xlu0 12
    %4838 = vperm.xlu0 %4837, %v4720
    %v4839 = vpop.permute.xlu0 %4838
    %v4841 = vmul.f32 %v4673, %v4724
    %v4842 = vmul.f32 %v4674, %v4729
    %v4843 = vmul.f32 %v4675, %v4734
    %v4844 = vmul.f32 %v4676, %v4739
    %v4845 = vmul.f32 %v4677, %v4744
    %v4846 = vmul.f32 %v4678, %v4749
    %v4847 = vmul.f32 %v4679, %v4754
    %v4848 = vmul.f32 %v4680, %v4759
    %v4849 = vmul.f32 %v4681, %v4764
    %v4850 = vmul.f32 %v4682, %v4769
    %v4851 = vmul.f32 %v4683, %v4774
    %v4852 = vmul.f32 %v4684, %v4779
    %v4853 = vmul.f32 %v4685, %v4784
    %v4854 = vmul.f32 %v4686, %v4789
    %v4855 = vmul.f32 %v4687, %v4794
    %v4856 = vmul.f32 %v4688, %v4799
    %v4857 = vmul.f32 %v4689, %v4804
    %v4858 = vmul.f32 %v4690, %v4809
    %v4859 = vmul.f32 %v4691, %v4814
    %v4860 = vmul.f32 %v4692, %v4819
    %v4861 = vmul.f32 %v4693, %v4824
    %v4862 = vmul.f32 %v4694, %v4829
    %v4863 = vmul.f32 %v4695, %v4834
    %v4864 = vmul.f32 %v4696, %v4839
    %v4865 = vpack.c.bf16 %v4842, %v4841
    %v4866 = vpack.c.bf16 %v4844, %v4843
    %v4867 = vpack.c.bf16 %v4846, %v4845
    %v4868 = vpack.c.bf16 %v4848, %v4847
    %v4869 = vpack.c.bf16 %v4850, %v4849
    %v4870 = vpack.c.bf16 %v4852, %v4851
    %v4871 = vpack.c.bf16 %v4854, %v4853
    %v4872 = vpack.c.bf16 %v4856, %v4855
    %v4873 = vpack.c.bf16 %v4858, %v4857
    %v4874 = vpack.c.bf16 %v4860, %v4859
    %v4875 = vpack.c.bf16 %v4862, %v4861
    %v4876 = vpack.c.bf16 %v4864, %v4863
    %v4877 = vld [vmem:[#allocation2] sm:$0xff]
    %v4878 = vld [vmem:[#allocation2 + $0x8] sm:$0xff]
    %v4879 = vld [vmem:[#allocation2 + $0x10] sm:$0xff]
    %v4880 = vld [vmem:[#allocation2 + $0x18] sm:$0xff]
    %v4881 = vld [vmem:[#allocation2 + $0x20] sm:$0xff]
    %v4882 = vld [vmem:[#allocation2 + $0x28] sm:$0xff]
    %v4883 = vld [vmem:[#allocation2 + $0x30] sm:$0xff]
    %v4884 = vld [vmem:[#allocation2 + $0x38] sm:$0xff]
    %v4885 = vld [vmem:[#allocation2 + $0x40] sm:$0xff]
    %v4886 = vld [vmem:[#allocation2 + $0x48] sm:$0xff]
    %v4887 = vld [vmem:[#allocation2 + $0x50] sm:$0xff]
    %v4888 = vld [vmem:[#allocation2 + $0x58] sm:$0xff]
    %v4889 = vld [vmem:[#allocation2 + $0x60] sm:$0xff]
    %v4890 = vld [vmem:[#allocation2 + $0x68] sm:$0xff]
    %v4891 = vld [vmem:[#allocation2 + $0x70] sm:$0xff]
    %v4892 = vld [vmem:[#allocation2 + $0x78] sm:$0xff]
    %v4893 = vld [vmem:[#allocation2 + $0x80] sm:$0xff]
    %v4894 = vld [vmem:[#allocation2 + $0x88] sm:$0xff]
    %v4895 = vld [vmem:[#allocation2 + $0x90] sm:$0xff]
    %v4896 = vld [vmem:[#allocation2 + $0x98] sm:$0xff]
    %v4897 = vld [vmem:[#allocation2 + $0xa0] sm:$0xff]
    %v4898 = vld [vmem:[#allocation2 + $0xa8] sm:$0xff]
    %v4899 = vld [vmem:[#allocation2 + $0xb0] sm:$0xff]
    %v4900 = vld [vmem:[#allocation2 + $0xb8] sm:$0xff]
    %s4901 = scalar_lea.vmem %s2, 48
    %v4902 = vld [vmem:[%s4901] sm:$0xf]
    %v4904 = vsel %vm269, %v4865, 0
    %v4907 = vsel %vm269, %v4866, 0
    %v4910 = vsel %vm269, %v4867, 0
    %v4913 = vsel %vm269, %v4868, 0
    %v4916 = vsel %vm269, %v4869, 0
    %v4919 = vsel %vm269, %v4870, 0
    %v4922 = vsel %vm269, %v4871, 0
    %v4925 = vsel %vm269, %v4872, 0
    %v4928 = vsel %vm269, %v4873, 0
    %v4931 = vsel %vm269, %v4874, 0
    %v4934 = vsel %vm269, %v4875, 0
    %v4937 = vsel %vm269, %v4876, 0
    %v4940 = vsel %vm306, %v4902, 0
    %4942 = vmatpush.bf16.msra.mxu0 0
    %4943 = vmatpush.bf16.msra.mxu0 0
    %4944 = vmatpush.bf16.msra.mxu0 0
    %4945 = vmatpush.bf16.msra.mxu0 0
    %4946 = vmatpush.bf16.msra.mxu0 0
    %4947 = vmatpush.bf16.msra.mxu0 0
    %4948 = vmatpush.bf16.msra.mxu0 0
    %4949 = vmatpush.bf16.msra.mxu0 %v4940
    %4950 = vmatmul.bf16.gmra.mxu0 %v4904
    %v4951 = vpop.f32.mrf.mxu0
    %v4952 = vadd.f32 0.0, %v4951
    %v4953 = vpop.f32.mrf.mxu0
    %v4954 = vadd.f32 0.0, %v4953
    %4955 = vmatmul.bf16.gmra.mxu0 %v4907
    %v4956 = vpop.f32.mrf.mxu0
    %v4957 = vadd.f32 0.0, %v4956
    %v4958 = vpop.f32.mrf.mxu0
    %v4959 = vadd.f32 0.0, %v4958
    %4960 = vmatmul.bf16.gmra.mxu0 %v4910
    %v4961 = vpop.f32.mrf.mxu0
    %v4962 = vadd.f32 0.0, %v4961
    %v4963 = vpop.f32.mrf.mxu0
    %v4964 = vadd.f32 0.0, %v4963
    %4965 = vmatmul.bf16.gmra.mxu0 %v4913
    %v4966 = vpop.f32.mrf.mxu0
    %v4967 = vadd.f32 0.0, %v4966
    %v4968 = vpop.f32.mrf.mxu0
    %v4969 = vadd.f32 0.0, %v4968
    %4970 = vmatmul.bf16.gmra.mxu0 %v4916
    %v4971 = vpop.f32.mrf.mxu0
    %v4972 = vadd.f32 0.0, %v4971
    %v4973 = vpop.f32.mrf.mxu0
    %v4974 = vadd.f32 0.0, %v4973
    %4975 = vmatmul.bf16.gmra.mxu0 %v4919
    %v4976 = vpop.f32.mrf.mxu0
    %v4977 = vadd.f32 0.0, %v4976
    %v4978 = vpop.f32.mrf.mxu0
    %v4979 = vadd.f32 0.0, %v4978
    %4980 = vmatmul.bf16.gmra.mxu0 %v4922
    %v4981 = vpop.f32.mrf.mxu0
    %v4982 = vadd.f32 0.0, %v4981
    %v4983 = vpop.f32.mrf.mxu0
    %v4984 = vadd.f32 0.0, %v4983
    %4985 = vmatmul.bf16.gmra.mxu0 %v4925
    %v4986 = vpop.f32.mrf.mxu0
    %v4987 = vadd.f32 0.0, %v4986
    %v4988 = vpop.f32.mrf.mxu0
    %v4989 = vadd.f32 0.0, %v4988
    %4990 = vmatmul.bf16.gmra.mxu0 %v4928
    %v4991 = vpop.f32.mrf.mxu0
    %v4992 = vadd.f32 0.0, %v4991
    %v4993 = vpop.f32.mrf.mxu0
    %v4994 = vadd.f32 0.0, %v4993
    %4995 = vmatmul.bf16.gmra.mxu0 %v4931
    %v4996 = vpop.f32.mrf.mxu0
    %v4997 = vadd.f32 0.0, %v4996
    %v4998 = vpop.f32.mrf.mxu0
    %v4999 = vadd.f32 0.0, %v4998
    %5000 = vmatmul.bf16.gmra.mxu0 %v4934
    %v5001 = vpop.f32.mrf.mxu0
    %v5002 = vadd.f32 0.0, %v5001
    %v5003 = vpop.f32.mrf.mxu0
    %v5004 = vadd.f32 0.0, %v5003
    %5005 = vmatmul.bf16.gmra.mxu0 %v4937
    %v5006 = vpop.f32.mrf.mxu0
    %v5007 = vadd.f32 0.0, %v5006
    %v5008 = vpop.f32.mrf.mxu0
    %v5009 = vadd.f32 0.0, %v5008
    %5010 = vdwg.mxu0
    %v5011 = vadd.f32 %v4877, %v4952
    %v5012 = vadd.f32 %v4878, %v4954
    %v5013 = vadd.f32 %v4879, %v4957
    %v5014 = vadd.f32 %v4880, %v4959
    %v5015 = vadd.f32 %v4881, %v4962
    %v5016 = vadd.f32 %v4882, %v4964
    %v5017 = vadd.f32 %v4883, %v4967
    %v5018 = vadd.f32 %v4884, %v4969
    %v5019 = vadd.f32 %v4885, %v4972
    %v5020 = vadd.f32 %v4886, %v4974
    %v5021 = vadd.f32 %v4887, %v4977
    %v5022 = vadd.f32 %v4888, %v4979
    %v5023 = vadd.f32 %v4889, %v4982
    %v5024 = vadd.f32 %v4890, %v4984
    %v5025 = vadd.f32 %v4891, %v4987
    %v5026 = vadd.f32 %v4892, %v4989
    %v5027 = vadd.f32 %v4893, %v4992
    %v5028 = vadd.f32 %v4894, %v4994
    %v5029 = vadd.f32 %v4895, %v4997
    %v5030 = vadd.f32 %v4896, %v4999
    %v5031 = vadd.f32 %v4897, %v5002
    %v5032 = vadd.f32 %v4898, %v5004
    %v5033 = vadd.f32 %v4899, %v5007
    %v5034 = vadd.f32 %v4900, %v5009
    %5035 = vst [vmem:[#allocation2] sm:$0xff] %v5011
    %5036 = vst [vmem:[#allocation2 + $0x8] sm:$0xff] %v5012
    %5037 = vst [vmem:[#allocation2 + $0x10] sm:$0xff] %v5013
    %5038 = vst [vmem:[#allocation2 + $0x18] sm:$0xff] %v5014
    %5039 = vst [vmem:[#allocation2 + $0x20] sm:$0xff] %v5015
    %5040 = vst [vmem:[#allocation2 + $0x28] sm:$0xff] %v5016
    %5041 = vst [vmem:[#allocation2 + $0x30] sm:$0xff] %v5017
    %5042 = vst [vmem:[#allocation2 + $0x38] sm:$0xff] %v5018
    %5043 = vst [vmem:[#allocation2 + $0x40] sm:$0xff] %v5019
    %5044 = vst [vmem:[#allocation2 + $0x48] sm:$0xff] %v5020
    %5045 = vst [vmem:[#allocation2 + $0x50] sm:$0xff] %v5021
    %5046 = vst [vmem:[#allocation2 + $0x58] sm:$0xff] %v5022
    %5047 = vst [vmem:[#allocation2 + $0x60] sm:$0xff] %v5023
    %5048 = vst [vmem:[#allocation2 + $0x68] sm:$0xff] %v5024
    %5049 = vst [vmem:[#allocation2 + $0x70] sm:$0xff] %v5025
    %5050 = vst [vmem:[#allocation2 + $0x78] sm:$0xff] %v5026
    %5051 = vst [vmem:[#allocation2 + $0x80] sm:$0xff] %v5027
    %5052 = vst [vmem:[#allocation2 + $0x88] sm:$0xff] %v5028
    %5053 = vst [vmem:[#allocation2 + $0x90] sm:$0xff] %v5029
    %5054 = vst [vmem:[#allocation2 + $0x98] sm:$0xff] %v5030
    %5055 = vst [vmem:[#allocation2 + $0xa0] sm:$0xff] %v5031
    %5056 = vst [vmem:[#allocation2 + $0xa8] sm:$0xff] %v5032
    %5057 = vst [vmem:[#allocation2 + $0xb0] sm:$0xff] %v5033
    %5058 = vst [vmem:[#allocation2 + $0xb8] sm:$0xff] %v5034
    %v5059 = vld [vmem:[%s1] sm:$0xff]
    %v5060 = vld [vmem:[%s1 + $0x8] sm:$0xff]
    %v5061 = vld [vmem:[%s1 + $0x10] sm:$0xff]
    %v5062 = vld [vmem:[%s1 + $0x18] sm:$0xff]
    %v5063 = vld [vmem:[%s1 + $0x20] sm:$0xff]
    %v5064 = vld [vmem:[%s1 + $0x28] sm:$0xff]
    %v5065 = vld [vmem:[%s1 + $0x30] sm:$0xff]
    %v5066 = vld [vmem:[%s1 + $0x38] sm:$0xff]
    %v5067 = vld [vmem:[%s1 + $0x40] sm:$0xff]
    %v5068 = vld [vmem:[%s1 + $0x48] sm:$0xff]
    %v5069 = vld [vmem:[%s1 + $0x50] sm:$0xff]
    %v5070 = vld [vmem:[%s1 + $0x58] sm:$0xff]
    %v5071 = vld [vmem:[%s1 + $0x60] sm:$0xff]
    %v5072 = vld [vmem:[%s1 + $0x68] sm:$0xff]
    %v5073 = vld [vmem:[%s1 + $0x70] sm:$0xff]
    %v5074 = vld [vmem:[%s1 + $0x78] sm:$0xff]
    %v5075 = vld [vmem:[%s1 + $0x80] sm:$0xff]
    %v5076 = vld [vmem:[%s1 + $0x88] sm:$0xff]
    %v5077 = vld [vmem:[%s1 + $0x90] sm:$0xff]
    %v5078 = vld [vmem:[%s1 + $0x98] sm:$0xff]
    %v5079 = vld [vmem:[%s1 + $0xa0] sm:$0xff]
    %v5080 = vld [vmem:[%s1 + $0xa8] sm:$0xff]
    %v5081 = vld [vmem:[%s1 + $0xb0] sm:$0xff]
    %v5082 = vld [vmem:[%s1 + $0xb8] sm:$0xff]
    %v5083 = vld [vmem:[%s0] sm:$0xff]
    %v5084 = vld [vmem:[%s0 + $0x8] sm:$0xff]
    %v5085 = vld [vmem:[%s0 + $0x10] sm:$0xff]
    %v5086 = vld [vmem:[%s0 + $0x18] sm:$0xff]
    %v5087 = vld [vmem:[%s0 + $0x20] sm:$0xff]
    %v5088 = vld [vmem:[%s0 + $0x28] sm:$0xff]
    %v5089 = vld [vmem:[%s0 + $0x30] sm:$0xff]
    %v5090 = vld [vmem:[%s0 + $0x38] sm:$0xff]
    %v5091 = vld [vmem:[%s0 + $0x40] sm:$0xff]
    %v5092 = vld [vmem:[%s0 + $0x48] sm:$0xff]
    %v5093 = vld [vmem:[%s0 + $0x50] sm:$0xff]
    %v5094 = vld [vmem:[%s0 + $0x58] sm:$0xff]
    %v5095 = vld [vmem:[%s0 + $0x60] sm:$0xff]
    %v5096 = vld [vmem:[%s0 + $0x68] sm:$0xff]
    %v5097 = vld [vmem:[%s0 + $0x70] sm:$0xff]
    %v5098 = vld [vmem:[%s0 + $0x78] sm:$0xff]
    %v5099 = vld [vmem:[%s0 + $0x80] sm:$0xff]
    %v5100 = vld [vmem:[%s0 + $0x88] sm:$0xff]
    %v5101 = vld [vmem:[%s0 + $0x90] sm:$0xff]
    %v5102 = vld [vmem:[%s0 + $0x98] sm:$0xff]
    %v5103 = vld [vmem:[%s0 + $0xa0] sm:$0xff]
    %v5104 = vld [vmem:[%s0 + $0xa8] sm:$0xff]
    %v5105 = vld [vmem:[%s0 + $0xb0] sm:$0xff]
    %v5106 = vld [vmem:[%s0 + $0xb8] sm:$0xff]
    %5108 = vset.pattern.permute.xlu0 13
    %5109 = vperm.xlu0 %5108, %v5083
    %v5110 = vpop.permute.xlu0 %5109
    %5113 = vset.pattern.permute.xlu0 13
    %5114 = vperm.xlu0 %5113, %v5084
    %v5115 = vpop.permute.xlu0 %5114
    %5118 = vset.pattern.permute.xlu0 13
    %5119 = vperm.xlu0 %5118, %v5085
    %v5120 = vpop.permute.xlu0 %5119
    %5123 = vset.pattern.permute.xlu0 13
    %5124 = vperm.xlu0 %5123, %v5086
    %v5125 = vpop.permute.xlu0 %5124
    %5128 = vset.pattern.permute.xlu0 13
    %5129 = vperm.xlu0 %5128, %v5087
    %v5130 = vpop.permute.xlu0 %5129
    %5133 = vset.pattern.permute.xlu0 13
    %5134 = vperm.xlu0 %5133, %v5088
    %v5135 = vpop.permute.xlu0 %5134
    %5138 = vset.pattern.permute.xlu0 13
    %5139 = vperm.xlu0 %5138, %v5089
    %v5140 = vpop.permute.xlu0 %5139
    %5143 = vset.pattern.permute.xlu0 13
    %5144 = vperm.xlu0 %5143, %v5090
    %v5145 = vpop.permute.xlu0 %5144
    %5148 = vset.pattern.permute.xlu0 13
    %5149 = vperm.xlu0 %5148, %v5091
    %v5150 = vpop.permute.xlu0 %5149
    %5153 = vset.pattern.permute.xlu0 13
    %5154 = vperm.xlu0 %5153, %v5092
    %v5155 = vpop.permute.xlu0 %5154
    %5158 = vset.pattern.permute.xlu0 13
    %5159 = vperm.xlu0 %5158, %v5093
    %v5160 = vpop.permute.xlu0 %5159
    %5163 = vset.pattern.permute.xlu0 13
    %5164 = vperm.xlu0 %5163, %v5094
    %v5165 = vpop.permute.xlu0 %5164
    %5168 = vset.pattern.permute.xlu0 13
    %5169 = vperm.xlu0 %5168, %v5095
    %v5170 = vpop.permute.xlu0 %5169
    %5173 = vset.pattern.permute.xlu0 13
    %5174 = vperm.xlu0 %5173, %v5096
    %v5175 = vpop.permute.xlu0 %5174
    %5178 = vset.pattern.permute.xlu0 13
    %5179 = vperm.xlu0 %5178, %v5097
    %v5180 = vpop.permute.xlu0 %5179
    %5183 = vset.pattern.permute.xlu0 13
    %5184 = vperm.xlu0 %5183, %v5098
    %v5185 = vpop.permute.xlu0 %5184
    %5188 = vset.pattern.permute.xlu0 13
    %5189 = vperm.xlu0 %5188, %v5099
    %v5190 = vpop.permute.xlu0 %5189
    %5193 = vset.pattern.permute.xlu0 13
    %5194 = vperm.xlu0 %5193, %v5100
    %v5195 = vpop.permute.xlu0 %5194
    %5198 = vset.pattern.permute.xlu0 13
    %5199 = vperm.xlu0 %5198, %v5101
    %v5200 = vpop.permute.xlu0 %5199
    %5203 = vset.pattern.permute.xlu0 13
    %5204 = vperm.xlu0 %5203, %v5102
    %v5205 = vpop.permute.xlu0 %5204
    %5208 = vset.pattern.permute.xlu0 13
    %5209 = vperm.xlu0 %5208, %v5103
    %v5210 = vpop.permute.xlu0 %5209
    %5213 = vset.pattern.permute.xlu0 13
    %5214 = vperm.xlu0 %5213, %v5104
    %v5215 = vpop.permute.xlu0 %5214
    %5218 = vset.pattern.permute.xlu0 13
    %5219 = vperm.xlu0 %5218, %v5105
    %v5220 = vpop.permute.xlu0 %5219
    %5223 = vset.pattern.permute.xlu0 13
    %5224 = vperm.xlu0 %5223, %v5106
    %v5225 = vpop.permute.xlu0 %5224
    %v5227 = vmul.f32 %v5059, %v5110
    %v5228 = vmul.f32 %v5060, %v5115
    %v5229 = vmul.f32 %v5061, %v5120
    %v5230 = vmul.f32 %v5062, %v5125
    %v5231 = vmul.f32 %v5063, %v5130
    %v5232 = vmul.f32 %v5064, %v5135
    %v5233 = vmul.f32 %v5065, %v5140
    %v5234 = vmul.f32 %v5066, %v5145
    %v5235 = vmul.f32 %v5067, %v5150
    %v5236 = vmul.f32 %v5068, %v5155
    %v5237 = vmul.f32 %v5069, %v5160
    %v5238 = vmul.f32 %v5070, %v5165
    %v5239 = vmul.f32 %v5071, %v5170
    %v5240 = vmul.f32 %v5072, %v5175
    %v5241 = vmul.f32 %v5073, %v5180
    %v5242 = vmul.f32 %v5074, %v5185
    %v5243 = vmul.f32 %v5075, %v5190
    %v5244 = vmul.f32 %v5076, %v5195
    %v5245 = vmul.f32 %v5077, %v5200
    %v5246 = vmul.f32 %v5078, %v5205
    %v5247 = vmul.f32 %v5079, %v5210
    %v5248 = vmul.f32 %v5080, %v5215
    %v5249 = vmul.f32 %v5081, %v5220
    %v5250 = vmul.f32 %v5082, %v5225
    %v5251 = vpack.c.bf16 %v5228, %v5227
    %v5252 = vpack.c.bf16 %v5230, %v5229
    %v5253 = vpack.c.bf16 %v5232, %v5231
    %v5254 = vpack.c.bf16 %v5234, %v5233
    %v5255 = vpack.c.bf16 %v5236, %v5235
    %v5256 = vpack.c.bf16 %v5238, %v5237
    %v5257 = vpack.c.bf16 %v5240, %v5239
    %v5258 = vpack.c.bf16 %v5242, %v5241
    %v5259 = vpack.c.bf16 %v5244, %v5243
    %v5260 = vpack.c.bf16 %v5246, %v5245
    %v5261 = vpack.c.bf16 %v5248, %v5247
    %v5262 = vpack.c.bf16 %v5250, %v5249
    %v5263 = vld [vmem:[#allocation2] sm:$0xff]
    %v5264 = vld [vmem:[#allocation2 + $0x8] sm:$0xff]
    %v5265 = vld [vmem:[#allocation2 + $0x10] sm:$0xff]
    %v5266 = vld [vmem:[#allocation2 + $0x18] sm:$0xff]
    %v5267 = vld [vmem:[#allocation2 + $0x20] sm:$0xff]
    %v5268 = vld [vmem:[#allocation2 + $0x28] sm:$0xff]
    %v5269 = vld [vmem:[#allocation2 + $0x30] sm:$0xff]
    %v5270 = vld [vmem:[#allocation2 + $0x38] sm:$0xff]
    %v5271 = vld [vmem:[#allocation2 + $0x40] sm:$0xff]
    %v5272 = vld [vmem:[#allocation2 + $0x48] sm:$0xff]
    %v5273 = vld [vmem:[#allocation2 + $0x50] sm:$0xff]
    %v5274 = vld [vmem:[#allocation2 + $0x58] sm:$0xff]
    %v5275 = vld [vmem:[#allocation2 + $0x60] sm:$0xff]
    %v5276 = vld [vmem:[#allocation2 + $0x68] sm:$0xff]
    %v5277 = vld [vmem:[#allocation2 + $0x70] sm:$0xff]
    %v5278 = vld [vmem:[#allocation2 + $0x78] sm:$0xff]
    %v5279 = vld [vmem:[#allocation2 + $0x80] sm:$0xff]
    %v5280 = vld [vmem:[#allocation2 + $0x88] sm:$0xff]
    %v5281 = vld [vmem:[#allocation2 + $0x90] sm:$0xff]
    %v5282 = vld [vmem:[#allocation2 + $0x98] sm:$0xff]
    %v5283 = vld [vmem:[#allocation2 + $0xa0] sm:$0xff]
    %v5284 = vld [vmem:[#allocation2 + $0xa8] sm:$0xff]
    %v5285 = vld [vmem:[#allocation2 + $0xb0] sm:$0xff]
    %v5286 = vld [vmem:[#allocation2 + $0xb8] sm:$0xff]
    %s5287 = scalar_lea.vmem %s2, 52
    %v5288 = vld [vmem:[%s5287] sm:$0xf]
    %v5290 = vsel %vm269, %v5251, 0
    %v5293 = vsel %vm269, %v5252, 0
    %v5296 = vsel %vm269, %v5253, 0
    %v5299 = vsel %vm269, %v5254, 0
    %v5302 = vsel %vm269, %v5255, 0
    %v5305 = vsel %vm269, %v5256, 0
    %v5308 = vsel %vm269, %v5257, 0
    %v5311 = vsel %vm269, %v5258, 0
    %v5314 = vsel %vm269, %v5259, 0
    %v5317 = vsel %vm269, %v5260, 0
    %v5320 = vsel %vm269, %v5261, 0
    %v5323 = vsel %vm269, %v5262, 0
    %v5326 = vsel %vm306, %v5288, 0
    %5328 = vmatpush.bf16.msra.mxu0 0
    %5329 = vmatpush.bf16.msra.mxu0 0
    %5330 = vmatpush.bf16.msra.mxu0 0
    %5331 = vmatpush.bf16.msra.mxu0 0
    %5332 = vmatpush.bf16.msra.mxu0 0
    %5333 = vmatpush.bf16.msra.mxu0 0
    %5334 = vmatpush.bf16.msra.mxu0 0
    %5335 = vmatpush.bf16.msra.mxu0 %v5326
    %5336 = vmatmul.bf16.gmra.mxu0 %v5290
    %v5337 = vpop.f32.mrf.mxu0
    %v5338 = vadd.f32 0.0, %v5337
    %v5339 = vpop.f32.mrf.mxu0
    %v5340 = vadd.f32 0.0, %v5339
    %5341 = vmatmul.bf16.gmra.mxu0 %v5293
    %v5342 = vpop.f32.mrf.mxu0
    %v5343 = vadd.f32 0.0, %v5342
    %v5344 = vpop.f32.mrf.mxu0
    %v5345 = vadd.f32 0.0, %v5344
    %5346 = vmatmul.bf16.gmra.mxu0 %v5296
    %v5347 = vpop.f32.mrf.mxu0
    %v5348 = vadd.f32 0.0, %v5347
    %v5349 = vpop.f32.mrf.mxu0
    %v5350 = vadd.f32 0.0, %v5349
    %5351 = vmatmul.bf16.gmra.mxu0 %v5299
    %v5352 = vpop.f32.mrf.mxu0
    %v5353 = vadd.f32 0.0, %v5352
    %v5354 = vpop.f32.mrf.mxu0
    %v5355 = vadd.f32 0.0, %v5354
    %5356 = vmatmul.bf16.gmra.mxu0 %v5302
    %v5357 = vpop.f32.mrf.mxu0
    %v5358 = vadd.f32 0.0, %v5357
    %v5359 = vpop.f32.mrf.mxu0
    %v5360 = vadd.f32 0.0, %v5359
    %5361 = vmatmul.bf16.gmra.mxu0 %v5305
    %v5362 = vpop.f32.mrf.mxu0
    %v5363 = vadd.f32 0.0, %v5362
    %v5364 = vpop.f32.mrf.mxu0
    %v5365 = vadd.f32 0.0, %v5364
    %5366 = vmatmul.bf16.gmra.mxu0 %v5308
    %v5367 = vpop.f32.mrf.mxu0
    %v5368 = vadd.f32 0.0, %v5367
    %v5369 = vpop.f32.mrf.mxu0
    %v5370 = vadd.f32 0.0, %v5369
    %5371 = vmatmul.bf16.gmra.mxu0 %v5311
    %v5372 = vpop.f32.mrf.mxu0
    %v5373 = vadd.f32 0.0, %v5372
    %v5374 = vpop.f32.mrf.mxu0
    %v5375 = vadd.f32 0.0, %v5374
    %5376 = vmatmul.bf16.gmra.mxu0 %v5314
    %v5377 = vpop.f32.mrf.mxu0
    %v5378 = vadd.f32 0.0, %v5377
    %v5379 = vpop.f32.mrf.mxu0
    %v5380 = vadd.f32 0.0, %v5379
    %5381 = vmatmul.bf16.gmra.mxu0 %v5317
    %v5382 = vpop.f32.mrf.mxu0
    %v5383 = vadd.f32 0.0, %v5382
    %v5384 = vpop.f32.mrf.mxu0
    %v5385 = vadd.f32 0.0, %v5384
    %5386 = vmatmul.bf16.gmra.mxu0 %v5320
    %v5387 = vpop.f32.mrf.mxu0
    %v5388 = vadd.f32 0.0, %v5387
    %v5389 = vpop.f32.mrf.mxu0
    %v5390 = vadd.f32 0.0, %v5389
    %5391 = vmatmul.bf16.gmra.mxu0 %v5323
    %v5392 = vpop.f32.mrf.mxu0
    %v5393 = vadd.f32 0.0, %v5392
    %v5394 = vpop.f32.mrf.mxu0
    %v5395 = vadd.f32 0.0, %v5394
    %5396 = vdwg.mxu0
    %v5397 = vadd.f32 %v5263, %v5338
    %v5398 = vadd.f32 %v5264, %v5340
    %v5399 = vadd.f32 %v5265, %v5343
    %v5400 = vadd.f32 %v5266, %v5345
    %v5401 = vadd.f32 %v5267, %v5348
    %v5402 = vadd.f32 %v5268, %v5350
    %v5403 = vadd.f32 %v5269, %v5353
    %v5404 = vadd.f32 %v5270, %v5355
    %v5405 = vadd.f32 %v5271, %v5358
    %v5406 = vadd.f32 %v5272, %v5360
    %v5407 = vadd.f32 %v5273, %v5363
    %v5408 = vadd.f32 %v5274, %v5365
    %v5409 = vadd.f32 %v5275, %v5368
    %v5410 = vadd.f32 %v5276, %v5370
    %v5411 = vadd.f32 %v5277, %v5373
    %v5412 = vadd.f32 %v5278, %v5375
    %v5413 = vadd.f32 %v5279, %v5378
    %v5414 = vadd.f32 %v5280, %v5380
    %v5415 = vadd.f32 %v5281, %v5383
    %v5416 = vadd.f32 %v5282, %v5385
    %v5417 = vadd.f32 %v5283, %v5388
    %v5418 = vadd.f32 %v5284, %v5390
    %v5419 = vadd.f32 %v5285, %v5393
    %v5420 = vadd.f32 %v5286, %v5395
    %5421 = vst [vmem:[#allocation2] sm:$0xff] %v5397
    %5422 = vst [vmem:[#allocation2 + $0x8] sm:$0xff] %v5398
    %5423 = vst [vmem:[#allocation2 + $0x10] sm:$0xff] %v5399
    %5424 = vst [vmem:[#allocation2 + $0x18] sm:$0xff] %v5400
    %5425 = vst [vmem:[#allocation2 + $0x20] sm:$0xff] %v5401
    %5426 = vst [vmem:[#allocation2 + $0x28] sm:$0xff] %v5402
    %5427 = vst [vmem:[#allocation2 + $0x30] sm:$0xff] %v5403
    %5428 = vst [vmem:[#allocation2 + $0x38] sm:$0xff] %v5404
    %5429 = vst [vmem:[#allocation2 + $0x40] sm:$0xff] %v5405
    %5430 = vst [vmem:[#allocation2 + $0x48] sm:$0xff] %v5406
    %5431 = vst [vmem:[#allocation2 + $0x50] sm:$0xff] %v5407
    %5432 = vst [vmem:[#allocation2 + $0x58] sm:$0xff] %v5408
    %5433 = vst [vmem:[#allocation2 + $0x60] sm:$0xff] %v5409
    %5434 = vst [vmem:[#allocation2 + $0x68] sm:$0xff] %v5410
    %5435 = vst [vmem:[#allocation2 + $0x70] sm:$0xff] %v5411
    %5436 = vst [vmem:[#allocation2 + $0x78] sm:$0xff] %v5412
    %5437 = vst [vmem:[#allocation2 + $0x80] sm:$0xff] %v5413
    %5438 = vst [vmem:[#allocation2 + $0x88] sm:$0xff] %v5414
    %5439 = vst [vmem:[#allocation2 + $0x90] sm:$0xff] %v5415
    %5440 = vst [vmem:[#allocation2 + $0x98] sm:$0xff] %v5416
    %5441 = vst [vmem:[#allocation2 + $0xa0] sm:$0xff] %v5417
    %5442 = vst [vmem:[#allocation2 + $0xa8] sm:$0xff] %v5418
    %5443 = vst [vmem:[#allocation2 + $0xb0] sm:$0xff] %v5419
    %5444 = vst [vmem:[#allocation2 + $0xb8] sm:$0xff] %v5420
    %v5445 = vld [vmem:[%s1] sm:$0xff]
    %v5446 = vld [vmem:[%s1 + $0x8] sm:$0xff]
    %v5447 = vld [vmem:[%s1 + $0x10] sm:$0xff]
    %v5448 = vld [vmem:[%s1 + $0x18] sm:$0xff]
    %v5449 = vld [vmem:[%s1 + $0x20] sm:$0xff]
    %v5450 = vld [vmem:[%s1 + $0x28] sm:$0xff]
    %v5451 = vld [vmem:[%s1 + $0x30] sm:$0xff]
    %v5452 = vld [vmem:[%s1 + $0x38] sm:$0xff]
    %v5453 = vld [vmem:[%s1 + $0x40] sm:$0xff]
    %v5454 = vld [vmem:[%s1 + $0x48] sm:$0xff]
    %v5455 = vld [vmem:[%s1 + $0x50] sm:$0xff]
    %v5456 = vld [vmem:[%s1 + $0x58] sm:$0xff]
    %v5457 = vld [vmem:[%s1 + $0x60] sm:$0xff]
    %v5458 = vld [vmem:[%s1 + $0x68] sm:$0xff]
    %v5459 = vld [vmem:[%s1 + $0x70] sm:$0xff]
    %v5460 = vld [vmem:[%s1 + $0x78] sm:$0xff]
    %v5461 = vld [vmem:[%s1 + $0x80] sm:$0xff]
    %v5462 = vld [vmem:[%s1 + $0x88] sm:$0xff]
    %v5463 = vld [vmem:[%s1 + $0x90] sm:$0xff]
    %v5464 = vld [vmem:[%s1 + $0x98] sm:$0xff]
    %v5465 = vld [vmem:[%s1 + $0xa0] sm:$0xff]
    %v5466 = vld [vmem:[%s1 + $0xa8] sm:$0xff]
    %v5467 = vld [vmem:[%s1 + $0xb0] sm:$0xff]
    %v5468 = vld [vmem:[%s1 + $0xb8] sm:$0xff]
    %v5469 = vld [vmem:[%s0] sm:$0xff]
    %v5470 = vld [vmem:[%s0 + $0x8] sm:$0xff]
    %v5471 = vld [vmem:[%s0 + $0x10] sm:$0xff]
    %v5472 = vld [vmem:[%s0 + $0x18] sm:$0xff]
    %v5473 = vld [vmem:[%s0 + $0x20] sm:$0xff]
    %v5474 = vld [vmem:[%s0 + $0x28] sm:$0xff]
    %v5475 = vld [vmem:[%s0 + $0x30] sm:$0xff]
    %v5476 = vld [vmem:[%s0 + $0x38] sm:$0xff]
    %v5477 = vld [vmem:[%s0 + $0x40] sm:$0xff]
    %v5478 = vld [vmem:[%s0 + $0x48] sm:$0xff]
    %v5479 = vld [vmem:[%s0 + $0x50] sm:$0xff]
    %v5480 = vld [vmem:[%s0 + $0x58] sm:$0xff]
    %v5481 = vld [vmem:[%s0 + $0x60] sm:$0xff]
    %v5482 = vld [vmem:[%s0 + $0x68] sm:$0xff]
    %v5483 = vld [vmem:[%s0 + $0x70] sm:$0xff]
    %v5484 = vld [vmem:[%s0 + $0x78] sm:$0xff]
    %v5485 = vld [vmem:[%s0 + $0x80] sm:$0xff]
    %v5486 = vld [vmem:[%s0 + $0x88] sm:$0xff]
    %v5487 = vld [vmem:[%s0 + $0x90] sm:$0xff]
    %v5488 = vld [vmem:[%s0 + $0x98] sm:$0xff]
    %v5489 = vld [vmem:[%s0 + $0xa0] sm:$0xff]
    %v5490 = vld [vmem:[%s0 + $0xa8] sm:$0xff]
    %v5491 = vld [vmem:[%s0 + $0xb0] sm:$0xff]
    %v5492 = vld [vmem:[%s0 + $0xb8] sm:$0xff]
    %5494 = vset.pattern.permute.xlu0 14
    %5495 = vperm.xlu0 %5494, %v5469
    %v5496 = vpop.permute.xlu0 %5495
    %5499 = vset.pattern.permute.xlu0 14
    %5500 = vperm.xlu0 %5499, %v5470
    %v5501 = vpop.permute.xlu0 %5500
    %5504 = vset.pattern.permute.xlu0 14
    %5505 = vperm.xlu0 %5504, %v5471
    %v5506 = vpop.permute.xlu0 %5505
    %5509 = vset.pattern.permute.xlu0 14
    %5510 = vperm.xlu0 %5509, %v5472
    %v5511 = vpop.permute.xlu0 %5510
    %5514 = vset.pattern.permute.xlu0 14
    %5515 = vperm.xlu0 %5514, %v5473
    %v5516 = vpop.permute.xlu0 %5515
    %5519 = vset.pattern.permute.xlu0 14
    %5520 = vperm.xlu0 %5519, %v5474
    %v5521 = vpop.permute.xlu0 %5520
    %5524 = vset.pattern.permute.xlu0 14
    %5525 = vperm.xlu0 %5524, %v5475
    %v5526 = vpop.permute.xlu0 %5525
    %5529 = vset.pattern.permute.xlu0 14
    %5530 = vperm.xlu0 %5529, %v5476
    %v5531 = vpop.permute.xlu0 %5530
    %5534 = vset.pattern.permute.xlu0 14
    %5535 = vperm.xlu0 %5534, %v5477
    %v5536 = vpop.permute.xlu0 %5535
    %5539 = vset.pattern.permute.xlu0 14
    %5540 = vperm.xlu0 %5539, %v5478
    %v5541 = vpop.permute.xlu0 %5540
    %5544 = vset.pattern.permute.xlu0 14
    %5545 = vperm.xlu0 %5544, %v5479
    %v5546 = vpop.permute.xlu0 %5545
    %5549 = vset.pattern.permute.xlu0 14
    %5550 = vperm.xlu0 %5549, %v5480
    %v5551 = vpop.permute.xlu0 %5550
    %5554 = vset.pattern.permute.xlu0 14
    %5555 = vperm.xlu0 %5554, %v5481
    %v5556 = vpop.permute.xlu0 %5555
    %5559 = vset.pattern.permute.xlu0 14
    %5560 = vperm.xlu0 %5559, %v5482
    %v5561 = vpop.permute.xlu0 %5560
    %5564 = vset.pattern.permute.xlu0 14
    %5565 = vperm.xlu0 %5564, %v5483
    %v5566 = vpop.permute.xlu0 %5565
    %5569 = vset.pattern.permute.xlu0 14
    %5570 = vperm.xlu0 %5569, %v5484
    %v5571 = vpop.permute.xlu0 %5570
    %5574 = vset.pattern.permute.xlu0 14
    %5575 = vperm.xlu0 %5574, %v5485
    %v5576 = vpop.permute.xlu0 %5575
    %5579 = vset.pattern.permute.xlu0 14
    %5580 = vperm.xlu0 %5579, %v5486
    %v5581 = vpop.permute.xlu0 %5580
    %5584 = vset.pattern.permute.xlu0 14
    %5585 = vperm.xlu0 %5584, %v5487
    %v5586 = vpop.permute.xlu0 %5585
    %5589 = vset.pattern.permute.xlu0 14
    %5590 = vperm.xlu0 %5589, %v5488
    %v5591 = vpop.permute.xlu0 %5590
    %5594 = vset.pattern.permute.xlu0 14
    %5595 = vperm.xlu0 %5594, %v5489
    %v5596 = vpop.permute.xlu0 %5595
    %5599 = vset.pattern.permute.xlu0 14
    %5600 = vperm.xlu0 %5599, %v5490
    %v5601 = vpop.permute.xlu0 %5600
    %5604 = vset.pattern.permute.xlu0 14
    %5605 = vperm.xlu0 %5604, %v5491
    %v5606 = vpop.permute.xlu0 %5605
    %5609 = vset.pattern.permute.xlu0 14
    %5610 = vperm.xlu0 %5609, %v5492
    %v5611 = vpop.permute.xlu0 %5610
    %v5613 = vmul.f32 %v5445, %v5496
    %v5614 = vmul.f32 %v5446, %v5501
    %v5615 = vmul.f32 %v5447, %v5506
    %v5616 = vmul.f32 %v5448, %v5511
    %v5617 = vmul.f32 %v5449, %v5516
    %v5618 = vmul.f32 %v5450, %v5521
    %v5619 = vmul.f32 %v5451, %v5526
    %v5620 = vmul.f32 %v5452, %v5531
    %v5621 = vmul.f32 %v5453, %v5536
    %v5622 = vmul.f32 %v5454, %v5541
    %v5623 = vmul.f32 %v5455, %v5546
    %v5624 = vmul.f32 %v5456, %v5551
    %v5625 = vmul.f32 %v5457, %v5556
    %v5626 = vmul.f32 %v5458, %v5561
    %v5627 = vmul.f32 %v5459, %v5566
    %v5628 = vmul.f32 %v5460, %v5571
    %v5629 = vmul.f32 %v5461, %v5576
    %v5630 = vmul.f32 %v5462, %v5581
    %v5631 = vmul.f32 %v5463, %v5586
    %v5632 = vmul.f32 %v5464, %v5591
    %v5633 = vmul.f32 %v5465, %v5596
    %v5634 = vmul.f32 %v5466, %v5601
    %v5635 = vmul.f32 %v5467, %v5606
    %v5636 = vmul.f32 %v5468, %v5611
    %v5637 = vpack.c.bf16 %v5614, %v5613
    %v5638 = vpack.c.bf16 %v5616, %v5615
    %v5639 = vpack.c.bf16 %v5618, %v5617
    %v5640 = vpack.c.bf16 %v5620, %v5619
    %v5641 = vpack.c.bf16 %v5622, %v5621
    %v5642 = vpack.c.bf16 %v5624, %v5623
    %v5643 = vpack.c.bf16 %v5626, %v5625
    %v5644 = vpack.c.bf16 %v5628, %v5627
    %v5645 = vpack.c.bf16 %v5630, %v5629
    %v5646 = vpack.c.bf16 %v5632, %v5631
    %v5647 = vpack.c.bf16 %v5634, %v5633
    %v5648 = vpack.c.bf16 %v5636, %v5635
    %v5649 = vld [vmem:[#allocation2] sm:$0xff]
    %v5650 = vld [vmem:[#allocation2 + $0x8] sm:$0xff]
    %v5651 = vld [vmem:[#allocation2 + $0x10] sm:$0xff]
    %v5652 = vld [vmem:[#allocation2 + $0x18] sm:$0xff]
    %v5653 = vld [vmem:[#allocation2 + $0x20] sm:$0xff]
    %v5654 = vld [vmem:[#allocation2 + $0x28] sm:$0xff]
    %v5655 = vld [vmem:[#allocation2 + $0x30] sm:$0xff]
    %v5656 = vld [vmem:[#allocation2 + $0x38] sm:$0xff]
    %v5657 = vld [vmem:[#allocation2 + $0x40] sm:$0xff]
    %v5658 = vld [vmem:[#allocation2 + $0x48] sm:$0xff]
    %v5659 = vld [vmem:[#allocation2 + $0x50] sm:$0xff]
    %v5660 = vld [vmem:[#allocation2 + $0x58] sm:$0xff]
    %v5661 = vld [vmem:[#allocation2 + $0x60] sm:$0xff]
    %v5662 = vld [vmem:[#allocation2 + $0x68] sm:$0xff]
    %v5663 = vld [vmem:[#allocation2 + $0x70] sm:$0xff]
    %v5664 = vld [vmem:[#allocation2 + $0x78] sm:$0xff]
    %v5665 = vld [vmem:[#allocation2 + $0x80] sm:$0xff]
    %v5666 = vld [vmem:[#allocation2 + $0x88] sm:$0xff]
    %v5667 = vld [vmem:[#allocation2 + $0x90] sm:$0xff]
    %v5668 = vld [vmem:[#allocation2 + $0x98] sm:$0xff]
    %v5669 = vld [vmem:[#allocation2 + $0xa0] sm:$0xff]
    %v5670 = vld [vmem:[#allocation2 + $0xa8] sm:$0xff]
    %v5671 = vld [vmem:[#allocation2 + $0xb0] sm:$0xff]
    %v5672 = vld [vmem:[#allocation2 + $0xb8] sm:$0xff]
    %s5673 = scalar_lea.vmem %s2, 56
    %v5674 = vld [vmem:[%s5673] sm:$0xf]
    %v5676 = vsel %vm269, %v5637, 0
    %v5679 = vsel %vm269, %v5638, 0
    %v5682 = vsel %vm269, %v5639, 0
    %v5685 = vsel %vm269, %v5640, 0
    %v5688 = vsel %vm269, %v5641, 0
    %v5691 = vsel %vm269, %v5642, 0
    %v5694 = vsel %vm269, %v5643, 0
    %v5697 = vsel %vm269, %v5644, 0
    %v5700 = vsel %vm269, %v5645, 0
    %v5703 = vsel %vm269, %v5646, 0
    %v5706 = vsel %vm269, %v5647, 0
    %v5709 = vsel %vm269, %v5648, 0
    %v5712 = vsel %vm306, %v5674, 0
    %5714 = vmatpush.bf16.msra.mxu0 0
    %5715 = vmatpush.bf16.msra.mxu0 0
    %5716 = vmatpush.bf16.msra.mxu0 0
    %5717 = vmatpush.bf16.msra.mxu0 0
    %5718 = vmatpush.bf16.msra.mxu0 0
    %5719 = vmatpush.bf16.msra.mxu0 0
    %5720 = vmatpush.bf16.msra.mxu0 0
    %5721 = vmatpush.bf16.msra.mxu0 %v5712
    %5722 = vmatmul.bf16.gmra.mxu0 %v5676
    %v5723 = vpop.f32.mrf.mxu0
    %v5724 = vadd.f32 0.0, %v5723
    %v5725 = vpop.f32.mrf.mxu0
    %v5726 = vadd.f32 0.0, %v5725
    %5727 = vmatmul.bf16.gmra.mxu0 %v5679
    %v5728 = vpop.f32.mrf.mxu0
    %v5729 = vadd.f32 0.0, %v5728
    %v5730 = vpop.f32.mrf.mxu0
    %v5731 = vadd.f32 0.0, %v5730
    %5732 = vmatmul.bf16.gmra.mxu0 %v5682
    %v5733 = vpop.f32.mrf.mxu0
    %v5734 = vadd.f32 0.0, %v5733
    %v5735 = vpop.f32.mrf.mxu0
    %v5736 = vadd.f32 0.0, %v5735
    %5737 = vmatmul.bf16.gmra.mxu0 %v5685
    %v5738 = vpop.f32.mrf.mxu0
    %v5739 = vadd.f32 0.0, %v5738
    %v5740 = vpop.f32.mrf.mxu0
    %v5741 = vadd.f32 0.0, %v5740
    %5742 = vmatmul.bf16.gmra.mxu0 %v5688
    %v5743 = vpop.f32.mrf.mxu0
    %v5744 = vadd.f32 0.0, %v5743
    %v5745 = vpop.f32.mrf.mxu0
    %v5746 = vadd.f32 0.0, %v5745
    %5747 = vmatmul.bf16.gmra.mxu0 %v5691
    %v5748 = vpop.f32.mrf.mxu0
    %v5749 = vadd.f32 0.0, %v5748
    %v5750 = vpop.f32.mrf.mxu0
    %v5751 = vadd.f32 0.0, %v5750
    %5752 = vmatmul.bf16.gmra.mxu0 %v5694
    %v5753 = vpop.f32.mrf.mxu0
    %v5754 = vadd.f32 0.0, %v5753
    %v5755 = vpop.f32.mrf.mxu0
    %v5756 = vadd.f32 0.0, %v5755
    %5757 = vmatmul.bf16.gmra.mxu0 %v5697
    %v5758 = vpop.f32.mrf.mxu0
    %v5759 = vadd.f32 0.0, %v5758
    %v5760 = vpop.f32.mrf.mxu0
    %v5761 = vadd.f32 0.0, %v5760
    %5762 = vmatmul.bf16.gmra.mxu0 %v5700
    %v5763 = vpop.f32.mrf.mxu0
    %v5764 = vadd.f32 0.0, %v5763
    %v5765 = vpop.f32.mrf.mxu0
    %v5766 = vadd.f32 0.0, %v5765
    %5767 = vmatmul.bf16.gmra.mxu0 %v5703
    %v5768 = vpop.f32.mrf.mxu0
    %v5769 = vadd.f32 0.0, %v5768
    %v5770 = vpop.f32.mrf.mxu0
    %v5771 = vadd.f32 0.0, %v5770
    %5772 = vmatmul.bf16.gmra.mxu0 %v5706
    %v5773 = vpop.f32.mrf.mxu0
    %v5774 = vadd.f32 0.0, %v5773
    %v5775 = vpop.f32.mrf.mxu0
    %v5776 = vadd.f32 0.0, %v5775
    %5777 = vmatmul.bf16.gmra.mxu0 %v5709
    %v5778 = vpop.f32.mrf.mxu0
    %v5779 = vadd.f32 0.0, %v5778
    %v5780 = vpop.f32.mrf.mxu0
    %v5781 = vadd.f32 0.0, %v5780
    %5782 = vdwg.mxu0
    %v5783 = vadd.f32 %v5649, %v5724
    %v5784 = vadd.f32 %v5650, %v5726
    %v5785 = vadd.f32 %v5651, %v5729
    %v5786 = vadd.f32 %v5652, %v5731
    %v5787 = vadd.f32 %v5653, %v5734
    %v5788 = vadd.f32 %v5654, %v5736
    %v5789 = vadd.f32 %v5655, %v5739
    %v5790 = vadd.f32 %v5656, %v5741
    %v5791 = vadd.f32 %v5657, %v5744
    %v5792 = vadd.f32 %v5658, %v5746
    %v5793 = vadd.f32 %v5659, %v5749
    %v5794 = vadd.f32 %v5660, %v5751
    %v5795 = vadd.f32 %v5661, %v5754
    %v5796 = vadd.f32 %v5662, %v5756
    %v5797 = vadd.f32 %v5663, %v5759
    %v5798 = vadd.f32 %v5664, %v5761
    %v5799 = vadd.f32 %v5665, %v5764
    %v5800 = vadd.f32 %v5666, %v5766
    %v5801 = vadd.f32 %v5667, %v5769
    %v5802 = vadd.f32 %v5668, %v5771
    %v5803 = vadd.f32 %v5669, %v5774
    %v5804 = vadd.f32 %v5670, %v5776
    %v5805 = vadd.f32 %v5671, %v5779
    %v5806 = vadd.f32 %v5672, %v5781
    %5807 = vst [vmem:[#allocation2] sm:$0xff] %v5783
    %5808 = vst [vmem:[#allocation2 + $0x8] sm:$0xff] %v5784
    %5809 = vst [vmem:[#allocation2 + $0x10] sm:$0xff] %v5785
    %5810 = vst [vmem:[#allocation2 + $0x18] sm:$0xff] %v5786
    %5811 = vst [vmem:[#allocation2 + $0x20] sm:$0xff] %v5787
    %5812 = vst [vmem:[#allocation2 + $0x28] sm:$0xff] %v5788
    %5813 = vst [vmem:[#allocation2 + $0x30] sm:$0xff] %v5789
    %5814 = vst [vmem:[#allocation2 + $0x38] sm:$0xff] %v5790
    %5815 = vst [vmem:[#allocation2 + $0x40] sm:$0xff] %v5791
    %5816 = vst [vmem:[#allocation2 + $0x48] sm:$0xff] %v5792
    %5817 = vst [vmem:[#allocation2 + $0x50] sm:$0xff] %v5793
    %5818 = vst [vmem:[#allocation2 + $0x58] sm:$0xff] %v5794
    %5819 = vst [vmem:[#allocation2 + $0x60] sm:$0xff] %v5795
    %5820 = vst [vmem:[#allocation2 + $0x68] sm:$0xff] %v5796
    %5821 = vst [vmem:[#allocation2 + $0x70] sm:$0xff] %v5797
    %5822 = vst [vmem:[#allocation2 + $0x78] sm:$0xff] %v5798
    %5823 = vst [vmem:[#allocation2 + $0x80] sm:$0xff] %v5799
    %5824 = vst [vmem:[#allocation2 + $0x88] sm:$0xff] %v5800
    %5825 = vst [vmem:[#allocation2 + $0x90] sm:$0xff] %v5801
    %5826 = vst [vmem:[#allocation2 + $0x98] sm:$0xff] %v5802
    %5827 = vst [vmem:[#allocation2 + $0xa0] sm:$0xff] %v5803
    %5828 = vst [vmem:[#allocation2 + $0xa8] sm:$0xff] %v5804
    %5829 = vst [vmem:[#allocation2 + $0xb0] sm:$0xff] %v5805
    %5830 = vst [vmem:[#allocation2 + $0xb8] sm:$0xff] %v5806
    %v5831 = vld [vmem:[%s1] sm:$0xff]
    %v5832 = vld [vmem:[%s1 + $0x8] sm:$0xff]
    %v5833 = vld [vmem:[%s1 + $0x10] sm:$0xff]
    %v5834 = vld [vmem:[%s1 + $0x18] sm:$0xff]
    %v5835 = vld [vmem:[%s1 + $0x20] sm:$0xff]
    %v5836 = vld [vmem:[%s1 + $0x28] sm:$0xff]
    %v5837 = vld [vmem:[%s1 + $0x30] sm:$0xff]
    %v5838 = vld [vmem:[%s1 + $0x38] sm:$0xff]
    %v5839 = vld [vmem:[%s1 + $0x40] sm:$0xff]
    %v5840 = vld [vmem:[%s1 + $0x48] sm:$0xff]
    %v5841 = vld [vmem:[%s1 + $0x50] sm:$0xff]
    %v5842 = vld [vmem:[%s1 + $0x58] sm:$0xff]
    %v5843 = vld [vmem:[%s1 + $0x60] sm:$0xff]
    %v5844 = vld [vmem:[%s1 + $0x68] sm:$0xff]
    %v5845 = vld [vmem:[%s1 + $0x70] sm:$0xff]
    %v5846 = vld [vmem:[%s1 + $0x78] sm:$0xff]
    %v5847 = vld [vmem:[%s1 + $0x80] sm:$0xff]
    %v5848 = vld [vmem:[%s1 + $0x88] sm:$0xff]
    %v5849 = vld [vmem:[%s1 + $0x90] sm:$0xff]
    %v5850 = vld [vmem:[%s1 + $0x98] sm:$0xff]
    %v5851 = vld [vmem:[%s1 + $0xa0] sm:$0xff]
    %v5852 = vld [vmem:[%s1 + $0xa8] sm:$0xff]
    %v5853 = vld [vmem:[%s1 + $0xb0] sm:$0xff]
    %v5854 = vld [vmem:[%s1 + $0xb8] sm:$0xff]
    %v5855 = vld [vmem:[%s0] sm:$0xff]
    %v5856 = vld [vmem:[%s0 + $0x8] sm:$0xff]
    %v5857 = vld [vmem:[%s0 + $0x10] sm:$0xff]
    %v5858 = vld [vmem:[%s0 + $0x18] sm:$0xff]
    %v5859 = vld [vmem:[%s0 + $0x20] sm:$0xff]
    %v5860 = vld [vmem:[%s0 + $0x28] sm:$0xff]
    %v5861 = vld [vmem:[%s0 + $0x30] sm:$0xff]
    %v5862 = vld [vmem:[%s0 + $0x38] sm:$0xff]
    %v5863 = vld [vmem:[%s0 + $0x40] sm:$0xff]
    %v5864 = vld [vmem:[%s0 + $0x48] sm:$0xff]
    %v5865 = vld [vmem:[%s0 + $0x50] sm:$0xff]
    %v5866 = vld [vmem:[%s0 + $0x58] sm:$0xff]
    %v5867 = vld [vmem:[%s0 + $0x60] sm:$0xff]
    %v5868 = vld [vmem:[%s0 + $0x68] sm:$0xff]
    %v5869 = vld [vmem:[%s0 + $0x70] sm:$0xff]
    %v5870 = vld [vmem:[%s0 + $0x78] sm:$0xff]
    %v5871 = vld [vmem:[%s0 + $0x80] sm:$0xff]
    %v5872 = vld [vmem:[%s0 + $0x88] sm:$0xff]
    %v5873 = vld [vmem:[%s0 + $0x90] sm:$0xff]
    %v5874 = vld [vmem:[%s0 + $0x98] sm:$0xff]
    %v5875 = vld [vmem:[%s0 + $0xa0] sm:$0xff]
    %v5876 = vld [vmem:[%s0 + $0xa8] sm:$0xff]
    %v5877 = vld [vmem:[%s0 + $0xb0] sm:$0xff]
    %v5878 = vld [vmem:[%s0 + $0xb8] sm:$0xff]
    %5880 = vset.pattern.permute.xlu0 15
    %5881 = vperm.xlu0 %5880, %v5855
    %v5882 = vpop.permute.xlu0 %5881
    %5885 = vset.pattern.permute.xlu0 15
    %5886 = vperm.xlu0 %5885, %v5856
    %v5887 = vpop.permute.xlu0 %5886
    %5890 = vset.pattern.permute.xlu0 15
    %5891 = vperm.xlu0 %5890, %v5857
    %v5892 = vpop.permute.xlu0 %5891
    %5895 = vset.pattern.permute.xlu0 15
    %5896 = vperm.xlu0 %5895, %v5858
    %v5897 = vpop.permute.xlu0 %5896
    %5900 = vset.pattern.permute.xlu0 15
    %5901 = vperm.xlu0 %5900, %v5859
    %v5902 = vpop.permute.xlu0 %5901
    %5905 = vset.pattern.permute.xlu0 15
    %5906 = vperm.xlu0 %5905, %v5860
    %v5907 = vpop.permute.xlu0 %5906
    %5910 = vset.pattern.permute.xlu0 15
    %5911 = vperm.xlu0 %5910, %v5861
    %v5912 = vpop.permute.xlu0 %5911
    %5915 = vset.pattern.permute.xlu0 15
    %5916 = vperm.xlu0 %5915, %v5862
    %v5917 = vpop.permute.xlu0 %5916
    %5920 = vset.pattern.permute.xlu0 15
    %5921 = vperm.xlu0 %5920, %v5863
    %v5922 = vpop.permute.xlu0 %5921
    %5925 = vset.pattern.permute.xlu0 15
    %5926 = vperm.xlu0 %5925, %v5864
    %v5927 = vpop.permute.xlu0 %5926
    %5930 = vset.pattern.permute.xlu0 15
    %5931 = vperm.xlu0 %5930, %v5865
    %v5932 = vpop.permute.xlu0 %5931
    %5935 = vset.pattern.permute.xlu0 15
    %5936 = vperm.xlu0 %5935, %v5866
    %v5937 = vpop.permute.xlu0 %5936
    %5940 = vset.pattern.permute.xlu0 15
    %5941 = vperm.xlu0 %5940, %v5867
    %v5942 = vpop.permute.xlu0 %5941
    %5945 = vset.pattern.permute.xlu0 15
    %5946 = vperm.xlu0 %5945, %v5868
    %v5947 = vpop.permute.xlu0 %5946
    %5950 = vset.pattern.permute.xlu0 15
    %5951 = vperm.xlu0 %5950, %v5869
    %v5952 = vpop.permute.xlu0 %5951
    %5955 = vset.pattern.permute.xlu0 15
    %5956 = vperm.xlu0 %5955, %v5870
    %v5957 = vpop.permute.xlu0 %5956
    %5960 = vset.pattern.permute.xlu0 15
    %5961 = vperm.xlu0 %5960, %v5871
    %v5962 = vpop.permute.xlu0 %5961
    %5965 = vset.pattern.permute.xlu0 15
    %5966 = vperm.xlu0 %5965, %v5872
    %v5967 = vpop.permute.xlu0 %5966
    %5970 = vset.pattern.permute.xlu0 15
    %5971 = vperm.xlu0 %5970, %v5873
    %v5972 = vpop.permute.xlu0 %5971
    %5975 = vset.pattern.permute.xlu0 15
    %5976 = vperm.xlu0 %5975, %v5874
    %v5977 = vpop.permute.xlu0 %5976
    %5980 = vset.pattern.permute.xlu0 15
    %5981 = vperm.xlu0 %5980, %v5875
    %v5982 = vpop.permute.xlu0 %5981
    %5985 = vset.pattern.permute.xlu0 15
    %5986 = vperm.xlu0 %5985, %v5876
    %v5987 = vpop.permute.xlu0 %5986
    %5990 = vset.pattern.permute.xlu0 15
    %5991 = vperm.xlu0 %5990, %v5877
    %v5992 = vpop.permute.xlu0 %5991
    %5995 = vset.pattern.permute.xlu0 15
    %5996 = vperm.xlu0 %5995, %v5878
    %v5997 = vpop.permute.xlu0 %5996
    %v5999 = vmul.f32 %v5831, %v5882
    %v6000 = vmul.f32 %v5832, %v5887
    %v6001 = vmul.f32 %v5833, %v5892
    %v6002 = vmul.f32 %v5834, %v5897
    %v6003 = vmul.f32 %v5835, %v5902
    %v6004 = vmul.f32 %v5836, %v5907
    %v6005 = vmul.f32 %v5837, %v5912
    %v6006 = vmul.f32 %v5838, %v5917
    %v6007 = vmul.f32 %v5839, %v5922
    %v6008 = vmul.f32 %v5840, %v5927
    %v6009 = vmul.f32 %v5841, %v5932
    %v6010 = vmul.f32 %v5842, %v5937
    %v6011 = vmul.f32 %v5843, %v5942
    %v6012 = vmul.f32 %v5844, %v5947
    %v6013 = vmul.f32 %v5845, %v5952
    %v6014 = vmul.f32 %v5846, %v5957
    %v6015 = vmul.f32 %v5847, %v5962
    %v6016 = vmul.f32 %v5848, %v5967
    %v6017 = vmul.f32 %v5849, %v5972
    %v6018 = vmul.f32 %v5850, %v5977
    %v6019 = vmul.f32 %v5851, %v5982
    %v6020 = vmul.f32 %v5852, %v5987
    %v6021 = vmul.f32 %v5853, %v5992
    %v6022 = vmul.f32 %v5854, %v5997
    %v6023 = vpack.c.bf16 %v6000, %v5999
    %v6024 = vpack.c.bf16 %v6002, %v6001
    %v6025 = vpack.c.bf16 %v6004, %v6003
    %v6026 = vpack.c.bf16 %v6006, %v6005
    %v6027 = vpack.c.bf16 %v6008, %v6007
    %v6028 = vpack.c.bf16 %v6010, %v6009
    %v6029 = vpack.c.bf16 %v6012, %v6011
    %v6030 = vpack.c.bf16 %v6014, %v6013
    %v6031 = vpack.c.bf16 %v6016, %v6015
    %v6032 = vpack.c.bf16 %v6018, %v6017
    %v6033 = vpack.c.bf16 %v6020, %v6019
    %v6034 = vpack.c.bf16 %v6022, %v6021
    %v6035 = vld [vmem:[#allocation2] sm:$0xff]
    %v6036 = vld [vmem:[#allocation2 + $0x8] sm:$0xff]
    %v6037 = vld [vmem:[#allocation2 + $0x10] sm:$0xff]
    %v6038 = vld [vmem:[#allocation2 + $0x18] sm:$0xff]
    %v6039 = vld [vmem:[#allocation2 + $0x20] sm:$0xff]
    %v6040 = vld [vmem:[#allocation2 + $0x28] sm:$0xff]
    %v6041 = vld [vmem:[#allocation2 + $0x30] sm:$0xff]
    %v6042 = vld [vmem:[#allocation2 + $0x38] sm:$0xff]
    %v6043 = vld [vmem:[#allocation2 + $0x40] sm:$0xff]
    %v6044 = vld [vmem:[#allocation2 + $0x48] sm:$0xff]
    %v6045 = vld [vmem:[#allocation2 + $0x50] sm:$0xff]
    %v6046 = vld [vmem:[#allocation2 + $0x58] sm:$0xff]
    %v6047 = vld [vmem:[#allocation2 + $0x60] sm:$0xff]
    %v6048 = vld [vmem:[#allocation2 + $0x68] sm:$0xff]
    %v6049 = vld [vmem:[#allocation2 + $0x70] sm:$0xff]
    %v6050 = vld [vmem:[#allocation2 + $0x78] sm:$0xff]
    %v6051 = vld [vmem:[#allocation2 + $0x80] sm:$0xff]
    %v6052 = vld [vmem:[#allocation2 + $0x88] sm:$0xff]
    %v6053 = vld [vmem:[#allocation2 + $0x90] sm:$0xff]
    %v6054 = vld [vmem:[#allocation2 + $0x98] sm:$0xff]
    %v6055 = vld [vmem:[#allocation2 + $0xa0] sm:$0xff]
    %v6056 = vld [vmem:[#allocation2 + $0xa8] sm:$0xff]
    %v6057 = vld [vmem:[#allocation2 + $0xb0] sm:$0xff]
    %v6058 = vld [vmem:[#allocation2 + $0xb8] sm:$0xff]
    %s6059 = scalar_lea.vmem %s2, 60
    %v6060 = vld [vmem:[%s6059] sm:$0xf]
    %v6062 = vsel %vm269, %v6023, 0
    %v6065 = vsel %vm269, %v6024, 0
    %v6068 = vsel %vm269, %v6025, 0
    %v6071 = vsel %vm269, %v6026, 0
    %v6074 = vsel %vm269, %v6027, 0
    %v6077 = vsel %vm269, %v6028, 0
    %v6080 = vsel %vm269, %v6029, 0
    %v6083 = vsel %vm269, %v6030, 0
    %v6086 = vsel %vm269, %v6031, 0
    %v6089 = vsel %vm269, %v6032, 0
    %v6092 = vsel %vm269, %v6033, 0
    %v6095 = vsel %vm269, %v6034, 0
    %v6098 = vsel %vm306, %v6060, 0
    %6100 = vmatpush.bf16.msra.mxu0 0
    %6101 = vmatpush.bf16.msra.mxu0 0
    %6102 = vmatpush.bf16.msra.mxu0 0
    %6103 = vmatpush.bf16.msra.mxu0 0
    %6104 = vmatpush.bf16.msra.mxu0 0
    %6105 = vmatpush.bf16.msra.mxu0 0
    %6106 = vmatpush.bf16.msra.mxu0 0
    %6107 = vmatpush.bf16.msra.mxu0 %v6098
    %6108 = vmatmul.bf16.gmra.mxu0 %v6062
    %v6109 = vpop.f32.mrf.mxu0
    %v6110 = vadd.f32 0.0, %v6109
    %v6111 = vpop.f32.mrf.mxu0
    %v6112 = vadd.f32 0.0, %v6111
    %6113 = vmatmul.bf16.gmra.mxu0 %v6065
    %v6114 = vpop.f32.mrf.mxu0
    %v6115 = vadd.f32 0.0, %v6114
    %v6116 = vpop.f32.mrf.mxu0
    %v6117 = vadd.f32 0.0, %v6116
    %6118 = vmatmul.bf16.gmra.mxu0 %v6068
    %v6119 = vpop.f32.mrf.mxu0
    %v6120 = vadd.f32 0.0, %v6119
    %v6121 = vpop.f32.mrf.mxu0
    %v6122 = vadd.f32 0.0, %v6121
    %6123 = vmatmul.bf16.gmra.mxu0 %v6071
    %v6124 = vpop.f32.mrf.mxu0
    %v6125 = vadd.f32 0.0, %v6124
    %v6126 = vpop.f32.mrf.mxu0
    %v6127 = vadd.f32 0.0, %v6126
    %6128 = vmatmul.bf16.gmra.mxu0 %v6074
    %v6129 = vpop.f32.mrf.mxu0
    %v6130 = vadd.f32 0.0, %v6129
    %v6131 = vpop.f32.mrf.mxu0
    %v6132 = vadd.f32 0.0, %v6131
    %6133 = vmatmul.bf16.gmra.mxu0 %v6077
    %v6134 = vpop.f32.mrf.mxu0
    %v6135 = vadd.f32 0.0, %v6134
    %v6136 = vpop.f32.mrf.mxu0
    %v6137 = vadd.f32 0.0, %v6136
    %6138 = vmatmul.bf16.gmra.mxu0 %v6080
    %v6139 = vpop.f32.mrf.mxu0
    %v6140 = vadd.f32 0.0, %v6139
    %v6141 = vpop.f32.mrf.mxu0
    %v6142 = vadd.f32 0.0, %v6141
    %6143 = vmatmul.bf16.gmra.mxu0 %v6083
    %v6144 = vpop.f32.mrf.mxu0
    %v6145 = vadd.f32 0.0, %v6144
    %v6146 = vpop.f32.mrf.mxu0
    %v6147 = vadd.f32 0.0, %v6146
    %6148 = vmatmul.bf16.gmra.mxu0 %v6086
    %v6149 = vpop.f32.mrf.mxu0
    %v6150 = vadd.f32 0.0, %v6149
    %v6151 = vpop.f32.mrf.mxu0
    %v6152 = vadd.f32 0.0, %v6151
    %6153 = vmatmul.bf16.gmra.mxu0 %v6089
    %v6154 = vpop.f32.mrf.mxu0
    %v6155 = vadd.f32 0.0, %v6154
    %v6156 = vpop.f32.mrf.mxu0
    %v6157 = vadd.f32 0.0, %v6156
    %6158 = vmatmul.bf16.gmra.mxu0 %v6092
    %v6159 = vpop.f32.mrf.mxu0
    %v6160 = vadd.f32 0.0, %v6159
    %v6161 = vpop.f32.mrf.mxu0
    %v6162 = vadd.f32 0.0, %v6161
    %6163 = vmatmul.bf16.gmra.mxu0 %v6095
    %v6164 = vpop.f32.mrf.mxu0
    %v6165 = vadd.f32 0.0, %v6164
    %v6166 = vpop.f32.mrf.mxu0
    %v6167 = vadd.f32 0.0, %v6166
    %6168 = vdwg.mxu0
    %v6169 = vadd.f32 %v6035, %v6110
    %v6170 = vadd.f32 %v6036, %v6112
    %v6171 = vadd.f32 %v6037, %v6115
    %v6172 = vadd.f32 %v6038, %v6117
    %v6173 = vadd.f32 %v6039, %v6120
    %v6174 = vadd.f32 %v6040, %v6122
    %v6175 = vadd.f32 %v6041, %v6125
    %v6176 = vadd.f32 %v6042, %v6127
    %v6177 = vadd.f32 %v6043, %v6130
    %v6178 = vadd.f32 %v6044, %v6132
    %v6179 = vadd.f32 %v6045, %v6135
    %v6180 = vadd.f32 %v6046, %v6137
    %v6181 = vadd.f32 %v6047, %v6140
    %v6182 = vadd.f32 %v6048, %v6142
    %v6183 = vadd.f32 %v6049, %v6145
    %v6184 = vadd.f32 %v6050, %v6147
    %v6185 = vadd.f32 %v6051, %v6150
    %v6186 = vadd.f32 %v6052, %v6152
    %v6187 = vadd.f32 %v6053, %v6155
    %v6188 = vadd.f32 %v6054, %v6157
    %v6189 = vadd.f32 %v6055, %v6160
    %v6190 = vadd.f32 %v6056, %v6162
    %v6191 = vadd.f32 %v6057, %v6165
    %v6192 = vadd.f32 %v6058, %v6167
    %6193 = vst [vmem:[#allocation2] sm:$0xff] %v6169
    %6194 = vst [vmem:[#allocation2 + $0x8] sm:$0xff] %v6170
    %6195 = vst [vmem:[#allocation2 + $0x10] sm:$0xff] %v6171
    %6196 = vst [vmem:[#allocation2 + $0x18] sm:$0xff] %v6172
    %6197 = vst [vmem:[#allocation2 + $0x20] sm:$0xff] %v6173
    %6198 = vst [vmem:[#allocation2 + $0x28] sm:$0xff] %v6174
    %6199 = vst [vmem:[#allocation2 + $0x30] sm:$0xff] %v6175
    %6200 = vst [vmem:[#allocation2 + $0x38] sm:$0xff] %v6176
    %6201 = vst [vmem:[#allocation2 + $0x40] sm:$0xff] %v6177
    %6202 = vst [vmem:[#allocation2 + $0x48] sm:$0xff] %v6178
    %6203 = vst [vmem:[#allocation2 + $0x50] sm:$0xff] %v6179
    %6204 = vst [vmem:[#allocation2 + $0x58] sm:$0xff] %v6180
    %6205 = vst [vmem:[#allocation2 + $0x60] sm:$0xff] %v6181
    %6206 = vst [vmem:[#allocation2 + $0x68] sm:$0xff] %v6182
    %6207 = vst [vmem:[#allocation2 + $0x70] sm:$0xff] %v6183
    %6208 = vst [vmem:[#allocation2 + $0x78] sm:$0xff] %v6184
    %6209 = vst [vmem:[#allocation2 + $0x80] sm:$0xff] %v6185
    %6210 = vst [vmem:[#allocation2 + $0x88] sm:$0xff] %v6186
    %6211 = vst [vmem:[#allocation2 + $0x90] sm:$0xff] %v6187
    %6212 = vst [vmem:[#allocation2 + $0x98] sm:$0xff] %v6188
    %6213 = vst [vmem:[#allocation2 + $0xa0] sm:$0xff] %v6189
    %6214 = vst [vmem:[#allocation2 + $0xa8] sm:$0xff] %v6190
    %6215 = vst [vmem:[#allocation2 + $0xb0] sm:$0xff] %v6191
    %6216 = vst [vmem:[#allocation2 + $0xb8] sm:$0xff] %v6192
    %v6217 = vld [vmem:[%s1] sm:$0xff]
    %v6218 = vld [vmem:[%s1 + $0x8] sm:$0xff]
    %v6219 = vld [vmem:[%s1 + $0x10] sm:$0xff]
    %v6220 = vld [vmem:[%s1 + $0x18] sm:$0xff]
    %v6221 = vld [vmem:[%s1 + $0x20] sm:$0xff]
    %v6222 = vld [vmem:[%s1 + $0x28] sm:$0xff]
    %v6223 = vld [vmem:[%s1 + $0x30] sm:$0xff]
    %v6224 = vld [vmem:[%s1 + $0x38] sm:$0xff]
    %v6225 = vld [vmem:[%s1 + $0x40] sm:$0xff]
    %v6226 = vld [vmem:[%s1 + $0x48] sm:$0xff]
    %v6227 = vld [vmem:[%s1 + $0x50] sm:$0xff]
    %v6228 = vld [vmem:[%s1 + $0x58] sm:$0xff]
    %v6229 = vld [vmem:[%s1 + $0x60] sm:$0xff]
    %v6230 = vld [vmem:[%s1 + $0x68] sm:$0xff]
    %v6231 = vld [vmem:[%s1 + $0x70] sm:$0xff]
    %v6232 = vld [vmem:[%s1 + $0x78] sm:$0xff]
    %v6233 = vld [vmem:[%s1 + $0x80] sm:$0xff]
    %v6234 = vld [vmem:[%s1 + $0x88] sm:$0xff]
    %v6235 = vld [vmem:[%s1 + $0x90] sm:$0xff]
    %v6236 = vld [vmem:[%s1 + $0x98] sm:$0xff]
    %v6237 = vld [vmem:[%s1 + $0xa0] sm:$0xff]
    %v6238 = vld [vmem:[%s1 + $0xa8] sm:$0xff]
    %v6239 = vld [vmem:[%s1 + $0xb0] sm:$0xff]
    %v6240 = vld [vmem:[%s1 + $0xb8] sm:$0xff]
    %v6241 = vld [vmem:[%s0] sm:$0xff]
    %v6242 = vld [vmem:[%s0 + $0x8] sm:$0xff]
    %v6243 = vld [vmem:[%s0 + $0x10] sm:$0xff]
    %v6244 = vld [vmem:[%s0 + $0x18] sm:$0xff]
    %v6245 = vld [vmem:[%s0 + $0x20] sm:$0xff]
    %v6246 = vld [vmem:[%s0 + $0x28] sm:$0xff]
    %v6247 = vld [vmem:[%s0 + $0x30] sm:$0xff]
    %v6248 = vld [vmem:[%s0 + $0x38] sm:$0xff]
    %v6249 = vld [vmem:[%s0 + $0x40] sm:$0xff]
    %v6250 = vld [vmem:[%s0 + $0x48] sm:$0xff]
    %v6251 = vld [vmem:[%s0 + $0x50] sm:$0xff]
    %v6252 = vld [vmem:[%s0 + $0x58] sm:$0xff]
    %v6253 = vld [vmem:[%s0 + $0x60] sm:$0xff]
    %v6254 = vld [vmem:[%s0 + $0x68] sm:$0xff]
    %v6255 = vld [vmem:[%s0 + $0x70] sm:$0xff]
    %v6256 = vld [vmem:[%s0 + $0x78] sm:$0xff]
    %v6257 = vld [vmem:[%s0 + $0x80] sm:$0xff]
    %v6258 = vld [vmem:[%s0 + $0x88] sm:$0xff]
    %v6259 = vld [vmem:[%s0 + $0x90] sm:$0xff]
    %v6260 = vld [vmem:[%s0 + $0x98] sm:$0xff]
    %v6261 = vld [vmem:[%s0 + $0xa0] sm:$0xff]
    %v6262 = vld [vmem:[%s0 + $0xa8] sm:$0xff]
    %v6263 = vld [vmem:[%s0 + $0xb0] sm:$0xff]
    %v6264 = vld [vmem:[%s0 + $0xb8] sm:$0xff]
    %6266 = vset.pattern.permute.xlu0 16
    %6267 = vperm.xlu0 %6266, %v6241
    %v6268 = vpop.permute.xlu0 %6267
    %6271 = vset.pattern.permute.xlu0 16
    %6272 = vperm.xlu0 %6271, %v6242
    %v6273 = vpop.permute.xlu0 %6272
    %6276 = vset.pattern.permute.xlu0 16
    %6277 = vperm.xlu0 %6276, %v6243
    %v6278 = vpop.permute.xlu0 %6277
    %6281 = vset.pattern.permute.xlu0 16
    %6282 = vperm.xlu0 %6281, %v6244
    %v6283 = vpop.permute.xlu0 %6282
    %6286 = vset.pattern.permute.xlu0 16
    %6287 = vperm.xlu0 %6286, %v6245
    %v6288 = vpop.permute.xlu0 %6287
    %6291 = vset.pattern.permute.xlu0 16
    %6292 = vperm.xlu0 %6291, %v6246
    %v6293 = vpop.permute.xlu0 %6292
    %6296 = vset.pattern.permute.xlu0 16
    %6297 = vperm.xlu0 %6296, %v6247
    %v6298 = vpop.permute.xlu0 %6297
    %6301 = vset.pattern.permute.xlu0 16
    %6302 = vperm.xlu0 %6301, %v6248
    %v6303 = vpop.permute.xlu0 %6302
    %6306 = vset.pattern.permute.xlu0 16
    %6307 = vperm.xlu0 %6306, %v6249
    %v6308 = vpop.permute.xlu0 %6307
    %6311 = vset.pattern.permute.xlu0 16
    %6312 = vperm.xlu0 %6311, %v6250
    %v6313 = vpop.permute.xlu0 %6312
    %6316 = vset.pattern.permute.xlu0 16
    %6317 = vperm.xlu0 %6316, %v6251
    %v6318 = vpop.permute.xlu0 %6317
    %6321 = vset.pattern.permute.xlu0 16
    %6322 = vperm.xlu0 %6321, %v6252
    %v6323 = vpop.permute.xlu0 %6322
    %6326 = vset.pattern.permute.xlu0 16
    %6327 = vperm.xlu0 %6326, %v6253
    %v6328 = vpop.permute.xlu0 %6327
    %6331 = vset.pattern.permute.xlu0 16
    %6332 = vperm.xlu0 %6331, %v6254
    %v6333 = vpop.permute.xlu0 %6332
    %6336 = vset.pattern.permute.xlu0 16
    %6337 = vperm.xlu0 %6336, %v6255
    %v6338 = vpop.permute.xlu0 %6337
    %6341 = vset.pattern.permute.xlu0 16
    %6342 = vperm.xlu0 %6341, %v6256
    %v6343 = vpop.permute.xlu0 %6342
    %6346 = vset.pattern.permute.xlu0 16
    %6347 = vperm.xlu0 %6346, %v6257
    %v6348 = vpop.permute.xlu0 %6347
    %6351 = vset.pattern.permute.xlu0 16
    %6352 = vperm.xlu0 %6351, %v6258
    %v6353 = vpop.permute.xlu0 %6352
    %6356 = vset.pattern.permute.xlu0 16
    %6357 = vperm.xlu0 %6356, %v6259
    %v6358 = vpop.permute.xlu0 %6357
    %6361 = vset.pattern.permute.xlu0 16
    %6362 = vperm.xlu0 %6361, %v6260
    %v6363 = vpop.permute.xlu0 %6362
    %6366 = vset.pattern.permute.xlu0 16
    %6367 = vperm.xlu0 %6366, %v6261
    %v6368 = vpop.permute.xlu0 %6367
    %6371 = vset.pattern.permute.xlu0 16
    %6372 = vperm.xlu0 %6371, %v6262
    %v6373 = vpop.permute.xlu0 %6372
    %6376 = vset.pattern.permute.xlu0 16
    %6377 = vperm.xlu0 %6376, %v6263
    %v6378 = vpop.permute.xlu0 %6377
    %6381 = vset.pattern.permute.xlu0 16
    %6382 = vperm.xlu0 %6381, %v6264
    %v6383 = vpop.permute.xlu0 %6382
    %v6385 = vmul.f32 %v6217, %v6268
    %v6386 = vmul.f32 %v6218, %v6273
    %v6387 = vmul.f32 %v6219, %v6278
    %v6388 = vmul.f32 %v6220, %v6283
    %v6389 = vmul.f32 %v6221, %v6288
    %v6390 = vmul.f32 %v6222, %v6293
    %v6391 = vmul.f32 %v6223, %v6298
    %v6392 = vmul.f32 %v6224, %v6303
    %v6393 = vmul.f32 %v6225, %v6308
    %v6394 = vmul.f32 %v6226, %v6313
    %v6395 = vmul.f32 %v6227, %v6318
    %v6396 = vmul.f32 %v6228, %v6323
    %v6397 = vmul.f32 %v6229, %v6328
    %v6398 = vmul.f32 %v6230, %v6333
    %v6399 = vmul.f32 %v6231, %v6338
    %v6400 = vmul.f32 %v6232, %v6343
    %v6401 = vmul.f32 %v6233, %v6348
    %v6402 = vmul.f32 %v6234, %v6353
    %v6403 = vmul.f32 %v6235, %v6358
    %v6404 = vmul.f32 %v6236, %v6363
    %v6405 = vmul.f32 %v6237, %v6368
    %v6406 = vmul.f32 %v6238, %v6373
    %v6407 = vmul.f32 %v6239, %v6378
    %v6408 = vmul.f32 %v6240, %v6383
    %v6409 = vpack.c.bf16 %v6386, %v6385
    %v6410 = vpack.c.bf16 %v6388, %v6387
    %v6411 = vpack.c.bf16 %v6390, %v6389
    %v6412 = vpack.c.bf16 %v6392, %v6391
    %v6413 = vpack.c.bf16 %v6394, %v6393
    %v6414 = vpack.c.bf16 %v6396, %v6395
    %v6415 = vpack.c.bf16 %v6398, %v6397
    %v6416 = vpack.c.bf16 %v6400, %v6399
    %v6417 = vpack.c.bf16 %v6402, %v6401
    %v6418 = vpack.c.bf16 %v6404, %v6403
    %v6419 = vpack.c.bf16 %v6406, %v6405
    %v6420 = vpack.c.bf16 %v6408, %v6407
    %v6421 = vld [vmem:[#allocation2] sm:$0xff]
    %v6422 = vld [vmem:[#allocation2 + $0x8] sm:$0xff]
    %v6423 = vld [vmem:[#allocation2 + $0x10] sm:$0xff]
    %v6424 = vld [vmem:[#allocation2 + $0x18] sm:$0xff]
    %v6425 = vld [vmem:[#allocation2 + $0x20] sm:$0xff]
    %v6426 = vld [vmem:[#allocation2 + $0x28] sm:$0xff]
    %v6427 = vld [vmem:[#allocation2 + $0x30] sm:$0xff]
    %v6428 = vld [vmem:[#allocation2 + $0x38] sm:$0xff]
    %v6429 = vld [vmem:[#allocation2 + $0x40] sm:$0xff]
    %v6430 = vld [vmem:[#allocation2 + $0x48] sm:$0xff]
    %v6431 = vld [vmem:[#allocation2 + $0x50] sm:$0xff]
    %v6432 = vld [vmem:[#allocation2 + $0x58] sm:$0xff]
    %v6433 = vld [vmem:[#allocation2 + $0x60] sm:$0xff]
    %v6434 = vld [vmem:[#allocation2 + $0x68] sm:$0xff]
    %v6435 = vld [vmem:[#allocation2 + $0x70] sm:$0xff]
    %v6436 = vld [vmem:[#allocation2 + $0x78] sm:$0xff]
    %v6437 = vld [vmem:[#allocation2 + $0x80] sm:$0xff]
    %v6438 = vld [vmem:[#allocation2 + $0x88] sm:$0xff]
    %v6439 = vld [vmem:[#allocation2 + $0x90] sm:$0xff]
    %v6440 = vld [vmem:[#allocation2 + $0x98] sm:$0xff]
    %v6441 = vld [vmem:[#allocation2 + $0xa0] sm:$0xff]
    %v6442 = vld [vmem:[#allocation2 + $0xa8] sm:$0xff]
    %v6443 = vld [vmem:[#allocation2 + $0xb0] sm:$0xff]
    %v6444 = vld [vmem:[#allocation2 + $0xb8] sm:$0xff]
    %s6445 = scalar_lea.vmem %s2, 64
    %v6446 = vld [vmem:[%s6445] sm:$0xf]
    %v6448 = vsel %vm269, %v6409, 0
    %v6451 = vsel %vm269, %v6410, 0
    %v6454 = vsel %vm269, %v6411, 0
    %v6457 = vsel %vm269, %v6412, 0
    %v6460 = vsel %vm269, %v6413, 0
    %v6463 = vsel %vm269, %v6414, 0
    %v6466 = vsel %vm269, %v6415, 0
    %v6469 = vsel %vm269, %v6416, 0
    %v6472 = vsel %vm269, %v6417, 0
    %v6475 = vsel %vm269, %v6418, 0
    %v6478 = vsel %vm269, %v6419, 0
    %v6481 = vsel %vm269, %v6420, 0
    %v6484 = vsel %vm306, %v6446, 0
    %6486 = vmatpush.bf16.msra.mxu0 0
    %6487 = vmatpush.bf16.msra.mxu0 0
    %6488 = vmatpush.bf16.msra.mxu0 0
    %6489 = vmatpush.bf16.msra.mxu0 0
    %6490 = vmatpush.bf16.msra.mxu0 0
    %6491 = vmatpush.bf16.msra.mxu0 0
    %6492 = vmatpush.bf16.msra.mxu0 0
    %6493 = vmatpush.bf16.msra.mxu0 %v6484
    %6494 = vmatmul.bf16.gmra.mxu0 %v6448
    %v6495 = vpop.f32.mrf.mxu0
    %v6496 = vadd.f32 0.0, %v6495
    %v6497 = vpop.f32.mrf.mxu0
    %v6498 = vadd.f32 0.0, %v6497
    %6499 = vmatmul.bf16.gmra.mxu0 %v6451
    %v6500 = vpop.f32.mrf.mxu0
    %v6501 = vadd.f32 0.0, %v6500
    %v6502 = vpop.f32.mrf.mxu0
    %v6503 = vadd.f32 0.0, %v6502
    %6504 = vmatmul.bf16.gmra.mxu0 %v6454
    %v6505 = vpop.f32.mrf.mxu0
    %v6506 = vadd.f32 0.0, %v6505
    %v6507 = vpop.f32.mrf.mxu0
    %v6508 = vadd.f32 0.0, %v6507
    %6509 = vmatmul.bf16.gmra.mxu0 %v6457
    %v6510 = vpop.f32.mrf.mxu0
    %v6511 = vadd.f32 0.0, %v6510
    %v6512 = vpop.f32.mrf.mxu0
    %v6513 = vadd.f32 0.0, %v6512
    %6514 = vmatmul.bf16.gmra.mxu0 %v6460
    %v6515 = vpop.f32.mrf.mxu0
    %v6516 = vadd.f32 0.0, %v6515
    %v6517 = vpop.f32.mrf.mxu0
    %v6518 = vadd.f32 0.0, %v6517
    %6519 = vmatmul.bf16.gmra.mxu0 %v6463
    %v6520 = vpop.f32.mrf.mxu0
    %v6521 = vadd.f32 0.0, %v6520
    %v6522 = vpop.f32.mrf.mxu0
    %v6523 = vadd.f32 0.0, %v6522
    %6524 = vmatmul.bf16.gmra.mxu0 %v6466
    %v6525 = vpop.f32.mrf.mxu0
    %v6526 = vadd.f32 0.0, %v6525
    %v6527 = vpop.f32.mrf.mxu0
    %v6528 = vadd.f32 0.0, %v6527
    %6529 = vmatmul.bf16.gmra.mxu0 %v6469
    %v6530 = vpop.f32.mrf.mxu0
    %v6531 = vadd.f32 0.0, %v6530
    %v6532 = vpop.f32.mrf.mxu0
    %v6533 = vadd.f32 0.0, %v6532
    %6534 = vmatmul.bf16.gmra.mxu0 %v6472
    %v6535 = vpop.f32.mrf.mxu0
    %v6536 = vadd.f32 0.0, %v6535
    %v6537 = vpop.f32.mrf.mxu0
    %v6538 = vadd.f32 0.0, %v6537
    %6539 = vmatmul.bf16.gmra.mxu0 %v6475
    %v6540 = vpop.f32.mrf.mxu0
    %v6541 = vadd.f32 0.0, %v6540
    %v6542 = vpop.f32.mrf.mxu0
    %v6543 = vadd.f32 0.0, %v6542
    %6544 = vmatmul.bf16.gmra.mxu0 %v6478
    %v6545 = vpop.f32.mrf.mxu0
    %v6546 = vadd.f32 0.0, %v6545
    %v6547 = vpop.f32.mrf.mxu0
    %v6548 = vadd.f32 0.0, %v6547
    %6549 = vmatmul.bf16.gmra.mxu0 %v6481
    %v6550 = vpop.f32.mrf.mxu0
    %v6551 = vadd.f32 0.0, %v6550
    %v6552 = vpop.f32.mrf.mxu0
    %v6553 = vadd.f32 0.0, %v6552
    %6554 = vdwg.mxu0
    %v6555 = vadd.f32 %v6421, %v6496
    %v6556 = vadd.f32 %v6422, %v6498
    %v6557 = vadd.f32 %v6423, %v6501
    %v6558 = vadd.f32 %v6424, %v6503
    %v6559 = vadd.f32 %v6425, %v6506
    %v6560 = vadd.f32 %v6426, %v6508
    %v6561 = vadd.f32 %v6427, %v6511
    %v6562 = vadd.f32 %v6428, %v6513
    %v6563 = vadd.f32 %v6429, %v6516
    %v6564 = vadd.f32 %v6430, %v6518
    %v6565 = vadd.f32 %v6431, %v6521
    %v6566 = vadd.f32 %v6432, %v6523
    %v6567 = vadd.f32 %v6433, %v6526
    %v6568 = vadd.f32 %v6434, %v6528
    %v6569 = vadd.f32 %v6435, %v6531
    %v6570 = vadd.f32 %v6436, %v6533
    %v6571 = vadd.f32 %v6437, %v6536
    %v6572 = vadd.f32 %v6438, %v6538
    %v6573 = vadd.f32 %v6439, %v6541
    %v6574 = vadd.f32 %v6440, %v6543
    %v6575 = vadd.f32 %v6441, %v6546
    %v6576 = vadd.f32 %v6442, %v6548
    %v6577 = vadd.f32 %v6443, %v6551
    %v6578 = vadd.f32 %v6444, %v6553
    %6579 = vst [vmem:[#allocation2] sm:$0xff] %v6555
    %6580 = vst [vmem:[#allocation2 + $0x8] sm:$0xff] %v6556
    %6581 = vst [vmem:[#allocation2 + $0x10] sm:$0xff] %v6557
    %6582 = vst [vmem:[#allocation2 + $0x18] sm:$0xff] %v6558
    %6583 = vst [vmem:[#allocation2 + $0x20] sm:$0xff] %v6559
    %6584 = vst [vmem:[#allocation2 + $0x28] sm:$0xff] %v6560
    %6585 = vst [vmem:[#allocation2 + $0x30] sm:$0xff] %v6561
    %6586 = vst [vmem:[#allocation2 + $0x38] sm:$0xff] %v6562
    %6587 = vst [vmem:[#allocation2 + $0x40] sm:$0xff] %v6563
    %6588 = vst [vmem:[#allocation2 + $0x48] sm:$0xff] %v6564
    %6589 = vst [vmem:[#allocation2 + $0x50] sm:$0xff] %v6565
    %6590 = vst [vmem:[#allocation2 + $0x58] sm:$0xff] %v6566
    %6591 = vst [vmem:[#allocation2 + $0x60] sm:$0xff] %v6567
    %6592 = vst [vmem:[#allocation2 + $0x68] sm:$0xff] %v6568
    %6593 = vst [vmem:[#allocation2 + $0x70] sm:$0xff] %v6569
    %6594 = vst [vmem:[#allocation2 + $0x78] sm:$0xff] %v6570
    %6595 = vst [vmem:[#allocation2 + $0x80] sm:$0xff] %v6571
    %6596 = vst [vmem:[#allocation2 + $0x88] sm:$0xff] %v6572
    %6597 = vst [vmem:[#allocation2 + $0x90] sm:$0xff] %v6573
    %6598 = vst [vmem:[#allocation2 + $0x98] sm:$0xff] %v6574
    %6599 = vst [vmem:[#allocation2 + $0xa0] sm:$0xff] %v6575
    %6600 = vst [vmem:[#allocation2 + $0xa8] sm:$0xff] %v6576
    %6601 = vst [vmem:[#allocation2 + $0xb0] sm:$0xff] %v6577
    %6602 = vst [vmem:[#allocation2 + $0xb8] sm:$0xff] %v6578
    %v6603 = vld [vmem:[%s1] sm:$0xff]
    %v6604 = vld [vmem:[%s1 + $0x8] sm:$0xff]
    %v6605 = vld [vmem:[%s1 + $0x10] sm:$0xff]
    %v6606 = vld [vmem:[%s1 + $0x18] sm:$0xff]
    %v6607 = vld [vmem:[%s1 + $0x20] sm:$0xff]
    %v6608 = vld [vmem:[%s1 + $0x28] sm:$0xff]
    %v6609 = vld [vmem:[%s1 + $0x30] sm:$0xff]
    %v6610 = vld [vmem:[%s1 + $0x38] sm:$0xff]
    %v6611 = vld [vmem:[%s1 + $0x40] sm:$0xff]
    %v6612 = vld [vmem:[%s1 + $0x48] sm:$0xff]
    %v6613 = vld [vmem:[%s1 + $0x50] sm:$0xff]
    %v6614 = vld [vmem:[%s1 + $0x58] sm:$0xff]
    %v6615 = vld [vmem:[%s1 + $0x60] sm:$0xff]
    %v6616 = vld [vmem:[%s1 + $0x68] sm:$0xff]
    %v6617 = vld [vmem:[%s1 + $0x70] sm:$0xff]
    %v6618 = vld [vmem:[%s1 + $0x78] sm:$0xff]
    %v6619 = vld [vmem:[%s1 + $0x80] sm:$0xff]
    %v6620 = vld [vmem:[%s1 + $0x88] sm:$0xff]
    %v6621 = vld [vmem:[%s1 + $0x90] sm:$0xff]
    %v6622 = vld [vmem:[%s1 + $0x98] sm:$0xff]
    %v6623 = vld [vmem:[%s1 + $0xa0] sm:$0xff]
    %v6624 = vld [vmem:[%s1 + $0xa8] sm:$0xff]
    %v6625 = vld [vmem:[%s1 + $0xb0] sm:$0xff]
    %v6626 = vld [vmem:[%s1 + $0xb8] sm:$0xff]
    %v6627 = vld [vmem:[%s0] sm:$0xff]
    %v6628 = vld [vmem:[%s0 + $0x8] sm:$0xff]
    %v6629 = vld [vmem:[%s0 + $0x10] sm:$0xff]
    %v6630 = vld [vmem:[%s0 + $0x18] sm:$0xff]
    %v6631 = vld [vmem:[%s0 + $0x20] sm:$0xff]
    %v6632 = vld [vmem:[%s0 + $0x28] sm:$0xff]
    %v6633 = vld [vmem:[%s0 + $0x30] sm:$0xff]
    %v6634 = vld [vmem:[%s0 + $0x38] sm:$0xff]
    %v6635 = vld [vmem:[%s0 + $0x40] sm:$0xff]
    %v6636 = vld [vmem:[%s0 + $0x48] sm:$0xff]
    %v6637 = vld [vmem:[%s0 + $0x50] sm:$0xff]
    %v6638 = vld [vmem:[%s0 + $0x58] sm:$0xff]
    %v6639 = vld [vmem:[%s0 + $0x60] sm:$0xff]
    %v6640 = vld [vmem:[%s0 + $0x68] sm:$0xff]
    %v6641 = vld [vmem:[%s0 + $0x70] sm:$0xff]
    %v6642 = vld [vmem:[%s0 + $0x78] sm:$0xff]
    %v6643 = vld [vmem:[%s0 + $0x80] sm:$0xff]
    %v6644 = vld [vmem:[%s0 + $0x88] sm:$0xff]
    %v6645 = vld [vmem:[%s0 + $0x90] sm:$0xff]
    %v6646 = vld [vmem:[%s0 + $0x98] sm:$0xff]
    %v6647 = vld [vmem:[%s0 + $0xa0] sm:$0xff]
    %v6648 = vld [vmem:[%s0 + $0xa8] sm:$0xff]
    %v6649 = vld [vmem:[%s0 + $0xb0] sm:$0xff]
    %v6650 = vld [vmem:[%s0 + $0xb8] sm:$0xff]
    %6652 = vset.pattern.permute.xlu0 17
    %6653 = vperm.xlu0 %6652, %v6627
    %v6654 = vpop.permute.xlu0 %6653
    %6657 = vset.pattern.permute.xlu0 17
    %6658 = vperm.xlu0 %6657, %v6628
    %v6659 = vpop.permute.xlu0 %6658
    %6662 = vset.pattern.permute.xlu0 17
    %6663 = vperm.xlu0 %6662, %v6629
    %v6664 = vpop.permute.xlu0 %6663
    %6667 = vset.pattern.permute.xlu0 17
    %6668 = vperm.xlu0 %6667, %v6630
    %v6669 = vpop.permute.xlu0 %6668
    %6672 = vset.pattern.permute.xlu0 17
    %6673 = vperm.xlu0 %6672, %v6631
    %v6674 = vpop.permute.xlu0 %6673
    %6677 = vset.pattern.permute.xlu0 17
    %6678 = vperm.xlu0 %6677, %v6632
    %v6679 = vpop.permute.xlu0 %6678
    %6682 = vset.pattern.permute.xlu0 17
    %6683 = vperm.xlu0 %6682, %v6633
    %v6684 = vpop.permute.xlu0 %6683
    %6687 = vset.pattern.permute.xlu0 17
    %6688 = vperm.xlu0 %6687, %v6634
    %v6689 = vpop.permute.xlu0 %6688
    %6692 = vset.pattern.permute.xlu0 17
    %6693 = vperm.xlu0 %6692, %v6635
    %v6694 = vpop.permute.xlu0 %6693
    %6697 = vset.pattern.permute.xlu0 17
    %6698 = vperm.xlu0 %6697, %v6636
    %v6699 = vpop.permute.xlu0 %6698
    %6702 = vset.pattern.permute.xlu0 17
    %6703 = vperm.xlu0 %6702, %v6637
    %v6704 = vpop.permute.xlu0 %6703
    %6707 = vset.pattern.permute.xlu0 17
    %6708 = vperm.xlu0 %6707, %v6638
    %v6709 = vpop.permute.xlu0 %6708
    %6712 = vset.pattern.permute.xlu0 17
    %6713 = vperm.xlu0 %6712, %v6639
    %v6714 = vpop.permute.xlu0 %6713
    %6717 = vset.pattern.permute.xlu0 17
    %6718 = vperm.xlu0 %6717, %v6640
    %v6719 = vpop.permute.xlu0 %6718
    %6722 = vset.pattern.permute.xlu0 17
    %6723 = vperm.xlu0 %6722, %v6641
    %v6724 = vpop.permute.xlu0 %6723
    %6727 = vset.pattern.permute.xlu0 17
    %6728 = vperm.xlu0 %6727, %v6642
    %v6729 = vpop.permute.xlu0 %6728
    %6732 = vset.pattern.permute.xlu0 17
    %6733 = vperm.xlu0 %6732, %v6643
    %v6734 = vpop.permute.xlu0 %6733
    %6737 = vset.pattern.permute.xlu0 17
    %6738 = vperm.xlu0 %6737, %v6644
    %v6739 = vpop.permute.xlu0 %6738
    %6742 = vset.pattern.permute.xlu0 17
    %6743 = vperm.xlu0 %6742, %v6645
    %v6744 = vpop.permute.xlu0 %6743
    %6747 = vset.pattern.permute.xlu0 17
    %6748 = vperm.xlu0 %6747, %v6646
    %v6749 = vpop.permute.xlu0 %6748
    %6752 = vset.pattern.permute.xlu0 17
    %6753 = vperm.xlu0 %6752, %v6647
    %v6754 = vpop.permute.xlu0 %6753
    %6757 = vset.pattern.permute.xlu0 17
    %6758 = vperm.xlu0 %6757, %v6648
    %v6759 = vpop.permute.xlu0 %6758
    %6762 = vset.pattern.permute.xlu0 17
    %6763 = vperm.xlu0 %6762, %v6649
    %v6764 = vpop.permute.xlu0 %6763
    %6767 = vset.pattern.permute.xlu0 17
    %6768 = vperm.xlu0 %6767, %v6650
    %v6769 = vpop.permute.xlu0 %6768
    %v6771 = vmul.f32 %v6603, %v6654
    %v6772 = vmul.f32 %v6604, %v6659
    %v6773 = vmul.f32 %v6605, %v6664
    %v6774 = vmul.f32 %v6606, %v6669
    %v6775 = vmul.f32 %v6607, %v6674
    %v6776 = vmul.f32 %v6608, %v6679
    %v6777 = vmul.f32 %v6609, %v6684
    %v6778 = vmul.f32 %v6610, %v6689
    %v6779 = vmul.f32 %v6611, %v6694
    %v6780 = vmul.f32 %v6612, %v6699
    %v6781 = vmul.f32 %v6613, %v6704
    %v6782 = vmul.f32 %v6614, %v6709
    %v6783 = vmul.f32 %v6615, %v6714
    %v6784 = vmul.f32 %v6616, %v6719
    %v6785 = vmul.f32 %v6617, %v6724
    %v6786 = vmul.f32 %v6618, %v6729
    %v6787 = vmul.f32 %v6619, %v6734
    %v6788 = vmul.f32 %v6620, %v6739
    %v6789 = vmul.f32 %v6621, %v6744
    %v6790 = vmul.f32 %v6622, %v6749
    %v6791 = vmul.f32 %v6623, %v6754
    %v6792 = vmul.f32 %v6624, %v6759
    %v6793 = vmul.f32 %v6625, %v6764
    %v6794 = vmul.f32 %v6626, %v6769
    %v6795 = vpack.c.bf16 %v6772, %v6771
    %v6796 = vpack.c.bf16 %v6774, %v6773
    %v6797 = vpack.c.bf16 %v6776, %v6775
    %v6798 = vpack.c.bf16 %v6778, %v6777
    %v6799 = vpack.c.bf16 %v6780, %v6779
    %v6800 = vpack.c.bf16 %v6782, %v6781
    %v6801 = vpack.c.bf16 %v6784, %v6783
    %v6802 = vpack.c.bf16 %v6786, %v6785
    %v6803 = vpack.c.bf16 %v6788, %v6787
    %v6804 = vpack.c.bf16 %v6790, %v6789
    %v6805 = vpack.c.bf16 %v6792, %v6791
    %v6806 = vpack.c.bf16 %v6794, %v6793
    %v6807 = vld [vmem:[#allocation2] sm:$0xff]
    %v6808 = vld [vmem:[#allocation2 + $0x8] sm:$0xff]
    %v6809 = vld [vmem:[#allocation2 + $0x10] sm:$0xff]
    %v6810 = vld [vmem:[#allocation2 + $0x18] sm:$0xff]
    %v6811 = vld [vmem:[#allocation2 + $0x20] sm:$0xff]
    %v6812 = vld [vmem:[#allocation2 + $0x28] sm:$0xff]
    %v6813 = vld [vmem:[#allocation2 + $0x30] sm:$0xff]
    %v6814 = vld [vmem:[#allocation2 + $0x38] sm:$0xff]
    %v6815 = vld [vmem:[#allocation2 + $0x40] sm:$0xff]
    %v6816 = vld [vmem:[#allocation2 + $0x48] sm:$0xff]
    %v6817 = vld [vmem:[#allocation2 + $0x50] sm:$0xff]
    %v6818 = vld [vmem:[#allocation2 + $0x58] sm:$0xff]
    %v6819 = vld [vmem:[#allocation2 + $0x60] sm:$0xff]
    %v6820 = vld [vmem:[#allocation2 + $0x68] sm:$0xff]
    %v6821 = vld [vmem:[#allocation2 + $0x70] sm:$0xff]
    %v6822 = vld [vmem:[#allocation2 + $0x78] sm:$0xff]
    %v6823 = vld [vmem:[#allocation2 + $0x80] sm:$0xff]
    %v6824 = vld [vmem:[#allocation2 + $0x88] sm:$0xff]
    %v6825 = vld [vmem:[#allocation2 + $0x90] sm:$0xff]
    %v6826 = vld [vmem:[#allocation2 + $0x98] sm:$0xff]
    %v6827 = vld [vmem:[#allocation2 + $0xa0] sm:$0xff]
    %v6828 = vld [vmem:[#allocation2 + $0xa8] sm:$0xff]
    %v6829 = vld [vmem:[#allocation2 + $0xb0] sm:$0xff]
    %v6830 = vld [vmem:[#allocation2 + $0xb8] sm:$0xff]
    %s6831 = scalar_lea.vmem %s2, 68
    %v6832 = vld [vmem:[%s6831] sm:$0xf]
    %v6834 = vsel %vm269, %v6795, 0
    %v6837 = vsel %vm269, %v6796, 0
    %v6840 = vsel %vm269, %v6797, 0
    %v6843 = vsel %vm269, %v6798, 0
    %v6846 = vsel %vm269, %v6799, 0
    %v6849 = vsel %vm269, %v6800, 0
    %v6852 = vsel %vm269, %v6801, 0
    %v6855 = vsel %vm269, %v6802, 0
    %v6858 = vsel %vm269, %v6803, 0
    %v6861 = vsel %vm269, %v6804, 0
    %v6864 = vsel %vm269, %v6805, 0
    %v6867 = vsel %vm269, %v6806, 0
    %v6870 = vsel %vm306, %v6832, 0
    %6872 = vmatpush.bf16.msra.mxu0 0
    %6873 = vmatpush.bf16.msra.mxu0 0
    %6874 = vmatpush.bf16.msra.mxu0 0
    %6875 = vmatpush.bf16.msra.mxu0 0
    %6876 = vmatpush.bf16.msra.mxu0 0
    %6877 = vmatpush.bf16.msra.mxu0 0
    %6878 = vmatpush.bf16.msra.mxu0 0
    %6879 = vmatpush.bf16.msra.mxu0 %v6870
    %6880 = vmatmul.bf16.gmra.mxu0 %v6834
    %v6881 = vpop.f32.mrf.mxu0
    %v6882 = vadd.f32 0.0, %v6881
    %v6883 = vpop.f32.mrf.mxu0
    %v6884 = vadd.f32 0.0, %v6883
    %6885 = vmatmul.bf16.gmra.mxu0 %v6837
    %v6886 = vpop.f32.mrf.mxu0
    %v6887 = vadd.f32 0.0, %v6886
    %v6888 = vpop.f32.mrf.mxu0
    %v6889 = vadd.f32 0.0, %v6888
    %6890 = vmatmul.bf16.gmra.mxu0 %v6840
    %v6891 = vpop.f32.mrf.mxu0
    %v6892 = vadd.f32 0.0, %v6891
    %v6893 = vpop.f32.mrf.mxu0
    %v6894 = vadd.f32 0.0, %v6893
    %6895 = vmatmul.bf16.gmra.mxu0 %v6843
    %v6896 = vpop.f32.mrf.mxu0
    %v6897 = vadd.f32 0.0, %v6896
    %v6898 = vpop.f32.mrf.mxu0
    %v6899 = vadd.f32 0.0, %v6898
    %6900 = vmatmul.bf16.gmra.mxu0 %v6846
    %v6901 = vpop.f32.mrf.mxu0
    %v6902 = vadd.f32 0.0, %v6901
    %v6903 = vpop.f32.mrf.mxu0
    %v6904 = vadd.f32 0.0, %v6903
    %6905 = vmatmul.bf16.gmra.mxu0 %v6849
    %v6906 = vpop.f32.mrf.mxu0
    %v6907 = vadd.f32 0.0, %v6906
    %v6908 = vpop.f32.mrf.mxu0
    %v6909 = vadd.f32 0.0, %v6908
    %6910 = vmatmul.bf16.gmra.mxu0 %v6852
    %v6911 = vpop.f32.mrf.mxu0
    %v6912 = vadd.f32 0.0, %v6911
    %v6913 = vpop.f32.mrf.mxu0
    %v6914 = vadd.f32 0.0, %v6913
    %6915 = vmatmul.bf16.gmra.mxu0 %v6855
    %v6916 = vpop.f32.mrf.mxu0
    %v6917 = vadd.f32 0.0, %v6916
    %v6918 = vpop.f32.mrf.mxu0
    %v6919 = vadd.f32 0.0, %v6918
    %6920 = vmatmul.bf16.gmra.mxu0 %v6858
    %v6921 = vpop.f32.mrf.mxu0
    %v6922 = vadd.f32 0.0, %v6921
    %v6923 = vpop.f32.mrf.mxu0
    %v6924 = vadd.f32 0.0, %v6923
    %6925 = vmatmul.bf16.gmra.mxu0 %v6861
    %v6926 = vpop.f32.mrf.mxu0
    %v6927 = vadd.f32 0.0, %v6926
    %v6928 = vpop.f32.mrf.mxu0
    %v6929 = vadd.f32 0.0, %v6928
    %6930 = vmatmul.bf16.gmra.mxu0 %v6864
    %v6931 = vpop.f32.mrf.mxu0
    %v6932 = vadd.f32 0.0, %v6931
    %v6933 = vpop.f32.mrf.mxu0
    %v6934 = vadd.f32 0.0, %v6933
    %6935 = vmatmul.bf16.gmra.mxu0 %v6867
    %v6936 = vpop.f32.mrf.mxu0
    %v6937 = vadd.f32 0.0, %v6936
    %v6938 = vpop.f32.mrf.mxu0
    %v6939 = vadd.f32 0.0, %v6938
    %6940 = vdwg.mxu0
    %v6941 = vadd.f32 %v6807, %v6882
    %v6942 = vadd.f32 %v6808, %v6884
    %v6943 = vadd.f32 %v6809, %v6887
    %v6944 = vadd.f32 %v6810, %v6889
    %v6945 = vadd.f32 %v6811, %v6892
    %v6946 = vadd.f32 %v6812, %v6894
    %v6947 = vadd.f32 %v6813, %v6897
    %v6948 = vadd.f32 %v6814, %v6899
    %v6949 = vadd.f32 %v6815, %v6902
    %v6950 = vadd.f32 %v6816, %v6904
    %v6951 = vadd.f32 %v6817, %v6907
    %v6952 = vadd.f32 %v6818, %v6909
    %v6953 = vadd.f32 %v6819, %v6912
    %v6954 = vadd.f32 %v6820, %v6914
    %v6955 = vadd.f32 %v6821, %v6917
    %v6956 = vadd.f32 %v6822, %v6919
    %v6957 = vadd.f32 %v6823, %v6922
    %v6958 = vadd.f32 %v6824, %v6924
    %v6959 = vadd.f32 %v6825, %v6927
    %v6960 = vadd.f32 %v6826, %v6929
    %v6961 = vadd.f32 %v6827, %v6932
    %v6962 = vadd.f32 %v6828, %v6934
    %v6963 = vadd.f32 %v6829, %v6937
    %v6964 = vadd.f32 %v6830, %v6939
    %6965 = vst [vmem:[#allocation2] sm:$0xff] %v6941
    %6966 = vst [vmem:[#allocation2 + $0x8] sm:$0xff] %v6942
    %6967 = vst [vmem:[#allocation2 + $0x10] sm:$0xff] %v6943
    %6968 = vst [vmem:[#allocation2 + $0x18] sm:$0xff] %v6944
    %6969 = vst [vmem:[#allocation2 + $0x20] sm:$0xff] %v6945
    %6970 = vst [vmem:[#allocation2 + $0x28] sm:$0xff] %v6946
    %6971 = vst [vmem:[#allocation2 + $0x30] sm:$0xff] %v6947
    %6972 = vst [vmem:[#allocation2 + $0x38] sm:$0xff] %v6948
    %6973 = vst [vmem:[#allocation2 + $0x40] sm:$0xff] %v6949
    %6974 = vst [vmem:[#allocation2 + $0x48] sm:$0xff] %v6950
    %6975 = vst [vmem:[#allocation2 + $0x50] sm:$0xff] %v6951
    %6976 = vst [vmem:[#allocation2 + $0x58] sm:$0xff] %v6952
    %6977 = vst [vmem:[#allocation2 + $0x60] sm:$0xff] %v6953
    %6978 = vst [vmem:[#allocation2 + $0x68] sm:$0xff] %v6954
    %6979 = vst [vmem:[#allocation2 + $0x70] sm:$0xff] %v6955
    %6980 = vst [vmem:[#allocation2 + $0x78] sm:$0xff] %v6956
    %6981 = vst [vmem:[#allocation2 + $0x80] sm:$0xff] %v6957
    %6982 = vst [vmem:[#allocation2 + $0x88] sm:$0xff] %v6958
    %6983 = vst [vmem:[#allocation2 + $0x90] sm:$0xff] %v6959
    %6984 = vst [vmem:[#allocation2 + $0x98] sm:$0xff] %v6960
    %6985 = vst [vmem:[#allocation2 + $0xa0] sm:$0xff] %v6961
    %6986 = vst [vmem:[#allocation2 + $0xa8] sm:$0xff] %v6962
    %6987 = vst [vmem:[#allocation2 + $0xb0] sm:$0xff] %v6963
    %6988 = vst [vmem:[#allocation2 + $0xb8] sm:$0xff] %v6964
    %v6989 = vld [vmem:[%s1] sm:$0xff]
    %v6990 = vld [vmem:[%s1 + $0x8] sm:$0xff]
    %v6991 = vld [vmem:[%s1 + $0x10] sm:$0xff]
    %v6992 = vld [vmem:[%s1 + $0x18] sm:$0xff]
    %v6993 = vld [vmem:[%s1 + $0x20] sm:$0xff]
    %v6994 = vld [vmem:[%s1 + $0x28] sm:$0xff]
    %v6995 = vld [vmem:[%s1 + $0x30] sm:$0xff]
    %v6996 = vld [vmem:[%s1 + $0x38] sm:$0xff]
    %v6997 = vld [vmem:[%s1 + $0x40] sm:$0xff]
    %v6998 = vld [vmem:[%s1 + $0x48] sm:$0xff]
    %v6999 = vld [vmem:[%s1 + $0x50] sm:$0xff]
    %v7000 = vld [vmem:[%s1 + $0x58] sm:$0xff]
    %v7001 = vld [vmem:[%s1 + $0x60] sm:$0xff]
    %v7002 = vld [vmem:[%s1 + $0x68] sm:$0xff]
    %v7003 = vld [vmem:[%s1 + $0x70] sm:$0xff]
    %v7004 = vld [vmem:[%s1 + $0x78] sm:$0xff]
    %v7005 = vld [vmem:[%s1 + $0x80] sm:$0xff]
    %v7006 = vld [vmem:[%s1 + $0x88] sm:$0xff]
    %v7007 = vld [vmem:[%s1 + $0x90] sm:$0xff]
    %v7008 = vld [vmem:[%s1 + $0x98] sm:$0xff]
    %v7009 = vld [vmem:[%s1 + $0xa0] sm:$0xff]
    %v7010 = vld [vmem:[%s1 + $0xa8] sm:$0xff]
    %v7011 = vld [vmem:[%s1 + $0xb0] sm:$0xff]
    %v7012 = vld [vmem:[%s1 + $0xb8] sm:$0xff]
    %v7013 = vld [vmem:[%s0] sm:$0xff]
    %v7014 = vld [vmem:[%s0 + $0x8] sm:$0xff]
    %v7015 = vld [vmem:[%s0 + $0x10] sm:$0xff]
    %v7016 = vld [vmem:[%s0 + $0x18] sm:$0xff]
    %v7017 = vld [vmem:[%s0 + $0x20] sm:$0xff]
    %v7018 = vld [vmem:[%s0 + $0x28] sm:$0xff]
    %v7019 = vld [vmem:[%s0 + $0x30] sm:$0xff]
    %v7020 = vld [vmem:[%s0 + $0x38] sm:$0xff]
    %v7021 = vld [vmem:[%s0 + $0x40] sm:$0xff]
    %v7022 = vld [vmem:[%s0 + $0x48] sm:$0xff]
    %v7023 = vld [vmem:[%s0 + $0x50] sm:$0xff]
    %v7024 = vld [vmem:[%s0 + $0x58] sm:$0xff]
    %v7025 = vld [vmem:[%s0 + $0x60] sm:$0xff]
    %v7026 = vld [vmem:[%s0 + $0x68] sm:$0xff]
    %v7027 = vld [vmem:[%s0 + $0x70] sm:$0xff]
    %v7028 = vld [vmem:[%s0 + $0x78] sm:$0xff]
    %v7029 = vld [vmem:[%s0 + $0x80] sm:$0xff]
    %v7030 = vld [vmem:[%s0 + $0x88] sm:$0xff]
    %v7031 = vld [vmem:[%s0 + $0x90] sm:$0xff]
    %v7032 = vld [vmem:[%s0 + $0x98] sm:$0xff]
    %v7033 = vld [vmem:[%s0 + $0xa0] sm:$0xff]
    %v7034 = vld [vmem:[%s0 + $0xa8] sm:$0xff]
    %v7035 = vld [vmem:[%s0 + $0xb0] sm:$0xff]
    %v7036 = vld [vmem:[%s0 + $0xb8] sm:$0xff]
    %7038 = vset.pattern.permute.xlu0 18
    %7039 = vperm.xlu0 %7038, %v7013
    %v7040 = vpop.permute.xlu0 %7039
    %7043 = vset.pattern.permute.xlu0 18
    %7044 = vperm.xlu0 %7043, %v7014
    %v7045 = vpop.permute.xlu0 %7044
    %7048 = vset.pattern.permute.xlu0 18
    %7049 = vperm.xlu0 %7048, %v7015
    %v7050 = vpop.permute.xlu0 %7049
    %7053 = vset.pattern.permute.xlu0 18
    %7054 = vperm.xlu0 %7053, %v7016
    %v7055 = vpop.permute.xlu0 %7054
    %7058 = vset.pattern.permute.xlu0 18
    %7059 = vperm.xlu0 %7058, %v7017
    %v7060 = vpop.permute.xlu0 %7059
    %7063 = vset.pattern.permute.xlu0 18
    %7064 = vperm.xlu0 %7063, %v7018
    %v7065 = vpop.permute.xlu0 %7064
    %7068 = vset.pattern.permute.xlu0 18
    %7069 = vperm.xlu0 %7068, %v7019
    %v7070 = vpop.permute.xlu0 %7069
    %7073 = vset.pattern.permute.xlu0 18
    %7074 = vperm.xlu0 %7073, %v7020
    %v7075 = vpop.permute.xlu0 %7074
    %7078 = vset.pattern.permute.xlu0 18
    %7079 = vperm.xlu0 %7078, %v7021
    %v7080 = vpop.permute.xlu0 %7079
    %7083 = vset.pattern.permute.xlu0 18
    %7084 = vperm.xlu0 %7083, %v7022
    %v7085 = vpop.permute.xlu0 %7084
    %7088 = vset.pattern.permute.xlu0 18
    %7089 = vperm.xlu0 %7088, %v7023
    %v7090 = vpop.permute.xlu0 %7089
    %7093 = vset.pattern.permute.xlu0 18
    %7094 = vperm.xlu0 %7093, %v7024
    %v7095 = vpop.permute.xlu0 %7094
    %7098 = vset.pattern.permute.xlu0 18
    %7099 = vperm.xlu0 %7098, %v7025
    %v7100 = vpop.permute.xlu0 %7099
    %7103 = vset.pattern.permute.xlu0 18
    %7104 = vperm.xlu0 %7103, %v7026
    %v7105 = vpop.permute.xlu0 %7104
    %7108 = vset.pattern.permute.xlu0 18
    %7109 = vperm.xlu0 %7108, %v7027
    %v7110 = vpop.permute.xlu0 %7109
    %7113 = vset.pattern.permute.xlu0 18
    %7114 = vperm.xlu0 %7113, %v7028
    %v7115 = vpop.permute.xlu0 %7114
    %7118 = vset.pattern.permute.xlu0 18
    %7119 = vperm.xlu0 %7118, %v7029
    %v7120 = vpop.permute.xlu0 %7119
    %7123 = vset.pattern.permute.xlu0 18
    %7124 = vperm.xlu0 %7123, %v7030
    %v7125 = vpop.permute.xlu0 %7124
    %7128 = vset.pattern.permute.xlu0 18
    %7129 = vperm.xlu0 %7128, %v7031
    %v7130 = vpop.permute.xlu0 %7129
    %7133 = vset.pattern.permute.xlu0 18
    %7134 = vperm.xlu0 %7133, %v7032
    %v7135 = vpop.permute.xlu0 %7134
    %7138 = vset.pattern.permute.xlu0 18
    %7139 = vperm.xlu0 %7138, %v7033
    %v7140 = vpop.permute.xlu0 %7139
    %7143 = vset.pattern.permute.xlu0 18
    %7144 = vperm.xlu0 %7143, %v7034
    %v7145 = vpop.permute.xlu0 %7144
    %7148 = vset.pattern.permute.xlu0 18
    %7149 = vperm.xlu0 %7148, %v7035
    %v7150 = vpop.permute.xlu0 %7149
    %7153 = vset.pattern.permute.xlu0 18
    %7154 = vperm.xlu0 %7153, %v7036
    %v7155 = vpop.permute.xlu0 %7154
    %v7157 = vmul.f32 %v6989, %v7040
    %v7158 = vmul.f32 %v6990, %v7045
    %v7159 = vmul.f32 %v6991, %v7050
    %v7160 = vmul.f32 %v6992, %v7055
    %v7161 = vmul.f32 %v6993, %v7060
    %v7162 = vmul.f32 %v6994, %v7065
    %v7163 = vmul.f32 %v6995, %v7070
    %v7164 = vmul.f32 %v6996, %v7075
    %v7165 = vmul.f32 %v6997, %v7080
    %v7166 = vmul.f32 %v6998, %v7085
    %v7167 = vmul.f32 %v6999, %v7090
    %v7168 = vmul.f32 %v7000, %v7095
    %v7169 = vmul.f32 %v7001, %v7100
    %v7170 = vmul.f32 %v7002, %v7105
    %v7171 = vmul.f32 %v7003, %v7110
    %v7172 = vmul.f32 %v7004, %v7115
    %v7173 = vmul.f32 %v7005, %v7120
    %v7174 = vmul.f32 %v7006, %v7125
    %v7175 = vmul.f32 %v7007, %v7130
    %v7176 = vmul.f32 %v7008, %v7135
    %v7177 = vmul.f32 %v7009, %v7140
    %v7178 = vmul.f32 %v7010, %v7145
    %v7179 = vmul.f32 %v7011, %v7150
    %v7180 = vmul.f32 %v7012, %v7155
    %v7181 = vpack.c.bf16 %v7158, %v7157
    %v7182 = vpack.c.bf16 %v7160, %v7159
    %v7183 = vpack.c.bf16 %v7162, %v7161
    %v7184 = vpack.c.bf16 %v7164, %v7163
    %v7185 = vpack.c.bf16 %v7166, %v7165
    %v7186 = vpack.c.bf16 %v7168, %v7167
    %v7187 = vpack.c.bf16 %v7170, %v7169
    %v7188 = vpack.c.bf16 %v7172, %v7171
    %v7189 = vpack.c.bf16 %v7174, %v7173
    %v7190 = vpack.c.bf16 %v7176, %v7175
    %v7191 = vpack.c.bf16 %v7178, %v7177
    %v7192 = vpack.c.bf16 %v7180, %v7179
    %v7193 = vld [vmem:[#allocation2] sm:$0xff]
    %v7194 = vld [vmem:[#allocation2 + $0x8] sm:$0xff]
    %v7195 = vld [vmem:[#allocation2 + $0x10] sm:$0xff]
    %v7196 = vld [vmem:[#allocation2 + $0x18] sm:$0xff]
    %v7197 = vld [vmem:[#allocation2 + $0x20] sm:$0xff]
    %v7198 = vld [vmem:[#allocation2 + $0x28] sm:$0xff]
    %v7199 = vld [vmem:[#allocation2 + $0x30] sm:$0xff]
    %v7200 = vld [vmem:[#allocation2 + $0x38] sm:$0xff]
    %v7201 = vld [vmem:[#allocation2 + $0x40] sm:$0xff]
    %v7202 = vld [vmem:[#allocation2 + $0x48] sm:$0xff]
    %v7203 = vld [vmem:[#allocation2 + $0x50] sm:$0xff]
    %v7204 = vld [vmem:[#allocation2 + $0x58] sm:$0xff]
    %v7205 = vld [vmem:[#allocation2 + $0x60] sm:$0xff]
    %v7206 = vld [vmem:[#allocation2 + $0x68] sm:$0xff]
    %v7207 = vld [vmem:[#allocation2 + $0x70] sm:$0xff]
    %v7208 = vld [vmem:[#allocation2 + $0x78] sm:$0xff]
    %v7209 = vld [vmem:[#allocation2 + $0x80] sm:$0xff]
    %v7210 = vld [vmem:[#allocation2 + $0x88] sm:$0xff]
    %v7211 = vld [vmem:[#allocation2 + $0x90] sm:$0xff]
    %v7212 = vld [vmem:[#allocation2 + $0x98] sm:$0xff]
    %v7213 = vld [vmem:[#allocation2 + $0xa0] sm:$0xff]
    %v7214 = vld [vmem:[#allocation2 + $0xa8] sm:$0xff]
    %v7215 = vld [vmem:[#allocation2 + $0xb0] sm:$0xff]
    %v7216 = vld [vmem:[#allocation2 + $0xb8] sm:$0xff]
    %s7217 = scalar_lea.vmem %s2, 72
    %v7218 = vld [vmem:[%s7217] sm:$0xf]
    %v7220 = vsel %vm269, %v7181, 0
    %v7223 = vsel %vm269, %v7182, 0
    %v7226 = vsel %vm269, %v7183, 0
    %v7229 = vsel %vm269, %v7184, 0
    %v7232 = vsel %vm269, %v7185, 0
    %v7235 = vsel %vm269, %v7186, 0
    %v7238 = vsel %vm269, %v7187, 0
    %v7241 = vsel %vm269, %v7188, 0
    %v7244 = vsel %vm269, %v7189, 0
    %v7247 = vsel %vm269, %v7190, 0
    %v7250 = vsel %vm269, %v7191, 0
    %v7253 = vsel %vm269, %v7192, 0
    %v7256 = vsel %vm306, %v7218, 0
    %7258 = vmatpush.bf16.msra.mxu0 0
    %7259 = vmatpush.bf16.msra.mxu0 0
    %7260 = vmatpush.bf16.msra.mxu0 0
    %7261 = vmatpush.bf16.msra.mxu0 0
    %7262 = vmatpush.bf16.msra.mxu0 0
    %7263 = vmatpush.bf16.msra.mxu0 0
    %7264 = vmatpush.bf16.msra.mxu0 0
    %7265 = vmatpush.bf16.msra.mxu0 %v7256
    %7266 = vmatmul.bf16.gmra.mxu0 %v7220
    %v7267 = vpop.f32.mrf.mxu0
    %v7268 = vadd.f32 0.0, %v7267
    %v7269 = vpop.f32.mrf.mxu0
    %v7270 = vadd.f32 0.0, %v7269
    %7271 = vmatmul.bf16.gmra.mxu0 %v7223
    %v7272 = vpop.f32.mrf.mxu0
    %v7273 = vadd.f32 0.0, %v7272
    %v7274 = vpop.f32.mrf.mxu0
    %v7275 = vadd.f32 0.0, %v7274
    %7276 = vmatmul.bf16.gmra.mxu0 %v7226
    %v7277 = vpop.f32.mrf.mxu0
    %v7278 = vadd.f32 0.0, %v7277
    %v7279 = vpop.f32.mrf.mxu0
    %v7280 = vadd.f32 0.0, %v7279
    %7281 = vmatmul.bf16.gmra.mxu0 %v7229
    %v7282 = vpop.f32.mrf.mxu0
    %v7283 = vadd.f32 0.0, %v7282
    %v7284 = vpop.f32.mrf.mxu0
    %v7285 = vadd.f32 0.0, %v7284
    %7286 = vmatmul.bf16.gmra.mxu0 %v7232
    %v7287 = vpop.f32.mrf.mxu0
    %v7288 = vadd.f32 0.0, %v7287
    %v7289 = vpop.f32.mrf.mxu0
    %v7290 = vadd.f32 0.0, %v7289
    %7291 = vmatmul.bf16.gmra.mxu0 %v7235
    %v7292 = vpop.f32.mrf.mxu0
    %v7293 = vadd.f32 0.0, %v7292
    %v7294 = vpop.f32.mrf.mxu0
    %v7295 = vadd.f32 0.0, %v7294
    %7296 = vmatmul.bf16.gmra.mxu0 %v7238
    %v7297 = vpop.f32.mrf.mxu0
    %v7298 = vadd.f32 0.0, %v7297
    %v7299 = vpop.f32.mrf.mxu0
    %v7300 = vadd.f32 0.0, %v7299
    %7301 = vmatmul.bf16.gmra.mxu0 %v7241
    %v7302 = vpop.f32.mrf.mxu0
    %v7303 = vadd.f32 0.0, %v7302
    %v7304 = vpop.f32.mrf.mxu0
    %v7305 = vadd.f32 0.0, %v7304
    %7306 = vmatmul.bf16.gmra.mxu0 %v7244
    %v7307 = vpop.f32.mrf.mxu0
    %v7308 = vadd.f32 0.0, %v7307
    %v7309 = vpop.f32.mrf.mxu0
    %v7310 = vadd.f32 0.0, %v7309
    %7311 = vmatmul.bf16.gmra.mxu0 %v7247
    %v7312 = vpop.f32.mrf.mxu0
    %v7313 = vadd.f32 0.0, %v7312
    %v7314 = vpop.f32.mrf.mxu0
    %v7315 = vadd.f32 0.0, %v7314
    %7316 = vmatmul.bf16.gmra.mxu0 %v7250
    %v7317 = vpop.f32.mrf.mxu0
    %v7318 = vadd.f32 0.0, %v7317
    %v7319 = vpop.f32.mrf.mxu0
    %v7320 = vadd.f32 0.0, %v7319
    %7321 = vmatmul.bf16.gmra.mxu0 %v7253
    %v7322 = vpop.f32.mrf.mxu0
    %v7323 = vadd.f32 0.0, %v7322
    %v7324 = vpop.f32.mrf.mxu0
    %v7325 = vadd.f32 0.0, %v7324
    %7326 = vdwg.mxu0
    %v7327 = vadd.f32 %v7193, %v7268
    %v7328 = vadd.f32 %v7194, %v7270
    %v7329 = vadd.f32 %v7195, %v7273
    %v7330 = vadd.f32 %v7196, %v7275
    %v7331 = vadd.f32 %v7197, %v7278
    %v7332 = vadd.f32 %v7198, %v7280
    %v7333 = vadd.f32 %v7199, %v7283
    %v7334 = vadd.f32 %v7200, %v7285
    %v7335 = vadd.f32 %v7201, %v7288
    %v7336 = vadd.f32 %v7202, %v7290
    %v7337 = vadd.f32 %v7203, %v7293
    %v7338 = vadd.f32 %v7204, %v7295
    %v7339 = vadd.f32 %v7205, %v7298
    %v7340 = vadd.f32 %v7206, %v7300
    %v7341 = vadd.f32 %v7207, %v7303
    %v7342 = vadd.f32 %v7208, %v7305
    %v7343 = vadd.f32 %v7209, %v7308
    %v7344 = vadd.f32 %v7210, %v7310
    %v7345 = vadd.f32 %v7211, %v7313
    %v7346 = vadd.f32 %v7212, %v7315
    %v7347 = vadd.f32 %v7213, %v7318
    %v7348 = vadd.f32 %v7214, %v7320
    %v7349 = vadd.f32 %v7215, %v7323
    %v7350 = vadd.f32 %v7216, %v7325
    %7351 = vst [vmem:[#allocation2] sm:$0xff] %v7327
    %7352 = vst [vmem:[#allocation2 + $0x8] sm:$0xff] %v7328
    %7353 = vst [vmem:[#allocation2 + $0x10] sm:$0xff] %v7329
    %7354 = vst [vmem:[#allocation2 + $0x18] sm:$0xff] %v7330
    %7355 = vst [vmem:[#allocation2 + $0x20] sm:$0xff] %v7331
    %7356 = vst [vmem:[#allocation2 + $0x28] sm:$0xff] %v7332
    %7357 = vst [vmem:[#allocation2 + $0x30] sm:$0xff] %v7333
    %7358 = vst [vmem:[#allocation2 + $0x38] sm:$0xff] %v7334
    %7359 = vst [vmem:[#allocation2 + $0x40] sm:$0xff] %v7335
    %7360 = vst [vmem:[#allocation2 + $0x48] sm:$0xff] %v7336
    %7361 = vst [vmem:[#allocation2 + $0x50] sm:$0xff] %v7337
    %7362 = vst [vmem:[#allocation2 + $0x58] sm:$0xff] %v7338
    %7363 = vst [vmem:[#allocation2 + $0x60] sm:$0xff] %v7339
    %7364 = vst [vmem:[#allocation2 + $0x68] sm:$0xff] %v7340
    %7365 = vst [vmem:[#allocation2 + $0x70] sm:$0xff] %v7341
    %7366 = vst [vmem:[#allocation2 + $0x78] sm:$0xff] %v7342
    %7367 = vst [vmem:[#allocation2 + $0x80] sm:$0xff] %v7343
    %7368 = vst [vmem:[#allocation2 + $0x88] sm:$0xff] %v7344
    %7369 = vst [vmem:[#allocation2 + $0x90] sm:$0xff] %v7345
    %7370 = vst [vmem:[#allocation2 + $0x98] sm:$0xff] %v7346
    %7371 = vst [vmem:[#allocation2 + $0xa0] sm:$0xff] %v7347
    %7372 = vst [vmem:[#allocation2 + $0xa8] sm:$0xff] %v7348
    %7373 = vst [vmem:[#allocation2 + $0xb0] sm:$0xff] %v7349
    %7374 = vst [vmem:[#allocation2 + $0xb8] sm:$0xff] %v7350
    %v7375 = vld [vmem:[%s1] sm:$0xff]
    %v7376 = vld [vmem:[%s1 + $0x8] sm:$0xff]
    %v7377 = vld [vmem:[%s1 + $0x10] sm:$0xff]
    %v7378 = vld [vmem:[%s1 + $0x18] sm:$0xff]
    %v7379 = vld [vmem:[%s1 + $0x20] sm:$0xff]
    %v7380 = vld [vmem:[%s1 + $0x28] sm:$0xff]
    %v7381 = vld [vmem:[%s1 + $0x30] sm:$0xff]
    %v7382 = vld [vmem:[%s1 + $0x38] sm:$0xff]
    %v7383 = vld [vmem:[%s1 + $0x40] sm:$0xff]
    %v7384 = vld [vmem:[%s1 + $0x48] sm:$0xff]
    %v7385 = vld [vmem:[%s1 + $0x50] sm:$0xff]
    %v7386 = vld [vmem:[%s1 + $0x58] sm:$0xff]
    %v7387 = vld [vmem:[%s1 + $0x60] sm:$0xff]
    %v7388 = vld [vmem:[%s1 + $0x68] sm:$0xff]
    %v7389 = vld [vmem:[%s1 + $0x70] sm:$0xff]
    %v7390 = vld [vmem:[%s1 + $0x78] sm:$0xff]
    %v7391 = vld [vmem:[%s1 + $0x80] sm:$0xff]
    %v7392 = vld [vmem:[%s1 + $0x88] sm:$0xff]
    %v7393 = vld [vmem:[%s1 + $0x90] sm:$0xff]
    %v7394 = vld [vmem:[%s1 + $0x98] sm:$0xff]
    %v7395 = vld [vmem:[%s1 + $0xa0] sm:$0xff]
    %v7396 = vld [vmem:[%s1 + $0xa8] sm:$0xff]
    %v7397 = vld [vmem:[%s1 + $0xb0] sm:$0xff]
    %v7398 = vld [vmem:[%s1 + $0xb8] sm:$0xff]
    %v7399 = vld [vmem:[%s0] sm:$0xff]
    %v7400 = vld [vmem:[%s0 + $0x8] sm:$0xff]
    %v7401 = vld [vmem:[%s0 + $0x10] sm:$0xff]
    %v7402 = vld [vmem:[%s0 + $0x18] sm:$0xff]
    %v7403 = vld [vmem:[%s0 + $0x20] sm:$0xff]
    %v7404 = vld [vmem:[%s0 + $0x28] sm:$0xff]
    %v7405 = vld [vmem:[%s0 + $0x30] sm:$0xff]
    %v7406 = vld [vmem:[%s0 + $0x38] sm:$0xff]
    %v7407 = vld [vmem:[%s0 + $0x40] sm:$0xff]
    %v7408 = vld [vmem:[%s0 + $0x48] sm:$0xff]
    %v7409 = vld [vmem:[%s0 + $0x50] sm:$0xff]
    %v7410 = vld [vmem:[%s0 + $0x58] sm:$0xff]
    %v7411 = vld [vmem:[%s0 + $0x60] sm:$0xff]
    %v7412 = vld [vmem:[%s0 + $0x68] sm:$0xff]
    %v7413 = vld [vmem:[%s0 + $0x70] sm:$0xff]
    %v7414 = vld [vmem:[%s0 + $0x78] sm:$0xff]
    %v7415 = vld [vmem:[%s0 + $0x80] sm:$0xff]
    %v7416 = vld [vmem:[%s0 + $0x88] sm:$0xff]
    %v7417 = vld [vmem:[%s0 + $0x90] sm:$0xff]
    %v7418 = vld [vmem:[%s0 + $0x98] sm:$0xff]
    %v7419 = vld [vmem:[%s0 + $0xa0] sm:$0xff]
    %v7420 = vld [vmem:[%s0 + $0xa8] sm:$0xff]
    %v7421 = vld [vmem:[%s0 + $0xb0] sm:$0xff]
    %v7422 = vld [vmem:[%s0 + $0xb8] sm:$0xff]
    %7424 = vset.pattern.permute.xlu0 19
    %7425 = vperm.xlu0 %7424, %v7399
    %v7426 = vpop.permute.xlu0 %7425
    %7429 = vset.pattern.permute.xlu0 19
    %7430 = vperm.xlu0 %7429, %v7400
    %v7431 = vpop.permute.xlu0 %7430
    %7434 = vset.pattern.permute.xlu0 19
    %7435 = vperm.xlu0 %7434, %v7401
    %v7436 = vpop.permute.xlu0 %7435
    %7439 = vset.pattern.permute.xlu0 19
    %7440 = vperm.xlu0 %7439, %v7402
    %v7441 = vpop.permute.xlu0 %7440
    %7444 = vset.pattern.permute.xlu0 19
    %7445 = vperm.xlu0 %7444, %v7403
    %v7446 = vpop.permute.xlu0 %7445
    %7449 = vset.pattern.permute.xlu0 19
    %7450 = vperm.xlu0 %7449, %v7404
    %v7451 = vpop.permute.xlu0 %7450
    %7454 = vset.pattern.permute.xlu0 19
    %7455 = vperm.xlu0 %7454, %v7405
    %v7456 = vpop.permute.xlu0 %7455
    %7459 = vset.pattern.permute.xlu0 19
    %7460 = vperm.xlu0 %7459, %v7406
    %v7461 = vpop.permute.xlu0 %7460
    %7464 = vset.pattern.permute.xlu0 19
    %7465 = vperm.xlu0 %7464, %v7407
    %v7466 = vpop.permute.xlu0 %7465
    %7469 = vset.pattern.permute.xlu0 19
    %7470 = vperm.xlu0 %7469, %v7408
    %v7471 = vpop.permute.xlu0 %7470
    %7474 = vset.pattern.permute.xlu0 19
    %7475 = vperm.xlu0 %7474, %v7409
    %v7476 = vpop.permute.xlu0 %7475
    %7479 = vset.pattern.permute.xlu0 19
    %7480 = vperm.xlu0 %7479, %v7410
    %v7481 = vpop.permute.xlu0 %7480
    %7484 = vset.pattern.permute.xlu0 19
    %7485 = vperm.xlu0 %7484, %v7411
    %v7486 = vpop.permute.xlu0 %7485
    %7489 = vset.pattern.permute.xlu0 19
    %7490 = vperm.xlu0 %7489, %v7412
    %v7491 = vpop.permute.xlu0 %7490
    %7494 = vset.pattern.permute.xlu0 19
    %7495 = vperm.xlu0 %7494, %v7413
    %v7496 = vpop.permute.xlu0 %7495
    %7499 = vset.pattern.permute.xlu0 19
    %7500 = vperm.xlu0 %7499, %v7414
    %v7501 = vpop.permute.xlu0 %7500
    %7504 = vset.pattern.permute.xlu0 19
    %7505 = vperm.xlu0 %7504, %v7415
    %v7506 = vpop.permute.xlu0 %7505
    %7509 = vset.pattern.permute.xlu0 19
    %7510 = vperm.xlu0 %7509, %v7416
    %v7511 = vpop.permute.xlu0 %7510
    %7514 = vset.pattern.permute.xlu0 19
    %7515 = vperm.xlu0 %7514, %v7417
    %v7516 = vpop.permute.xlu0 %7515
    %7519 = vset.pattern.permute.xlu0 19
    %7520 = vperm.xlu0 %7519, %v7418
    %v7521 = vpop.permute.xlu0 %7520
    %7524 = vset.pattern.permute.xlu0 19
    %7525 = vperm.xlu0 %7524, %v7419
    %v7526 = vpop.permute.xlu0 %7525
    %7529 = vset.pattern.permute.xlu0 19
    %7530 = vperm.xlu0 %7529, %v7420
    %v7531 = vpop.permute.xlu0 %7530
    %7534 = vset.pattern.permute.xlu0 19
    %7535 = vperm.xlu0 %7534, %v7421
    %v7536 = vpop.permute.xlu0 %7535
    %7539 = vset.pattern.permute.xlu0 19
    %7540 = vperm.xlu0 %7539, %v7422
    %v7541 = vpop.permute.xlu0 %7540
    %v7543 = vmul.f32 %v7375, %v7426
    %v7544 = vmul.f32 %v7376, %v7431
    %v7545 = vmul.f32 %v7377, %v7436
    %v7546 = vmul.f32 %v7378, %v7441
    %v7547 = vmul.f32 %v7379, %v7446
    %v7548 = vmul.f32 %v7380, %v7451
    %v7549 = vmul.f32 %v7381, %v7456
    %v7550 = vmul.f32 %v7382, %v7461
    %v7551 = vmul.f32 %v7383, %v7466
    %v7552 = vmul.f32 %v7384, %v7471
    %v7553 = vmul.f32 %v7385, %v7476
    %v7554 = vmul.f32 %v7386, %v7481
    %v7555 = vmul.f32 %v7387, %v7486
    %v7556 = vmul.f32 %v7388, %v7491
    %v7557 = vmul.f32 %v7389, %v7496
    %v7558 = vmul.f32 %v7390, %v7501
    %v7559 = vmul.f32 %v7391, %v7506
    %v7560 = vmul.f32 %v7392, %v7511
    %v7561 = vmul.f32 %v7393, %v7516
    %v7562 = vmul.f32 %v7394, %v7521
    %v7563 = vmul.f32 %v7395, %v7526
    %v7564 = vmul.f32 %v7396, %v7531
    %v7565 = vmul.f32 %v7397, %v7536
    %v7566 = vmul.f32 %v7398, %v7541
    %v7567 = vpack.c.bf16 %v7544, %v7543
    %v7568 = vpack.c.bf16 %v7546, %v7545
    %v7569 = vpack.c.bf16 %v7548, %v7547
    %v7570 = vpack.c.bf16 %v7550, %v7549
    %v7571 = vpack.c.bf16 %v7552, %v7551
    %v7572 = vpack.c.bf16 %v7554, %v7553
    %v7573 = vpack.c.bf16 %v7556, %v7555
    %v7574 = vpack.c.bf16 %v7558, %v7557
    %v7575 = vpack.c.bf16 %v7560, %v7559
    %v7576 = vpack.c.bf16 %v7562, %v7561
    %v7577 = vpack.c.bf16 %v7564, %v7563
    %v7578 = vpack.c.bf16 %v7566, %v7565
    %v7579 = vld [vmem:[#allocation2] sm:$0xff]
    %v7580 = vld [vmem:[#allocation2 + $0x8] sm:$0xff]
    %v7581 = vld [vmem:[#allocation2 + $0x10] sm:$0xff]
    %v7582 = vld [vmem:[#allocation2 + $0x18] sm:$0xff]
    %v7583 = vld [vmem:[#allocation2 + $0x20] sm:$0xff]
    %v7584 = vld [vmem:[#allocation2 + $0x28] sm:$0xff]
    %v7585 = vld [vmem:[#allocation2 + $0x30] sm:$0xff]
    %v7586 = vld [vmem:[#allocation2 + $0x38] sm:$0xff]
    %v7587 = vld [vmem:[#allocation2 + $0x40] sm:$0xff]
    %v7588 = vld [vmem:[#allocation2 + $0x48] sm:$0xff]
    %v7589 = vld [vmem:[#allocation2 + $0x50] sm:$0xff]
    %v7590 = vld [vmem:[#allocation2 + $0x58] sm:$0xff]
    %v7591 = vld [vmem:[#allocation2 + $0x60] sm:$0xff]
    %v7592 = vld [vmem:[#allocation2 + $0x68] sm:$0xff]
    %v7593 = vld [vmem:[#allocation2 + $0x70] sm:$0xff]
    %v7594 = vld [vmem:[#allocation2 + $0x78] sm:$0xff]
    %v7595 = vld [vmem:[#allocation2 + $0x80] sm:$0xff]
    %v7596 = vld [vmem:[#allocation2 + $0x88] sm:$0xff]
    %v7597 = vld [vmem:[#allocation2 + $0x90] sm:$0xff]
    %v7598 = vld [vmem:[#allocation2 + $0x98] sm:$0xff]
    %v7599 = vld [vmem:[#allocation2 + $0xa0] sm:$0xff]
    %v7600 = vld [vmem:[#allocation2 + $0xa8] sm:$0xff]
    %v7601 = vld [vmem:[#allocation2 + $0xb0] sm:$0xff]
    %v7602 = vld [vmem:[#allocation2 + $0xb8] sm:$0xff]
    %s7603 = scalar_lea.vmem %s2, 76
    %v7604 = vld [vmem:[%s7603] sm:$0xf]
    %v7606 = vsel %vm269, %v7567, 0
    %v7609 = vsel %vm269, %v7568, 0
    %v7612 = vsel %vm269, %v7569, 0
    %v7615 = vsel %vm269, %v7570, 0
    %v7618 = vsel %vm269, %v7571, 0
    %v7621 = vsel %vm269, %v7572, 0
    %v7624 = vsel %vm269, %v7573, 0
    %v7627 = vsel %vm269, %v7574, 0
    %v7630 = vsel %vm269, %v7575, 0
    %v7633 = vsel %vm269, %v7576, 0
    %v7636 = vsel %vm269, %v7577, 0
    %v7639 = vsel %vm269, %v7578, 0
    %v7642 = vsel %vm306, %v7604, 0
    %7644 = vmatpush.bf16.msra.mxu0 0
    %7645 = vmatpush.bf16.msra.mxu0 0
    %7646 = vmatpush.bf16.msra.mxu0 0
    %7647 = vmatpush.bf16.msra.mxu0 0
    %7648 = vmatpush.bf16.msra.mxu0 0
    %7649 = vmatpush.bf16.msra.mxu0 0
    %7650 = vmatpush.bf16.msra.mxu0 0
    %7651 = vmatpush.bf16.msra.mxu0 %v7642
    %7652 = vmatmul.bf16.gmra.mxu0 %v7606
    %v7653 = vpop.f32.mrf.mxu0
    %v7654 = vadd.f32 0.0, %v7653
    %v7655 = vpop.f32.mrf.mxu0
    %v7656 = vadd.f32 0.0, %v7655
    %7657 = vmatmul.bf16.gmra.mxu0 %v7609
    %v7658 = vpop.f32.mrf.mxu0
    %v7659 = vadd.f32 0.0, %v7658
    %v7660 = vpop.f32.mrf.mxu0
    %v7661 = vadd.f32 0.0, %v7660
    %7662 = vmatmul.bf16.gmra.mxu0 %v7612
    %v7663 = vpop.f32.mrf.mxu0
    %v7664 = vadd.f32 0.0, %v7663
    %v7665 = vpop.f32.mrf.mxu0
    %v7666 = vadd.f32 0.0, %v7665
    %7667 = vmatmul.bf16.gmra.mxu0 %v7615
    %v7668 = vpop.f32.mrf.mxu0
    %v7669 = vadd.f32 0.0, %v7668
    %v7670 = vpop.f32.mrf.mxu0
    %v7671 = vadd.f32 0.0, %v7670
    %7672 = vmatmul.bf16.gmra.mxu0 %v7618
    %v7673 = vpop.f32.mrf.mxu0
    %v7674 = vadd.f32 0.0, %v7673
    %v7675 = vpop.f32.mrf.mxu0
    %v7676 = vadd.f32 0.0, %v7675
    %7677 = vmatmul.bf16.gmra.mxu0 %v7621
    %v7678 = vpop.f32.mrf.mxu0
    %v7679 = vadd.f32 0.0, %v7678
    %v7680 = vpop.f32.mrf.mxu0
    %v7681 = vadd.f32 0.0, %v7680
    %7682 = vmatmul.bf16.gmra.mxu0 %v7624
    %v7683 = vpop.f32.mrf.mxu0
    %v7684 = vadd.f32 0.0, %v7683
    %v7685 = vpop.f32.mrf.mxu0
    %v7686 = vadd.f32 0.0, %v7685
    %7687 = vmatmul.bf16.gmra.mxu0 %v7627
    %v7688 = vpop.f32.mrf.mxu0
    %v7689 = vadd.f32 0.0, %v7688
    %v7690 = vpop.f32.mrf.mxu0
    %v7691 = vadd.f32 0.0, %v7690
    %7692 = vmatmul.bf16.gmra.mxu0 %v7630
    %v7693 = vpop.f32.mrf.mxu0
    %v7694 = vadd.f32 0.0, %v7693
    %v7695 = vpop.f32.mrf.mxu0
    %v7696 = vadd.f32 0.0, %v7695
    %7697 = vmatmul.bf16.gmra.mxu0 %v7633
    %v7698 = vpop.f32.mrf.mxu0
    %v7699 = vadd.f32 0.0, %v7698
    %v7700 = vpop.f32.mrf.mxu0
    %v7701 = vadd.f32 0.0, %v7700
    %7702 = vmatmul.bf16.gmra.mxu0 %v7636
    %v7703 = vpop.f32.mrf.mxu0
    %v7704 = vadd.f32 0.0, %v7703
    %v7705 = vpop.f32.mrf.mxu0
    %v7706 = vadd.f32 0.0, %v7705
    %7707 = vmatmul.bf16.gmra.mxu0 %v7639
    %v7708 = vpop.f32.mrf.mxu0
    %v7709 = vadd.f32 0.0, %v7708
    %v7710 = vpop.f32.mrf.mxu0
    %v7711 = vadd.f32 0.0, %v7710
    %7712 = vdwg.mxu0
    %v7713 = vadd.f32 %v7579, %v7654
    %v7714 = vadd.f32 %v7580, %v7656
    %v7715 = vadd.f32 %v7581, %v7659
    %v7716 = vadd.f32 %v7582, %v7661
    %v7717 = vadd.f32 %v7583, %v7664
    %v7718 = vadd.f32 %v7584, %v7666
    %v7719 = vadd.f32 %v7585, %v7669
    %v7720 = vadd.f32 %v7586, %v7671
    %v7721 = vadd.f32 %v7587, %v7674
    %v7722 = vadd.f32 %v7588, %v7676
    %v7723 = vadd.f32 %v7589, %v7679
    %v7724 = vadd.f32 %v7590, %v7681
    %v7725 = vadd.f32 %v7591, %v7684
    %v7726 = vadd.f32 %v7592, %v7686
    %v7727 = vadd.f32 %v7593, %v7689
    %v7728 = vadd.f32 %v7594, %v7691
    %v7729 = vadd.f32 %v7595, %v7694
    %v7730 = vadd.f32 %v7596, %v7696
    %v7731 = vadd.f32 %v7597, %v7699
    %v7732 = vadd.f32 %v7598, %v7701
    %v7733 = vadd.f32 %v7599, %v7704
    %v7734 = vadd.f32 %v7600, %v7706
    %v7735 = vadd.f32 %v7601, %v7709
    %v7736 = vadd.f32 %v7602, %v7711
    %7737 = vst [vmem:[#allocation2] sm:$0xff] %v7713
    %7738 = vst [vmem:[#allocation2 + $0x8] sm:$0xff] %v7714
    %7739 = vst [vmem:[#allocation2 + $0x10] sm:$0xff] %v7715
    %7740 = vst [vmem:[#allocation2 + $0x18] sm:$0xff] %v7716
    %7741 = vst [vmem:[#allocation2 + $0x20] sm:$0xff] %v7717
    %7742 = vst [vmem:[#allocation2 + $0x28] sm:$0xff] %v7718
    %7743 = vst [vmem:[#allocation2 + $0x30] sm:$0xff] %v7719
    %7744 = vst [vmem:[#allocation2 + $0x38] sm:$0xff] %v7720
    %7745 = vst [vmem:[#allocation2 + $0x40] sm:$0xff] %v7721
    %7746 = vst [vmem:[#allocation2 + $0x48] sm:$0xff] %v7722
    %7747 = vst [vmem:[#allocation2 + $0x50] sm:$0xff] %v7723
    %7748 = vst [vmem:[#allocation2 + $0x58] sm:$0xff] %v7724
    %7749 = vst [vmem:[#allocation2 + $0x60] sm:$0xff] %v7725
    %7750 = vst [vmem:[#allocation2 + $0x68] sm:$0xff] %v7726
    %7751 = vst [vmem:[#allocation2 + $0x70] sm:$0xff] %v7727
    %7752 = vst [vmem:[#allocation2 + $0x78] sm:$0xff] %v7728
    %7753 = vst [vmem:[#allocation2 + $0x80] sm:$0xff] %v7729
    %7754 = vst [vmem:[#allocation2 + $0x88] sm:$0xff] %v7730
    %7755 = vst [vmem:[#allocation2 + $0x90] sm:$0xff] %v7731
    %7756 = vst [vmem:[#allocation2 + $0x98] sm:$0xff] %v7732
    %7757 = vst [vmem:[#allocation2 + $0xa0] sm:$0xff] %v7733
    %7758 = vst [vmem:[#allocation2 + $0xa8] sm:$0xff] %v7734
    %7759 = vst [vmem:[#allocation2 + $0xb0] sm:$0xff] %v7735
    %7760 = vst [vmem:[#allocation2 + $0xb8] sm:$0xff] %v7736
    %v7761 = vld [vmem:[%s1] sm:$0xff]
    %v7762 = vld [vmem:[%s1 + $0x8] sm:$0xff]
    %v7763 = vld [vmem:[%s1 + $0x10] sm:$0xff]
    %v7764 = vld [vmem:[%s1 + $0x18] sm:$0xff]
    %v7765 = vld [vmem:[%s1 + $0x20] sm:$0xff]
    %v7766 = vld [vmem:[%s1 + $0x28] sm:$0xff]
    %v7767 = vld [vmem:[%s1 + $0x30] sm:$0xff]
    %v7768 = vld [vmem:[%s1 + $0x38] sm:$0xff]
    %v7769 = vld [vmem:[%s1 + $0x40] sm:$0xff]
    %v7770 = vld [vmem:[%s1 + $0x48] sm:$0xff]
    %v7771 = vld [vmem:[%s1 + $0x50] sm:$0xff]
    %v7772 = vld [vmem:[%s1 + $0x58] sm:$0xff]
    %v7773 = vld [vmem:[%s1 + $0x60] sm:$0xff]
    %v7774 = vld [vmem:[%s1 + $0x68] sm:$0xff]
    %v7775 = vld [vmem:[%s1 + $0x70] sm:$0xff]
    %v7776 = vld [vmem:[%s1 + $0x78] sm:$0xff]
    %v7777 = vld [vmem:[%s1 + $0x80] sm:$0xff]
    %v7778 = vld [vmem:[%s1 + $0x88] sm:$0xff]
    %v7779 = vld [vmem:[%s1 + $0x90] sm:$0xff]
    %v7780 = vld [vmem:[%s1 + $0x98] sm:$0xff]
    %v7781 = vld [vmem:[%s1 + $0xa0] sm:$0xff]
    %v7782 = vld [vmem:[%s1 + $0xa8] sm:$0xff]
    %v7783 = vld [vmem:[%s1 + $0xb0] sm:$0xff]
    %v7784 = vld [vmem:[%s1 + $0xb8] sm:$0xff]
    %v7785 = vld [vmem:[%s0] sm:$0xff]
    %v7786 = vld [vmem:[%s0 + $0x8] sm:$0xff]
    %v7787 = vld [vmem:[%s0 + $0x10] sm:$0xff]
    %v7788 = vld [vmem:[%s0 + $0x18] sm:$0xff]
    %v7789 = vld [vmem:[%s0 + $0x20] sm:$0xff]
    %v7790 = vld [vmem:[%s0 + $0x28] sm:$0xff]
    %v7791 = vld [vmem:[%s0 + $0x30] sm:$0xff]
    %v7792 = vld [vmem:[%s0 + $0x38] sm:$0xff]
    %v7793 = vld [vmem:[%s0 + $0x40] sm:$0xff]
    %v7794 = vld [vmem:[%s0 + $0x48] sm:$0xff]
    %v7795 = vld [vmem:[%s0 + $0x50] sm:$0xff]
    %v7796 = vld [vmem:[%s0 + $0x58] sm:$0xff]
    %v7797 = vld [vmem:[%s0 + $0x60] sm:$0xff]
    %v7798 = vld [vmem:[%s0 + $0x68] sm:$0xff]
    %v7799 = vld [vmem:[%s0 + $0x70] sm:$0xff]
    %v7800 = vld [vmem:[%s0 + $0x78] sm:$0xff]
    %v7801 = vld [vmem:[%s0 + $0x80] sm:$0xff]
    %v7802 = vld [vmem:[%s0 + $0x88] sm:$0xff]
    %v7803 = vld [vmem:[%s0 + $0x90] sm:$0xff]
    %v7804 = vld [vmem:[%s0 + $0x98] sm:$0xff]
    %v7805 = vld [vmem:[%s0 + $0xa0] sm:$0xff]
    %v7806 = vld [vmem:[%s0 + $0xa8] sm:$0xff]
    %v7807 = vld [vmem:[%s0 + $0xb0] sm:$0xff]
    %v7808 = vld [vmem:[%s0 + $0xb8] sm:$0xff]
    %7810 = vset.pattern.permute.xlu0 20
    %7811 = vperm.xlu0 %7810, %v7785
    %v7812 = vpop.permute.xlu0 %7811
    %7815 = vset.pattern.permute.xlu0 20
    %7816 = vperm.xlu0 %7815, %v7786
    %v7817 = vpop.permute.xlu0 %7816
    %7820 = vset.pattern.permute.xlu0 20
    %7821 = vperm.xlu0 %7820, %v7787
    %v7822 = vpop.permute.xlu0 %7821
    %7825 = vset.pattern.permute.xlu0 20
    %7826 = vperm.xlu0 %7825, %v7788
    %v7827 = vpop.permute.xlu0 %7826
    %7830 = vset.pattern.permute.xlu0 20
    %7831 = vperm.xlu0 %7830, %v7789
    %v7832 = vpop.permute.xlu0 %7831
    %7835 = vset.pattern.permute.xlu0 20
    %7836 = vperm.xlu0 %7835, %v7790
    %v7837 = vpop.permute.xlu0 %7836
    %7840 = vset.pattern.permute.xlu0 20
    %7841 = vperm.xlu0 %7840, %v7791
    %v7842 = vpop.permute.xlu0 %7841
    %7845 = vset.pattern.permute.xlu0 20
    %7846 = vperm.xlu0 %7845, %v7792
    %v7847 = vpop.permute.xlu0 %7846
    %7850 = vset.pattern.permute.xlu0 20
    %7851 = vperm.xlu0 %7850, %v7793
    %v7852 = vpop.permute.xlu0 %7851
    %7855 = vset.pattern.permute.xlu0 20
    %7856 = vperm.xlu0 %7855, %v7794
    %v7857 = vpop.permute.xlu0 %7856
    %7860 = vset.pattern.permute.xlu0 20
    %7861 = vperm.xlu0 %7860, %v7795
    %v7862 = vpop.permute.xlu0 %7861
    %7865 = vset.pattern.permute.xlu0 20
    %7866 = vperm.xlu0 %7865, %v7796
    %v7867 = vpop.permute.xlu0 %7866
    %7870 = vset.pattern.permute.xlu0 20
    %7871 = vperm.xlu0 %7870, %v7797
    %v7872 = vpop.permute.xlu0 %7871
    %7875 = vset.pattern.permute.xlu0 20
    %7876 = vperm.xlu0 %7875, %v7798
    %v7877 = vpop.permute.xlu0 %7876
    %7880 = vset.pattern.permute.xlu0 20
    %7881 = vperm.xlu0 %7880, %v7799
    %v7882 = vpop.permute.xlu0 %7881
    %7885 = vset.pattern.permute.xlu0 20
    %7886 = vperm.xlu0 %7885, %v7800
    %v7887 = vpop.permute.xlu0 %7886
    %7890 = vset.pattern.permute.xlu0 20
    %7891 = vperm.xlu0 %7890, %v7801
    %v7892 = vpop.permute.xlu0 %7891
    %7895 = vset.pattern.permute.xlu0 20
    %7896 = vperm.xlu0 %7895, %v7802
    %v7897 = vpop.permute.xlu0 %7896
    %7900 = vset.pattern.permute.xlu0 20
    %7901 = vperm.xlu0 %7900, %v7803
    %v7902 = vpop.permute.xlu0 %7901
    %7905 = vset.pattern.permute.xlu0 20
    %7906 = vperm.xlu0 %7905, %v7804
    %v7907 = vpop.permute.xlu0 %7906
    %7910 = vset.pattern.permute.xlu0 20
    %7911 = vperm.xlu0 %7910, %v7805
    %v7912 = vpop.permute.xlu0 %7911
    %7915 = vset.pattern.permute.xlu0 20
    %7916 = vperm.xlu0 %7915, %v7806
    %v7917 = vpop.permute.xlu0 %7916
    %7920 = vset.pattern.permute.xlu0 20
    %7921 = vperm.xlu0 %7920, %v7807
    %v7922 = vpop.permute.xlu0 %7921
    %7925 = vset.pattern.permute.xlu0 20
    %7926 = vperm.xlu0 %7925, %v7808
    %v7927 = vpop.permute.xlu0 %7926
    %v7929 = vmul.f32 %v7761, %v7812
    %v7930 = vmul.f32 %v7762, %v7817
    %v7931 = vmul.f32 %v7763, %v7822
    %v7932 = vmul.f32 %v7764, %v7827
    %v7933 = vmul.f32 %v7765, %v7832
    %v7934 = vmul.f32 %v7766, %v7837
    %v7935 = vmul.f32 %v7767, %v7842
    %v7936 = vmul.f32 %v7768, %v7847
    %v7937 = vmul.f32 %v7769, %v7852
    %v7938 = vmul.f32 %v7770, %v7857
    %v7939 = vmul.f32 %v7771, %v7862
    %v7940 = vmul.f32 %v7772, %v7867
    %v7941 = vmul.f32 %v7773, %v7872
    %v7942 = vmul.f32 %v7774, %v7877
    %v7943 = vmul.f32 %v7775, %v7882
    %v7944 = vmul.f32 %v7776, %v7887
    %v7945 = vmul.f32 %v7777, %v7892
    %v7946 = vmul.f32 %v7778, %v7897
    %v7947 = vmul.f32 %v7779, %v7902
    %v7948 = vmul.f32 %v7780, %v7907
    %v7949 = vmul.f32 %v7781, %v7912
    %v7950 = vmul.f32 %v7782, %v7917
    %v7951 = vmul.f32 %v7783, %v7922
    %v7952 = vmul.f32 %v7784, %v7927
    %v7953 = vpack.c.bf16 %v7930, %v7929
    %v7954 = vpack.c.bf16 %v7932, %v7931
    %v7955 = vpack.c.bf16 %v7934, %v7933
    %v7956 = vpack.c.bf16 %v7936, %v7935
    %v7957 = vpack.c.bf16 %v7938, %v7937
    %v7958 = vpack.c.bf16 %v7940, %v7939
    %v7959 = vpack.c.bf16 %v7942, %v7941
    %v7960 = vpack.c.bf16 %v7944, %v7943
    %v7961 = vpack.c.bf16 %v7946, %v7945
    %v7962 = vpack.c.bf16 %v7948, %v7947
    %v7963 = vpack.c.bf16 %v7950, %v7949
    %v7964 = vpack.c.bf16 %v7952, %v7951
    %v7965 = vld [vmem:[#allocation2] sm:$0xff]
    %v7966 = vld [vmem:[#allocation2 + $0x8] sm:$0xff]
    %v7967 = vld [vmem:[#allocation2 + $0x10] sm:$0xff]
    %v7968 = vld [vmem:[#allocation2 + $0x18] sm:$0xff]
    %v7969 = vld [vmem:[#allocation2 + $0x20] sm:$0xff]
    %v7970 = vld [vmem:[#allocation2 + $0x28] sm:$0xff]
    %v7971 = vld [vmem:[#allocation2 + $0x30] sm:$0xff]
    %v7972 = vld [vmem:[#allocation2 + $0x38] sm:$0xff]
    %v7973 = vld [vmem:[#allocation2 + $0x40] sm:$0xff]
    %v7974 = vld [vmem:[#allocation2 + $0x48] sm:$0xff]
    %v7975 = vld [vmem:[#allocation2 + $0x50] sm:$0xff]
    %v7976 = vld [vmem:[#allocation2 + $0x58] sm:$0xff]
    %v7977 = vld [vmem:[#allocation2 + $0x60] sm:$0xff]
    %v7978 = vld [vmem:[#allocation2 + $0x68] sm:$0xff]
    %v7979 = vld [vmem:[#allocation2 + $0x70] sm:$0xff]
    %v7980 = vld [vmem:[#allocation2 + $0x78] sm:$0xff]
    %v7981 = vld [vmem:[#allocation2 + $0x80] sm:$0xff]
    %v7982 = vld [vmem:[#allocation2 + $0x88] sm:$0xff]
    %v7983 = vld [vmem:[#allocation2 + $0x90] sm:$0xff]
    %v7984 = vld [vmem:[#allocation2 + $0x98] sm:$0xff]
    %v7985 = vld [vmem:[#allocation2 + $0xa0] sm:$0xff]
    %v7986 = vld [vmem:[#allocation2 + $0xa8] sm:$0xff]
    %v7987 = vld [vmem:[#allocation2 + $0xb0] sm:$0xff]
    %v7988 = vld [vmem:[#allocation2 + $0xb8] sm:$0xff]
    %s7989 = scalar_lea.vmem %s2, 80
    %v7990 = vld [vmem:[%s7989] sm:$0xf]
    %v7992 = vsel %vm269, %v7953, 0
    %v7995 = vsel %vm269, %v7954, 0
    %v7998 = vsel %vm269, %v7955, 0
    %v8001 = vsel %vm269, %v7956, 0
    %v8004 = vsel %vm269, %v7957, 0
    %v8007 = vsel %vm269, %v7958, 0
    %v8010 = vsel %vm269, %v7959, 0
    %v8013 = vsel %vm269, %v7960, 0
    %v8016 = vsel %vm269, %v7961, 0
    %v8019 = vsel %vm269, %v7962, 0
    %v8022 = vsel %vm269, %v7963, 0
    %v8025 = vsel %vm269, %v7964, 0
    %v8028 = vsel %vm306, %v7990, 0
    %8030 = vmatpush.bf16.msra.mxu0 0
    %8031 = vmatpush.bf16.msra.mxu0 0
    %8032 = vmatpush.bf16.msra.mxu0 0
    %8033 = vmatpush.bf16.msra.mxu0 0
    %8034 = vmatpush.bf16.msra.mxu0 0
    %8035 = vmatpush.bf16.msra.mxu0 0
    %8036 = vmatpush.bf16.msra.mxu0 0
    %8037 = vmatpush.bf16.msra.mxu0 %v8028
    %8038 = vmatmul.bf16.gmra.mxu0 %v7992
    %v8039 = vpop.f32.mrf.mxu0
    %v8040 = vadd.f32 0.0, %v8039
    %v8041 = vpop.f32.mrf.mxu0
    %v8042 = vadd.f32 0.0, %v8041
    %8043 = vmatmul.bf16.gmra.mxu0 %v7995
    %v8044 = vpop.f32.mrf.mxu0
    %v8045 = vadd.f32 0.0, %v8044
    %v8046 = vpop.f32.mrf.mxu0
    %v8047 = vadd.f32 0.0, %v8046
    %8048 = vmatmul.bf16.gmra.mxu0 %v7998
    %v8049 = vpop.f32.mrf.mxu0
    %v8050 = vadd.f32 0.0, %v8049
    %v8051 = vpop.f32.mrf.mxu0
    %v8052 = vadd.f32 0.0, %v8051
    %8053 = vmatmul.bf16.gmra.mxu0 %v8001
    %v8054 = vpop.f32.mrf.mxu0
    %v8055 = vadd.f32 0.0, %v8054
    %v8056 = vpop.f32.mrf.mxu0
    %v8057 = vadd.f32 0.0, %v8056
    %8058 = vmatmul.bf16.gmra.mxu0 %v8004
    %v8059 = vpop.f32.mrf.mxu0
    %v8060 = vadd.f32 0.0, %v8059
    %v8061 = vpop.f32.mrf.mxu0
    %v8062 = vadd.f32 0.0, %v8061
    %8063 = vmatmul.bf16.gmra.mxu0 %v8007
    %v8064 = vpop.f32.mrf.mxu0
    %v8065 = vadd.f32 0.0, %v8064
    %v8066 = vpop.f32.mrf.mxu0
    %v8067 = vadd.f32 0.0, %v8066
    %8068 = vmatmul.bf16.gmra.mxu0 %v8010
    %v8069 = vpop.f32.mrf.mxu0
    %v8070 = vadd.f32 0.0, %v8069
    %v8071 = vpop.f32.mrf.mxu0
    %v8072 = vadd.f32 0.0, %v8071
    %8073 = vmatmul.bf16.gmra.mxu0 %v8013
    %v8074 = vpop.f32.mrf.mxu0
    %v8075 = vadd.f32 0.0, %v8074
    %v8076 = vpop.f32.mrf.mxu0
    %v8077 = vadd.f32 0.0, %v8076
    %8078 = vmatmul.bf16.gmra.mxu0 %v8016
    %v8079 = vpop.f32.mrf.mxu0
    %v8080 = vadd.f32 0.0, %v8079
    %v8081 = vpop.f32.mrf.mxu0
    %v8082 = vadd.f32 0.0, %v8081
    %8083 = vmatmul.bf16.gmra.mxu0 %v8019
    %v8084 = vpop.f32.mrf.mxu0
    %v8085 = vadd.f32 0.0, %v8084
    %v8086 = vpop.f32.mrf.mxu0
    %v8087 = vadd.f32 0.0, %v8086
    %8088 = vmatmul.bf16.gmra.mxu0 %v8022
    %v8089 = vpop.f32.mrf.mxu0
    %v8090 = vadd.f32 0.0, %v8089
    %v8091 = vpop.f32.mrf.mxu0
    %v8092 = vadd.f32 0.0, %v8091
    %8093 = vmatmul.bf16.gmra.mxu0 %v8025
    %v8094 = vpop.f32.mrf.mxu0
    %v8095 = vadd.f32 0.0, %v8094
    %v8096 = vpop.f32.mrf.mxu0
    %v8097 = vadd.f32 0.0, %v8096
    %8098 = vdwg.mxu0
    %v8099 = vadd.f32 %v7965, %v8040
    %v8100 = vadd.f32 %v7966, %v8042
    %v8101 = vadd.f32 %v7967, %v8045
    %v8102 = vadd.f32 %v7968, %v8047
    %v8103 = vadd.f32 %v7969, %v8050
    %v8104 = vadd.f32 %v7970, %v8052
    %v8105 = vadd.f32 %v7971, %v8055
    %v8106 = vadd.f32 %v7972, %v8057
    %v8107 = vadd.f32 %v7973, %v8060
    %v8108 = vadd.f32 %v7974, %v8062
    %v8109 = vadd.f32 %v7975, %v8065
    %v8110 = vadd.f32 %v7976, %v8067
    %v8111 = vadd.f32 %v7977, %v8070
    %v8112 = vadd.f32 %v7978, %v8072
    %v8113 = vadd.f32 %v7979, %v8075
    %v8114 = vadd.f32 %v7980, %v8077
    %v8115 = vadd.f32 %v7981, %v8080
    %v8116 = vadd.f32 %v7982, %v8082
    %v8117 = vadd.f32 %v7983, %v8085
    %v8118 = vadd.f32 %v7984, %v8087
    %v8119 = vadd.f32 %v7985, %v8090
    %v8120 = vadd.f32 %v7986, %v8092
    %v8121 = vadd.f32 %v7987, %v8095
    %v8122 = vadd.f32 %v7988, %v8097
    %8123 = vst [vmem:[#allocation2] sm:$0xff] %v8099
    %8124 = vst [vmem:[#allocation2 + $0x8] sm:$0xff] %v8100
    %8125 = vst [vmem:[#allocation2 + $0x10] sm:$0xff] %v8101
    %8126 = vst [vmem:[#allocation2 + $0x18] sm:$0xff] %v8102
    %8127 = vst [vmem:[#allocation2 + $0x20] sm:$0xff] %v8103
    %8128 = vst [vmem:[#allocation2 + $0x28] sm:$0xff] %v8104
    %8129 = vst [vmem:[#allocation2 + $0x30] sm:$0xff] %v8105
    %8130 = vst [vmem:[#allocation2 + $0x38] sm:$0xff] %v8106
    %8131 = vst [vmem:[#allocation2 + $0x40] sm:$0xff] %v8107
    %8132 = vst [vmem:[#allocation2 + $0x48] sm:$0xff] %v8108
    %8133 = vst [vmem:[#allocation2 + $0x50] sm:$0xff] %v8109
    %8134 = vst [vmem:[#allocation2 + $0x58] sm:$0xff] %v8110
    %8135 = vst [vmem:[#allocation2 + $0x60] sm:$0xff] %v8111
    %8136 = vst [vmem:[#allocation2 + $0x68] sm:$0xff] %v8112
    %8137 = vst [vmem:[#allocation2 + $0x70] sm:$0xff] %v8113
    %8138 = vst [vmem:[#allocation2 + $0x78] sm:$0xff] %v8114
    %8139 = vst [vmem:[#allocation2 + $0x80] sm:$0xff] %v8115
    %8140 = vst [vmem:[#allocation2 + $0x88] sm:$0xff] %v8116
    %8141 = vst [vmem:[#allocation2 + $0x90] sm:$0xff] %v8117
    %8142 = vst [vmem:[#allocation2 + $0x98] sm:$0xff] %v8118
    %8143 = vst [vmem:[#allocation2 + $0xa0] sm:$0xff] %v8119
    %8144 = vst [vmem:[#allocation2 + $0xa8] sm:$0xff] %v8120
    %8145 = vst [vmem:[#allocation2 + $0xb0] sm:$0xff] %v8121
    %8146 = vst [vmem:[#allocation2 + $0xb8] sm:$0xff] %v8122
    %v8147 = vld [vmem:[%s1] sm:$0xff]
    %v8148 = vld [vmem:[%s1 + $0x8] sm:$0xff]
    %v8149 = vld [vmem:[%s1 + $0x10] sm:$0xff]
    %v8150 = vld [vmem:[%s1 + $0x18] sm:$0xff]
    %v8151 = vld [vmem:[%s1 + $0x20] sm:$0xff]
    %v8152 = vld [vmem:[%s1 + $0x28] sm:$0xff]
    %v8153 = vld [vmem:[%s1 + $0x30] sm:$0xff]
    %v8154 = vld [vmem:[%s1 + $0x38] sm:$0xff]
    %v8155 = vld [vmem:[%s1 + $0x40] sm:$0xff]
    %v8156 = vld [vmem:[%s1 + $0x48] sm:$0xff]
    %v8157 = vld [vmem:[%s1 + $0x50] sm:$0xff]
    %v8158 = vld [vmem:[%s1 + $0x58] sm:$0xff]
    %v8159 = vld [vmem:[%s1 + $0x60] sm:$0xff]
    %v8160 = vld [vmem:[%s1 + $0x68] sm:$0xff]
    %v8161 = vld [vmem:[%s1 + $0x70] sm:$0xff]
    %v8162 = vld [vmem:[%s1 + $0x78] sm:$0xff]
    %v8163 = vld [vmem:[%s1 + $0x80] sm:$0xff]
    %v8164 = vld [vmem:[%s1 + $0x88] sm:$0xff]
    %v8165 = vld [vmem:[%s1 + $0x90] sm:$0xff]
    %v8166 = vld [vmem:[%s1 + $0x98] sm:$0xff]
    %v8167 = vld [vmem:[%s1 + $0xa0] sm:$0xff]
    %v8168 = vld [vmem:[%s1 + $0xa8] sm:$0xff]
    %v8169 = vld [vmem:[%s1 + $0xb0] sm:$0xff]
    %v8170 = vld [vmem:[%s1 + $0xb8] sm:$0xff]
    %v8171 = vld [vmem:[%s0] sm:$0xff]
    %v8172 = vld [vmem:[%s0 + $0x8] sm:$0xff]
    %v8173 = vld [vmem:[%s0 + $0x10] sm:$0xff]
    %v8174 = vld [vmem:[%s0 + $0x18] sm:$0xff]
    %v8175 = vld [vmem:[%s0 + $0x20] sm:$0xff]
    %v8176 = vld [vmem:[%s0 + $0x28] sm:$0xff]
    %v8177 = vld [vmem:[%s0 + $0x30] sm:$0xff]
    %v8178 = vld [vmem:[%s0 + $0x38] sm:$0xff]
    %v8179 = vld [vmem:[%s0 + $0x40] sm:$0xff]
    %v8180 = vld [vmem:[%s0 + $0x48] sm:$0xff]
    %v8181 = vld [vmem:[%s0 + $0x50] sm:$0xff]
    %v8182 = vld [vmem:[%s0 + $0x58] sm:$0xff]
    %v8183 = vld [vmem:[%s0 + $0x60] sm:$0xff]
    %v8184 = vld [vmem:[%s0 + $0x68] sm:$0xff]
    %v8185 = vld [vmem:[%s0 + $0x70] sm:$0xff]
    %v8186 = vld [vmem:[%s0 + $0x78] sm:$0xff]
    %v8187 = vld [vmem:[%s0 + $0x80] sm:$0xff]
    %v8188 = vld [vmem:[%s0 + $0x88] sm:$0xff]
    %v8189 = vld [vmem:[%s0 + $0x90] sm:$0xff]
    %v8190 = vld [vmem:[%s0 + $0x98] sm:$0xff]
    %v8191 = vld [vmem:[%s0 + $0xa0] sm:$0xff]
    %v8192 = vld [vmem:[%s0 + $0xa8] sm:$0xff]
    %v8193 = vld [vmem:[%s0 + $0xb0] sm:$0xff]
    %v8194 = vld [vmem:[%s0 + $0xb8] sm:$0xff]
    %8196 = vset.pattern.permute.xlu0 21
    %8197 = vperm.xlu0 %8196, %v8171
    %v8198 = vpop.permute.xlu0 %8197
    %8201 = vset.pattern.permute.xlu0 21
    %8202 = vperm.xlu0 %8201, %v8172
    %v8203 = vpop.permute.xlu0 %8202
    %8206 = vset.pattern.permute.xlu0 21
    %8207 = vperm.xlu0 %8206, %v8173
    %v8208 = vpop.permute.xlu0 %8207
    %8211 = vset.pattern.permute.xlu0 21
    %8212 = vperm.xlu0 %8211, %v8174
    %v8213 = vpop.permute.xlu0 %8212
    %8216 = vset.pattern.permute.xlu0 21
    %8217 = vperm.xlu0 %8216, %v8175
    %v8218 = vpop.permute.xlu0 %8217
    %8221 = vset.pattern.permute.xlu0 21
    %8222 = vperm.xlu0 %8221, %v8176
    %v8223 = vpop.permute.xlu0 %8222
    %8226 = vset.pattern.permute.xlu0 21
    %8227 = vperm.xlu0 %8226, %v8177
    %v8228 = vpop.permute.xlu0 %8227
    %8231 = vset.pattern.permute.xlu0 21
    %8232 = vperm.xlu0 %8231, %v8178
    %v8233 = vpop.permute.xlu0 %8232
    %8236 = vset.pattern.permute.xlu0 21
    %8237 = vperm.xlu0 %8236, %v8179
    %v8238 = vpop.permute.xlu0 %8237
    %8241 = vset.pattern.permute.xlu0 21
    %8242 = vperm.xlu0 %8241, %v8180
    %v8243 = vpop.permute.xlu0 %8242
    %8246 = vset.pattern.permute.xlu0 21
    %8247 = vperm.xlu0 %8246, %v8181
    %v8248 = vpop.permute.xlu0 %8247
    %8251 = vset.pattern.permute.xlu0 21
    %8252 = vperm.xlu0 %8251, %v8182
    %v8253 = vpop.permute.xlu0 %8252
    %8256 = vset.pattern.permute.xlu0 21
    %8257 = vperm.xlu0 %8256, %v8183
    %v8258 = vpop.permute.xlu0 %8257
    %8261 = vset.pattern.permute.xlu0 21
    %8262 = vperm.xlu0 %8261, %v8184
    %v8263 = vpop.permute.xlu0 %8262
    %8266 = vset.pattern.permute.xlu0 21
    %8267 = vperm.xlu0 %8266, %v8185
    %v8268 = vpop.permute.xlu0 %8267
    %8271 = vset.pattern.permute.xlu0 21
    %8272 = vperm.xlu0 %8271, %v8186
    %v8273 = vpop.permute.xlu0 %8272
    %8276 = vset.pattern.permute.xlu0 21
    %8277 = vperm.xlu0 %8276, %v8187
    %v8278 = vpop.permute.xlu0 %8277
    %8281 = vset.pattern.permute.xlu0 21
    %8282 = vperm.xlu0 %8281, %v8188
    %v8283 = vpop.permute.xlu0 %8282
    %8286 = vset.pattern.permute.xlu0 21
    %8287 = vperm.xlu0 %8286, %v8189
    %v8288 = vpop.permute.xlu0 %8287
    %8291 = vset.pattern.permute.xlu0 21
    %8292 = vperm.xlu0 %8291, %v8190
    %v8293 = vpop.permute.xlu0 %8292
    %8296 = vset.pattern.permute.xlu0 21
    %8297 = vperm.xlu0 %8296, %v8191
    %v8298 = vpop.permute.xlu0 %8297
    %8301 = vset.pattern.permute.xlu0 21
    %8302 = vperm.xlu0 %8301, %v8192
    %v8303 = vpop.permute.xlu0 %8302
    %8306 = vset.pattern.permute.xlu0 21
    %8307 = vperm.xlu0 %8306, %v8193
    %v8308 = vpop.permute.xlu0 %8307
    %8311 = vset.pattern.permute.xlu0 21
    %8312 = vperm.xlu0 %8311, %v8194
    %v8313 = vpop.permute.xlu0 %8312
    %v8315 = vmul.f32 %v8147, %v8198
    %v8316 = vmul.f32 %v8148, %v8203
    %v8317 = vmul.f32 %v8149, %v8208
    %v8318 = vmul.f32 %v8150, %v8213
    %v8319 = vmul.f32 %v8151, %v8218
    %v8320 = vmul.f32 %v8152, %v8223
    %v8321 = vmul.f32 %v8153, %v8228
    %v8322 = vmul.f32 %v8154, %v8233
    %v8323 = vmul.f32 %v8155, %v8238
    %v8324 = vmul.f32 %v8156, %v8243
    %v8325 = vmul.f32 %v8157, %v8248
    %v8326 = vmul.f32 %v8158, %v8253
    %v8327 = vmul.f32 %v8159, %v8258
    %v8328 = vmul.f32 %v8160, %v8263
    %v8329 = vmul.f32 %v8161, %v8268
    %v8330 = vmul.f32 %v8162, %v8273
    %v8331 = vmul.f32 %v8163, %v8278
    %v8332 = vmul.f32 %v8164, %v8283
    %v8333 = vmul.f32 %v8165, %v8288
    %v8334 = vmul.f32 %v8166, %v8293
    %v8335 = vmul.f32 %v8167, %v8298
    %v8336 = vmul.f32 %v8168, %v8303
    %v8337 = vmul.f32 %v8169, %v8308
    %v8338 = vmul.f32 %v8170, %v8313
    %v8339 = vpack.c.bf16 %v8316, %v8315
    %v8340 = vpack.c.bf16 %v8318, %v8317
    %v8341 = vpack.c.bf16 %v8320, %v8319
    %v8342 = vpack.c.bf16 %v8322, %v8321
    %v8343 = vpack.c.bf16 %v8324, %v8323
    %v8344 = vpack.c.bf16 %v8326, %v8325
    %v8345 = vpack.c.bf16 %v8328, %v8327
    %v8346 = vpack.c.bf16 %v8330, %v8329
    %v8347 = vpack.c.bf16 %v8332, %v8331
    %v8348 = vpack.c.bf16 %v8334, %v8333
    %v8349 = vpack.c.bf16 %v8336, %v8335
    %v8350 = vpack.c.bf16 %v8338, %v8337
    %v8351 = vld [vmem:[#allocation2] sm:$0xff]
    %v8352 = vld [vmem:[#allocation2 + $0x8] sm:$0xff]
    %v8353 = vld [vmem:[#allocation2 + $0x10] sm:$0xff]
    %v8354 = vld [vmem:[#allocation2 + $0x18] sm:$0xff]
    %v8355 = vld [vmem:[#allocation2 + $0x20] sm:$0xff]
    %v8356 = vld [vmem:[#allocation2 + $0x28] sm:$0xff]
    %v8357 = vld [vmem:[#allocation2 + $0x30] sm:$0xff]
    %v8358 = vld [vmem:[#allocation2 + $0x38] sm:$0xff]
    %v8359 = vld [vmem:[#allocation2 + $0x40] sm:$0xff]
    %v8360 = vld [vmem:[#allocation2 + $0x48] sm:$0xff]
    %v8361 = vld [vmem:[#allocation2 + $0x50] sm:$0xff]
    %v8362 = vld [vmem:[#allocation2 + $0x58] sm:$0xff]
    %v8363 = vld [vmem:[#allocation2 + $0x60] sm:$0xff]
    %v8364 = vld [vmem:[#allocation2 + $0x68] sm:$0xff]
    %v8365 = vld [vmem:[#allocation2 + $0x70] sm:$0xff]
    %v8366 = vld [vmem:[#allocation2 + $0x78] sm:$0xff]
    %v8367 = vld [vmem:[#allocation2 + $0x80] sm:$0xff]
    %v8368 = vld [vmem:[#allocation2 + $0x88] sm:$0xff]
    %v8369 = vld [vmem:[#allocation2 + $0x90] sm:$0xff]
    %v8370 = vld [vmem:[#allocation2 + $0x98] sm:$0xff]
    %v8371 = vld [vmem:[#allocation2 + $0xa0] sm:$0xff]
    %v8372 = vld [vmem:[#allocation2 + $0xa8] sm:$0xff]
    %v8373 = vld [vmem:[#allocation2 + $0xb0] sm:$0xff]
    %v8374 = vld [vmem:[#allocation2 + $0xb8] sm:$0xff]
    %s8375 = scalar_lea.vmem %s2, 84
    %v8376 = vld [vmem:[%s8375] sm:$0xf]
    %v8378 = vsel %vm269, %v8339, 0
    %v8381 = vsel %vm269, %v8340, 0
    %v8384 = vsel %vm269, %v8341, 0
    %v8387 = vsel %vm269, %v8342, 0
    %v8390 = vsel %vm269, %v8343, 0
    %v8393 = vsel %vm269, %v8344, 0
    %v8396 = vsel %vm269, %v8345, 0
    %v8399 = vsel %vm269, %v8346, 0
    %v8402 = vsel %vm269, %v8347, 0
    %v8405 = vsel %vm269, %v8348, 0
    %v8408 = vsel %vm269, %v8349, 0
    %v8411 = vsel %vm269, %v8350, 0
    %v8414 = vsel %vm306, %v8376, 0
    %8416 = vmatpush.bf16.msra.mxu0 0
    %8417 = vmatpush.bf16.msra.mxu0 0
    %8418 = vmatpush.bf16.msra.mxu0 0
    %8419 = vmatpush.bf16.msra.mxu0 0
    %8420 = vmatpush.bf16.msra.mxu0 0
    %8421 = vmatpush.bf16.msra.mxu0 0
    %8422 = vmatpush.bf16.msra.mxu0 0
    %8423 = vmatpush.bf16.msra.mxu0 %v8414
    %8424 = vmatmul.bf16.gmra.mxu0 %v8378
    %v8425 = vpop.f32.mrf.mxu0
    %v8426 = vadd.f32 0.0, %v8425
    %v8427 = vpop.f32.mrf.mxu0
    %v8428 = vadd.f32 0.0, %v8427
    %8429 = vmatmul.bf16.gmra.mxu0 %v8381
    %v8430 = vpop.f32.mrf.mxu0
    %v8431 = vadd.f32 0.0, %v8430
    %v8432 = vpop.f32.mrf.mxu0
    %v8433 = vadd.f32 0.0, %v8432
    %8434 = vmatmul.bf16.gmra.mxu0 %v8384
    %v8435 = vpop.f32.mrf.mxu0
    %v8436 = vadd.f32 0.0, %v8435
    %v8437 = vpop.f32.mrf.mxu0
    %v8438 = vadd.f32 0.0, %v8437
    %8439 = vmatmul.bf16.gmra.mxu0 %v8387
    %v8440 = vpop.f32.mrf.mxu0
    %v8441 = vadd.f32 0.0, %v8440
    %v8442 = vpop.f32.mrf.mxu0
    %v8443 = vadd.f32 0.0, %v8442
    %8444 = vmatmul.bf16.gmra.mxu0 %v8390
    %v8445 = vpop.f32.mrf.mxu0
    %v8446 = vadd.f32 0.0, %v8445
    %v8447 = vpop.f32.mrf.mxu0
    %v8448 = vadd.f32 0.0, %v8447
    %8449 = vmatmul.bf16.gmra.mxu0 %v8393
    %v8450 = vpop.f32.mrf.mxu0
    %v8451 = vadd.f32 0.0, %v8450
    %v8452 = vpop.f32.mrf.mxu0
    %v8453 = vadd.f32 0.0, %v8452
    %8454 = vmatmul.bf16.gmra.mxu0 %v8396
    %v8455 = vpop.f32.mrf.mxu0
    %v8456 = vadd.f32 0.0, %v8455
    %v8457 = vpop.f32.mrf.mxu0
    %v8458 = vadd.f32 0.0, %v8457
    %8459 = vmatmul.bf16.gmra.mxu0 %v8399
    %v8460 = vpop.f32.mrf.mxu0
    %v8461 = vadd.f32 0.0, %v8460
    %v8462 = vpop.f32.mrf.mxu0
    %v8463 = vadd.f32 0.0, %v8462
    %8464 = vmatmul.bf16.gmra.mxu0 %v8402
    %v8465 = vpop.f32.mrf.mxu0
    %v8466 = vadd.f32 0.0, %v8465
    %v8467 = vpop.f32.mrf.mxu0
    %v8468 = vadd.f32 0.0, %v8467
    %8469 = vmatmul.bf16.gmra.mxu0 %v8405
    %v8470 = vpop.f32.mrf.mxu0
    %v8471 = vadd.f32 0.0, %v8470
    %v8472 = vpop.f32.mrf.mxu0
    %v8473 = vadd.f32 0.0, %v8472
    %8474 = vmatmul.bf16.gmra.mxu0 %v8408
    %v8475 = vpop.f32.mrf.mxu0
    %v8476 = vadd.f32 0.0, %v8475
    %v8477 = vpop.f32.mrf.mxu0
    %v8478 = vadd.f32 0.0, %v8477
    %8479 = vmatmul.bf16.gmra.mxu0 %v8411
    %v8480 = vpop.f32.mrf.mxu0
    %v8481 = vadd.f32 0.0, %v8480
    %v8482 = vpop.f32.mrf.mxu0
    %v8483 = vadd.f32 0.0, %v8482
    %8484 = vdwg.mxu0
    %v8485 = vadd.f32 %v8351, %v8426
    %v8486 = vadd.f32 %v8352, %v8428
    %v8487 = vadd.f32 %v8353, %v8431
    %v8488 = vadd.f32 %v8354, %v8433
    %v8489 = vadd.f32 %v8355, %v8436
    %v8490 = vadd.f32 %v8356, %v8438
    %v8491 = vadd.f32 %v8357, %v8441
    %v8492 = vadd.f32 %v8358, %v8443
    %v8493 = vadd.f32 %v8359, %v8446
    %v8494 = vadd.f32 %v8360, %v8448
    %v8495 = vadd.f32 %v8361, %v8451
    %v8496 = vadd.f32 %v8362, %v8453
    %v8497 = vadd.f32 %v8363, %v8456
    %v8498 = vadd.f32 %v8364, %v8458
    %v8499 = vadd.f32 %v8365, %v8461
    %v8500 = vadd.f32 %v8366, %v8463
    %v8501 = vadd.f32 %v8367, %v8466
    %v8502 = vadd.f32 %v8368, %v8468
    %v8503 = vadd.f32 %v8369, %v8471
    %v8504 = vadd.f32 %v8370, %v8473
    %v8505 = vadd.f32 %v8371, %v8476
    %v8506 = vadd.f32 %v8372, %v8478
    %v8507 = vadd.f32 %v8373, %v8481
    %v8508 = vadd.f32 %v8374, %v8483
    %8509 = vst [vmem:[#allocation2] sm:$0xff] %v8485
    %8510 = vst [vmem:[#allocation2 + $0x8] sm:$0xff] %v8486
    %8511 = vst [vmem:[#allocation2 + $0x10] sm:$0xff] %v8487
    %8512 = vst [vmem:[#allocation2 + $0x18] sm:$0xff] %v8488
    %8513 = vst [vmem:[#allocation2 + $0x20] sm:$0xff] %v8489
    %8514 = vst [vmem:[#allocation2 + $0x28] sm:$0xff] %v8490
    %8515 = vst [vmem:[#allocation2 + $0x30] sm:$0xff] %v8491
    %8516 = vst [vmem:[#allocation2 + $0x38] sm:$0xff] %v8492
    %8517 = vst [vmem:[#allocation2 + $0x40] sm:$0xff] %v8493
    %8518 = vst [vmem:[#allocation2 + $0x48] sm:$0xff] %v8494
    %8519 = vst [vmem:[#allocation2 + $0x50] sm:$0xff] %v8495
    %8520 = vst [vmem:[#allocation2 + $0x58] sm:$0xff] %v8496
    %8521 = vst [vmem:[#allocation2 + $0x60] sm:$0xff] %v8497
    %8522 = vst [vmem:[#allocation2 + $0x68] sm:$0xff] %v8498
    %8523 = vst [vmem:[#allocation2 + $0x70] sm:$0xff] %v8499
    %8524 = vst [vmem:[#allocation2 + $0x78] sm:$0xff] %v8500
    %8525 = vst [vmem:[#allocation2 + $0x80] sm:$0xff] %v8501
    %8526 = vst [vmem:[#allocation2 + $0x88] sm:$0xff] %v8502
    %8527 = vst [vmem:[#allocation2 + $0x90] sm:$0xff] %v8503
    %8528 = vst [vmem:[#allocation2 + $0x98] sm:$0xff] %v8504
    %8529 = vst [vmem:[#allocation2 + $0xa0] sm:$0xff] %v8505
    %8530 = vst [vmem:[#allocation2 + $0xa8] sm:$0xff] %v8506
    %8531 = vst [vmem:[#allocation2 + $0xb0] sm:$0xff] %v8507
    %8532 = vst [vmem:[#allocation2 + $0xb8] sm:$0xff] %v8508
    %v8533 = vld [vmem:[%s1] sm:$0xff]
    %v8534 = vld [vmem:[%s1 + $0x8] sm:$0xff]
    %v8535 = vld [vmem:[%s1 + $0x10] sm:$0xff]
    %v8536 = vld [vmem:[%s1 + $0x18] sm:$0xff]
    %v8537 = vld [vmem:[%s1 + $0x20] sm:$0xff]
    %v8538 = vld [vmem:[%s1 + $0x28] sm:$0xff]
    %v8539 = vld [vmem:[%s1 + $0x30] sm:$0xff]
    %v8540 = vld [vmem:[%s1 + $0x38] sm:$0xff]
    %v8541 = vld [vmem:[%s1 + $0x40] sm:$0xff]
    %v8542 = vld [vmem:[%s1 + $0x48] sm:$0xff]
    %v8543 = vld [vmem:[%s1 + $0x50] sm:$0xff]
    %v8544 = vld [vmem:[%s1 + $0x58] sm:$0xff]
    %v8545 = vld [vmem:[%s1 + $0x60] sm:$0xff]
    %v8546 = vld [vmem:[%s1 + $0x68] sm:$0xff]
    %v8547 = vld [vmem:[%s1 + $0x70] sm:$0xff]
    %v8548 = vld [vmem:[%s1 + $0x78] sm:$0xff]
    %v8549 = vld [vmem:[%s1 + $0x80] sm:$0xff]
    %v8550 = vld [vmem:[%s1 + $0x88] sm:$0xff]
    %v8551 = vld [vmem:[%s1 + $0x90] sm:$0xff]
    %v8552 = vld [vmem:[%s1 + $0x98] sm:$0xff]
    %v8553 = vld [vmem:[%s1 + $0xa0] sm:$0xff]
    %v8554 = vld [vmem:[%s1 + $0xa8] sm:$0xff]
    %v8555 = vld [vmem:[%s1 + $0xb0] sm:$0xff]
    %v8556 = vld [vmem:[%s1 + $0xb8] sm:$0xff]
    %v8557 = vld [vmem:[%s0] sm:$0xff]
    %v8558 = vld [vmem:[%s0 + $0x8] sm:$0xff]
    %v8559 = vld [vmem:[%s0 + $0x10] sm:$0xff]
    %v8560 = vld [vmem:[%s0 + $0x18] sm:$0xff]
    %v8561 = vld [vmem:[%s0 + $0x20] sm:$0xff]
    %v8562 = vld [vmem:[%s0 + $0x28] sm:$0xff]
    %v8563 = vld [vmem:[%s0 + $0x30] sm:$0xff]
    %v8564 = vld [vmem:[%s0 + $0x38] sm:$0xff]
    %v8565 = vld [vmem:[%s0 + $0x40] sm:$0xff]
    %v8566 = vld [vmem:[%s0 + $0x48] sm:$0xff]
    %v8567 = vld [vmem:[%s0 + $0x50] sm:$0xff]
    %v8568 = vld [vmem:[%s0 + $0x58] sm:$0xff]
    %v8569 = vld [vmem:[%s0 + $0x60] sm:$0xff]
    %v8570 = vld [vmem:[%s0 + $0x68] sm:$0xff]
    %v8571 = vld [vmem:[%s0 + $0x70] sm:$0xff]
    %v8572 = vld [vmem:[%s0 + $0x78] sm:$0xff]
    %v8573 = vld [vmem:[%s0 + $0x80] sm:$0xff]
    %v8574 = vld [vmem:[%s0 + $0x88] sm:$0xff]
    %v8575 = vld [vmem:[%s0 + $0x90] sm:$0xff]
    %v8576 = vld [vmem:[%s0 + $0x98] sm:$0xff]
    %v8577 = vld [vmem:[%s0 + $0xa0] sm:$0xff]
    %v8578 = vld [vmem:[%s0 + $0xa8] sm:$0xff]
    %v8579 = vld [vmem:[%s0 + $0xb0] sm:$0xff]
    %v8580 = vld [vmem:[%s0 + $0xb8] sm:$0xff]
    %8582 = vset.pattern.permute.xlu0 22
    %8583 = vperm.xlu0 %8582, %v8557
    %v8584 = vpop.permute.xlu0 %8583
    %8587 = vset.pattern.permute.xlu0 22
    %8588 = vperm.xlu0 %8587, %v8558
    %v8589 = vpop.permute.xlu0 %8588
    %8592 = vset.pattern.permute.xlu0 22
    %8593 = vperm.xlu0 %8592, %v8559
    %v8594 = vpop.permute.xlu0 %8593
    %8597 = vset.pattern.permute.xlu0 22
    %8598 = vperm.xlu0 %8597, %v8560
    %v8599 = vpop.permute.xlu0 %8598
    %8602 = vset.pattern.permute.xlu0 22
    %8603 = vperm.xlu0 %8602, %v8561
    %v8604 = vpop.permute.xlu0 %8603
    %8607 = vset.pattern.permute.xlu0 22
    %8608 = vperm.xlu0 %8607, %v8562
    %v8609 = vpop.permute.xlu0 %8608
    %8612 = vset.pattern.permute.xlu0 22
    %8613 = vperm.xlu0 %8612, %v8563
    %v8614 = vpop.permute.xlu0 %8613
    %8617 = vset.pattern.permute.xlu0 22
    %8618 = vperm.xlu0 %8617, %v8564
    %v8619 = vpop.permute.xlu0 %8618
    %8622 = vset.pattern.permute.xlu0 22
    %8623 = vperm.xlu0 %8622, %v8565
    %v8624 = vpop.permute.xlu0 %8623
    %8627 = vset.pattern.permute.xlu0 22
    %8628 = vperm.xlu0 %8627, %v8566
    %v8629 = vpop.permute.xlu0 %8628
    %8632 = vset.pattern.permute.xlu0 22
    %8633 = vperm.xlu0 %8632, %v8567
    %v8634 = vpop.permute.xlu0 %8633
    %8637 = vset.pattern.permute.xlu0 22
    %8638 = vperm.xlu0 %8637, %v8568
    %v8639 = vpop.permute.xlu0 %8638
    %8642 = vset.pattern.permute.xlu0 22
    %8643 = vperm.xlu0 %8642, %v8569
    %v8644 = vpop.permute.xlu0 %8643
    %8647 = vset.pattern.permute.xlu0 22
    %8648 = vperm.xlu0 %8647, %v8570
    %v8649 = vpop.permute.xlu0 %8648
    %8652 = vset.pattern.permute.xlu0 22
    %8653 = vperm.xlu0 %8652, %v8571
    %v8654 = vpop.permute.xlu0 %8653
    %8657 = vset.pattern.permute.xlu0 22
    %8658 = vperm.xlu0 %8657, %v8572
    %v8659 = vpop.permute.xlu0 %8658
    %8662 = vset.pattern.permute.xlu0 22
    %8663 = vperm.xlu0 %8662, %v8573
    %v8664 = vpop.permute.xlu0 %8663
    %8667 = vset.pattern.permute.xlu0 22
    %8668 = vperm.xlu0 %8667, %v8574
    %v8669 = vpop.permute.xlu0 %8668
    %8672 = vset.pattern.permute.xlu0 22
    %8673 = vperm.xlu0 %8672, %v8575
    %v8674 = vpop.permute.xlu0 %8673
    %8677 = vset.pattern.permute.xlu0 22
    %8678 = vperm.xlu0 %8677, %v8576
    %v8679 = vpop.permute.xlu0 %8678
    %8682 = vset.pattern.permute.xlu0 22
    %8683 = vperm.xlu0 %8682, %v8577
    %v8684 = vpop.permute.xlu0 %8683
    %8687 = vset.pattern.permute.xlu0 22
    %8688 = vperm.xlu0 %8687, %v8578
    %v8689 = vpop.permute.xlu0 %8688
    %8692 = vset.pattern.permute.xlu0 22
    %8693 = vperm.xlu0 %8692, %v8579
    %v8694 = vpop.permute.xlu0 %8693
    %8697 = vset.pattern.permute.xlu0 22
    %8698 = vperm.xlu0 %8697, %v8580
    %v8699 = vpop.permute.xlu0 %8698
    %v8701 = vmul.f32 %v8533, %v8584
    %v8702 = vmul.f32 %v8534, %v8589
    %v8703 = vmul.f32 %v8535, %v8594
    %v8704 = vmul.f32 %v8536, %v8599
    %v8705 = vmul.f32 %v8537, %v8604
    %v8706 = vmul.f32 %v8538, %v8609
    %v8707 = vmul.f32 %v8539, %v8614
    %v8708 = vmul.f32 %v8540, %v8619
    %v8709 = vmul.f32 %v8541, %v8624
    %v8710 = vmul.f32 %v8542, %v8629
    %v8711 = vmul.f32 %v8543, %v8634
    %v8712 = vmul.f32 %v8544, %v8639
    %v8713 = vmul.f32 %v8545, %v8644
    %v8714 = vmul.f32 %v8546, %v8649
    %v8715 = vmul.f32 %v8547, %v8654
    %v8716 = vmul.f32 %v8548, %v8659
    %v8717 = vmul.f32 %v8549, %v8664
    %v8718 = vmul.f32 %v8550, %v8669
    %v8719 = vmul.f32 %v8551, %v8674
    %v8720 = vmul.f32 %v8552, %v8679
    %v8721 = vmul.f32 %v8553, %v8684
    %v8722 = vmul.f32 %v8554, %v8689
    %v8723 = vmul.f32 %v8555, %v8694
    %v8724 = vmul.f32 %v8556, %v8699
    %v8725 = vpack.c.bf16 %v8702, %v8701
    %v8726 = vpack.c.bf16 %v8704, %v8703
    %v8727 = vpack.c.bf16 %v8706, %v8705
    %v8728 = vpack.c.bf16 %v8708, %v8707
    %v8729 = vpack.c.bf16 %v8710, %v8709
    %v8730 = vpack.c.bf16 %v8712, %v8711
    %v8731 = vpack.c.bf16 %v8714, %v8713
    %v8732 = vpack.c.bf16 %v8716, %v8715
    %v8733 = vpack.c.bf16 %v8718, %v8717
    %v8734 = vpack.c.bf16 %v8720, %v8719
    %v8735 = vpack.c.bf16 %v8722, %v8721
    %v8736 = vpack.c.bf16 %v8724, %v8723
    %v8737 = vld [vmem:[#allocation2] sm:$0xff]
    %v8738 = vld [vmem:[#allocation2 + $0x8] sm:$0xff]
    %v8739 = vld [vmem:[#allocation2 + $0x10] sm:$0xff]
    %v8740 = vld [vmem:[#allocation2 + $0x18] sm:$0xff]
    %v8741 = vld [vmem:[#allocation2 + $0x20] sm:$0xff]
    %v8742 = vld [vmem:[#allocation2 + $0x28] sm:$0xff]
    %v8743 = vld [vmem:[#allocation2 + $0x30] sm:$0xff]
    %v8744 = vld [vmem:[#allocation2 + $0x38] sm:$0xff]
    %v8745 = vld [vmem:[#allocation2 + $0x40] sm:$0xff]
    %v8746 = vld [vmem:[#allocation2 + $0x48] sm:$0xff]
    %v8747 = vld [vmem:[#allocation2 + $0x50] sm:$0xff]
    %v8748 = vld [vmem:[#allocation2 + $0x58] sm:$0xff]
    %v8749 = vld [vmem:[#allocation2 + $0x60] sm:$0xff]
    %v8750 = vld [vmem:[#allocation2 + $0x68] sm:$0xff]
    %v8751 = vld [vmem:[#allocation2 + $0x70] sm:$0xff]
    %v8752 = vld [vmem:[#allocation2 + $0x78] sm:$0xff]
    %v8753 = vld [vmem:[#allocation2 + $0x80] sm:$0xff]
    %v8754 = vld [vmem:[#allocation2 + $0x88] sm:$0xff]
    %v8755 = vld [vmem:[#allocation2 + $0x90] sm:$0xff]
    %v8756 = vld [vmem:[#allocation2 + $0x98] sm:$0xff]
    %v8757 = vld [vmem:[#allocation2 + $0xa0] sm:$0xff]
    %v8758 = vld [vmem:[#allocation2 + $0xa8] sm:$0xff]
    %v8759 = vld [vmem:[#allocation2 + $0xb0] sm:$0xff]
    %v8760 = vld [vmem:[#allocation2 + $0xb8] sm:$0xff]
    %s8761 = scalar_lea.vmem %s2, 88
    %v8762 = vld [vmem:[%s8761] sm:$0xf]
    %v8764 = vsel %vm269, %v8725, 0
    %v8767 = vsel %vm269, %v8726, 0
    %v8770 = vsel %vm269, %v8727, 0
    %v8773 = vsel %vm269, %v8728, 0
    %v8776 = vsel %vm269, %v8729, 0
    %v8779 = vsel %vm269, %v8730, 0
    %v8782 = vsel %vm269, %v8731, 0
    %v8785 = vsel %vm269, %v8732, 0
    %v8788 = vsel %vm269, %v8733, 0
    %v8791 = vsel %vm269, %v8734, 0
    %v8794 = vsel %vm269, %v8735, 0
    %v8797 = vsel %vm269, %v8736, 0
    %v8800 = vsel %vm306, %v8762, 0
    %8802 = vmatpush.bf16.msra.mxu0 0
    %8803 = vmatpush.bf16.msra.mxu0 0
    %8804 = vmatpush.bf16.msra.mxu0 0
    %8805 = vmatpush.bf16.msra.mxu0 0
    %8806 = vmatpush.bf16.msra.mxu0 0
    %8807 = vmatpush.bf16.msra.mxu0 0
    %8808 = vmatpush.bf16.msra.mxu0 0
    %8809 = vmatpush.bf16.msra.mxu0 %v8800
    %8810 = vmatmul.bf16.gmra.mxu0 %v8764
    %v8811 = vpop.f32.mrf.mxu0
    %v8812 = vadd.f32 0.0, %v8811
    %v8813 = vpop.f32.mrf.mxu0
    %v8814 = vadd.f32 0.0, %v8813
    %8815 = vmatmul.bf16.gmra.mxu0 %v8767
    %v8816 = vpop.f32.mrf.mxu0
    %v8817 = vadd.f32 0.0, %v8816
    %v8818 = vpop.f32.mrf.mxu0
    %v8819 = vadd.f32 0.0, %v8818
    %8820 = vmatmul.bf16.gmra.mxu0 %v8770
    %v8821 = vpop.f32.mrf.mxu0
    %v8822 = vadd.f32 0.0, %v8821
    %v8823 = vpop.f32.mrf.mxu0
    %v8824 = vadd.f32 0.0, %v8823
    %8825 = vmatmul.bf16.gmra.mxu0 %v8773
    %v8826 = vpop.f32.mrf.mxu0
    %v8827 = vadd.f32 0.0, %v8826
    %v8828 = vpop.f32.mrf.mxu0
    %v8829 = vadd.f32 0.0, %v8828
    %8830 = vmatmul.bf16.gmra.mxu0 %v8776
    %v8831 = vpop.f32.mrf.mxu0
    %v8832 = vadd.f32 0.0, %v8831
    %v8833 = vpop.f32.mrf.mxu0
    %v8834 = vadd.f32 0.0, %v8833
    %8835 = vmatmul.bf16.gmra.mxu0 %v8779
    %v8836 = vpop.f32.mrf.mxu0
    %v8837 = vadd.f32 0.0, %v8836
    %v8838 = vpop.f32.mrf.mxu0
    %v8839 = vadd.f32 0.0, %v8838
    %8840 = vmatmul.bf16.gmra.mxu0 %v8782
    %v8841 = vpop.f32.mrf.mxu0
    %v8842 = vadd.f32 0.0, %v8841
    %v8843 = vpop.f32.mrf.mxu0
    %v8844 = vadd.f32 0.0, %v8843
    %8845 = vmatmul.bf16.gmra.mxu0 %v8785
    %v8846 = vpop.f32.mrf.mxu0
    %v8847 = vadd.f32 0.0, %v8846
    %v8848 = vpop.f32.mrf.mxu0
    %v8849 = vadd.f32 0.0, %v8848
    %8850 = vmatmul.bf16.gmra.mxu0 %v8788
    %v8851 = vpop.f32.mrf.mxu0
    %v8852 = vadd.f32 0.0, %v8851
    %v8853 = vpop.f32.mrf.mxu0
    %v8854 = vadd.f32 0.0, %v8853
    %8855 = vmatmul.bf16.gmra.mxu0 %v8791
    %v8856 = vpop.f32.mrf.mxu0
    %v8857 = vadd.f32 0.0, %v8856
    %v8858 = vpop.f32.mrf.mxu0
    %v8859 = vadd.f32 0.0, %v8858
    %8860 = vmatmul.bf16.gmra.mxu0 %v8794
    %v8861 = vpop.f32.mrf.mxu0
    %v8862 = vadd.f32 0.0, %v8861
    %v8863 = vpop.f32.mrf.mxu0
    %v8864 = vadd.f32 0.0, %v8863
    %8865 = vmatmul.bf16.gmra.mxu0 %v8797
    %v8866 = vpop.f32.mrf.mxu0
    %v8867 = vadd.f32 0.0, %v8866
    %v8868 = vpop.f32.mrf.mxu0
    %v8869 = vadd.f32 0.0, %v8868
    %8870 = vdwg.mxu0
    %v8871 = vadd.f32 %v8737, %v8812
    %v8872 = vadd.f32 %v8738, %v8814
    %v8873 = vadd.f32 %v8739, %v8817
    %v8874 = vadd.f32 %v8740, %v8819
    %v8875 = vadd.f32 %v8741, %v8822
    %v8876 = vadd.f32 %v8742, %v8824
    %v8877 = vadd.f32 %v8743, %v8827
    %v8878 = vadd.f32 %v8744, %v8829
    %v8879 = vadd.f32 %v8745, %v8832
    %v8880 = vadd.f32 %v8746, %v8834
    %v8881 = vadd.f32 %v8747, %v8837
    %v8882 = vadd.f32 %v8748, %v8839
    %v8883 = vadd.f32 %v8749, %v8842
    %v8884 = vadd.f32 %v8750, %v8844
    %v8885 = vadd.f32 %v8751, %v8847
    %v8886 = vadd.f32 %v8752, %v8849
    %v8887 = vadd.f32 %v8753, %v8852
    %v8888 = vadd.f32 %v8754, %v8854
    %v8889 = vadd.f32 %v8755, %v8857
    %v8890 = vadd.f32 %v8756, %v8859
    %v8891 = vadd.f32 %v8757, %v8862
    %v8892 = vadd.f32 %v8758, %v8864
    %v8893 = vadd.f32 %v8759, %v8867
    %v8894 = vadd.f32 %v8760, %v8869
    %8895 = vst [vmem:[#allocation2] sm:$0xff] %v8871
    %8896 = vst [vmem:[#allocation2 + $0x8] sm:$0xff] %v8872
    %8897 = vst [vmem:[#allocation2 + $0x10] sm:$0xff] %v8873
    %8898 = vst [vmem:[#allocation2 + $0x18] sm:$0xff] %v8874
    %8899 = vst [vmem:[#allocation2 + $0x20] sm:$0xff] %v8875
    %8900 = vst [vmem:[#allocation2 + $0x28] sm:$0xff] %v8876
    %8901 = vst [vmem:[#allocation2 + $0x30] sm:$0xff] %v8877
    %8902 = vst [vmem:[#allocation2 + $0x38] sm:$0xff] %v8878
    %8903 = vst [vmem:[#allocation2 + $0x40] sm:$0xff] %v8879
    %8904 = vst [vmem:[#allocation2 + $0x48] sm:$0xff] %v8880
    %8905 = vst [vmem:[#allocation2 + $0x50] sm:$0xff] %v8881
    %8906 = vst [vmem:[#allocation2 + $0x58] sm:$0xff] %v8882
    %8907 = vst [vmem:[#allocation2 + $0x60] sm:$0xff] %v8883
    %8908 = vst [vmem:[#allocation2 + $0x68] sm:$0xff] %v8884
    %8909 = vst [vmem:[#allocation2 + $0x70] sm:$0xff] %v8885
    %8910 = vst [vmem:[#allocation2 + $0x78] sm:$0xff] %v8886
    %8911 = vst [vmem:[#allocation2 + $0x80] sm:$0xff] %v8887
    %8912 = vst [vmem:[#allocation2 + $0x88] sm:$0xff] %v8888
    %8913 = vst [vmem:[#allocation2 + $0x90] sm:$0xff] %v8889
    %8914 = vst [vmem:[#allocation2 + $0x98] sm:$0xff] %v8890
    %8915 = vst [vmem:[#allocation2 + $0xa0] sm:$0xff] %v8891
    %8916 = vst [vmem:[#allocation2 + $0xa8] sm:$0xff] %v8892
    %8917 = vst [vmem:[#allocation2 + $0xb0] sm:$0xff] %v8893
    %8918 = vst [vmem:[#allocation2 + $0xb8] sm:$0xff] %v8894
    %v8919 = vld [vmem:[%s1] sm:$0xff]
    %v8920 = vld [vmem:[%s1 + $0x8] sm:$0xff]
    %v8921 = vld [vmem:[%s1 + $0x10] sm:$0xff]
    %v8922 = vld [vmem:[%s1 + $0x18] sm:$0xff]
    %v8923 = vld [vmem:[%s1 + $0x20] sm:$0xff]
    %v8924 = vld [vmem:[%s1 + $0x28] sm:$0xff]
    %v8925 = vld [vmem:[%s1 + $0x30] sm:$0xff]
    %v8926 = vld [vmem:[%s1 + $0x38] sm:$0xff]
    %v8927 = vld [vmem:[%s1 + $0x40] sm:$0xff]
    %v8928 = vld [vmem:[%s1 + $0x48] sm:$0xff]
    %v8929 = vld [vmem:[%s1 + $0x50] sm:$0xff]
    %v8930 = vld [vmem:[%s1 + $0x58] sm:$0xff]
    %v8931 = vld [vmem:[%s1 + $0x60] sm:$0xff]
    %v8932 = vld [vmem:[%s1 + $0x68] sm:$0xff]
    %v8933 = vld [vmem:[%s1 + $0x70] sm:$0xff]
    %v8934 = vld [vmem:[%s1 + $0x78] sm:$0xff]
    %v8935 = vld [vmem:[%s1 + $0x80] sm:$0xff]
    %v8936 = vld [vmem:[%s1 + $0x88] sm:$0xff]
    %v8937 = vld [vmem:[%s1 + $0x90] sm:$0xff]
    %v8938 = vld [vmem:[%s1 + $0x98] sm:$0xff]
    %v8939 = vld [vmem:[%s1 + $0xa0] sm:$0xff]
    %v8940 = vld [vmem:[%s1 + $0xa8] sm:$0xff]
    %v8941 = vld [vmem:[%s1 + $0xb0] sm:$0xff]
    %v8942 = vld [vmem:[%s1 + $0xb8] sm:$0xff]
    %v8943 = vld [vmem:[%s0] sm:$0xff]
    %v8944 = vld [vmem:[%s0 + $0x8] sm:$0xff]
    %v8945 = vld [vmem:[%s0 + $0x10] sm:$0xff]
    %v8946 = vld [vmem:[%s0 + $0x18] sm:$0xff]
    %v8947 = vld [vmem:[%s0 + $0x20] sm:$0xff]
    %v8948 = vld [vmem:[%s0 + $0x28] sm:$0xff]
    %v8949 = vld [vmem:[%s0 + $0x30] sm:$0xff]
    %v8950 = vld [vmem:[%s0 + $0x38] sm:$0xff]
    %v8951 = vld [vmem:[%s0 + $0x40] sm:$0xff]
    %v8952 = vld [vmem:[%s0 + $0x48] sm:$0xff]
    %v8953 = vld [vmem:[%s0 + $0x50] sm:$0xff]
    %v8954 = vld [vmem:[%s0 + $0x58] sm:$0xff]
    %v8955 = vld [vmem:[%s0 + $0x60] sm:$0xff]
    %v8956 = vld [vmem:[%s0 + $0x68] sm:$0xff]
    %v8957 = vld [vmem:[%s0 + $0x70] sm:$0xff]
    %v8958 = vld [vmem:[%s0 + $0x78] sm:$0xff]
    %v8959 = vld [vmem:[%s0 + $0x80] sm:$0xff]
    %v8960 = vld [vmem:[%s0 + $0x88] sm:$0xff]
    %v8961 = vld [vmem:[%s0 + $0x90] sm:$0xff]
    %v8962 = vld [vmem:[%s0 + $0x98] sm:$0xff]
    %v8963 = vld [vmem:[%s0 + $0xa0] sm:$0xff]
    %v8964 = vld [vmem:[%s0 + $0xa8] sm:$0xff]
    %v8965 = vld [vmem:[%s0 + $0xb0] sm:$0xff]
    %v8966 = vld [vmem:[%s0 + $0xb8] sm:$0xff]
    %8968 = vset.pattern.permute.xlu0 23
    %8969 = vperm.xlu0 %8968, %v8943
    %v8970 = vpop.permute.xlu0 %8969
    %8973 = vset.pattern.permute.xlu0 23
    %8974 = vperm.xlu0 %8973, %v8944
    %v8975 = vpop.permute.xlu0 %8974
    %8978 = vset.pattern.permute.xlu0 23
    %8979 = vperm.xlu0 %8978, %v8945
    %v8980 = vpop.permute.xlu0 %8979
    %8983 = vset.pattern.permute.xlu0 23
    %8984 = vperm.xlu0 %8983, %v8946
    %v8985 = vpop.permute.xlu0 %8984
    %8988 = vset.pattern.permute.xlu0 23
    %8989 = vperm.xlu0 %8988, %v8947
    %v8990 = vpop.permute.xlu0 %8989
    %8993 = vset.pattern.permute.xlu0 23
    %8994 = vperm.xlu0 %8993, %v8948
    %v8995 = vpop.permute.xlu0 %8994
    %8998 = vset.pattern.permute.xlu0 23
    %8999 = vperm.xlu0 %8998, %v8949
    %v9000 = vpop.permute.xlu0 %8999
    %9003 = vset.pattern.permute.xlu0 23
    %9004 = vperm.xlu0 %9003, %v8950
    %v9005 = vpop.permute.xlu0 %9004
    %9008 = vset.pattern.permute.xlu0 23
    %9009 = vperm.xlu0 %9008, %v8951
    %v9010 = vpop.permute.xlu0 %9009
    %9013 = vset.pattern.permute.xlu0 23
    %9014 = vperm.xlu0 %9013, %v8952
    %v9015 = vpop.permute.xlu0 %9014
    %9018 = vset.pattern.permute.xlu0 23
    %9019 = vperm.xlu0 %9018, %v8953
    %v9020 = vpop.permute.xlu0 %9019
    %9023 = vset.pattern.permute.xlu0 23
    %9024 = vperm.xlu0 %9023, %v8954
    %v9025 = vpop.permute.xlu0 %9024
    %9028 = vset.pattern.permute.xlu0 23
    %9029 = vperm.xlu0 %9028, %v8955
    %v9030 = vpop.permute.xlu0 %9029
    %9033 = vset.pattern.permute.xlu0 23
    %9034 = vperm.xlu0 %9033, %v8956
    %v9035 = vpop.permute.xlu0 %9034
    %9038 = vset.pattern.permute.xlu0 23
    %9039 = vperm.xlu0 %9038, %v8957
    %v9040 = vpop.permute.xlu0 %9039
    %9043 = vset.pattern.permute.xlu0 23
    %9044 = vperm.xlu0 %9043, %v8958
    %v9045 = vpop.permute.xlu0 %9044
    %9048 = vset.pattern.permute.xlu0 23
    %9049 = vperm.xlu0 %9048, %v8959
    %v9050 = vpop.permute.xlu0 %9049
    %9053 = vset.pattern.permute.xlu0 23
    %9054 = vperm.xlu0 %9053, %v8960
    %v9055 = vpop.permute.xlu0 %9054
    %9058 = vset.pattern.permute.xlu0 23
    %9059 = vperm.xlu0 %9058, %v8961
    %v9060 = vpop.permute.xlu0 %9059
    %9063 = vset.pattern.permute.xlu0 23
    %9064 = vperm.xlu0 %9063, %v8962
    %v9065 = vpop.permute.xlu0 %9064
    %9068 = vset.pattern.permute.xlu0 23
    %9069 = vperm.xlu0 %9068, %v8963
    %v9070 = vpop.permute.xlu0 %9069
    %9073 = vset.pattern.permute.xlu0 23
    %9074 = vperm.xlu0 %9073, %v8964
    %v9075 = vpop.permute.xlu0 %9074
    %9078 = vset.pattern.permute.xlu0 23
    %9079 = vperm.xlu0 %9078, %v8965
    %v9080 = vpop.permute.xlu0 %9079
    %9083 = vset.pattern.permute.xlu0 23
    %9084 = vperm.xlu0 %9083, %v8966
    %v9085 = vpop.permute.xlu0 %9084
    %v9087 = vmul.f32 %v8919, %v8970
    %v9088 = vmul.f32 %v8920, %v8975
    %v9089 = vmul.f32 %v8921, %v8980
    %v9090 = vmul.f32 %v8922, %v8985
    %v9091 = vmul.f32 %v8923, %v8990
    %v9092 = vmul.f32 %v8924, %v8995
    %v9093 = vmul.f32 %v8925, %v9000
    %v9094 = vmul.f32 %v8926, %v9005
    %v9095 = vmul.f32 %v8927, %v9010
    %v9096 = vmul.f32 %v8928, %v9015
    %v9097 = vmul.f32 %v8929, %v9020
    %v9098 = vmul.f32 %v8930, %v9025
    %v9099 = vmul.f32 %v8931, %v9030
    %v9100 = vmul.f32 %v8932, %v9035
    %v9101 = vmul.f32 %v8933, %v9040
    %v9102 = vmul.f32 %v8934, %v9045
    %v9103 = vmul.f32 %v8935, %v9050
    %v9104 = vmul.f32 %v8936, %v9055
    %v9105 = vmul.f32 %v8937, %v9060
    %v9106 = vmul.f32 %v8938, %v9065
    %v9107 = vmul.f32 %v8939, %v9070
    %v9108 = vmul.f32 %v8940, %v9075
    %v9109 = vmul.f32 %v8941, %v9080
    %v9110 = vmul.f32 %v8942, %v9085
    %v9111 = vpack.c.bf16 %v9088, %v9087
    %v9112 = vpack.c.bf16 %v9090, %v9089
    %v9113 = vpack.c.bf16 %v9092, %v9091
    %v9114 = vpack.c.bf16 %v9094, %v9093
    %v9115 = vpack.c.bf16 %v9096, %v9095
    %v9116 = vpack.c.bf16 %v9098, %v9097
    %v9117 = vpack.c.bf16 %v9100, %v9099
    %v9118 = vpack.c.bf16 %v9102, %v9101
    %v9119 = vpack.c.bf16 %v9104, %v9103
    %v9120 = vpack.c.bf16 %v9106, %v9105
    %v9121 = vpack.c.bf16 %v9108, %v9107
    %v9122 = vpack.c.bf16 %v9110, %v9109
    %v9123 = vld [vmem:[#allocation2] sm:$0xff]
    %v9124 = vld [vmem:[#allocation2 + $0x8] sm:$0xff]
    %v9125 = vld [vmem:[#allocation2 + $0x10] sm:$0xff]
    %v9126 = vld [vmem:[#allocation2 + $0x18] sm:$0xff]
    %v9127 = vld [vmem:[#allocation2 + $0x20] sm:$0xff]
    %v9128 = vld [vmem:[#allocation2 + $0x28] sm:$0xff]
    %v9129 = vld [vmem:[#allocation2 + $0x30] sm:$0xff]
    %v9130 = vld [vmem:[#allocation2 + $0x38] sm:$0xff]
    %v9131 = vld [vmem:[#allocation2 + $0x40] sm:$0xff]
    %v9132 = vld [vmem:[#allocation2 + $0x48] sm:$0xff]
    %v9133 = vld [vmem:[#allocation2 + $0x50] sm:$0xff]
    %v9134 = vld [vmem:[#allocation2 + $0x58] sm:$0xff]
    %v9135 = vld [vmem:[#allocation2 + $0x60] sm:$0xff]
    %v9136 = vld [vmem:[#allocation2 + $0x68] sm:$0xff]
    %v9137 = vld [vmem:[#allocation2 + $0x70] sm:$0xff]
    %v9138 = vld [vmem:[#allocation2 + $0x78] sm:$0xff]
    %v9139 = vld [vmem:[#allocation2 + $0x80] sm:$0xff]
    %v9140 = vld [vmem:[#allocation2 + $0x88] sm:$0xff]
    %v9141 = vld [vmem:[#allocation2 + $0x90] sm:$0xff]
    %v9142 = vld [vmem:[#allocation2 + $0x98] sm:$0xff]
    %v9143 = vld [vmem:[#allocation2 + $0xa0] sm:$0xff]
    %v9144 = vld [vmem:[#allocation2 + $0xa8] sm:$0xff]
    %v9145 = vld [vmem:[#allocation2 + $0xb0] sm:$0xff]
    %v9146 = vld [vmem:[#allocation2 + $0xb8] sm:$0xff]
    %s9147 = scalar_lea.vmem %s2, 92
    %v9148 = vld [vmem:[%s9147] sm:$0xf]
    %v9150 = vsel %vm269, %v9111, 0
    %v9153 = vsel %vm269, %v9112, 0
    %v9156 = vsel %vm269, %v9113, 0
    %v9159 = vsel %vm269, %v9114, 0
    %v9162 = vsel %vm269, %v9115, 0
    %v9165 = vsel %vm269, %v9116, 0
    %v9168 = vsel %vm269, %v9117, 0
    %v9171 = vsel %vm269, %v9118, 0
    %v9174 = vsel %vm269, %v9119, 0
    %v9177 = vsel %vm269, %v9120, 0
    %v9180 = vsel %vm269, %v9121, 0
    %v9183 = vsel %vm269, %v9122, 0
    %v9186 = vsel %vm306, %v9148, 0
    %9188 = vmatpush.bf16.msra.mxu0 0
    %9189 = vmatpush.bf16.msra.mxu0 0
    %9190 = vmatpush.bf16.msra.mxu0 0
    %9191 = vmatpush.bf16.msra.mxu0 0
    %9192 = vmatpush.bf16.msra.mxu0 0
    %9193 = vmatpush.bf16.msra.mxu0 0
    %9194 = vmatpush.bf16.msra.mxu0 0
    %9195 = vmatpush.bf16.msra.mxu0 %v9186
    %9196 = vmatmul.bf16.gmra.mxu0 %v9150
    %v9197 = vpop.f32.mrf.mxu0
    %v9198 = vadd.f32 0.0, %v9197
    %v9199 = vpop.f32.mrf.mxu0
    %v9200 = vadd.f32 0.0, %v9199
    %9201 = vmatmul.bf16.gmra.mxu0 %v9153
    %v9202 = vpop.f32.mrf.mxu0
    %v9203 = vadd.f32 0.0, %v9202
    %v9204 = vpop.f32.mrf.mxu0
    %v9205 = vadd.f32 0.0, %v9204
    %9206 = vmatmul.bf16.gmra.mxu0 %v9156
    %v9207 = vpop.f32.mrf.mxu0
    %v9208 = vadd.f32 0.0, %v9207
    %v9209 = vpop.f32.mrf.mxu0
    %v9210 = vadd.f32 0.0, %v9209
    %9211 = vmatmul.bf16.gmra.mxu0 %v9159
    %v9212 = vpop.f32.mrf.mxu0
    %v9213 = vadd.f32 0.0, %v9212
    %v9214 = vpop.f32.mrf.mxu0
    %v9215 = vadd.f32 0.0, %v9214
    %9216 = vmatmul.bf16.gmra.mxu0 %v9162
    %v9217 = vpop.f32.mrf.mxu0
    %v9218 = vadd.f32 0.0, %v9217
    %v9219 = vpop.f32.mrf.mxu0
    %v9220 = vadd.f32 0.0, %v9219
    %9221 = vmatmul.bf16.gmra.mxu0 %v9165
    %v9222 = vpop.f32.mrf.mxu0
    %v9223 = vadd.f32 0.0, %v9222
    %v9224 = vpop.f32.mrf.mxu0
    %v9225 = vadd.f32 0.0, %v9224
    %9226 = vmatmul.bf16.gmra.mxu0 %v9168
    %v9227 = vpop.f32.mrf.mxu0
    %v9228 = vadd.f32 0.0, %v9227
    %v9229 = vpop.f32.mrf.mxu0
    %v9230 = vadd.f32 0.0, %v9229
    %9231 = vmatmul.bf16.gmra.mxu0 %v9171
    %v9232 = vpop.f32.mrf.mxu0
    %v9233 = vadd.f32 0.0, %v9232
    %v9234 = vpop.f32.mrf.mxu0
    %v9235 = vadd.f32 0.0, %v9234
    %9236 = vmatmul.bf16.gmra.mxu0 %v9174
    %v9237 = vpop.f32.mrf.mxu0
    %v9238 = vadd.f32 0.0, %v9237
    %v9239 = vpop.f32.mrf.mxu0
    %v9240 = vadd.f32 0.0, %v9239
    %9241 = vmatmul.bf16.gmra.mxu0 %v9177
    %v9242 = vpop.f32.mrf.mxu0
    %v9243 = vadd.f32 0.0, %v9242
    %v9244 = vpop.f32.mrf.mxu0
    %v9245 = vadd.f32 0.0, %v9244
    %9246 = vmatmul.bf16.gmra.mxu0 %v9180
    %v9247 = vpop.f32.mrf.mxu0
    %v9248 = vadd.f32 0.0, %v9247
    %v9249 = vpop.f32.mrf.mxu0
    %v9250 = vadd.f32 0.0, %v9249
    %9251 = vmatmul.bf16.gmra.mxu0 %v9183
    %v9252 = vpop.f32.mrf.mxu0
    %v9253 = vadd.f32 0.0, %v9252
    %v9254 = vpop.f32.mrf.mxu0
    %v9255 = vadd.f32 0.0, %v9254
    %9256 = vdwg.mxu0
    %v9257 = vadd.f32 %v9123, %v9198
    %v9258 = vadd.f32 %v9124, %v9200
    %v9259 = vadd.f32 %v9125, %v9203
    %v9260 = vadd.f32 %v9126, %v9205
    %v9261 = vadd.f32 %v9127, %v9208
    %v9262 = vadd.f32 %v9128, %v9210
    %v9263 = vadd.f32 %v9129, %v9213
    %v9264 = vadd.f32 %v9130, %v9215
    %v9265 = vadd.f32 %v9131, %v9218
    %v9266 = vadd.f32 %v9132, %v9220
    %v9267 = vadd.f32 %v9133, %v9223
    %v9268 = vadd.f32 %v9134, %v9225
    %v9269 = vadd.f32 %v9135, %v9228
    %v9270 = vadd.f32 %v9136, %v9230
    %v9271 = vadd.f32 %v9137, %v9233
    %v9272 = vadd.f32 %v9138, %v9235
    %v9273 = vadd.f32 %v9139, %v9238
    %v9274 = vadd.f32 %v9140, %v9240
    %v9275 = vadd.f32 %v9141, %v9243
    %v9276 = vadd.f32 %v9142, %v9245
    %v9277 = vadd.f32 %v9143, %v9248
    %v9278 = vadd.f32 %v9144, %v9250
    %v9279 = vadd.f32 %v9145, %v9253
    %v9280 = vadd.f32 %v9146, %v9255
    %9281 = vst [vmem:[#allocation2] sm:$0xff] %v9257
    %9282 = vst [vmem:[#allocation2 + $0x8] sm:$0xff] %v9258
    %9283 = vst [vmem:[#allocation2 + $0x10] sm:$0xff] %v9259
    %9284 = vst [vmem:[#allocation2 + $0x18] sm:$0xff] %v9260
    %9285 = vst [vmem:[#allocation2 + $0x20] sm:$0xff] %v9261
    %9286 = vst [vmem:[#allocation2 + $0x28] sm:$0xff] %v9262
    %9287 = vst [vmem:[#allocation2 + $0x30] sm:$0xff] %v9263
    %9288 = vst [vmem:[#allocation2 + $0x38] sm:$0xff] %v9264
    %9289 = vst [vmem:[#allocation2 + $0x40] sm:$0xff] %v9265
    %9290 = vst [vmem:[#allocation2 + $0x48] sm:$0xff] %v9266
    %9291 = vst [vmem:[#allocation2 + $0x50] sm:$0xff] %v9267
    %9292 = vst [vmem:[#allocation2 + $0x58] sm:$0xff] %v9268
    %9293 = vst [vmem:[#allocation2 + $0x60] sm:$0xff] %v9269
    %9294 = vst [vmem:[#allocation2 + $0x68] sm:$0xff] %v9270
    %9295 = vst [vmem:[#allocation2 + $0x70] sm:$0xff] %v9271
    %9296 = vst [vmem:[#allocation2 + $0x78] sm:$0xff] %v9272
    %9297 = vst [vmem:[#allocation2 + $0x80] sm:$0xff] %v9273
    %9298 = vst [vmem:[#allocation2 + $0x88] sm:$0xff] %v9274
    %9299 = vst [vmem:[#allocation2 + $0x90] sm:$0xff] %v9275
    %9300 = vst [vmem:[#allocation2 + $0x98] sm:$0xff] %v9276
    %9301 = vst [vmem:[#allocation2 + $0xa0] sm:$0xff] %v9277
    %9302 = vst [vmem:[#allocation2 + $0xa8] sm:$0xff] %v9278
    %9303 = vst [vmem:[#allocation2 + $0xb0] sm:$0xff] %v9279
    %9304 = vst [vmem:[#allocation2 + $0xb8] sm:$0xff] %v9280
    %v9305 = vld [vmem:[%s1] sm:$0xff]
    %v9306 = vld [vmem:[%s1 + $0x8] sm:$0xff]
    %v9307 = vld [vmem:[%s1 + $0x10] sm:$0xff]
    %v9308 = vld [vmem:[%s1 + $0x18] sm:$0xff]
    %v9309 = vld [vmem:[%s1 + $0x20] sm:$0xff]
    %v9310 = vld [vmem:[%s1 + $0x28] sm:$0xff]
    %v9311 = vld [vmem:[%s1 + $0x30] sm:$0xff]
    %v9312 = vld [vmem:[%s1 + $0x38] sm:$0xff]
    %v9313 = vld [vmem:[%s1 + $0x40] sm:$0xff]
    %v9314 = vld [vmem:[%s1 + $0x48] sm:$0xff]
    %v9315 = vld [vmem:[%s1 + $0x50] sm:$0xff]
    %v9316 = vld [vmem:[%s1 + $0x58] sm:$0xff]
    %v9317 = vld [vmem:[%s1 + $0x60] sm:$0xff]
    %v9318 = vld [vmem:[%s1 + $0x68] sm:$0xff]
    %v9319 = vld [vmem:[%s1 + $0x70] sm:$0xff]
    %v9320 = vld [vmem:[%s1 + $0x78] sm:$0xff]
    %v9321 = vld [vmem:[%s1 + $0x80] sm:$0xff]
    %v9322 = vld [vmem:[%s1 + $0x88] sm:$0xff]
    %v9323 = vld [vmem:[%s1 + $0x90] sm:$0xff]
    %v9324 = vld [vmem:[%s1 + $0x98] sm:$0xff]
    %v9325 = vld [vmem:[%s1 + $0xa0] sm:$0xff]
    %v9326 = vld [vmem:[%s1 + $0xa8] sm:$0xff]
    %v9327 = vld [vmem:[%s1 + $0xb0] sm:$0xff]
    %v9328 = vld [vmem:[%s1 + $0xb8] sm:$0xff]
    %v9329 = vld [vmem:[%s0] sm:$0xff]
    %v9330 = vld [vmem:[%s0 + $0x8] sm:$0xff]
    %v9331 = vld [vmem:[%s0 + $0x10] sm:$0xff]
    %v9332 = vld [vmem:[%s0 + $0x18] sm:$0xff]
    %v9333 = vld [vmem:[%s0 + $0x20] sm:$0xff]
    %v9334 = vld [vmem:[%s0 + $0x28] sm:$0xff]
    %v9335 = vld [vmem:[%s0 + $0x30] sm:$0xff]
    %v9336 = vld [vmem:[%s0 + $0x38] sm:$0xff]
    %v9337 = vld [vmem:[%s0 + $0x40] sm:$0xff]
    %v9338 = vld [vmem:[%s0 + $0x48] sm:$0xff]
    %v9339 = vld [vmem:[%s0 + $0x50] sm:$0xff]
    %v9340 = vld [vmem:[%s0 + $0x58] sm:$0xff]
    %v9341 = vld [vmem:[%s0 + $0x60] sm:$0xff]
    %v9342 = vld [vmem:[%s0 + $0x68] sm:$0xff]
    %v9343 = vld [vmem:[%s0 + $0x70] sm:$0xff]
    %v9344 = vld [vmem:[%s0 + $0x78] sm:$0xff]
    %v9345 = vld [vmem:[%s0 + $0x80] sm:$0xff]
    %v9346 = vld [vmem:[%s0 + $0x88] sm:$0xff]
    %v9347 = vld [vmem:[%s0 + $0x90] sm:$0xff]
    %v9348 = vld [vmem:[%s0 + $0x98] sm:$0xff]
    %v9349 = vld [vmem:[%s0 + $0xa0] sm:$0xff]
    %v9350 = vld [vmem:[%s0 + $0xa8] sm:$0xff]
    %v9351 = vld [vmem:[%s0 + $0xb0] sm:$0xff]
    %v9352 = vld [vmem:[%s0 + $0xb8] sm:$0xff]
    %9354 = vset.pattern.permute.xlu0 24
    %9355 = vperm.xlu0 %9354, %v9329
    %v9356 = vpop.permute.xlu0 %9355
    %9359 = vset.pattern.permute.xlu0 24
    %9360 = vperm.xlu0 %9359, %v9330
    %v9361 = vpop.permute.xlu0 %9360
    %9364 = vset.pattern.permute.xlu0 24
    %9365 = vperm.xlu0 %9364, %v9331
    %v9366 = vpop.permute.xlu0 %9365
    %9369 = vset.pattern.permute.xlu0 24
    %9370 = vperm.xlu0 %9369, %v9332
    %v9371 = vpop.permute.xlu0 %9370
    %9374 = vset.pattern.permute.xlu0 24
    %9375 = vperm.xlu0 %9374, %v9333
    %v9376 = vpop.permute.xlu0 %9375
    %9379 = vset.pattern.permute.xlu0 24
    %9380 = vperm.xlu0 %9379, %v9334
    %v9381 = vpop.permute.xlu0 %9380
    %9384 = vset.pattern.permute.xlu0 24
    %9385 = vperm.xlu0 %9384, %v9335
    %v9386 = vpop.permute.xlu0 %9385
    %9389 = vset.pattern.permute.xlu0 24
    %9390 = vperm.xlu0 %9389, %v9336
    %v9391 = vpop.permute.xlu0 %9390
    %9394 = vset.pattern.permute.xlu0 24
    %9395 = vperm.xlu0 %9394, %v9337
    %v9396 = vpop.permute.xlu0 %9395
    %9399 = vset.pattern.permute.xlu0 24
    %9400 = vperm.xlu0 %9399, %v9338
    %v9401 = vpop.permute.xlu0 %9400
    %9404 = vset.pattern.permute.xlu0 24
    %9405 = vperm.xlu0 %9404, %v9339
    %v9406 = vpop.permute.xlu0 %9405
    %9409 = vset.pattern.permute.xlu0 24
    %9410 = vperm.xlu0 %9409, %v9340
    %v9411 = vpop.permute.xlu0 %9410
    %9414 = vset.pattern.permute.xlu0 24
    %9415 = vperm.xlu0 %9414, %v9341
    %v9416 = vpop.permute.xlu0 %9415
    %9419 = vset.pattern.permute.xlu0 24
    %9420 = vperm.xlu0 %9419, %v9342
    %v9421 = vpop.permute.xlu0 %9420
    %9424 = vset.pattern.permute.xlu0 24
    %9425 = vperm.xlu0 %9424, %v9343
    %v9426 = vpop.permute.xlu0 %9425
    %9429 = vset.pattern.permute.xlu0 24
    %9430 = vperm.xlu0 %9429, %v9344
    %v9431 = vpop.permute.xlu0 %9430
    %9434 = vset.pattern.permute.xlu0 24
    %9435 = vperm.xlu0 %9434, %v9345
    %v9436 = vpop.permute.xlu0 %9435
    %9439 = vset.pattern.permute.xlu0 24
    %9440 = vperm.xlu0 %9439, %v9346
    %v9441 = vpop.permute.xlu0 %9440
    %9444 = vset.pattern.permute.xlu0 24
    %9445 = vperm.xlu0 %9444, %v9347
    %v9446 = vpop.permute.xlu0 %9445
    %9449 = vset.pattern.permute.xlu0 24
    %9450 = vperm.xlu0 %9449, %v9348
    %v9451 = vpop.permute.xlu0 %9450
    %9454 = vset.pattern.permute.xlu0 24
    %9455 = vperm.xlu0 %9454, %v9349
    %v9456 = vpop.permute.xlu0 %9455
    %9459 = vset.pattern.permute.xlu0 24
    %9460 = vperm.xlu0 %9459, %v9350
    %v9461 = vpop.permute.xlu0 %9460
    %9464 = vset.pattern.permute.xlu0 24
    %9465 = vperm.xlu0 %9464, %v9351
    %v9466 = vpop.permute.xlu0 %9465
    %9469 = vset.pattern.permute.xlu0 24
    %9470 = vperm.xlu0 %9469, %v9352
    %v9471 = vpop.permute.xlu0 %9470
    %v9473 = vmul.f32 %v9305, %v9356
    %v9474 = vmul.f32 %v9306, %v9361
    %v9475 = vmul.f32 %v9307, %v9366
    %v9476 = vmul.f32 %v9308, %v9371
    %v9477 = vmul.f32 %v9309, %v9376
    %v9478 = vmul.f32 %v9310, %v9381
    %v9479 = vmul.f32 %v9311, %v9386
    %v9480 = vmul.f32 %v9312, %v9391
    %v9481 = vmul.f32 %v9313, %v9396
    %v9482 = vmul.f32 %v9314, %v9401
    %v9483 = vmul.f32 %v9315, %v9406
    %v9484 = vmul.f32 %v9316, %v9411
    %v9485 = vmul.f32 %v9317, %v9416
    %v9486 = vmul.f32 %v9318, %v9421
    %v9487 = vmul.f32 %v9319, %v9426
    %v9488 = vmul.f32 %v9320, %v9431
    %v9489 = vmul.f32 %v9321, %v9436
    %v9490 = vmul.f32 %v9322, %v9441
    %v9491 = vmul.f32 %v9323, %v9446
    %v9492 = vmul.f32 %v9324, %v9451
    %v9493 = vmul.f32 %v9325, %v9456
    %v9494 = vmul.f32 %v9326, %v9461
    %v9495 = vmul.f32 %v9327, %v9466
    %v9496 = vmul.f32 %v9328, %v9471
    %v9497 = vpack.c.bf16 %v9474, %v9473
    %v9498 = vpack.c.bf16 %v9476, %v9475
    %v9499 = vpack.c.bf16 %v9478, %v9477
    %v9500 = vpack.c.bf16 %v9480, %v9479
    %v9501 = vpack.c.bf16 %v9482, %v9481
    %v9502 = vpack.c.bf16 %v9484, %v9483
    %v9503 = vpack.c.bf16 %v9486, %v9485
    %v9504 = vpack.c.bf16 %v9488, %v9487
    %v9505 = vpack.c.bf16 %v9490, %v9489
    %v9506 = vpack.c.bf16 %v9492, %v9491
    %v9507 = vpack.c.bf16 %v9494, %v9493
    %v9508 = vpack.c.bf16 %v9496, %v9495
    %v9509 = vld [vmem:[#allocation2] sm:$0xff]
    %v9510 = vld [vmem:[#allocation2 + $0x8] sm:$0xff]
    %v9511 = vld [vmem:[#allocation2 + $0x10] sm:$0xff]
    %v9512 = vld [vmem:[#allocation2 + $0x18] sm:$0xff]
    %v9513 = vld [vmem:[#allocation2 + $0x20] sm:$0xff]
    %v9514 = vld [vmem:[#allocation2 + $0x28] sm:$0xff]
    %v9515 = vld [vmem:[#allocation2 + $0x30] sm:$0xff]
    %v9516 = vld [vmem:[#allocation2 + $0x38] sm:$0xff]
    %v9517 = vld [vmem:[#allocation2 + $0x40] sm:$0xff]
    %v9518 = vld [vmem:[#allocation2 + $0x48] sm:$0xff]
    %v9519 = vld [vmem:[#allocation2 + $0x50] sm:$0xff]
    %v9520 = vld [vmem:[#allocation2 + $0x58] sm:$0xff]
    %v9521 = vld [vmem:[#allocation2 + $0x60] sm:$0xff]
    %v9522 = vld [vmem:[#allocation2 + $0x68] sm:$0xff]
    %v9523 = vld [vmem:[#allocation2 + $0x70] sm:$0xff]
    %v9524 = vld [vmem:[#allocation2 + $0x78] sm:$0xff]
    %v9525 = vld [vmem:[#allocation2 + $0x80] sm:$0xff]
    %v9526 = vld [vmem:[#allocation2 + $0x88] sm:$0xff]
    %v9527 = vld [vmem:[#allocation2 + $0x90] sm:$0xff]
    %v9528 = vld [vmem:[#allocation2 + $0x98] sm:$0xff]
    %v9529 = vld [vmem:[#allocation2 + $0xa0] sm:$0xff]
    %v9530 = vld [vmem:[#allocation2 + $0xa8] sm:$0xff]
    %v9531 = vld [vmem:[#allocation2 + $0xb0] sm:$0xff]
    %v9532 = vld [vmem:[#allocation2 + $0xb8] sm:$0xff]
    %s9533 = scalar_lea.vmem %s2, 96
    %v9534 = vld [vmem:[%s9533] sm:$0xf]
    %v9536 = vsel %vm269, %v9497, 0
    %v9539 = vsel %vm269, %v9498, 0
    %v9542 = vsel %vm269, %v9499, 0
    %v9545 = vsel %vm269, %v9500, 0
    %v9548 = vsel %vm269, %v9501, 0
    %v9551 = vsel %vm269, %v9502, 0
    %v9554 = vsel %vm269, %v9503, 0
    %v9557 = vsel %vm269, %v9504, 0
    %v9560 = vsel %vm269, %v9505, 0
    %v9563 = vsel %vm269, %v9506, 0
    %v9566 = vsel %vm269, %v9507, 0
    %v9569 = vsel %vm269, %v9508, 0
    %v9572 = vsel %vm306, %v9534, 0
    %9574 = vmatpush.bf16.msra.mxu0 0
    %9575 = vmatpush.bf16.msra.mxu0 0
    %9576 = vmatpush.bf16.msra.mxu0 0
    %9577 = vmatpush.bf16.msra.mxu0 0
    %9578 = vmatpush.bf16.msra.mxu0 0
    %9579 = vmatpush.bf16.msra.mxu0 0
    %9580 = vmatpush.bf16.msra.mxu0 0
    %9581 = vmatpush.bf16.msra.mxu0 %v9572
    %9582 = vmatmul.bf16.gmra.mxu0 %v9536
    %v9583 = vpop.f32.mrf.mxu0
    %v9584 = vadd.f32 0.0, %v9583
    %v9585 = vpop.f32.mrf.mxu0
    %v9586 = vadd.f32 0.0, %v9585
    %9587 = vmatmul.bf16.gmra.mxu0 %v9539
    %v9588 = vpop.f32.mrf.mxu0
    %v9589 = vadd.f32 0.0, %v9588
    %v9590 = vpop.f32.mrf.mxu0
    %v9591 = vadd.f32 0.0, %v9590
    %9592 = vmatmul.bf16.gmra.mxu0 %v9542
    %v9593 = vpop.f32.mrf.mxu0
    %v9594 = vadd.f32 0.0, %v9593
    %v9595 = vpop.f32.mrf.mxu0
    %v9596 = vadd.f32 0.0, %v9595
    %9597 = vmatmul.bf16.gmra.mxu0 %v9545
    %v9598 = vpop.f32.mrf.mxu0
    %v9599 = vadd.f32 0.0, %v9598
    %v9600 = vpop.f32.mrf.mxu0
    %v9601 = vadd.f32 0.0, %v9600
    %9602 = vmatmul.bf16.gmra.mxu0 %v9548
    %v9603 = vpop.f32.mrf.mxu0
    %v9604 = vadd.f32 0.0, %v9603
    %v9605 = vpop.f32.mrf.mxu0
    %v9606 = vadd.f32 0.0, %v9605
    %9607 = vmatmul.bf16.gmra.mxu0 %v9551
    %v9608 = vpop.f32.mrf.mxu0
    %v9609 = vadd.f32 0.0, %v9608
    %v9610 = vpop.f32.mrf.mxu0
    %v9611 = vadd.f32 0.0, %v9610
    %9612 = vmatmul.bf16.gmra.mxu0 %v9554
    %v9613 = vpop.f32.mrf.mxu0
    %v9614 = vadd.f32 0.0, %v9613
    %v9615 = vpop.f32.mrf.mxu0
    %v9616 = vadd.f32 0.0, %v9615
    %9617 = vmatmul.bf16.gmra.mxu0 %v9557
    %v9618 = vpop.f32.mrf.mxu0
    %v9619 = vadd.f32 0.0, %v9618
    %v9620 = vpop.f32.mrf.mxu0
    %v9621 = vadd.f32 0.0, %v9620
    %9622 = vmatmul.bf16.gmra.mxu0 %v9560
    %v9623 = vpop.f32.mrf.mxu0
    %v9624 = vadd.f32 0.0, %v9623
    %v9625 = vpop.f32.mrf.mxu0
    %v9626 = vadd.f32 0.0, %v9625
    %9627 = vmatmul.bf16.gmra.mxu0 %v9563
    %v9628 = vpop.f32.mrf.mxu0
    %v9629 = vadd.f32 0.0, %v9628
    %v9630 = vpop.f32.mrf.mxu0
    %v9631 = vadd.f32 0.0, %v9630
    %9632 = vmatmul.bf16.gmra.mxu0 %v9566
    %v9633 = vpop.f32.mrf.mxu0
    %v9634 = vadd.f32 0.0, %v9633
    %v9635 = vpop.f32.mrf.mxu0
    %v9636 = vadd.f32 0.0, %v9635
    %9637 = vmatmul.bf16.gmra.mxu0 %v9569
    %v9638 = vpop.f32.mrf.mxu0
    %v9639 = vadd.f32 0.0, %v9638
    %v9640 = vpop.f32.mrf.mxu0
    %v9641 = vadd.f32 0.0, %v9640
    %9642 = vdwg.mxu0
    %v9643 = vadd.f32 %v9509, %v9584
    %v9644 = vadd.f32 %v9510, %v9586
    %v9645 = vadd.f32 %v9511, %v9589
    %v9646 = vadd.f32 %v9512, %v9591
    %v9647 = vadd.f32 %v9513, %v9594
    %v9648 = vadd.f32 %v9514, %v9596
    %v9649 = vadd.f32 %v9515, %v9599
    %v9650 = vadd.f32 %v9516, %v9601
    %v9651 = vadd.f32 %v9517, %v9604
    %v9652 = vadd.f32 %v9518, %v9606
    %v9653 = vadd.f32 %v9519, %v9609
    %v9654 = vadd.f32 %v9520, %v9611
    %v9655 = vadd.f32 %v9521, %v9614
    %v9656 = vadd.f32 %v9522, %v9616
    %v9657 = vadd.f32 %v9523, %v9619
    %v9658 = vadd.f32 %v9524, %v9621
    %v9659 = vadd.f32 %v9525, %v9624
    %v9660 = vadd.f32 %v9526, %v9626
    %v9661 = vadd.f32 %v9527, %v9629
    %v9662 = vadd.f32 %v9528, %v9631
    %v9663 = vadd.f32 %v9529, %v9634
    %v9664 = vadd.f32 %v9530, %v9636
    %v9665 = vadd.f32 %v9531, %v9639
    %v9666 = vadd.f32 %v9532, %v9641
    %9667 = vst [vmem:[#allocation2] sm:$0xff] %v9643
    %9668 = vst [vmem:[#allocation2 + $0x8] sm:$0xff] %v9644
    %9669 = vst [vmem:[#allocation2 + $0x10] sm:$0xff] %v9645
    %9670 = vst [vmem:[#allocation2 + $0x18] sm:$0xff] %v9646
    %9671 = vst [vmem:[#allocation2 + $0x20] sm:$0xff] %v9647
    %9672 = vst [vmem:[#allocation2 + $0x28] sm:$0xff] %v9648
    %9673 = vst [vmem:[#allocation2 + $0x30] sm:$0xff] %v9649
    %9674 = vst [vmem:[#allocation2 + $0x38] sm:$0xff] %v9650
    %9675 = vst [vmem:[#allocation2 + $0x40] sm:$0xff] %v9651
    %9676 = vst [vmem:[#allocation2 + $0x48] sm:$0xff] %v9652
    %9677 = vst [vmem:[#allocation2 + $0x50] sm:$0xff] %v9653
    %9678 = vst [vmem:[#allocation2 + $0x58] sm:$0xff] %v9654
    %9679 = vst [vmem:[#allocation2 + $0x60] sm:$0xff] %v9655
    %9680 = vst [vmem:[#allocation2 + $0x68] sm:$0xff] %v9656
    %9681 = vst [vmem:[#allocation2 + $0x70] sm:$0xff] %v9657
    %9682 = vst [vmem:[#allocation2 + $0x78] sm:$0xff] %v9658
    %9683 = vst [vmem:[#allocation2 + $0x80] sm:$0xff] %v9659
    %9684 = vst [vmem:[#allocation2 + $0x88] sm:$0xff] %v9660
    %9685 = vst [vmem:[#allocation2 + $0x90] sm:$0xff] %v9661
    %9686 = vst [vmem:[#allocation2 + $0x98] sm:$0xff] %v9662
    %9687 = vst [vmem:[#allocation2 + $0xa0] sm:$0xff] %v9663
    %9688 = vst [vmem:[#allocation2 + $0xa8] sm:$0xff] %v9664
    %9689 = vst [vmem:[#allocation2 + $0xb0] sm:$0xff] %v9665
    %9690 = vst [vmem:[#allocation2 + $0xb8] sm:$0xff] %v9666
    // Predicated region
    $region14: #{tpu_custom_call.1} parent=1 // pred_check
      _
    $region15: #{tpu_custom_call.1} parent=1 // pred_check_branch
      %9692 = sbr.rel (0) target = $region17
    $region16: #{tpu_custom_call.1} parent=1 // pred_region
      %9694 = vsyncadd [#allocation3], 0
      %s9695 = sshll.u32 [#allocation2], 4
      %s9696 = int_to_ptr.vmem [resolvable:$true] %s9695
      %s9697 = sshll.u32 %s3, 4
      %s9698 = int_to_ptr.hbm [resolvable:$true] %s9697
      %9703 = dma.vmem_to_hbm [thread:$0]  %s9696, 3072, %s9698, [#allocation3], 128, 128, 8
    $region17: #{tpu_custom_call.1} parent=1 // pred_fallthru
      _
    // Predicated region
    $region18: #{tpu_custom_call.1} parent=1 // pred_check
      _
    $region19: #{tpu_custom_call.1} parent=1 // pred_check_branch
      %9705 = sbr.rel (0) target = $region21
    $region20: #{tpu_custom_call.1} parent=1 // pred_region
      %9707 = dma.done [#allocation3], 3072
    $region21: #{tpu_custom_call.1} parent=1 // pred_fallthru
      _
    %9708 = vsyncpa [#allocation3], 1

</llo_original>
